<compile_context>
chip_gen: v7x
topology: tpu7x:2x2x1
jax: 0.10.0
libtpu: 0.0.40
codegen_flags: <defaults>
</compile_context>

<pallas_src>
import functools
import math

import numpy as np
import jax
import jax.numpy as jnp
from jax import lax
from jax.experimental import pallas as pl
from jax.experimental.pallas import tpu as pltpu


# 3x3 tap order matches HWIO weight flattening: t = dh*3 + dw, offset (dh-1, dw-1).
_TAPS = [(-1, -1), (-1, 0), (-1, 1),
         (0, -1), (0, 0), (0, 1),
         (1, -1), (1, 0), (1, 1)]


# ----------------------------------------------------------------------------
# Fused forward kernel (one batch element per grid step)
# ----------------------------------------------------------------------------
def _pool_fused_kernel(x_ref, w1_ref, bias1_ref, pw_ref, pbias_ref,
                       c2w_ref, c2bias_ref, o_ref, *, H, W, Cin, dim):
    HW = H * W
    mm_dt = w1_ref.dtype                     # matmul operand dtype (f32 / bf16)

    # Lane-index helpers for boundary masks, shape (1, HW); broadcast on use.
    lane = lax.broadcasted_iota(jnp.int32, (1, HW), 1)
    if (W & (W - 1)) == 0:
        wmod = jnp.bitwise_and(lane, W - 1)
    else:
        # TODO(synk): pad W to a power of two to avoid the VPU integer modulo.
        wmod = lane % W

    def shifted(v, off):
        # s[:, r] = v[:, r + off]; wrap-around lanes are masked by the caller.
        if off == 0:
            return v
        return pltpu.roll(v, (-off) % HW, 1)

    def tap(v, oh, ow):
        # One 3x3 conv tap: shift by (oh, ow) and zero out-of-image lanes.
        t = shifted(v, oh * W + ow)
        m = None
        if oh == -1:
            m = lane >= W
        elif oh == 1:
            m = lane < (HW - W)
        if ow == -1:
            mw = wmod >= 1
            m = mw if m is None else jnp.logical_and(m, mw)
        elif ow == 1:
            mw = wmod < (W - 1)
            m = mw if m is None else jnp.logical_and(m, mw)
        if m is None:
            return t
        return jnp.where(m, t, 0.0)

    def im2col(v):
        # (C, HW) -> (9*C, HW); sublane-axis concat (lane layout unchanged).
        return jnp.concatenate([tap(v, oh, ow) for oh, ow in _TAPS], axis=0)

    x = x_ref[0]                                            # (Cin, HW)

    # ---- stage 1: p1_conv1 | p2_conv1 | conv1(1x1) in ONE matmul, BN folded --
    cols = im2col(x).astype(mm_dt)                          # (9*Cin, HW)
    a = jnp.dot(w1_ref[...], cols, preferred_element_type=jnp.float32)
    a = jnp.maximum(a + bias1_ref[...], 0.0)                # (256+dim, HW)
    p1 = a[:128]                                            # relu(bn(p1_conv1))
    p2 = a[128:256]                                         # relu(bn(p2_conv1))
    rbn1 = a[256:]                                          # relu(bn1), (dim,HW)

    # ---- stage 2: corner pools = cumulative maxes (XLU rolls + iota masks) ---
    def cummax_pool(v, reverse):
        s = 1
        while s < H:                                        # along H (stride W)
            sh = s * W
            if reverse:
                r = pltpu.roll(v, (HW - sh) % HW, 1)        # r[:, i] = v[:, i+sh]
                valid = lane < (HW - sh)
            else:
                r = pltpu.roll(v, sh, 1)                    # r[:, i] = v[:, i-sh]
                valid = lane >= sh
            v = jnp.where(valid, jnp.maximum(v, r), v)
            s *= 2
        s = 1
        while s < W:                                        # along W (stride 1)
            if reverse:
                r = pltpu.roll(v, (HW - s) % HW, 1)
                valid = wmod < (W - s)
            else:
                r = pltpu.roll(v, s, 1)
                valid = wmod >= s
            v = jnp.where(valid, jnp.maximum(v, r), v)
            s *= 2
        return v

    b1 = cummax_pool(p1, reverse=True)      # LeftPool(TopPool(p1))
    b2 = cummax_pool(p2, reverse=False)     # RightPool(BottomPool(p2))

    # ---- stage 3: p_conv1 + p_bn1 over cat([b1, b2]); K-streamed per tap -----
    b12 = jnp.concatenate([b1, b2], axis=0)                 # (256, HW)
    acc = jnp.zeros((dim, HW), jnp.float32)
    for t, (oh, ow) in enumerate(_TAPS):
        acc = acc + jnp.dot(pw_ref[t], tap(b12, oh, ow).astype(mm_dt),
                            preferred_element_type=jnp.float32)
    p_bn1 = acc + pbias_ref[...]                            # (dim, HW), no relu

    # ---- stage 4/5: relu1 = relu(cat([p_bn1, bn1])); conv2 + BN + relu -------
    r = jnp.concatenate([jnp.maximum(p_bn1, 0.0), rbn1], axis=0)  # (2*dim, HW)
    cols2 = im2col(r).astype(mm_dt)                         # (18*dim, HW)
    out = jnp.dot(c2w_ref[...], cols2, preferred_element_type=jnp.float32)
    out = jnp.maximum(out + c2bias_ref[...], 0.0)           # (dim, HW)

    # Lane-dense store: last dim of the output block is H*W (multiple of 128).
    o_ref[...] = out.reshape(1, dim, HW).astype(o_ref.dtype)


# ----------------------------------------------------------------------------
# Wrapper: fold BN, pack/transpose weights, one pallas_call for the forward
# ----------------------------------------------------------------------------
def pool_forward(x_nchw, P, *, matmul_dtype=jnp.float32):
    """x_nchw: (N, Cin, H, W) NCHW.  Returns (N, dim, H, W) NCHW."""
    N, Cin, H, W = x_nchw.shape
    dim = P['c1_w'].shape[-1]
    assert Cin == dim, "module requires Cin == dim"
    HW = H * W
    NOUT1 = 256 + dim

    def foldT(w, scale):
        # HWIO (k,k,ci,co), BN scale folded -> (co, k*k*ci), column = t*ci + c
        w = (w * scale[None, None, None, :]).astype(jnp.float32)
        kh, kw, ci, co = w.shape
        return jnp.transpose(w, (3, 0, 1, 2)).reshape(co, kh * kw * ci)

    # Stage-1 packed LHS: rows [0:128]=p1_conv1, [128:256]=p2_conv1,
    # [256:256+dim]=conv1 (1x1) which only touches the centre-tap columns.
    w1 = foldT(P['p1_w'], P['p1_scale'])                       # (128, 9*Cin)
    w2 = foldT(P['p2_w'], P['p2_scale'])                       # (128, 9*Cin)
    c1 = (P['c1_w'][0, 0] * P['c1_scale'][None, :]).astype(jnp.float32)  # (ci,co)
    c1_rows = jnp.zeros((dim, 9 * Cin), jnp.float32)
    c1_rows = c1_rows.at[:, 4 * Cin:5 * Cin].set(c1.T)
    w1_all = jnp.concatenate([w1, w2, c1_rows], axis=0)        # (NOUT1, 9*Cin)
    bias1 = jnp.concatenate([P['p1_bias'], P['p2_bias'],
                             P['c1_bias']]).reshape(NOUT1, 1)

    pw = foldT(P['p_w'], P['p_scale']).reshape(dim, 9, 256)    # col = t*256 + c
    pw = jnp.transpose(pw, (1, 0, 2))                          # (9, dim, 256)
    pbias = P['p_bias'].reshape(dim, 1)

    c2w = foldT(P['c2_w'], P['c2_scale'])                      # (dim, 18*dim)
    c2bias = P['c2_bias'].reshape(dim, 1)

    mm = matmul_dtype
    w1_all, pw, c2w = w1_all.astype(mm), pw.astype(mm), c2w.astype(mm)

    x_flat = x_nchw.reshape(N, Cin, HW)
    kern = functools.partial(_pool_fused_kernel, H=H, W=W, Cin=Cin, dim=dim)
    const2 = lambda n: (0, 0)
    const3 = lambda n: (0, 0, 0)

    out = pl.pallas_call(
        kern,
        out_shape=jax.ShapeDtypeStruct((N, dim, HW), jnp.float32),
        grid=(N,),
        in_specs=[
            pl.BlockSpec((1, Cin, HW), lambda n: (n, 0, 0)),   # x
            pl.BlockSpec((NOUT1, 9 * Cin), const2),            # w1_all
            pl.BlockSpec((NOUT1, 1), const2),                  # bias1
            pl.BlockSpec((9, dim, 256), const3),               # pw
            pl.BlockSpec((dim, 1), const2),                    # pbias
            pl.BlockSpec((dim, 18 * dim), const2),             # c2w
            pl.BlockSpec((dim, 1), const2),                    # c2bias
        ],
        out_specs=pl.BlockSpec((1, dim, HW), lambda n: (n, 0, 0)),
        compiler_params=pltpu.CompilerParams(
            dimension_semantics=("parallel",)),
    )(x_flat, w1_all, bias1, pw, pbias, c2w, c2bias)

    return out.reshape(N, dim, H, W)


# ----------------------------------------------------------------------------
# Parameter construction (deterministic, matches PyTorch _initialize_weights)
# ----------------------------------------------------------------------------
def _kaiming_conv(key, k, cin, cout):
    # kaiming_normal_, mode='fan_out', nonlinearity='relu'
    std = math.sqrt(2.0 / (cout * k * k))
    return std * jax.random.normal(key, (k, k, cin, cout), jnp.float32)


def _bn_affine(c, eps=1e-5):
    gamma = jnp.ones((c,), jnp.float32)
    beta = jnp.zeros((c,), jnp.float32)
    mean = jnp.zeros((c,), jnp.float32)
    var = jnp.ones((c,), jnp.float32)
    scale = gamma / jnp.sqrt(var + eps)
    bias = beta - mean * scale
    return scale, bias


def make_params(key, dim):
    ks = jax.random.split(key, 5)
    p = {}
    p['p1_w'] = _kaiming_conv(ks[0], 3, dim, 128)
    p['p1_scale'], p['p1_bias'] = _bn_affine(128)
    p['p2_w'] = _kaiming_conv(ks[1], 3, dim, 128)
    p['p2_scale'], p['p2_bias'] = _bn_affine(128)
    p['p_w'] = _kaiming_conv(ks[2], 3, 256, dim)
    p['p_scale'], p['p_bias'] = _bn_affine(dim)
    p['c1_w'] = _kaiming_conv(ks[3], 1, dim, dim)
    p['c1_scale'], p['c1_bias'] = _bn_affine(dim)
    p['c2_w'] = _kaiming_conv(ks[4], 3, 2 * dim, dim)
    p['c2_scale'], p['c2_bias'] = _bn_affine(dim)
    return p


# ----------------------------------------------------------------------------
# Pure-JAX reference (NCHW, for correctness check)
# ----------------------------------------------------------------------------
def ref_forward(x, P):
    dn = ('NCHW', 'HWIO', 'NCHW')

    def conv(x, w):
        return lax.conv_general_dilated(x, w, (1, 1), 'SAME',
                                        dimension_numbers=dn)

    def bn(x, s, b):
        return x * s[None, :, None, None] + b[None, :, None, None]

    p1 = jax.nn.relu(bn(conv(x, P['p1_w']), P['p1_scale'], P['p1_bias']))
    p2 = jax.nn.relu(bn(conv(x, P['p2_w']), P['p2_scale'], P['p2_bias']))
    b1 = lax.cummax(lax.cummax(p1, axis=2, reverse=True), axis=3, reverse=True)
    b2 = lax.cummax(lax.cummax(p2, axis=2, reverse=False), axis=3, reverse=False)
    p_bn1 = bn(conv(jnp.concatenate([b1, b2], 1), P['p_w']),
               P['p_scale'], P['p_bias'])
    bn1 = bn(conv(x, P['c1_w']), P['c1_scale'], P['c1_bias'])
    r = jax.nn.relu(jnp.concatenate([p_bn1, bn1], 1))
    return jax.nn.relu(bn(conv(r, P['c2_w']), P['c2_scale'], P['c2_bias']))


if __name__ == "__main__":
    dim = 16
    N, H, W = 2, 16, 16

    key = jax.random.PRNGKey(0)
    kx, kp = jax.random.split(key)

    # PyTorch-style NCHW input; the kernel works in NCHW directly.
    x = jax.random.normal(kx, (N, dim, H, W), jnp.float32)
    params = make_params(kp, dim)

    out = jax.block_until_ready(pool_forward(x, params))
    assert out.shape == (N, dim, H, W)

    ref = jax.block_until_ready(ref_forward(x, params))
    np.testing.assert_allclose(np.asarray(out), np.asarray(ref),
                               rtol=5e-2, atol=5e-2)

    print("KERNEL_OK")
</pallas_src>

<mosaic_0001>
module attributes {stable_mosaic.version = 11 : i64} {
  func.func @_pool_fused_kernel(%arg0: i32, %arg1: memref<1x16x256xf32, #tpu.memory_space<vmem>>, %arg2: memref<272x144xf32, #tpu.memory_space<vmem>>, %arg3: memref<272x1xf32, #tpu.memory_space<vmem>>, %arg4: memref<9x16x256xf32, #tpu.memory_space<vmem>>, %arg5: memref<16x1xf32, #tpu.memory_space<vmem>>, %arg6: memref<16x288xf32, #tpu.memory_space<vmem>>, %arg7: memref<16x1xf32, #tpu.memory_space<vmem>>, %arg8: memref<1x16x256xf32, #tpu.memory_space<vmem>>) attributes {dimension_semantics = [#tpu.dimension_semantics<parallel>], iteration_bounds = array<i64: 2>, scalar_prefetch = 0 : i64, scratch_operands = 0 : i64, tpu.core_type = #tpu.core_type<tc>, window_params = [{transform_indices = @transform_0, window_bounds = array<i64: 1, 16, 256>}, {pipeline_mode = #tpu.pipeline_mode<synchronous>, transform_indices = @transform_1, window_bounds = array<i64: 272, 144>}, {pipeline_mode = #tpu.pipeline_mode<synchronous>, transform_indices = @transform_2, window_bounds = array<i64: 272, 1>}, {pipeline_mode = #tpu.pipeline_mode<synchronous>, transform_indices = @transform_3, window_bounds = array<i64: 9, 16, 256>}, {pipeline_mode = #tpu.pipeline_mode<synchronous>, transform_indices = @transform_4, window_bounds = array<i64: 16, 1>}, {pipeline_mode = #tpu.pipeline_mode<synchronous>, transform_indices = @transform_5, window_bounds = array<i64: 16, 288>}, {pipeline_mode = #tpu.pipeline_mode<synchronous>, transform_indices = @transform_6, window_bounds = array<i64: 16, 1>}, {transform_indices = @transform_7, window_bounds = array<i64: 1, 16, 256>}]} {
    %0 = tpu.iota {dimensions = array<i32: 1>} : vector<1x256xi32>
    %c15_i32 = arith.constant 15 : i32
    %1 = vector.broadcast %c15_i32 : i32 to vector<1x256xi32>
    %2 = arith.andi %0, %1 : vector<1x256xi32>
    %c0 = arith.constant 0 : index
    %c0_0 = arith.constant 0 : index
    %c0_1 = arith.constant 0 : index
    %3 = vector.load %arg1[%c0, %c0_0, %c0_1] : memref<1x16x256xf32, #tpu.memory_space<vmem>>, vector<1x16x256xf32>
    %4 = vector.shape_cast %3 : vector<1x16x256xf32> to vector<16x256xf32>
    %c17_i32 = arith.constant 17 : i32
    %5 = tpu.dynamic_rotate %4 by %c17_i32 dim 1 : vector<16x256xf32>, i32 -> vector<16x256xf32>
    %c16_i32 = arith.constant 16 : i32
    %6 = vector.broadcast %c16_i32 : i32 to vector<1x256xi32>
    %7 = arith.cmpi sge, %0, %6 : vector<1x256xi32>
    %c1_i32 = arith.constant 1 : i32
    %8 = vector.broadcast %c1_i32 : i32 to vector<1x256xi32>
    %9 = arith.cmpi sge, %2, %8 : vector<1x256xi32>
    %10 = arith.andi %7, %9 : vector<1x256xi1>
    %cst = arith.constant 0.000000e+00 : f32
    %11 = vector.shape_cast %10 : vector<1x256xi1> to vector<1x256xi1>
    %12 = vector.broadcast %11 : vector<1x256xi1> to vector<16x256xi1>
    %13 = vector.broadcast %cst : f32 to vector<16x256xf32>
    %14 = arith.select %12, %5, %13 : vector<16x256xi1>, vector<16x256xf32>
    %c16_i32_2 = arith.constant 16 : i32
    %15 = tpu.dynamic_rotate %4 by %c16_i32_2 dim 1 : vector<16x256xf32>, i32 -> vector<16x256xf32>
    %c16_i32_3 = arith.constant 16 : i32
    %16 = vector.broadcast %c16_i32_3 : i32 to vector<1x256xi32>
    %17 = arith.cmpi sge, %0, %16 : vector<1x256xi32>
    %cst_4 = arith.constant 0.000000e+00 : f32
    %18 = vector.shape_cast %17 : vector<1x256xi1> to vector<1x256xi1>
    %19 = vector.broadcast %18 : vector<1x256xi1> to vector<16x256xi1>
    %20 = vector.broadcast %cst_4 : f32 to vector<16x256xf32>
    %21 = arith.select %19, %15, %20 : vector<16x256xi1>, vector<16x256xf32>
    %c15_i32_5 = arith.constant 15 : i32
    %22 = tpu.dynamic_rotate %4 by %c15_i32_5 dim 1 : vector<16x256xf32>, i32 -> vector<16x256xf32>
    %c16_i32_6 = arith.constant 16 : i32
    %23 = vector.broadcast %c16_i32_6 : i32 to vector<1x256xi32>
    %24 = arith.cmpi sge, %0, %23 : vector<1x256xi32>
    %c15_i32_7 = arith.constant 15 : i32
    %25 = vector.broadcast %c15_i32_7 : i32 to vector<1x256xi32>
    %26 = arith.cmpi slt, %2, %25 : vector<1x256xi32>
    %27 = arith.andi %24, %26 : vector<1x256xi1>
    %cst_8 = arith.constant 0.000000e+00 : f32
    %28 = vector.shape_cast %27 : vector<1x256xi1> to vector<1x256xi1>
    %29 = vector.broadcast %28 : vector<1x256xi1> to vector<16x256xi1>
    %30 = vector.broadcast %cst_8 : f32 to vector<16x256xf32>
    %31 = arith.select %29, %22, %30 : vector<16x256xi1>, vector<16x256xf32>
    %c1_i32_9 = arith.constant 1 : i32
    %32 = tpu.dynamic_rotate %4 by %c1_i32_9 dim 1 : vector<16x256xf32>, i32 -> vector<16x256xf32>
    %c1_i32_10 = arith.constant 1 : i32
    %33 = vector.broadcast %c1_i32_10 : i32 to vector<1x256xi32>
    %34 = arith.cmpi sge, %2, %33 : vector<1x256xi32>
    %cst_11 = arith.constant 0.000000e+00 : f32
    %35 = vector.shape_cast %34 : vector<1x256xi1> to vector<1x256xi1>
    %36 = vector.broadcast %35 : vector<1x256xi1> to vector<16x256xi1>
    %37 = vector.broadcast %cst_11 : f32 to vector<16x256xf32>
    %38 = arith.select %36, %32, %37 : vector<16x256xi1>, vector<16x256xf32>
    %c255_i32 = arith.constant 255 : i32
    %39 = tpu.dynamic_rotate %4 by %c255_i32 dim 1 : vector<16x256xf32>, i32 -> vector<16x256xf32>
    %c15_i32_12 = arith.constant 15 : i32
    %40 = vector.broadcast %c15_i32_12 : i32 to vector<1x256xi32>
    %41 = arith.cmpi slt, %2, %40 : vector<1x256xi32>
    %cst_13 = arith.constant 0.000000e+00 : f32
    %42 = vector.shape_cast %41 : vector<1x256xi1> to vector<1x256xi1>
    %43 = vector.broadcast %42 : vector<1x256xi1> to vector<16x256xi1>
    %44 = vector.broadcast %cst_13 : f32 to vector<16x256xf32>
    %45 = arith.select %43, %39, %44 : vector<16x256xi1>, vector<16x256xf32>
    %c241_i32 = arith.constant 241 : i32
    %46 = tpu.dynamic_rotate %4 by %c241_i32 dim 1 : vector<16x256xf32>, i32 -> vector<16x256xf32>
    %c240_i32 = arith.constant 240 : i32
    %47 = vector.broadcast %c240_i32 : i32 to vector<1x256xi32>
    %48 = arith.cmpi slt, %0, %47 : vector<1x256xi32>
    %c1_i32_14 = arith.constant 1 : i32
    %49 = vector.broadcast %c1_i32_14 : i32 to vector<1x256xi32>
    %50 = arith.cmpi sge, %2, %49 : vector<1x256xi32>
    %51 = arith.andi %48, %50 : vector<1x256xi1>
    %cst_15 = arith.constant 0.000000e+00 : f32
    %52 = vector.shape_cast %51 : vector<1x256xi1> to vector<1x256xi1>
    %53 = vector.broadcast %52 : vector<1x256xi1> to vector<16x256xi1>
    %54 = vector.broadcast %cst_15 : f32 to vector<16x256xf32>
    %55 = arith.select %53, %46, %54 : vector<16x256xi1>, vector<16x256xf32>
    %c240_i32_16 = arith.constant 240 : i32
    %56 = tpu.dynamic_rotate %4 by %c240_i32_16 dim 1 : vector<16x256xf32>, i32 -> vector<16x256xf32>
    %c240_i32_17 = arith.constant 240 : i32
    %57 = vector.broadcast %c240_i32_17 : i32 to vector<1x256xi32>
    %58 = arith.cmpi slt, %0, %57 : vector<1x256xi32>
    %cst_18 = arith.constant 0.000000e+00 : f32
    %59 = vector.shape_cast %58 : vector<1x256xi1> to vector<1x256xi1>
    %60 = vector.broadcast %59 : vector<1x256xi1> to vector<16x256xi1>
    %61 = vector.broadcast %cst_18 : f32 to vector<16x256xf32>
    %62 = arith.select %60, %56, %61 : vector<16x256xi1>, vector<16x256xf32>
    %c239_i32 = arith.constant 239 : i32
    %63 = tpu.dynamic_rotate %4 by %c239_i32 dim 1 : vector<16x256xf32>, i32 -> vector<16x256xf32>
    %c240_i32_19 = arith.constant 240 : i32
    %64 = vector.broadcast %c240_i32_19 : i32 to vector<1x256xi32>
    %65 = arith.cmpi slt, %0, %64 : vector<1x256xi32>
    %c15_i32_20 = arith.constant 15 : i32
    %66 = vector.broadcast %c15_i32_20 : i32 to vector<1x256xi32>
    %67 = arith.cmpi slt, %2, %66 : vector<1x256xi32>
    %68 = arith.andi %65, %67 : vector<1x256xi1>
    %cst_21 = arith.constant 0.000000e+00 : f32
    %69 = vector.shape_cast %68 : vector<1x256xi1> to vector<1x256xi1>
    %70 = vector.broadcast %69 : vector<1x256xi1> to vector<16x256xi1>
    %71 = vector.broadcast %cst_21 : f32 to vector<16x256xf32>
    %72 = arith.select %70, %63, %71 : vector<16x256xi1>, vector<16x256xf32>
    %73 = tpu.concatenate %14, %21, %31, %38, %4, %45, %55, %62, %72 in 0 : vector<16x256xf32>, vector<16x256xf32>, vector<16x256xf32>, vector<16x256xf32>, vector<16x256xf32>, vector<16x256xf32>, vector<16x256xf32>, vector<16x256xf32>, vector<16x256xf32> -> vector<144x256xf32>
    %c0_22 = arith.constant 0 : index
    %c0_23 = arith.constant 0 : index
    %74 = vector.load %arg2[%c0_22, %c0_23] : memref<272x144xf32, #tpu.memory_space<vmem>>, vector<272x144xf32>
    %cst_24 = arith.constant dense<0.000000e+00> : vector<272x256xf32>
    %75 = tpu.matmul %74, %73, %cst_24 {dimension_numbers = #tpu.dot_dimension_numbers<[1], [0], [0], [1], [0, 0, 1, 1], [], []>} : vector<272x144xf32>, vector<144x256xf32>, vector<272x256xf32> -> vector<272x256xf32>
    %c0_25 = arith.constant 0 : index
    %c0_26 = arith.constant 0 : index
    %76 = vector.load %arg3[%c0_25, %c0_26] : memref<272x1xf32, #tpu.memory_space<vmem>>, vector<272x1xf32>
    %77 = vector.broadcast %76 : vector<272x1xf32> to vector<272x256xf32>
    %78 = arith.addf %75, %77 : vector<272x256xf32>
    %cst_27 = arith.constant 0.000000e+00 : f32
    %79 = vector.broadcast %cst_27 : f32 to vector<272x256xf32>
    %80 = arith.maximumf %78, %79 : vector<272x256xf32>
    %81 = vector.extract_strided_slice %80 {offsets = [0, 0], sizes = [128, 256], strides = [1, 1]} : vector<272x256xf32> to vector<128x256xf32>
    %82 = vector.extract_strided_slice %80 {offsets = [128, 0], sizes = [128, 256], strides = [1, 1]} : vector<272x256xf32> to vector<128x256xf32>
    %83 = vector.extract_strided_slice %80 {offsets = [256, 0], sizes = [16, 256], strides = [1, 1]} : vector<272x256xf32> to vector<16x256xf32>
    %c240_i32_28 = arith.constant 240 : i32
    %84 = tpu.dynamic_rotate %81 by %c240_i32_28 dim 1 : vector<128x256xf32>, i32 -> vector<128x256xf32>
    %c240_i32_29 = arith.constant 240 : i32
    %85 = vector.broadcast %c240_i32_29 : i32 to vector<1x256xi32>
    %86 = arith.cmpi slt, %0, %85 : vector<1x256xi32>
    %87 = arith.maximumf %81, %84 : vector<128x256xf32>
    %88 = vector.shape_cast %86 : vector<1x256xi1> to vector<1x256xi1>
    %89 = vector.broadcast %88 : vector<1x256xi1> to vector<128x256xi1>
    %90 = arith.select %89, %87, %81 : vector<128x256xi1>, vector<128x256xf32>
    %c224_i32 = arith.constant 224 : i32
    %91 = tpu.dynamic_rotate %90 by %c224_i32 dim 1 : vector<128x256xf32>, i32 -> vector<128x256xf32>
    %c224_i32_30 = arith.constant 224 : i32
    %92 = vector.broadcast %c224_i32_30 : i32 to vector<1x256xi32>
    %93 = arith.cmpi slt, %0, %92 : vector<1x256xi32>
    %94 = arith.maximumf %90, %91 : vector<128x256xf32>
    %95 = vector.shape_cast %93 : vector<1x256xi1> to vector<1x256xi1>
    %96 = vector.broadcast %95 : vector<1x256xi1> to vector<128x256xi1>
    %97 = arith.select %96, %94, %90 : vector<128x256xi1>, vector<128x256xf32>
    %c192_i32 = arith.constant 192 : i32
    %98 = tpu.dynamic_rotate %97 by %c192_i32 dim 1 : vector<128x256xf32>, i32 -> vector<128x256xf32>
    %c192_i32_31 = arith.constant 192 : i32
    %99 = vector.broadcast %c192_i32_31 : i32 to vector<1x256xi32>
    %100 = arith.cmpi slt, %0, %99 : vector<1x256xi32>
    %101 = arith.maximumf %97, %98 : vector<128x256xf32>
    %102 = vector.shape_cast %100 : vector<1x256xi1> to vector<1x256xi1>
    %103 = vector.broadcast %102 : vector<1x256xi1> to vector<128x256xi1>
    %104 = arith.select %103, %101, %97 : vector<128x256xi1>, vector<128x256xf32>
    %c128_i32 = arith.constant 128 : i32
    %105 = tpu.dynamic_rotate %104 by %c128_i32 dim 1 : vector<128x256xf32>, i32 -> vector<128x256xf32>
    %c128_i32_32 = arith.constant 128 : i32
    %106 = vector.broadcast %c128_i32_32 : i32 to vector<1x256xi32>
    %107 = arith.cmpi slt, %0, %106 : vector<1x256xi32>
    %108 = arith.maximumf %104, %105 : vector<128x256xf32>
    %109 = vector.shape_cast %107 : vector<1x256xi1> to vector<1x256xi1>
    %110 = vector.broadcast %109 : vector<1x256xi1> to vector<128x256xi1>
    %111 = arith.select %110, %108, %104 : vector<128x256xi1>, vector<128x256xf32>
    %c255_i32_33 = arith.constant 255 : i32
    %112 = tpu.dynamic_rotate %111 by %c255_i32_33 dim 1 : vector<128x256xf32>, i32 -> vector<128x256xf32>
    %c15_i32_34 = arith.constant 15 : i32
    %113 = vector.broadcast %c15_i32_34 : i32 to vector<1x256xi32>
    %114 = arith.cmpi slt, %2, %113 : vector<1x256xi32>
    %115 = arith.maximumf %111, %112 : vector<128x256xf32>
    %116 = vector.shape_cast %114 : vector<1x256xi1> to vector<1x256xi1>
    %117 = vector.broadcast %116 : vector<1x256xi1> to vector<128x256xi1>
    %118 = arith.select %117, %115, %111 : vector<128x256xi1>, vector<128x256xf32>
    %c254_i32 = arith.constant 254 : i32
    %119 = tpu.dynamic_rotate %118 by %c254_i32 dim 1 : vector<128x256xf32>, i32 -> vector<128x256xf32>
    %c14_i32 = arith.constant 14 : i32
    %120 = vector.broadcast %c14_i32 : i32 to vector<1x256xi32>
    %121 = arith.cmpi slt, %2, %120 : vector<1x256xi32>
    %122 = arith.maximumf %118, %119 : vector<128x256xf32>
    %123 = vector.shape_cast %121 : vector<1x256xi1> to vector<1x256xi1>
    %124 = vector.broadcast %123 : vector<1x256xi1> to vector<128x256xi1>
    %125 = arith.select %124, %122, %118 : vector<128x256xi1>, vector<128x256xf32>
    %c252_i32 = arith.constant 252 : i32
    %126 = tpu.dynamic_rotate %125 by %c252_i32 dim 1 : vector<128x256xf32>, i32 -> vector<128x256xf32>
    %c12_i32 = arith.constant 12 : i32
    %127 = vector.broadcast %c12_i32 : i32 to vector<1x256xi32>
    %128 = arith.cmpi slt, %2, %127 : vector<1x256xi32>
    %129 = arith.maximumf %125, %126 : vector<128x256xf32>
    %130 = vector.shape_cast %128 : vector<1x256xi1> to vector<1x256xi1>
    %131 = vector.broadcast %130 : vector<1x256xi1> to vector<128x256xi1>
    %132 = arith.select %131, %129, %125 : vector<128x256xi1>, vector<128x256xf32>
    %c248_i32 = arith.constant 248 : i32
    %133 = tpu.dynamic_rotate %132 by %c248_i32 dim 1 : vector<128x256xf32>, i32 -> vector<128x256xf32>
    %c8_i32 = arith.constant 8 : i32
    %134 = vector.broadcast %c8_i32 : i32 to vector<1x256xi32>
    %135 = arith.cmpi slt, %2, %134 : vector<1x256xi32>
    %136 = arith.maximumf %132, %133 : vector<128x256xf32>
    %137 = vector.shape_cast %135 : vector<1x256xi1> to vector<1x256xi1>
    %138 = vector.broadcast %137 : vector<1x256xi1> to vector<128x256xi1>
    %139 = arith.select %138, %136, %132 : vector<128x256xi1>, vector<128x256xf32>
    %c16_i32_35 = arith.constant 16 : i32
    %140 = tpu.dynamic_rotate %82 by %c16_i32_35 dim 1 : vector<128x256xf32>, i32 -> vector<128x256xf32>
    %c16_i32_36 = arith.constant 16 : i32
    %141 = vector.broadcast %c16_i32_36 : i32 to vector<1x256xi32>
    %142 = arith.cmpi sge, %0, %141 : vector<1x256xi32>
    %143 = arith.maximumf %82, %140 : vector<128x256xf32>
    %144 = vector.shape_cast %142 : vector<1x256xi1> to vector<1x256xi1>
    %145 = vector.broadcast %144 : vector<1x256xi1> to vector<128x256xi1>
    %146 = arith.select %145, %143, %82 : vector<128x256xi1>, vector<128x256xf32>
    %c32_i32 = arith.constant 32 : i32
    %147 = tpu.dynamic_rotate %146 by %c32_i32 dim 1 : vector<128x256xf32>, i32 -> vector<128x256xf32>
    %c32_i32_37 = arith.constant 32 : i32
    %148 = vector.broadcast %c32_i32_37 : i32 to vector<1x256xi32>
    %149 = arith.cmpi sge, %0, %148 : vector<1x256xi32>
    %150 = arith.maximumf %146, %147 : vector<128x256xf32>
    %151 = vector.shape_cast %149 : vector<1x256xi1> to vector<1x256xi1>
    %152 = vector.broadcast %151 : vector<1x256xi1> to vector<128x256xi1>
    %153 = arith.select %152, %150, %146 : vector<128x256xi1>, vector<128x256xf32>
    %c64_i32 = arith.constant 64 : i32
    %154 = tpu.dynamic_rotate %153 by %c64_i32 dim 1 : vector<128x256xf32>, i32 -> vector<128x256xf32>
    %c64_i32_38 = arith.constant 64 : i32
    %155 = vector.broadcast %c64_i32_38 : i32 to vector<1x256xi32>
    %156 = arith.cmpi sge, %0, %155 : vector<1x256xi32>
    %157 = arith.maximumf %153, %154 : vector<128x256xf32>
    %158 = vector.shape_cast %156 : vector<1x256xi1> to vector<1x256xi1>
    %159 = vector.broadcast %158 : vector<1x256xi1> to vector<128x256xi1>
    %160 = arith.select %159, %157, %153 : vector<128x256xi1>, vector<128x256xf32>
    %c128_i32_39 = arith.constant 128 : i32
    %161 = tpu.dynamic_rotate %160 by %c128_i32_39 dim 1 : vector<128x256xf32>, i32 -> vector<128x256xf32>
    %c128_i32_40 = arith.constant 128 : i32
    %162 = vector.broadcast %c128_i32_40 : i32 to vector<1x256xi32>
    %163 = arith.cmpi sge, %0, %162 : vector<1x256xi32>
    %164 = arith.maximumf %160, %161 : vector<128x256xf32>
    %165 = vector.shape_cast %163 : vector<1x256xi1> to vector<1x256xi1>
    %166 = vector.broadcast %165 : vector<1x256xi1> to vector<128x256xi1>
    %167 = arith.select %166, %164, %160 : vector<128x256xi1>, vector<128x256xf32>
    %c1_i32_41 = arith.constant 1 : i32
    %168 = tpu.dynamic_rotate %167 by %c1_i32_41 dim 1 : vector<128x256xf32>, i32 -> vector<128x256xf32>
    %c1_i32_42 = arith.constant 1 : i32
    %169 = vector.broadcast %c1_i32_42 : i32 to vector<1x256xi32>
    %170 = arith.cmpi sge, %2, %169 : vector<1x256xi32>
    %171 = arith.maximumf %167, %168 : vector<128x256xf32>
    %172 = vector.shape_cast %170 : vector<1x256xi1> to vector<1x256xi1>
    %173 = vector.broadcast %172 : vector<1x256xi1> to vector<128x256xi1>
    %174 = arith.select %173, %171, %167 : vector<128x256xi1>, vector<128x256xf32>
    %c2_i32 = arith.constant 2 : i32
    %175 = tpu.dynamic_rotate %174 by %c2_i32 dim 1 : vector<128x256xf32>, i32 -> vector<128x256xf32>
    %c2_i32_43 = arith.constant 2 : i32
    %176 = vector.broadcast %c2_i32_43 : i32 to vector<1x256xi32>
    %177 = arith.cmpi sge, %2, %176 : vector<1x256xi32>
    %178 = arith.maximumf %174, %175 : vector<128x256xf32>
    %179 = vector.shape_cast %177 : vector<1x256xi1> to vector<1x256xi1>
    %180 = vector.broadcast %179 : vector<1x256xi1> to vector<128x256xi1>
    %181 = arith.select %180, %178, %174 : vector<128x256xi1>, vector<128x256xf32>
    %c4_i32 = arith.constant 4 : i32
    %182 = tpu.dynamic_rotate %181 by %c4_i32 dim 1 : vector<128x256xf32>, i32 -> vector<128x256xf32>
    %c4_i32_44 = arith.constant 4 : i32
    %183 = vector.broadcast %c4_i32_44 : i32 to vector<1x256xi32>
    %184 = arith.cmpi sge, %2, %183 : vector<1x256xi32>
    %185 = arith.maximumf %181, %182 : vector<128x256xf32>
    %186 = vector.shape_cast %184 : vector<1x256xi1> to vector<1x256xi1>
    %187 = vector.broadcast %186 : vector<1x256xi1> to vector<128x256xi1>
    %188 = arith.select %187, %185, %181 : vector<128x256xi1>, vector<128x256xf32>
    %c8_i32_45 = arith.constant 8 : i32
    %189 = tpu.dynamic_rotate %188 by %c8_i32_45 dim 1 : vector<128x256xf32>, i32 -> vector<128x256xf32>
    %c8_i32_46 = arith.constant 8 : i32
    %190 = vector.broadcast %c8_i32_46 : i32 to vector<1x256xi32>
    %191 = arith.cmpi sge, %2, %190 : vector<1x256xi32>
    %192 = arith.maximumf %188, %189 : vector<128x256xf32>
    %193 = vector.shape_cast %191 : vector<1x256xi1> to vector<1x256xi1>
    %194 = vector.broadcast %193 : vector<1x256xi1> to vector<128x256xi1>
    %195 = arith.select %194, %192, %188 : vector<128x256xi1>, vector<128x256xf32>
    %196 = tpu.concatenate %139, %195 in 0 : vector<128x256xf32>, vector<128x256xf32> -> vector<256x256xf32>
    %cst_47 = arith.constant 0.000000e+00 : f32
    %197 = vector.broadcast %cst_47 : f32 to vector<16x256xf32>
    %c0_48 = arith.constant 0 : index
    %c0_49 = arith.constant 0 : index
    %c0_50 = arith.constant 0 : index
    %198 = vector.load %arg4[%c0_48, %c0_49, %c0_50] : memref<9x16x256xf32, #tpu.memory_space<vmem>>, vector<1x16x256xf32>
    %199 = vector.shape_cast %198 : vector<1x16x256xf32> to vector<16x256xf32>
    %c17_i32_51 = arith.constant 17 : i32
    %200 = tpu.dynamic_rotate %196 by %c17_i32_51 dim 1 : vector<256x256xf32>, i32 -> vector<256x256xf32>
    %c16_i32_52 = arith.constant 16 : i32
    %201 = vector.broadcast %c16_i32_52 : i32 to vector<1x256xi32>
    %202 = arith.cmpi sge, %0, %201 : vector<1x256xi32>
    %c1_i32_53 = arith.constant 1 : i32
    %203 = vector.broadcast %c1_i32_53 : i32 to vector<1x256xi32>
    %204 = arith.cmpi sge, %2, %203 : vector<1x256xi32>
    %205 = arith.andi %202, %204 : vector<1x256xi1>
    %cst_54 = arith.constant 0.000000e+00 : f32
    %206 = vector.shape_cast %205 : vector<1x256xi1> to vector<1x256xi1>
    %207 = vector.broadcast %206 : vector<1x256xi1> to vector<256x256xi1>
    %208 = vector.broadcast %cst_54 : f32 to vector<256x256xf32>
    %209 = arith.select %207, %200, %208 : vector<256x256xi1>, vector<256x256xf32>
    %cst_55 = arith.constant dense<0.000000e+00> : vector<16x256xf32>
    %210 = tpu.matmul %199, %209, %cst_55 {dimension_numbers = #tpu.dot_dimension_numbers<[1], [0], [0], [1], [0, 0, 1, 1], [], []>} : vector<16x256xf32>, vector<256x256xf32>, vector<16x256xf32> -> vector<16x256xf32>
    %211 = arith.addf %197, %210 : vector<16x256xf32>
    %c1 = arith.constant 1 : index
    %c0_56 = arith.constant 0 : index
    %c0_57 = arith.constant 0 : index
    %212 = vector.load %arg4[%c1, %c0_56, %c0_57] : memref<9x16x256xf32, #tpu.memory_space<vmem>>, vector<1x16x256xf32>
    %213 = vector.shape_cast %212 : vector<1x16x256xf32> to vector<16x256xf32>
    %c16_i32_58 = arith.constant 16 : i32
    %214 = tpu.dynamic_rotate %196 by %c16_i32_58 dim 1 : vector<256x256xf32>, i32 -> vector<256x256xf32>
    %c16_i32_59 = arith.constant 16 : i32
    %215 = vector.broadcast %c16_i32_59 : i32 to vector<1x256xi32>
    %216 = arith.cmpi sge, %0, %215 : vector<1x256xi32>
    %cst_60 = arith.constant 0.000000e+00 : f32
    %217 = vector.shape_cast %216 : vector<1x256xi1> to vector<1x256xi1>
    %218 = vector.broadcast %217 : vector<1x256xi1> to vector<256x256xi1>
    %219 = vector.broadcast %cst_60 : f32 to vector<256x256xf32>
    %220 = arith.select %218, %214, %219 : vector<256x256xi1>, vector<256x256xf32>
    %cst_61 = arith.constant dense<0.000000e+00> : vector<16x256xf32>
    %221 = tpu.matmul %213, %220, %cst_61 {dimension_numbers = #tpu.dot_dimension_numbers<[1], [0], [0], [1], [0, 0, 1, 1], [], []>} : vector<16x256xf32>, vector<256x256xf32>, vector<16x256xf32> -> vector<16x256xf32>
    %222 = arith.addf %211, %221 : vector<16x256xf32>
    %c2 = arith.constant 2 : index
    %c0_62 = arith.constant 0 : index
    %c0_63 = arith.constant 0 : index
    %223 = vector.load %arg4[%c2, %c0_62, %c0_63] : memref<9x16x256xf32, #tpu.memory_space<vmem>>, vector<1x16x256xf32>
    %224 = vector.shape_cast %223 : vector<1x16x256xf32> to vector<16x256xf32>
    %c15_i32_64 = arith.constant 15 : i32
    %225 = tpu.dynamic_rotate %196 by %c15_i32_64 dim 1 : vector<256x256xf32>, i32 -> vector<256x256xf32>
    %c16_i32_65 = arith.constant 16 : i32
    %226 = vector.broadcast %c16_i32_65 : i32 to vector<1x256xi32>
    %227 = arith.cmpi sge, %0, %226 : vector<1x256xi32>
    %c15_i32_66 = arith.constant 15 : i32
    %228 = vector.broadcast %c15_i32_66 : i32 to vector<1x256xi32>
    %229 = arith.cmpi slt, %2, %228 : vector<1x256xi32>
    %230 = arith.andi %227, %229 : vector<1x256xi1>
    %cst_67 = arith.constant 0.000000e+00 : f32
    %231 = vector.shape_cast %230 : vector<1x256xi1> to vector<1x256xi1>
    %232 = vector.broadcast %231 : vector<1x256xi1> to vector<256x256xi1>
    %233 = vector.broadcast %cst_67 : f32 to vector<256x256xf32>
    %234 = arith.select %232, %225, %233 : vector<256x256xi1>, vector<256x256xf32>
    %cst_68 = arith.constant dense<0.000000e+00> : vector<16x256xf32>
    %235 = tpu.matmul %224, %234, %cst_68 {dimension_numbers = #tpu.dot_dimension_numbers<[1], [0], [0], [1], [0, 0, 1, 1], [], []>} : vector<16x256xf32>, vector<256x256xf32>, vector<16x256xf32> -> vector<16x256xf32>
    %236 = arith.addf %222, %235 : vector<16x256xf32>
    %c3 = arith.constant 3 : index
    %c0_69 = arith.constant 0 : index
    %c0_70 = arith.constant 0 : index
    %237 = vector.load %arg4[%c3, %c0_69, %c0_70] : memref<9x16x256xf32, #tpu.memory_space<vmem>>, vector<1x16x256xf32>
    %238 = vector.shape_cast %237 : vector<1x16x256xf32> to vector<16x256xf32>
    %c1_i32_71 = arith.constant 1 : i32
    %239 = tpu.dynamic_rotate %196 by %c1_i32_71 dim 1 : vector<256x256xf32>, i32 -> vector<256x256xf32>
    %c1_i32_72 = arith.constant 1 : i32
    %240 = vector.broadcast %c1_i32_72 : i32 to vector<1x256xi32>
    %241 = arith.cmpi sge, %2, %240 : vector<1x256xi32>
    %cst_73 = arith.constant 0.000000e+00 : f32
    %242 = vector.shape_cast %241 : vector<1x256xi1> to vector<1x256xi1>
    %243 = vector.broadcast %242 : vector<1x256xi1> to vector<256x256xi1>
    %244 = vector.broadcast %cst_73 : f32 to vector<256x256xf32>
    %245 = arith.select %243, %239, %244 : vector<256x256xi1>, vector<256x256xf32>
    %cst_74 = arith.constant dense<0.000000e+00> : vector<16x256xf32>
    %246 = tpu.matmul %238, %245, %cst_74 {dimension_numbers = #tpu.dot_dimension_numbers<[1], [0], [0], [1], [0, 0, 1, 1], [], []>} : vector<16x256xf32>, vector<256x256xf32>, vector<16x256xf32> -> vector<16x256xf32>
    %247 = arith.addf %236, %246 : vector<16x256xf32>
    %c4 = arith.constant 4 : index
    %c0_75 = arith.constant 0 : index
    %c0_76 = arith.constant 0 : index
    %248 = vector.load %arg4[%c4, %c0_75, %c0_76] : memref<9x16x256xf32, #tpu.memory_space<vmem>>, vector<1x16x256xf32>
    %249 = vector.shape_cast %248 : vector<1x16x256xf32> to vector<16x256xf32>
    %cst_77 = arith.constant dense<0.000000e+00> : vector<16x256xf32>
    %250 = tpu.matmul %249, %196, %cst_77 {dimension_numbers = #tpu.dot_dimension_numbers<[1], [0], [0], [1], [0, 0, 1, 1], [], []>} : vector<16x256xf32>, vector<256x256xf32>, vector<16x256xf32> -> vector<16x256xf32>
    %251 = arith.addf %247, %250 : vector<16x256xf32>
    %c5 = arith.constant 5 : index
    %c0_78 = arith.constant 0 : index
    %c0_79 = arith.constant 0 : index
    %252 = vector.load %arg4[%c5, %c0_78, %c0_79] : memref<9x16x256xf32, #tpu.memory_space<vmem>>, vector<1x16x256xf32>
    %253 = vector.shape_cast %252 : vector<1x16x256xf32> to vector<16x256xf32>
    %c255_i32_80 = arith.constant 255 : i32
    %254 = tpu.dynamic_rotate %196 by %c255_i32_80 dim 1 : vector<256x256xf32>, i32 -> vector<256x256xf32>
    %c15_i32_81 = arith.constant 15 : i32
    %255 = vector.broadcast %c15_i32_81 : i32 to vector<1x256xi32>
    %256 = arith.cmpi slt, %2, %255 : vector<1x256xi32>
    %cst_82 = arith.constant 0.000000e+00 : f32
    %257 = vector.shape_cast %256 : vector<1x256xi1> to vector<1x256xi1>
    %258 = vector.broadcast %257 : vector<1x256xi1> to vector<256x256xi1>
    %259 = vector.broadcast %cst_82 : f32 to vector<256x256xf32>
    %260 = arith.select %258, %254, %259 : vector<256x256xi1>, vector<256x256xf32>
    %cst_83 = arith.constant dense<0.000000e+00> : vector<16x256xf32>
    %261 = tpu.matmul %253, %260, %cst_83 {dimension_numbers = #tpu.dot_dimension_numbers<[1], [0], [0], [1], [0, 0, 1, 1], [], []>} : vector<16x256xf32>, vector<256x256xf32>, vector<16x256xf32> -> vector<16x256xf32>
    %262 = arith.addf %251, %261 : vector<16x256xf32>
    %c6 = arith.constant 6 : index
    %c0_84 = arith.constant 0 : index
    %c0_85 = arith.constant 0 : index
    %263 = vector.load %arg4[%c6, %c0_84, %c0_85] : memref<9x16x256xf32, #tpu.memory_space<vmem>>, vector<1x16x256xf32>
    %264 = vector.shape_cast %263 : vector<1x16x256xf32> to vector<16x256xf32>
    %c241_i32_86 = arith.constant 241 : i32
    %265 = tpu.dynamic_rotate %196 by %c241_i32_86 dim 1 : vector<256x256xf32>, i32 -> vector<256x256xf32>
    %c240_i32_87 = arith.constant 240 : i32
    %266 = vector.broadcast %c240_i32_87 : i32 to vector<1x256xi32>
    %267 = arith.cmpi slt, %0, %266 : vector<1x256xi32>
    %c1_i32_88 = arith.constant 1 : i32
    %268 = vector.broadcast %c1_i32_88 : i32 to vector<1x256xi32>
    %269 = arith.cmpi sge, %2, %268 : vector<1x256xi32>
    %270 = arith.andi %267, %269 : vector<1x256xi1>
    %cst_89 = arith.constant 0.000000e+00 : f32
    %271 = vector.shape_cast %270 : vector<1x256xi1> to vector<1x256xi1>
    %272 = vector.broadcast %271 : vector<1x256xi1> to vector<256x256xi1>
    %273 = vector.broadcast %cst_89 : f32 to vector<256x256xf32>
    %274 = arith.select %272, %265, %273 : vector<256x256xi1>, vector<256x256xf32>
    %cst_90 = arith.constant dense<0.000000e+00> : vector<16x256xf32>
    %275 = tpu.matmul %264, %274, %cst_90 {dimension_numbers = #tpu.dot_dimension_numbers<[1], [0], [0], [1], [0, 0, 1, 1], [], []>} : vector<16x256xf32>, vector<256x256xf32>, vector<16x256xf32> -> vector<16x256xf32>
    %276 = arith.addf %262, %275 : vector<16x256xf32>
    %c7 = arith.constant 7 : index
    %c0_91 = arith.constant 0 : index
    %c0_92 = arith.constant 0 : index
    %277 = vector.load %arg4[%c7, %c0_91, %c0_92] : memref<9x16x256xf32, #tpu.memory_space<vmem>>, vector<1x16x256xf32>
    %278 = vector.shape_cast %277 : vector<1x16x256xf32> to vector<16x256xf32>
    %c240_i32_93 = arith.constant 240 : i32
    %279 = tpu.dynamic_rotate %196 by %c240_i32_93 dim 1 : vector<256x256xf32>, i32 -> vector<256x256xf32>
    %c240_i32_94 = arith.constant 240 : i32
    %280 = vector.broadcast %c240_i32_94 : i32 to vector<1x256xi32>
    %281 = arith.cmpi slt, %0, %280 : vector<1x256xi32>
    %cst_95 = arith.constant 0.000000e+00 : f32
    %282 = vector.shape_cast %281 : vector<1x256xi1> to vector<1x256xi1>
    %283 = vector.broadcast %282 : vector<1x256xi1> to vector<256x256xi1>
    %284 = vector.broadcast %cst_95 : f32 to vector<256x256xf32>
    %285 = arith.select %283, %279, %284 : vector<256x256xi1>, vector<256x256xf32>
    %cst_96 = arith.constant dense<0.000000e+00> : vector<16x256xf32>
    %286 = tpu.matmul %278, %285, %cst_96 {dimension_numbers = #tpu.dot_dimension_numbers<[1], [0], [0], [1], [0, 0, 1, 1], [], []>} : vector<16x256xf32>, vector<256x256xf32>, vector<16x256xf32> -> vector<16x256xf32>
    %287 = arith.addf %276, %286 : vector<16x256xf32>
    %c8 = arith.constant 8 : index
    %c0_97 = arith.constant 0 : index
    %c0_98 = arith.constant 0 : index
    %288 = vector.load %arg4[%c8, %c0_97, %c0_98] : memref<9x16x256xf32, #tpu.memory_space<vmem>>, vector<1x16x256xf32>
    %289 = vector.shape_cast %288 : vector<1x16x256xf32> to vector<16x256xf32>
    %c239_i32_99 = arith.constant 239 : i32
    %290 = tpu.dynamic_rotate %196 by %c239_i32_99 dim 1 : vector<256x256xf32>, i32 -> vector<256x256xf32>
    %c240_i32_100 = arith.constant 240 : i32
    %291 = vector.broadcast %c240_i32_100 : i32 to vector<1x256xi32>
    %292 = arith.cmpi slt, %0, %291 : vector<1x256xi32>
    %c15_i32_101 = arith.constant 15 : i32
    %293 = vector.broadcast %c15_i32_101 : i32 to vector<1x256xi32>
    %294 = arith.cmpi slt, %2, %293 : vector<1x256xi32>
    %295 = arith.andi %292, %294 : vector<1x256xi1>
    %cst_102 = arith.constant 0.000000e+00 : f32
    %296 = vector.shape_cast %295 : vector<1x256xi1> to vector<1x256xi1>
    %297 = vector.broadcast %296 : vector<1x256xi1> to vector<256x256xi1>
    %298 = vector.broadcast %cst_102 : f32 to vector<256x256xf32>
    %299 = arith.select %297, %290, %298 : vector<256x256xi1>, vector<256x256xf32>
    %cst_103 = arith.constant dense<0.000000e+00> : vector<16x256xf32>
    %300 = tpu.matmul %289, %299, %cst_103 {dimension_numbers = #tpu.dot_dimension_numbers<[1], [0], [0], [1], [0, 0, 1, 1], [], []>} : vector<16x256xf32>, vector<256x256xf32>, vector<16x256xf32> -> vector<16x256xf32>
    %301 = arith.addf %287, %300 : vector<16x256xf32>
    %c0_104 = arith.constant 0 : index
    %c0_105 = arith.constant 0 : index
    %302 = vector.load %arg5[%c0_104, %c0_105] : memref<16x1xf32, #tpu.memory_space<vmem>>, vector<16x1xf32>
    %303 = vector.broadcast %302 : vector<16x1xf32> to vector<16x256xf32>
    %304 = arith.addf %301, %303 : vector<16x256xf32>
    %cst_106 = arith.constant 0.000000e+00 : f32
    %305 = vector.broadcast %cst_106 : f32 to vector<16x256xf32>
    %306 = arith.maximumf %304, %305 : vector<16x256xf32>
    %307 = tpu.concatenate %306, %83 in 0 : vector<16x256xf32>, vector<16x256xf32> -> vector<32x256xf32>
    %c17_i32_107 = arith.constant 17 : i32
    %308 = tpu.dynamic_rotate %307 by %c17_i32_107 dim 1 : vector<32x256xf32>, i32 -> vector<32x256xf32>
    %c16_i32_108 = arith.constant 16 : i32
    %309 = vector.broadcast %c16_i32_108 : i32 to vector<1x256xi32>
    %310 = arith.cmpi sge, %0, %309 : vector<1x256xi32>
    %c1_i32_109 = arith.constant 1 : i32
    %311 = vector.broadcast %c1_i32_109 : i32 to vector<1x256xi32>
    %312 = arith.cmpi sge, %2, %311 : vector<1x256xi32>
    %313 = arith.andi %310, %312 : vector<1x256xi1>
    %cst_110 = arith.constant 0.000000e+00 : f32
    %314 = vector.shape_cast %313 : vector<1x256xi1> to vector<1x256xi1>
    %315 = vector.broadcast %314 : vector<1x256xi1> to vector<32x256xi1>
    %316 = vector.broadcast %cst_110 : f32 to vector<32x256xf32>
    %317 = arith.select %315, %308, %316 : vector<32x256xi1>, vector<32x256xf32>
    %c16_i32_111 = arith.constant 16 : i32
    %318 = tpu.dynamic_rotate %307 by %c16_i32_111 dim 1 : vector<32x256xf32>, i32 -> vector<32x256xf32>
    %c16_i32_112 = arith.constant 16 : i32
    %319 = vector.broadcast %c16_i32_112 : i32 to vector<1x256xi32>
    %320 = arith.cmpi sge, %0, %319 : vector<1x256xi32>
    %cst_113 = arith.constant 0.000000e+00 : f32
    %321 = vector.shape_cast %320 : vector<1x256xi1> to vector<1x256xi1>
    %322 = vector.broadcast %321 : vector<1x256xi1> to vector<32x256xi1>
    %323 = vector.broadcast %cst_113 : f32 to vector<32x256xf32>
    %324 = arith.select %322, %318, %323 : vector<32x256xi1>, vector<32x256xf32>
    %c15_i32_114 = arith.constant 15 : i32
    %325 = tpu.dynamic_rotate %307 by %c15_i32_114 dim 1 : vector<32x256xf32>, i32 -> vector<32x256xf32>
    %c16_i32_115 = arith.constant 16 : i32
    %326 = vector.broadcast %c16_i32_115 : i32 to vector<1x256xi32>
    %327 = arith.cmpi sge, %0, %326 : vector<1x256xi32>
    %c15_i32_116 = arith.constant 15 : i32
    %328 = vector.broadcast %c15_i32_116 : i32 to vector<1x256xi32>
    %329 = arith.cmpi slt, %2, %328 : vector<1x256xi32>
    %330 = arith.andi %327, %329 : vector<1x256xi1>
    %cst_117 = arith.constant 0.000000e+00 : f32
    %331 = vector.shape_cast %330 : vector<1x256xi1> to vector<1x256xi1>
    %332 = vector.broadcast %331 : vector<1x256xi1> to vector<32x256xi1>
    %333 = vector.broadcast %cst_117 : f32 to vector<32x256xf32>
    %334 = arith.select %332, %325, %333 : vector<32x256xi1>, vector<32x256xf32>
    %c1_i32_118 = arith.constant 1 : i32
    %335 = tpu.dynamic_rotate %307 by %c1_i32_118 dim 1 : vector<32x256xf32>, i32 -> vector<32x256xf32>
    %c1_i32_119 = arith.constant 1 : i32
    %336 = vector.broadcast %c1_i32_119 : i32 to vector<1x256xi32>
    %337 = arith.cmpi sge, %2, %336 : vector<1x256xi32>
    %cst_120 = arith.constant 0.000000e+00 : f32
    %338 = vector.shape_cast %337 : vector<1x256xi1> to vector<1x256xi1>
    %339 = vector.broadcast %338 : vector<1x256xi1> to vector<32x256xi1>
    %340 = vector.broadcast %cst_120 : f32 to vector<32x256xf32>
    %341 = arith.select %339, %335, %340 : vector<32x256xi1>, vector<32x256xf32>
    %c255_i32_121 = arith.constant 255 : i32
    %342 = tpu.dynamic_rotate %307 by %c255_i32_121 dim 1 : vector<32x256xf32>, i32 -> vector<32x256xf32>
    %c15_i32_122 = arith.constant 15 : i32
    %343 = vector.broadcast %c15_i32_122 : i32 to vector<1x256xi32>
    %344 = arith.cmpi slt, %2, %343 : vector<1x256xi32>
    %cst_123 = arith.constant 0.000000e+00 : f32
    %345 = vector.shape_cast %344 : vector<1x256xi1> to vector<1x256xi1>
    %346 = vector.broadcast %345 : vector<1x256xi1> to vector<32x256xi1>
    %347 = vector.broadcast %cst_123 : f32 to vector<32x256xf32>
    %348 = arith.select %346, %342, %347 : vector<32x256xi1>, vector<32x256xf32>
    %c241_i32_124 = arith.constant 241 : i32
    %349 = tpu.dynamic_rotate %307 by %c241_i32_124 dim 1 : vector<32x256xf32>, i32 -> vector<32x256xf32>
    %c240_i32_125 = arith.constant 240 : i32
    %350 = vector.broadcast %c240_i32_125 : i32 to vector<1x256xi32>
    %351 = arith.cmpi slt, %0, %350 : vector<1x256xi32>
    %c1_i32_126 = arith.constant 1 : i32
    %352 = vector.broadcast %c1_i32_126 : i32 to vector<1x256xi32>
    %353 = arith.cmpi sge, %2, %352 : vector<1x256xi32>
    %354 = arith.andi %351, %353 : vector<1x256xi1>
    %cst_127 = arith.constant 0.000000e+00 : f32
    %355 = vector.shape_cast %354 : vector<1x256xi1> to vector<1x256xi1>
    %356 = vector.broadcast %355 : vector<1x256xi1> to vector<32x256xi1>
    %357 = vector.broadcast %cst_127 : f32 to vector<32x256xf32>
    %358 = arith.select %356, %349, %357 : vector<32x256xi1>, vector<32x256xf32>
    %c240_i32_128 = arith.constant 240 : i32
    %359 = tpu.dynamic_rotate %307 by %c240_i32_128 dim 1 : vector<32x256xf32>, i32 -> vector<32x256xf32>
    %c240_i32_129 = arith.constant 240 : i32
    %360 = vector.broadcast %c240_i32_129 : i32 to vector<1x256xi32>
    %361 = arith.cmpi slt, %0, %360 : vector<1x256xi32>
    %cst_130 = arith.constant 0.000000e+00 : f32
    %362 = vector.shape_cast %361 : vector<1x256xi1> to vector<1x256xi1>
    %363 = vector.broadcast %362 : vector<1x256xi1> to vector<32x256xi1>
    %364 = vector.broadcast %cst_130 : f32 to vector<32x256xf32>
    %365 = arith.select %363, %359, %364 : vector<32x256xi1>, vector<32x256xf32>
    %c239_i32_131 = arith.constant 239 : i32
    %366 = tpu.dynamic_rotate %307 by %c239_i32_131 dim 1 : vector<32x256xf32>, i32 -> vector<32x256xf32>
    %c240_i32_132 = arith.constant 240 : i32
    %367 = vector.broadcast %c240_i32_132 : i32 to vector<1x256xi32>
    %368 = arith.cmpi slt, %0, %367 : vector<1x256xi32>
    %c15_i32_133 = arith.constant 15 : i32
    %369 = vector.broadcast %c15_i32_133 : i32 to vector<1x256xi32>
    %370 = arith.cmpi slt, %2, %369 : vector<1x256xi32>
    %371 = arith.andi %368, %370 : vector<1x256xi1>
    %cst_134 = arith.constant 0.000000e+00 : f32
    %372 = vector.shape_cast %371 : vector<1x256xi1> to vector<1x256xi1>
    %373 = vector.broadcast %372 : vector<1x256xi1> to vector<32x256xi1>
    %374 = vector.broadcast %cst_134 : f32 to vector<32x256xf32>
    %375 = arith.select %373, %366, %374 : vector<32x256xi1>, vector<32x256xf32>
    %376 = tpu.concatenate %317, %324, %334, %341, %307, %348, %358, %365, %375 in 0 : vector<32x256xf32>, vector<32x256xf32>, vector<32x256xf32>, vector<32x256xf32>, vector<32x256xf32>, vector<32x256xf32>, vector<32x256xf32>, vector<32x256xf32>, vector<32x256xf32> -> vector<288x256xf32>
    %c0_135 = arith.constant 0 : index
    %c0_136 = arith.constant 0 : index
    %377 = vector.load %arg6[%c0_135, %c0_136] : memref<16x288xf32, #tpu.memory_space<vmem>>, vector<16x288xf32>
    %cst_137 = arith.constant dense<0.000000e+00> : vector<16x256xf32>
    %378 = tpu.matmul %377, %376, %cst_137 {dimension_numbers = #tpu.dot_dimension_numbers<[1], [0], [0], [1], [0, 0, 1, 1], [], []>} : vector<16x288xf32>, vector<288x256xf32>, vector<16x256xf32> -> vector<16x256xf32>
    %c0_138 = arith.constant 0 : index
    %c0_139 = arith.constant 0 : index
    %379 = vector.load %arg7[%c0_138, %c0_139] : memref<16x1xf32, #tpu.memory_space<vmem>>, vector<16x1xf32>
    %380 = vector.broadcast %379 : vector<16x1xf32> to vector<16x256xf32>
    %381 = arith.addf %378, %380 : vector<16x256xf32>
    %cst_140 = arith.constant 0.000000e+00 : f32
    %382 = vector.broadcast %cst_140 : f32 to vector<16x256xf32>
    %383 = arith.maximumf %381, %382 : vector<16x256xf32>
    %384 = vector.shape_cast %383 : vector<16x256xf32> to vector<1x16x256xf32>
    %c0_141 = arith.constant 0 : index
    %c0_142 = arith.constant 0 : index
    %c0_143 = arith.constant 0 : index
    %385 = vector.load %arg8[%c0_141, %c0_142, %c0_143] : memref<1x16x256xf32, #tpu.memory_space<vmem>>, vector<1x16x256xf32>
    tpu.vector_store %arg8[%c0_141, %c0_142, %c0_143], %384 {strides = array<i32>} : memref<1x16x256xf32, #tpu.memory_space<vmem>>, vector<1x16x256xf32>,
    return
  }
  func.func @transform_0(%arg0: i32) -> (i32, i32, i32) {
    %c0_i32 = arith.constant 0 : i32
    %c0_i32_0 = arith.constant 0 : i32
    %c0_i32_1 = arith.constant 0 : i32
    return %arg0, %c0_i32, %c0_i32_0 : i32, i32, i32
  }
  func.func @transform_1(%arg0: i32) -> (i32, i32) {
    %c0_i32 = arith.constant 0 : i32
    %c0_i32_0 = arith.constant 0 : i32
    %c0_i32_1 = arith.constant 0 : i32
    return %c0_i32, %c0_i32_0 : i32, i32
  }
  func.func @transform_2(%arg0: i32) -> (i32, i32) {
    %c0_i32 = arith.constant 0 : i32
    %c0_i32_0 = arith.constant 0 : i32
    %c0_i32_1 = arith.constant 0 : i32
    return %c0_i32, %c0_i32_0 : i32, i32
  }
  func.func @transform_3(%arg0: i32) -> (i32, i32, i32) {
    %c0_i32 = arith.constant 0 : i32
    %c0_i32_0 = arith.constant 0 : i32
    %c0_i32_1 = arith.constant 0 : i32
    %c0_i32_2 = arith.constant 0 : i32
    return %c0_i32, %c0_i32_0, %c0_i32_1 : i32, i32, i32
  }
  func.func @transform_4(%arg0: i32) -> (i32, i32) {
    %c0_i32 = arith.constant 0 : i32
    %c0_i32_0 = arith.constant 0 : i32
    %c0_i32_1 = arith.constant 0 : i32
    return %c0_i32, %c0_i32_0 : i32, i32
  }
  func.func @transform_5(%arg0: i32) -> (i32, i32) {
    %c0_i32 = arith.constant 0 : i32
    %c0_i32_0 = arith.constant 0 : i32
    %c0_i32_1 = arith.constant 0 : i32
    return %c0_i32, %c0_i32_0 : i32, i32
  }
  func.func @transform_6(%arg0: i32) -> (i32, i32) {
    %c0_i32 = arith.constant 0 : i32
    %c0_i32_0 = arith.constant 0 : i32
    %c0_i32_1 = arith.constant 0 : i32
    return %c0_i32, %c0_i32_0 : i32, i32
  }
  func.func @transform_7(%arg0: i32) -> (i32, i32, i32) {
    %c0_i32 = arith.constant 0 : i32
    %c0_i32_0 = arith.constant 0 : i32
    %c0_i32_1 = arith.constant 0 : i32
    return %arg0, %c0_i32, %c0_i32_0 : i32, i32, i32
  }
}

</mosaic_0001>

<llo_original>
// kernel: tpu_custom_call.1
$region0: #{tpu_custom_call.1}
  #allocation0 [shape = 'u32[]', space=smem, size = 0x4, offset = 0x4, fixed_abs, tag = 'smem constant byte address 0x4 - core index']
  #allocation1 [shape = 'u32[144,128]{1,0:T(1,128)}', space=vmem, size = 0x12000, scoped, tag = 'internal scratch']
  %s0 = inlined_call_operand.vmem [shape: f32[2,16,256], index: 0, kind: input, shape index: {}]
  %s1 = inlined_call_operand.vmem [shape: f32[272,144], index: 1, kind: input, shape index: {}]
  %s2 = inlined_call_operand.vmem [shape: f32[272,1], index: 2, kind: input, shape index: {}]
  %s3 = inlined_call_operand.vmem [shape: f32[9,16,256], index: 3, kind: input, shape index: {}]
  %s4 = inlined_call_operand.vmem [shape: f32[16,1], index: 4, kind: input, shape index: {}]
  %s5 = inlined_call_operand.vmem [shape: f32[16,288], index: 5, kind: input, shape index: {}]
  %s6 = inlined_call_operand.vmem [shape: f32[16,1], index: 6, kind: input, shape index: {}]
  %s7 = inlined_call_operand.hbm [shape: f32[2,16,256], index: 7, kind: output, shape index: {}]
  %s8 = sld [smem:[#allocation0]]
  $region61: #{tpu_custom_call.1} parent=0
    _
  %s10 = ssub.s32 1, %s8
  %s11 = scalar_select 0, %s10, %s8
  $region1: #{tpu_custom_call.1} parent=0
    #allocation2 [shape = 'u8[32768]{0}', space=vmem, size = 0x8000, scoped, tag = 'output window, operand 0']
    #allocation3 [shape = 's32[2]{0}', space=sflag, size = 0x8, scoped, tag = 'scoped memory for tpu_custom_call.1']
    %12 = vsyncpa [#allocation3], 0
    %s13 = scalar_lea.sflag [#allocation3], 1
    %14 = vsyncpa %s13, 0
    loop: start=0, step=1, limit=4
    $region2: #{tpu_custom_call.1} parent=1 // loop_pre_header
      _
    $region3: #{tpu_custom_call.1} parent=1 // loop_header
      %s16 = sphi 0, %s20
      %p17 = scmp.ge.s32.totalorder %s16, 4
      %s26 = sphi 0, %s28
      %s29 = sphi 0, %s26
      %s30 = sphi 0, %s29
      %s46 = sphi 0, %s30
      %s50 = sphi 0, %s50
      %s52 = sphi 0, %s50
      %s53 = sphi 0, %s52
      %s67 = sphi 0, %s53
      %s71 = sphi 0, %s71
      %s73 = sphi 0, %s71
      %s74 = sphi 0, %s73
      %s88 = sphi 0, %s74
      %s92 = sphi 0, %s92
      %s94 = sphi 0, %s92
      %s95 = sphi 0, %s94
      %s109 = sphi 0, %s95
      %s113 = sphi 0, %s113
      %s115 = sphi 0, %s113
      %s116 = sphi 0, %s115
      %s130 = sphi 0, %s116
      %s134 = sphi 0, %s134
      %s136 = sphi 0, %s134
      %s137 = sphi 0, %s136
      %s151 = sphi 0, %s137
      %s155 = sphi 0, %s155
      %s157 = sphi 0, %s155
      %s158 = sphi 0, %s157
      %s172 = sphi 0, %s158
      %s178 = sphi 0, %s180
      %s181 = sphi 0, %s178
      %s182 = sphi 0, %s181
      %s198 = sphi 0, %s182
    $region4: #{tpu_custom_call.1} parent=1 // loop_header_branch
      %19 = sbr.rel (%p17) target = $region8
    $region5: #{tpu_custom_call.1} parent=1 // loop_body
      %s21 = ssub.s32 %s16, 1
      %s22 = ssub.s32 %s16, 2
      %s23 = sadd.s32 %s16, 1
      %s24 = ssub.s32 %s16, %s23
      %p25 = scmp.eq.s32.totalorder %s24, 0
      %s27 = sadd.s32 %s26, 1
      %s28 = scalar_select %p25, %s26, %s27
      %p31 = pneg %p25
      %p32 = scmp.eq.s32.totalorder %s16, 1
      %p33 = por %p31, %p32
      %p34 = scmp.ne.s32.totalorder %s26, %s29
      %p35 = scmp.eq.s32.totalorder %s16, 0
      %p36 = por %p34, %p35
      %p37 = scmp.ne.s32.totalorder %s26, %s29
      %p38 = scmp.eq.s32.totalorder %s21, 1
      %p39 = por %p37, %p38
      %p40 = scmp.ne.s32.totalorder %s29, %s30
      %p41 = scmp.eq.s32.totalorder %s21, 0
      %p42 = por %p40, %p41
      %p43 = scmp.ne.s32.totalorder %s29, %s30
      %p44 = scmp.eq.s32.totalorder %s22, 1
      %p45 = por %p43, %p44
      %p47 = scmp.ne.s32.totalorder %s30, %s46
      %p48 = scmp.eq.s32.totalorder %s22, 0
      %p49 = por %p47, %p48
      %s51 = sadd.s32 %s50, 1
      %p54 = scmp.eq.s32.totalorder %s16, 1
      %p55 = scmp.ne.s32.totalorder %s50, %s52
      %p56 = scmp.eq.s32.totalorder %s16, 0
      %p57 = por %p55, %p56
      %p58 = scmp.ne.s32.totalorder %s50, %s52
      %p59 = scmp.eq.s32.totalorder %s21, 1
      %p60 = por %p58, %p59
      %p61 = scmp.ne.s32.totalorder %s52, %s53
      %p62 = scmp.eq.s32.totalorder %s21, 0
      %p63 = por %p61, %p62
      %p64 = scmp.ne.s32.totalorder %s52, %s53
      %p65 = scmp.eq.s32.totalorder %s22, 1
      %p66 = por %p64, %p65
      %p68 = scmp.ne.s32.totalorder %s53, %s67
      %p69 = scmp.eq.s32.totalorder %s22, 0
      %p70 = por %p68, %p69
      %s72 = sadd.s32 %s71, 1
      %p75 = scmp.eq.s32.totalorder %s16, 1
      %p76 = scmp.ne.s32.totalorder %s71, %s73
      %p77 = scmp.eq.s32.totalorder %s16, 0
      %p78 = por %p76, %p77
      %p79 = scmp.ne.s32.totalorder %s71, %s73
      %p80 = scmp.eq.s32.totalorder %s21, 1
      %p81 = por %p79, %p80
      %p82 = scmp.ne.s32.totalorder %s73, %s74
      %p83 = scmp.eq.s32.totalorder %s21, 0
      %p84 = por %p82, %p83
      %p85 = scmp.ne.s32.totalorder %s73, %s74
      %p86 = scmp.eq.s32.totalorder %s22, 1
      %p87 = por %p85, %p86
      %p89 = scmp.ne.s32.totalorder %s74, %s88
      %p90 = scmp.eq.s32.totalorder %s22, 0
      %p91 = por %p89, %p90
      %s93 = sadd.s32 %s92, 1
      %p96 = scmp.eq.s32.totalorder %s16, 1
      %p97 = scmp.ne.s32.totalorder %s92, %s94
      %p98 = scmp.eq.s32.totalorder %s16, 0
      %p99 = por %p97, %p98
      %p100 = scmp.ne.s32.totalorder %s92, %s94
      %p101 = scmp.eq.s32.totalorder %s21, 1
      %p102 = por %p100, %p101
      %p103 = scmp.ne.s32.totalorder %s94, %s95
      %p104 = scmp.eq.s32.totalorder %s21, 0
      %p105 = por %p103, %p104
      %p106 = scmp.ne.s32.totalorder %s94, %s95
      %p107 = scmp.eq.s32.totalorder %s22, 1
      %p108 = por %p106, %p107
      %p110 = scmp.ne.s32.totalorder %s95, %s109
      %p111 = scmp.eq.s32.totalorder %s22, 0
      %p112 = por %p110, %p111
      %s114 = sadd.s32 %s113, 1
      %p117 = scmp.eq.s32.totalorder %s16, 1
      %p118 = scmp.ne.s32.totalorder %s113, %s115
      %p119 = scmp.eq.s32.totalorder %s16, 0
      %p120 = por %p118, %p119
      %p121 = scmp.ne.s32.totalorder %s113, %s115
      %p122 = scmp.eq.s32.totalorder %s21, 1
      %p123 = por %p121, %p122
      %p124 = scmp.ne.s32.totalorder %s115, %s116
      %p125 = scmp.eq.s32.totalorder %s21, 0
      %p126 = por %p124, %p125
      %p127 = scmp.ne.s32.totalorder %s115, %s116
      %p128 = scmp.eq.s32.totalorder %s22, 1
      %p129 = por %p127, %p128
      %p131 = scmp.ne.s32.totalorder %s116, %s130
      %p132 = scmp.eq.s32.totalorder %s22, 0
      %p133 = por %p131, %p132
      %s135 = sadd.s32 %s134, 1
      %p138 = scmp.eq.s32.totalorder %s16, 1
      %p139 = scmp.ne.s32.totalorder %s134, %s136
      %p140 = scmp.eq.s32.totalorder %s16, 0
      %p141 = por %p139, %p140
      %p142 = scmp.ne.s32.totalorder %s134, %s136
      %p143 = scmp.eq.s32.totalorder %s21, 1
      %p144 = por %p142, %p143
      %p145 = scmp.ne.s32.totalorder %s136, %s137
      %p146 = scmp.eq.s32.totalorder %s21, 0
      %p147 = por %p145, %p146
      %p148 = scmp.ne.s32.totalorder %s136, %s137
      %p149 = scmp.eq.s32.totalorder %s22, 1
      %p150 = por %p148, %p149
      %p152 = scmp.ne.s32.totalorder %s137, %s151
      %p153 = scmp.eq.s32.totalorder %s22, 0
      %p154 = por %p152, %p153
      %s156 = sadd.s32 %s155, 1
      %p159 = scmp.eq.s32.totalorder %s16, 1
      %p160 = scmp.ne.s32.totalorder %s155, %s157
      %p161 = scmp.eq.s32.totalorder %s16, 0
      %p162 = por %p160, %p161
      %p163 = scmp.ne.s32.totalorder %s155, %s157
      %p164 = scmp.eq.s32.totalorder %s21, 1
      %p165 = por %p163, %p164
      %p166 = scmp.ne.s32.totalorder %s157, %s158
      %p167 = scmp.eq.s32.totalorder %s21, 0
      %p168 = por %p166, %p167
      %p169 = scmp.ne.s32.totalorder %s157, %s158
      %p170 = scmp.eq.s32.totalorder %s22, 1
      %p171 = por %p169, %p170
      %p173 = scmp.ne.s32.totalorder %s158, %s172
      %p174 = scmp.eq.s32.totalorder %s22, 0
      %p175 = por %p173, %p174
      %s176 = ssub.s32 %s16, %s23
      %p177 = scmp.eq.s32.totalorder %s176, 0
      %s179 = sadd.s32 %s178, 1
      %s180 = scalar_select %p177, %s178, %s179
      %p183 = pneg %p177
      %p184 = scmp.eq.s32.totalorder %s16, 1
      %p185 = por %p183, %p184
      %p186 = scmp.ne.s32.totalorder %s178, %s181
      %p187 = scmp.eq.s32.totalorder %s16, 0
      %p188 = por %p186, %p187
      %p189 = scmp.ne.s32.totalorder %s178, %s181
      %p190 = scmp.eq.s32.totalorder %s21, 1
      %p191 = por %p189, %p190
      %p192 = scmp.ne.s32.totalorder %s181, %s182
      %p193 = scmp.eq.s32.totalorder %s21, 0
      %p194 = por %p192, %p193
      %p195 = scmp.ne.s32.totalorder %s181, %s182
      %p196 = scmp.eq.s32.totalorder %s22, 1
      %p197 = por %p195, %p196
      %p199 = scmp.ne.s32.totalorder %s182, %s198
      %p200 = scmp.eq.s32.totalorder %s22, 0
      %p201 = por %p199, %p200
      %p202 = scmp.le.s32.totalorder 1, %s16
      %p203 = scmp.lt.s32.totalorder %s16, 3
      %p204 = pnand %p202, %p203
      %p205 = pneg %p204
      // Predicated region
      $region9: #{tpu_custom_call.1} parent=5 // pred_check
        _
      $region10: #{tpu_custom_call.1} parent=5 // pred_check_branch
        %207 = sbr.rel (%p204) target = $region12
      $region11: #{tpu_custom_call.1} parent=5 // pred_region
        %s208 = ssub.s32 %s16, 1
        // Predicated region
        $region13: #{tpu_custom_call.1} parent=11 // pred_check
          %p209 = pneg %p63
        $region14: #{tpu_custom_call.1} parent=11 // pred_check_branch
          %211 = sbr.rel (%p209) target = $region16
        $region15: #{tpu_custom_call.1} parent=11 // pred_region
          _
        $region16: #{tpu_custom_call.1} parent=11 // pred_fallthru
          _
        // Predicated region
        $region17: #{tpu_custom_call.1} parent=11 // pred_check
          %p212 = pneg %p84
        $region18: #{tpu_custom_call.1} parent=11 // pred_check_branch
          %214 = sbr.rel (%p212) target = $region20
        $region19: #{tpu_custom_call.1} parent=11 // pred_region
          _
        $region20: #{tpu_custom_call.1} parent=11 // pred_fallthru
          _
        // Predicated region
        $region21: #{tpu_custom_call.1} parent=11 // pred_check
          %p215 = pneg %p105
        $region22: #{tpu_custom_call.1} parent=11 // pred_check_branch
          %217 = sbr.rel (%p215) target = $region24
        $region23: #{tpu_custom_call.1} parent=11 // pred_region
          _
        $region24: #{tpu_custom_call.1} parent=11 // pred_fallthru
          _
        // Predicated region
        $region25: #{tpu_custom_call.1} parent=11 // pred_check
          %p218 = pneg %p126
        $region26: #{tpu_custom_call.1} parent=11 // pred_check_branch
          %220 = sbr.rel (%p218) target = $region28
        $region27: #{tpu_custom_call.1} parent=11 // pred_region
          _
        $region28: #{tpu_custom_call.1} parent=11 // pred_fallthru
          _
        // Predicated region
        $region29: #{tpu_custom_call.1} parent=11 // pred_check
          %p221 = pneg %p147
        $region30: #{tpu_custom_call.1} parent=11 // pred_check_branch
          %223 = sbr.rel (%p221) target = $region32
        $region31: #{tpu_custom_call.1} parent=11 // pred_region
          _
        $region32: #{tpu_custom_call.1} parent=11 // pred_fallthru
          _
        // Predicated region
        $region33: #{tpu_custom_call.1} parent=11 // pred_check
          %p224 = pneg %p168
        $region34: #{tpu_custom_call.1} parent=11 // pred_check_branch
          %226 = sbr.rel (%p224) target = $region36
        $region35: #{tpu_custom_call.1} parent=11 // pred_region
          _
        $region36: #{tpu_custom_call.1} parent=11 // pred_fallthru
          _
      $region12: #{tpu_custom_call.1} parent=5 // pred_fallthru
        _
      %p227 = scmp.lt.s32.totalorder %s16, 2
      // Predicated region
      $region37: #{tpu_custom_call.1} parent=5 // pred_check
        %p228 = pneg %p227
      $region38: #{tpu_custom_call.1} parent=5 // pred_check_branch
        %230 = sbr.rel (%p228) target = $region40
      $region39: #{tpu_custom_call.1} parent=5 // pred_region
        // Predicated region
        $region41: #{tpu_custom_call.1} parent=39 // pred_check
          %p231 = pneg %p36
        $region42: #{tpu_custom_call.1} parent=39 // pred_check_branch
          %233 = sbr.rel (%p231) target = $region44
        $region43: #{tpu_custom_call.1} parent=39 // pred_region
          %p234 = scmp.lt.s32.totalorder %s16, 1
          %s235 = scalar_select %p234, %s16, 1
          %s236 = smul.addr %s235, 4
          %s237 = smul.addr %s236, 8
          %s238 = scalar_lea.vmem %s0, %s237
        $region44: #{tpu_custom_call.1} parent=39 // pred_fallthru
          _
      $region40: #{tpu_custom_call.1} parent=5 // pred_fallthru
        _
      %p239 = scmp.le.s32.totalorder 1, %s16
      %p240 = scmp.lt.s32.totalorder %s16, 3
      %p241 = pnand %p239, %p240
      %p242 = pneg %p241
      // Predicated region
      $region45: #{tpu_custom_call.1} parent=5 // pred_check
        _
      $region46: #{tpu_custom_call.1} parent=5 // pred_check_branch
        %244 = sbr.rel (%p241) target = $region48
      $region47: #{tpu_custom_call.1} parent=5 // pred_region
        %s245 = ssub.s32 %s16, 1
        %p246 = scmp.lt.s32.totalorder %s21, 1
        %s247 = scalar_select %p246, %s21, 1
        %s248 = smul.addr %s247, 4
        %s249 = smul.addr %s248, 8
        %s250 = scalar_lea.vmem %s0, %s249
        %p251 = pneg %p42
        %p252 = pneg %p39
        %p253 = pneg %p63
        %p254 = pneg %p60
        %p255 = pneg %p84
        %p256 = pneg %p81
        %p257 = pneg %p105
        %p258 = pneg %p102
        %p259 = pneg %p126
        %p260 = pneg %p123
        %p261 = pneg %p147
        %p262 = pneg %p144
        %p263 = pneg %p168
        %p264 = pneg %p165
        %p265 = pneg %p194
        %p266 = pneg %p191
        %s267 = sand.u32 %s181, 1
        %s268 = scalar_lea.sflag [#allocation3], %s267
        %s269 = sand.u32 %s181, 1
        %s270 = smul.addr %s269, 32
        %s271 = scalar_lea.vmem [#allocation2], %s270
        %p272 = scmp.lt.s32.totalorder %s21, 1
        %s273 = scalar_select %p272, %s21, 1
        %s274 = smul.addr %s273, 4
        %s275 = smul.addr %s274, 8
        %s276 = scalar_lea.vmem %s0, %s275
        %v277 = vlaneseq
        %v278 = vand.u32 %v277, 127
        %v279 = vadd.s32 %v278, 128
        %v280 = vand.u32 %v278, 15
        %v281 = vand.u32 %v279, 15
        %v282 = vld [vmem:[%s276] sm:$0xff]
        %v283 = vld [vmem:[%s276 + $0x8] sm:$0xff]
        %v284 = vld [vmem:[%s276 + $0x10] sm:$0xff]
        %v285 = vld [vmem:[%s276 + $0x18] sm:$0xff]
        %286 = vrot.lane.b32.xlu0 %v282, 17
        %v287 = vpop.permute.xlu0 %286
        %288 = vrot.lane.b32.xlu0 %v284, 17
        %v289 = vpop.permute.xlu0 %288
        %290 = vrot.lane.b32.xlu0 %v283, 17
        %v291 = vpop.permute.xlu0 %290
        %292 = vrot.lane.b32.xlu0 %v285, 17
        %v293 = vpop.permute.xlu0 %292
        %vm294 = vcmp.lt.s32.totalorder %v278, 17
        %v295 = vsel %vm294, %v287, %v291
        %v296 = vsel %vm294, %v289, %v293
        %v297 = vsel %vm294, %v291, %v287
        %v298 = vsel %vm294, %v293, %v289
        %vm299 = vcmp.ge.s32.totalorder %v278, 16
        %vm300 = vcmp.ge.s32.totalorder %v279, 16
        %vm301 = vcmp.ge.s32.totalorder %v280, 1
        %vm302 = vcmp.ge.s32.totalorder %v281, 1
        %vm303 = vmand %vm299, %vm301
        %vm304 = vmand %vm300, %vm302
        %v305 = vsel %vm303, 1, 0
        %v306 = vsel %vm304, 1, 0
        %vm307 = vcmp.eq.s32.totalorder %v305, 1
        %vm308 = vcmp.eq.s32.totalorder %v306, 1
        %v309 = vsel %vm307, %v297, 0.0
        %v310 = vsel %vm308, %v295, 0.0
        %v311 = vsel %vm307, %v298, 0.0
        %v312 = vsel %vm308, %v296, 0.0
        %313 = vrot.lane.b32.xlu0 %v282, 16
        %v314 = vpop.permute.xlu0 %313
        %315 = vrot.lane.b32.xlu0 %v284, 16
        %v316 = vpop.permute.xlu0 %315
        %317 = vrot.lane.b32.xlu0 %v283, 16
        %v318 = vpop.permute.xlu0 %317
        %319 = vrot.lane.b32.xlu0 %v285, 16
        %v320 = vpop.permute.xlu0 %319
        %vm321 = vcmp.lt.s32.totalorder %v278, 16
        %v322 = vsel %vm321, %v314, %v318
        %v323 = vsel %vm321, %v316, %v320
        %v324 = vsel %vm321, %v318, %v314
        %v325 = vsel %vm321, %v320, %v316
        %v326 = vsel %vm299, 1, 0
        %v327 = vsel %vm300, 1, 0
        %vm328 = vcmp.eq.s32.totalorder %v326, 1
        %vm329 = vcmp.eq.s32.totalorder %v327, 1
        %v330 = vsel %vm328, %v324, 0.0
        %v331 = vsel %vm329, %v322, 0.0
        %v332 = vsel %vm328, %v325, 0.0
        %v333 = vsel %vm329, %v323, 0.0
        %334 = vrot.lane.b32.xlu0 %v282, 15
        %v335 = vpop.permute.xlu0 %334
        %336 = vrot.lane.b32.xlu0 %v284, 15
        %v337 = vpop.permute.xlu0 %336
        %338 = vrot.lane.b32.xlu0 %v283, 15
        %v339 = vpop.permute.xlu0 %338
        %340 = vrot.lane.b32.xlu0 %v285, 15
        %v341 = vpop.permute.xlu0 %340
        %vm342 = vcmp.lt.s32.totalorder %v278, 15
        %v343 = vsel %vm342, %v335, %v339
        %v344 = vsel %vm342, %v337, %v341
        %v345 = vsel %vm342, %v339, %v335
        %v346 = vsel %vm342, %v341, %v337
        %vm347 = vcmp.lt.s32.totalorder %v280, 15
        %vm348 = vcmp.lt.s32.totalorder %v281, 15
        %vm349 = vmand %vm299, %vm347
        %vm350 = vmand %vm300, %vm348
        %v351 = vsel %vm349, 1, 0
        %v352 = vsel %vm350, 1, 0
        %vm353 = vcmp.eq.s32.totalorder %v351, 1
        %vm354 = vcmp.eq.s32.totalorder %v352, 1
        %v355 = vsel %vm353, %v345, 0.0
        %v356 = vsel %vm354, %v343, 0.0
        %v357 = vsel %vm353, %v346, 0.0
        %v358 = vsel %vm354, %v344, 0.0
        %359 = vrot.lane.b32.xlu0 %v282, 1
        %v360 = vpop.permute.xlu0 %359
        %361 = vrot.lane.b32.xlu0 %v284, 1
        %v362 = vpop.permute.xlu0 %361
        %363 = vrot.lane.b32.xlu0 %v283, 1
        %v364 = vpop.permute.xlu0 %363
        %365 = vrot.lane.b32.xlu0 %v285, 1
        %v366 = vpop.permute.xlu0 %365
        %vm367 = vcmp.lt.s32.totalorder %v278, 1
        %v368 = vsel %vm367, %v360, %v364
        %v369 = vsel %vm367, %v362, %v366
        %v370 = vsel %vm367, %v364, %v360
        %v371 = vsel %vm367, %v366, %v362
        %v372 = vsel %vm301, 1, 0
        %v373 = vsel %vm302, 1, 0
        %vm374 = vcmp.eq.s32.totalorder %v372, 1
        %vm375 = vcmp.eq.s32.totalorder %v373, 1
        %v376 = vsel %vm374, %v370, 0.0
        %v377 = vsel %vm375, %v368, 0.0
        %v378 = vsel %vm374, %v371, 0.0
        %v379 = vsel %vm375, %v369, 0.0
        %380 = vrot.lane.b32.xlu0 %v282, 127
        %v381 = vpop.permute.xlu0 %380
        %382 = vrot.lane.b32.xlu0 %v284, 127
        %v383 = vpop.permute.xlu0 %382
        %384 = vrot.lane.b32.xlu0 %v283, 127
        %v385 = vpop.permute.xlu0 %384
        %386 = vrot.lane.b32.xlu0 %v285, 127
        %v387 = vpop.permute.xlu0 %386
        %vm388 = vcmp.lt.s32.totalorder %v278, 127
        %v389 = vsel %vm388, %v381, %v385
        %v390 = vsel %vm388, %v383, %v387
        %v391 = vsel %vm388, %v385, %v381
        %v392 = vsel %vm388, %v387, %v383
        %v393 = vsel %vm347, 1, 0
        %v394 = vsel %vm348, 1, 0
        %vm395 = vcmp.eq.s32.totalorder %v393, 1
        %vm396 = vcmp.eq.s32.totalorder %v394, 1
        %v397 = vsel %vm395, %v389, 0.0
        %v398 = vsel %vm396, %v391, 0.0
        %v399 = vsel %vm395, %v390, 0.0
        %v400 = vsel %vm396, %v392, 0.0
        %401 = vrot.lane.b32.xlu0 %v282, 113
        %v402 = vpop.permute.xlu0 %401
        %403 = vrot.lane.b32.xlu0 %v284, 113
        %v404 = vpop.permute.xlu0 %403
        %405 = vrot.lane.b32.xlu0 %v283, 113
        %v406 = vpop.permute.xlu0 %405
        %407 = vrot.lane.b32.xlu0 %v285, 113
        %v408 = vpop.permute.xlu0 %407
        %vm409 = vcmp.lt.s32.totalorder %v278, 113
        %v410 = vsel %vm409, %v402, %v406
        %v411 = vsel %vm409, %v404, %v408
        %v412 = vsel %vm409, %v406, %v402
        %v413 = vsel %vm409, %v408, %v404
        %vm414 = vcmp.lt.s32.totalorder %v278, 240
        %vm415 = vcmp.lt.s32.totalorder %v279, 240
        %vm416 = vmand %vm414, %vm301
        %vm417 = vmand %vm415, %vm302
        %v418 = vsel %vm416, 1, 0
        %v419 = vsel %vm417, 1, 0
        %vm420 = vcmp.eq.s32.totalorder %v418, 1
        %vm421 = vcmp.eq.s32.totalorder %v419, 1
        %v422 = vsel %vm420, %v410, 0.0
        %v423 = vsel %vm421, %v412, 0.0
        %v424 = vsel %vm420, %v411, 0.0
        %v425 = vsel %vm421, %v413, 0.0
        %426 = vrot.lane.b32.xlu0 %v282, 112
        %v427 = vpop.permute.xlu0 %426
        %428 = vrot.lane.b32.xlu0 %v284, 112
        %v429 = vpop.permute.xlu0 %428
        %430 = vrot.lane.b32.xlu0 %v283, 112
        %v431 = vpop.permute.xlu0 %430
        %432 = vrot.lane.b32.xlu0 %v285, 112
        %v433 = vpop.permute.xlu0 %432
        %vm434 = vcmp.lt.s32.totalorder %v278, 112
        %v435 = vsel %vm434, %v427, %v431
        %v436 = vsel %vm434, %v429, %v433
        %v437 = vsel %vm434, %v431, %v427
        %v438 = vsel %vm434, %v433, %v429
        %v439 = vsel %vm414, 1, 0
        %v440 = vsel %vm415, 1, 0
        %vm441 = vcmp.eq.s32.totalorder %v439, 1
        %vm442 = vcmp.eq.s32.totalorder %v440, 1
        %v443 = vsel %vm441, %v435, 0.0
        %v444 = vsel %vm442, %v437, 0.0
        %v445 = vsel %vm441, %v436, 0.0
        %v446 = vsel %vm442, %v438, 0.0
        %447 = vrot.lane.b32.xlu0 %v282, 111
        %v448 = vpop.permute.xlu0 %447
        %449 = vrot.lane.b32.xlu0 %v284, 111
        %v450 = vpop.permute.xlu0 %449
        %451 = vrot.lane.b32.xlu0 %v283, 111
        %v452 = vpop.permute.xlu0 %451
        %453 = vrot.lane.b32.xlu0 %v285, 111
        %v454 = vpop.permute.xlu0 %453
        %vm455 = vcmp.lt.s32.totalorder %v278, 111
        %v456 = vsel %vm455, %v448, %v452
        %v457 = vsel %vm455, %v450, %v454
        %v458 = vsel %vm455, %v452, %v448
        %v459 = vsel %vm455, %v454, %v450
        %vm460 = vmand %vm414, %vm347
        %vm461 = vmand %vm415, %vm348
        %v462 = vsel %vm460, 1, 0
        %v463 = vsel %vm461, 1, 0
        %vm464 = vcmp.eq.s32.totalorder %v462, 1
        %vm465 = vcmp.eq.s32.totalorder %v463, 1
        %v466 = vsel %vm464, %v456, 0.0
        %v467 = vsel %vm465, %v458, 0.0
        %v468 = vsel %vm464, %v457, 0.0
        %v469 = vsel %vm465, %v459, 0.0
        %v470 = vld [vmem:[%s1] sm:$0xff]
        %v471 = vld [vmem:[%s1 + $0x8] sm:$0xff]
        %v472 = vld [vmem:[%s1 + $0x10] sm:$0xff]
        %v473 = vld [vmem:[%s1 + $0x18] sm:$0xff]
        %v474 = vld [vmem:[%s1 + $0x20] sm:$0xff]
        %v475 = vld [vmem:[%s1 + $0x28] sm:$0xff]
        %v476 = vld [vmem:[%s1 + $0x30] sm:$0xff]
        %v477 = vld [vmem:[%s1 + $0x38] sm:$0xff]
        %v478 = vld [vmem:[%s1 + $0x40] sm:$0xff]
        %v479 = vld [vmem:[%s1 + $0x48] sm:$0xff]
        %v480 = vld [vmem:[%s1 + $0x50] sm:$0xff]
        %v481 = vld [vmem:[%s1 + $0x58] sm:$0xff]
        %v482 = vld [vmem:[%s1 + $0x60] sm:$0xff]
        %v483 = vld [vmem:[%s1 + $0x68] sm:$0xff]
        %v484 = vld [vmem:[%s1 + $0x70] sm:$0xff]
        %v485 = vld [vmem:[%s1 + $0x78] sm:$0xff]
        %v486 = vld [vmem:[%s1 + $0x80] sm:$0xff]
        %v487 = vld [vmem:[%s1 + $0x88] sm:$0xff]
        %v488 = vld [vmem:[%s1 + $0x90] sm:$0xff]
        %v489 = vld [vmem:[%s1 + $0x98] sm:$0xff]
        %v490 = vld [vmem:[%s1 + $0xa0] sm:$0xff]
        %v491 = vld [vmem:[%s1 + $0xa8] sm:$0xff]
        %v492 = vld [vmem:[%s1 + $0xb0] sm:$0xff]
        %v493 = vld [vmem:[%s1 + $0xb8] sm:$0xff]
        %v494 = vld [vmem:[%s1 + $0xc0] sm:$0xff]
        %v495 = vld [vmem:[%s1 + $0xc8] sm:$0xff]
        %v496 = vld [vmem:[%s1 + $0xd0] sm:$0xff]
        %v497 = vld [vmem:[%s1 + $0xd8] sm:$0xff]
        %v498 = vld [vmem:[%s1 + $0xe0] sm:$0xff]
        %v499 = vld [vmem:[%s1 + $0xe8] sm:$0xff]
        %v500 = vld [vmem:[%s1 + $0xf0] sm:$0xff]
        %v501 = vld [vmem:[%s1 + $0xf8] sm:$0xff]
        %v502 = vld [vmem:[%s1 + $0x100] sm:$0xff]
        %v503 = vld [vmem:[%s1 + $0x108] sm:$0xff]
        %v504 = vld [vmem:[%s1 + $0x110] sm:$0xff]
        %v505 = vld [vmem:[%s1 + $0x118] sm:$0xff]
        %v506 = vld [vmem:[%s1 + $0x120] sm:$0xff]
        %v507 = vld [vmem:[%s1 + $0x128] sm:$0xff]
        %v508 = vld [vmem:[%s1 + $0x130] sm:$0xff]
        %v509 = vld [vmem:[%s1 + $0x138] sm:$0xff]
        %v510 = vld [vmem:[%s1 + $0x140] sm:$0xff]
        %v511 = vld [vmem:[%s1 + $0x148] sm:$0xff]
        %v512 = vld [vmem:[%s1 + $0x150] sm:$0xff]
        %v513 = vld [vmem:[%s1 + $0x158] sm:$0xff]
        %v514 = vld [vmem:[%s1 + $0x160] sm:$0xff]
        %v515 = vld [vmem:[%s1 + $0x168] sm:$0xff]
        %v516 = vld [vmem:[%s1 + $0x170] sm:$0xff]
        %v517 = vld [vmem:[%s1 + $0x178] sm:$0xff]
        %v518 = vld [vmem:[%s1 + $0x180] sm:$0xff]
        %v519 = vld [vmem:[%s1 + $0x188] sm:$0xff]
        %v520 = vld [vmem:[%s1 + $0x190] sm:$0xff]
        %v521 = vld [vmem:[%s1 + $0x198] sm:$0xff]
        %v522 = vld [vmem:[%s1 + $0x1a0] sm:$0xff]
        %v523 = vld [vmem:[%s1 + $0x1a8] sm:$0xff]
        %v524 = vld [vmem:[%s1 + $0x1b0] sm:$0xff]
        %v525 = vld [vmem:[%s1 + $0x1b8] sm:$0xff]
        %v526 = vld [vmem:[%s1 + $0x1c0] sm:$0xff]
        %v527 = vld [vmem:[%s1 + $0x1c8] sm:$0xff]
        %v528 = vld [vmem:[%s1 + $0x1d0] sm:$0xff]
        %v529 = vld [vmem:[%s1 + $0x1d8] sm:$0xff]
        %v530 = vld [vmem:[%s1 + $0x1e0] sm:$0xff]
        %v531 = vld [vmem:[%s1 + $0x1e8] sm:$0xff]
        %v532 = vld [vmem:[%s1 + $0x1f0] sm:$0xff]
        %v533 = vld [vmem:[%s1 + $0x1f8] sm:$0xff]
        %v534 = vld [vmem:[%s1 + $0x200] sm:$0xff]
        %v535 = vld [vmem:[%s1 + $0x208] sm:$0xff]
        %v536 = vld [vmem:[%s1 + $0x210] sm:$0xff]
        %v537 = vld [vmem:[%s1 + $0x218] sm:$0xff]
        %v538 = vld [vmem:[%s2] sm:$0xff]
        %v539 = vld [vmem:[%s2 + $0x8] sm:$0xff]
        %v540 = vld [vmem:[%s2 + $0x10] sm:$0xff]
        %v541 = vld [vmem:[%s2 + $0x18] sm:$0xff]
        %v542 = vld [vmem:[%s2 + $0x20] sm:$0xff]
        %v543 = vld [vmem:[%s2 + $0x28] sm:$0xff]
        %v544 = vld [vmem:[%s2 + $0x30] sm:$0xff]
        %v545 = vld [vmem:[%s2 + $0x38] sm:$0xff]
        %v546 = vld [vmem:[%s2 + $0x40] sm:$0xff]
        %v547 = vld [vmem:[%s2 + $0x48] sm:$0xff]
        %v548 = vld [vmem:[%s2 + $0x50] sm:$0xff]
        %v549 = vld [vmem:[%s2 + $0x58] sm:$0xff]
        %v550 = vld [vmem:[%s2 + $0x60] sm:$0xff]
        %v551 = vld [vmem:[%s2 + $0x68] sm:$0xff]
        %v552 = vld [vmem:[%s2 + $0x70] sm:$0xff]
        %v553 = vld [vmem:[%s2 + $0x78] sm:$0xff]
        %v554 = vld [vmem:[%s2 + $0x80] sm:$0xff]
        %v555 = vld [vmem:[%s2 + $0x88] sm:$0xff]
        %v556 = vld [vmem:[%s2 + $0x90] sm:$0xff]
        %v557 = vld [vmem:[%s2 + $0x98] sm:$0xff]
        %v558 = vld [vmem:[%s2 + $0xa0] sm:$0xff]
        %v559 = vld [vmem:[%s2 + $0xa8] sm:$0xff]
        %v560 = vld [vmem:[%s2 + $0xb0] sm:$0xff]
        %v561 = vld [vmem:[%s2 + $0xb8] sm:$0xff]
        %v562 = vld [vmem:[%s2 + $0xc0] sm:$0xff]
        %v563 = vld [vmem:[%s2 + $0xc8] sm:$0xff]
        %v564 = vld [vmem:[%s2 + $0xd0] sm:$0xff]
        %v565 = vld [vmem:[%s2 + $0xd8] sm:$0xff]
        %v566 = vld [vmem:[%s2 + $0xe0] sm:$0xff]
        %v567 = vld [vmem:[%s2 + $0xe8] sm:$0xff]
        %v568 = vld [vmem:[%s2 + $0xf0] sm:$0xff]
        %v569 = vld [vmem:[%s2 + $0xf8] sm:$0xff]
        %v570 = vld [vmem:[%s2 + $0x100] sm:$0xff]
        %v571 = vld [vmem:[%s2 + $0x108] sm:$0xff]
        %573 = vset.pattern.permute.xlu0 0
        %574 = vperm.xlu0 %573, %v538
        %v575 = vpop.permute.xlu0 %574
        %578 = vset.pattern.permute.xlu0 0
        %579 = vperm.xlu0 %578, %v539
        %v580 = vpop.permute.xlu0 %579
        %583 = vset.pattern.permute.xlu0 0
        %584 = vperm.xlu0 %583, %v540
        %v585 = vpop.permute.xlu0 %584
        %588 = vset.pattern.permute.xlu0 0
        %589 = vperm.xlu0 %588, %v541
        %v590 = vpop.permute.xlu0 %589
        %593 = vset.pattern.permute.xlu0 0
        %594 = vperm.xlu0 %593, %v542
        %v595 = vpop.permute.xlu0 %594
        %598 = vset.pattern.permute.xlu0 0
        %599 = vperm.xlu0 %598, %v543
        %v600 = vpop.permute.xlu0 %599
        %603 = vset.pattern.permute.xlu0 0
        %604 = vperm.xlu0 %603, %v544
        %v605 = vpop.permute.xlu0 %604
        %608 = vset.pattern.permute.xlu0 0
        %609 = vperm.xlu0 %608, %v545
        %v610 = vpop.permute.xlu0 %609
        %613 = vset.pattern.permute.xlu0 0
        %614 = vperm.xlu0 %613, %v546
        %v615 = vpop.permute.xlu0 %614
        %618 = vset.pattern.permute.xlu0 0
        %619 = vperm.xlu0 %618, %v547
        %v620 = vpop.permute.xlu0 %619
        %623 = vset.pattern.permute.xlu0 0
        %624 = vperm.xlu0 %623, %v548
        %v625 = vpop.permute.xlu0 %624
        %628 = vset.pattern.permute.xlu0 0
        %629 = vperm.xlu0 %628, %v549
        %v630 = vpop.permute.xlu0 %629
        %633 = vset.pattern.permute.xlu0 0
        %634 = vperm.xlu0 %633, %v550
        %v635 = vpop.permute.xlu0 %634
        %638 = vset.pattern.permute.xlu0 0
        %639 = vperm.xlu0 %638, %v551
        %v640 = vpop.permute.xlu0 %639
        %643 = vset.pattern.permute.xlu0 0
        %644 = vperm.xlu0 %643, %v552
        %v645 = vpop.permute.xlu0 %644
        %648 = vset.pattern.permute.xlu0 0
        %649 = vperm.xlu0 %648, %v553
        %v650 = vpop.permute.xlu0 %649
        %653 = vset.pattern.permute.xlu0 0
        %654 = vperm.xlu0 %653, %v554
        %v655 = vpop.permute.xlu0 %654
        %658 = vset.pattern.permute.xlu0 0
        %659 = vperm.xlu0 %658, %v555
        %v660 = vpop.permute.xlu0 %659
        %663 = vset.pattern.permute.xlu0 0
        %664 = vperm.xlu0 %663, %v556
        %v665 = vpop.permute.xlu0 %664
        %668 = vset.pattern.permute.xlu0 0
        %669 = vperm.xlu0 %668, %v557
        %v670 = vpop.permute.xlu0 %669
        %673 = vset.pattern.permute.xlu0 0
        %674 = vperm.xlu0 %673, %v558
        %v675 = vpop.permute.xlu0 %674
        %678 = vset.pattern.permute.xlu0 0
        %679 = vperm.xlu0 %678, %v559
        %v680 = vpop.permute.xlu0 %679
        %683 = vset.pattern.permute.xlu0 0
        %684 = vperm.xlu0 %683, %v560
        %v685 = vpop.permute.xlu0 %684
        %688 = vset.pattern.permute.xlu0 0
        %689 = vperm.xlu0 %688, %v561
        %v690 = vpop.permute.xlu0 %689
        %693 = vset.pattern.permute.xlu0 0
        %694 = vperm.xlu0 %693, %v562
        %v695 = vpop.permute.xlu0 %694
        %698 = vset.pattern.permute.xlu0 0
        %699 = vperm.xlu0 %698, %v563
        %v700 = vpop.permute.xlu0 %699
        %703 = vset.pattern.permute.xlu0 0
        %704 = vperm.xlu0 %703, %v564
        %v705 = vpop.permute.xlu0 %704
        %708 = vset.pattern.permute.xlu0 0
        %709 = vperm.xlu0 %708, %v565
        %v710 = vpop.permute.xlu0 %709
        %713 = vset.pattern.permute.xlu0 0
        %714 = vperm.xlu0 %713, %v566
        %v715 = vpop.permute.xlu0 %714
        %718 = vset.pattern.permute.xlu0 0
        %719 = vperm.xlu0 %718, %v567
        %v720 = vpop.permute.xlu0 %719
        %723 = vset.pattern.permute.xlu0 0
        %724 = vperm.xlu0 %723, %v568
        %v725 = vpop.permute.xlu0 %724
        %728 = vset.pattern.permute.xlu0 0
        %729 = vperm.xlu0 %728, %v569
        %v730 = vpop.permute.xlu0 %729
        %733 = vset.pattern.permute.xlu0 0
        %734 = vperm.xlu0 %733, %v570
        %v735 = vpop.permute.xlu0 %734
        %738 = vset.pattern.permute.xlu0 0
        %739 = vperm.xlu0 %738, %v571
        %v740 = vpop.permute.xlu0 %739
        %vm742 = vcmask 130048
        %v744 = vsel %vm742, %v471, 0
        %v747 = vsel %vm742, %v473, 0
        %v750 = vsel %vm742, %v475, 0
        %v753 = vsel %vm742, %v477, 0
        %v756 = vsel %vm742, %v479, 0
        %v759 = vsel %vm742, %v481, 0
        %v762 = vsel %vm742, %v483, 0
        %v765 = vsel %vm742, %v485, 0
        %v768 = vsel %vm742, %v487, 0
        %v771 = vsel %vm742, %v489, 0
        %v774 = vsel %vm742, %v491, 0
        %v777 = vsel %vm742, %v493, 0
        %v780 = vsel %vm742, %v495, 0
        %v783 = vsel %vm742, %v497, 0
        %v786 = vsel %vm742, %v499, 0
        %v789 = vsel %vm742, %v501, 0
        %v792 = vsel %vm742, %v503, 0
        %v795 = vsel %vm742, %v505, 0
        %v798 = vsel %vm742, %v507, 0
        %v801 = vsel %vm742, %v509, 0
        %v804 = vsel %vm742, %v511, 0
        %v807 = vsel %vm742, %v513, 0
        %v810 = vsel %vm742, %v515, 0
        %v813 = vsel %vm742, %v517, 0
        %v816 = vsel %vm742, %v519, 0
        %v819 = vsel %vm742, %v521, 0
        %v822 = vsel %vm742, %v523, 0
        %v825 = vsel %vm742, %v525, 0
        %v828 = vsel %vm742, %v527, 0
        %v831 = vsel %vm742, %v529, 0
        %v834 = vsel %vm742, %v531, 0
        %v837 = vsel %vm742, %v533, 0
        %v840 = vsel %vm742, %v535, 0
        %v843 = vsel %vm742, %v537, 0
        %845 = vmatprep.subr.mxu0 %v310
        %846 = vmatpush1.msra.mxu0 %v309
        %847 = vmatprep.subr.mxu0 %v312
        %848 = vmatpush1.msra.mxu0 %v311
        %849 = vmatprep.subr.mxu0 %v331
        %850 = vmatpush1.msra.mxu0 %v330
        %851 = vmatprep.subr.mxu0 %v333
        %852 = vmatpush1.msra.mxu0 %v332
        %853 = vmatprep.subr.mxu0 %v356
        %854 = vmatpush1.msra.mxu0 %v355
        %855 = vmatprep.subr.mxu0 %v358
        %856 = vmatpush1.msra.mxu0 %v357
        %857 = vmatprep.subr.mxu0 %v377
        %858 = vmatpush1.msra.mxu0 %v376
        %859 = vmatprep.subr.mxu0 %v379
        %860 = vmatpush1.msra.mxu0 %v378
        %861 = vmatprep.subr.mxu0 %v283
        %862 = vmatpush1.msra.mxu0 %v282
        %863 = vmatprep.subr.mxu0 %v285
        %864 = vmatpush1.msra.mxu0 %v284
        %865 = vmatprep.subr.mxu0 %v398
        %866 = vmatpush1.msra.mxu0 %v397
        %867 = vmatprep.subr.mxu0 %v400
        %868 = vmatpush1.msra.mxu0 %v399
        %869 = vmatprep.subr.mxu0 %v423
        %870 = vmatpush1.msra.mxu0 %v422
        %871 = vmatprep.subr.mxu0 %v425
        %872 = vmatpush1.msra.mxu0 %v424
        %873 = vmatprep.subr.mxu0 %v444
        %874 = vmatpush1.msra.mxu0 %v443
        %875 = vmatprep.subr.mxu0 %v446
        %876 = vmatpush1.msra.mxu0 %v445
        %877 = vmatprep.subr.mxu0 %v467
        %878 = vmatpush1.msra.mxu0 %v466
        %879 = vmatprep.subr.mxu0 %v469
        %880 = vmatpush1.msra.mxu0 %v468
        %881 = vmatprep.subr.mxu0 0.0
        %882 = vmatpush1.msra.mxu0 0.0
        %883 = vmatprep.subr.mxu0 0.0
        %884 = vmatpush1.msra.mxu0 0.0
        %885 = vmatprep.subr.mxu0 0.0
        %886 = vmatpush1.msra.mxu0 0.0
        %887 = vmatprep.subr.mxu0 0.0
        %888 = vmatpush1.msra.mxu0 0.0
        %889 = vmatprep.subr.mxu0 0.0
        %890 = vmatpush1.msra.mxu0 0.0
        %891 = vmatprep.subr.mxu0 0.0
        %892 = vmatpush1.msra.mxu0 0.0
        %893 = vmatprep.subr.mxu0 0.0
        %894 = vmatpush1.msra.mxu0 0.0
        %895 = vmatprep.subr.mxu0 0.0
        %896 = vmatpush1.msra.mxu0 0.0
        %897 = vmatprep.subr.mxu0 0.0
        %898 = vmatpush1.msra.mxu0 0.0
        %899 = vmatprep.subr.mxu0 0.0
        %900 = vmatpush1.msra.mxu0 0.0
        %901 = vmatprep.subr.mxu0 0.0
        %902 = vmatpush1.msra.mxu0 0.0
        %903 = vmatprep.subr.mxu0 0.0
        %904 = vmatpush1.msra.mxu0 0.0
        %905 = vmatprep.subr.mxu0 0.0
        %906 = vmatpush1.msra.mxu0 0.0
        %907 = vmatprep.subr.mxu0 0.0
        %908 = vmatpush1.msra.mxu0 0.0
        %909 = vmatprep.mubr.f32.mxu0 %v744
        %910 = vmatmul.mubr.f32.gmra.mrb[0].mxu0 %v470
        %v911 = vpop.f32.mrb[0].mxu0
        %v912 = vadd.f32 %v575, %v911
        %v913 = vpop.f32.mrb[0].mxu0
        %v914 = vadd.f32 %v575, %v913
        %915 = vmatprep.mubr.f32.mxu0 %v747
        %916 = vmatmul.mubr.f32.gmra.mrb[0].mxu0 %v472
        %v917 = vpop.f32.mrb[0].mxu0
        %v918 = vadd.f32 %v580, %v917
        %v919 = vpop.f32.mrb[0].mxu0
        %v920 = vadd.f32 %v580, %v919
        %921 = vmatprep.mubr.f32.mxu0 %v750
        %922 = vmatmul.mubr.f32.gmra.mrb[0].mxu0 %v474
        %v923 = vpop.f32.mrb[0].mxu0
        %v924 = vadd.f32 %v585, %v923
        %v925 = vpop.f32.mrb[0].mxu0
        %v926 = vadd.f32 %v585, %v925
        %927 = vmatprep.mubr.f32.mxu0 %v753
        %928 = vmatmul.mubr.f32.gmra.mrb[0].mxu0 %v476
        %v929 = vpop.f32.mrb[0].mxu0
        %v930 = vadd.f32 %v590, %v929
        %v931 = vpop.f32.mrb[0].mxu0
        %v932 = vadd.f32 %v590, %v931
        %933 = vmatprep.mubr.f32.mxu0 %v756
        %934 = vmatmul.mubr.f32.gmra.mrb[0].mxu0 %v478
        %v935 = vpop.f32.mrb[0].mxu0
        %v936 = vadd.f32 %v595, %v935
        %v937 = vpop.f32.mrb[0].mxu0
        %v938 = vadd.f32 %v595, %v937
        %939 = vmatprep.mubr.f32.mxu0 %v759
        %940 = vmatmul.mubr.f32.gmra.mrb[0].mxu0 %v480
        %v941 = vpop.f32.mrb[0].mxu0
        %v942 = vadd.f32 %v600, %v941
        %v943 = vpop.f32.mrb[0].mxu0
        %v944 = vadd.f32 %v600, %v943
        %945 = vmatprep.mubr.f32.mxu0 %v762
        %946 = vmatmul.mubr.f32.gmra.mrb[0].mxu0 %v482
        %v947 = vpop.f32.mrb[0].mxu0
        %v948 = vadd.f32 %v605, %v947
        %v949 = vpop.f32.mrb[0].mxu0
        %v950 = vadd.f32 %v605, %v949
        %951 = vmatprep.mubr.f32.mxu0 %v765
        %952 = vmatmul.mubr.f32.gmra.mrb[0].mxu0 %v484
        %v953 = vpop.f32.mrb[0].mxu0
        %v954 = vadd.f32 %v610, %v953
        %v955 = vpop.f32.mrb[0].mxu0
        %v956 = vadd.f32 %v610, %v955
        %957 = vmatprep.mubr.f32.mxu0 %v768
        %958 = vmatmul.mubr.f32.gmra.mrb[0].mxu0 %v486
        %v959 = vpop.f32.mrb[0].mxu0
        %v960 = vadd.f32 %v615, %v959
        %v961 = vpop.f32.mrb[0].mxu0
        %v962 = vadd.f32 %v615, %v961
        %963 = vmatprep.mubr.f32.mxu0 %v771
        %964 = vmatmul.mubr.f32.gmra.mrb[0].mxu0 %v488
        %v965 = vpop.f32.mrb[0].mxu0
        %v966 = vadd.f32 %v620, %v965
        %v967 = vpop.f32.mrb[0].mxu0
        %v968 = vadd.f32 %v620, %v967
        %969 = vmatprep.mubr.f32.mxu0 %v774
        %970 = vmatmul.mubr.f32.gmra.mrb[0].mxu0 %v490
        %v971 = vpop.f32.mrb[0].mxu0
        %v972 = vadd.f32 %v625, %v971
        %v973 = vpop.f32.mrb[0].mxu0
        %v974 = vadd.f32 %v625, %v973
        %975 = vmatprep.mubr.f32.mxu0 %v777
        %976 = vmatmul.mubr.f32.gmra.mrb[0].mxu0 %v492
        %v977 = vpop.f32.mrb[0].mxu0
        %v978 = vadd.f32 %v630, %v977
        %v979 = vpop.f32.mrb[0].mxu0
        %v980 = vadd.f32 %v630, %v979
        %981 = vmatprep.mubr.f32.mxu0 %v780
        %982 = vmatmul.mubr.f32.gmra.mrb[0].mxu0 %v494
        %v983 = vpop.f32.mrb[0].mxu0
        %v984 = vadd.f32 %v635, %v983
        %v985 = vpop.f32.mrb[0].mxu0
        %v986 = vadd.f32 %v635, %v985
        %987 = vmatprep.mubr.f32.mxu0 %v783
        %988 = vmatmul.mubr.f32.gmra.mrb[0].mxu0 %v496
        %v989 = vpop.f32.mrb[0].mxu0
        %v990 = vadd.f32 %v640, %v989
        %v991 = vpop.f32.mrb[0].mxu0
        %v992 = vadd.f32 %v640, %v991
        %993 = vmatprep.mubr.f32.mxu0 %v786
        %994 = vmatmul.mubr.f32.gmra.mrb[0].mxu0 %v498
        %v995 = vpop.f32.mrb[0].mxu0
        %v996 = vadd.f32 %v645, %v995
        %v997 = vpop.f32.mrb[0].mxu0
        %v998 = vadd.f32 %v645, %v997
        %999 = vmatprep.mubr.f32.mxu0 %v789
        %1000 = vmatmul.mubr.f32.gmra.mrb[0].mxu0 %v500
        %v1001 = vpop.f32.mrb[0].mxu0
        %v1002 = vadd.f32 %v650, %v1001
        %v1003 = vpop.f32.mrb[0].mxu0
        %v1004 = vadd.f32 %v650, %v1003
        %1005 = vmatprep.mubr.f32.mxu0 %v792
        %1006 = vmatmul.mubr.f32.gmra.mrb[0].mxu0 %v502
        %v1007 = vpop.f32.mrb[0].mxu0
        %v1008 = vadd.f32 %v655, %v1007
        %v1009 = vpop.f32.mrb[0].mxu0
        %v1010 = vadd.f32 %v655, %v1009
        %1011 = vmatprep.mubr.f32.mxu0 %v795
        %1012 = vmatmul.mubr.f32.gmra.mrb[0].mxu0 %v504
        %v1013 = vpop.f32.mrb[0].mxu0
        %v1014 = vadd.f32 %v660, %v1013
        %v1015 = vpop.f32.mrb[0].mxu0
        %v1016 = vadd.f32 %v660, %v1015
        %1017 = vmatprep.mubr.f32.mxu0 %v798
        %1018 = vmatmul.mubr.f32.gmra.mrb[0].mxu0 %v506
        %v1019 = vpop.f32.mrb[0].mxu0
        %v1020 = vadd.f32 %v665, %v1019
        %v1021 = vpop.f32.mrb[0].mxu0
        %v1022 = vadd.f32 %v665, %v1021
        %1023 = vmatprep.mubr.f32.mxu0 %v801
        %1024 = vmatmul.mubr.f32.gmra.mrb[0].mxu0 %v508
        %v1025 = vpop.f32.mrb[0].mxu0
        %v1026 = vadd.f32 %v670, %v1025
        %v1027 = vpop.f32.mrb[0].mxu0
        %v1028 = vadd.f32 %v670, %v1027
        %1029 = vmatprep.mubr.f32.mxu0 %v804
        %1030 = vmatmul.mubr.f32.gmra.mrb[0].mxu0 %v510
        %v1031 = vpop.f32.mrb[0].mxu0
        %v1032 = vadd.f32 %v675, %v1031
        %v1033 = vpop.f32.mrb[0].mxu0
        %v1034 = vadd.f32 %v675, %v1033
        %1035 = vmatprep.mubr.f32.mxu0 %v807
        %1036 = vmatmul.mubr.f32.gmra.mrb[0].mxu0 %v512
        %v1037 = vpop.f32.mrb[0].mxu0
        %v1038 = vadd.f32 %v680, %v1037
        %v1039 = vpop.f32.mrb[0].mxu0
        %v1040 = vadd.f32 %v680, %v1039
        %1041 = vmatprep.mubr.f32.mxu0 %v810
        %1042 = vmatmul.mubr.f32.gmra.mrb[0].mxu0 %v514
        %v1043 = vpop.f32.mrb[0].mxu0
        %v1044 = vadd.f32 %v685, %v1043
        %v1045 = vpop.f32.mrb[0].mxu0
        %v1046 = vadd.f32 %v685, %v1045
        %1047 = vmatprep.mubr.f32.mxu0 %v813
        %1048 = vmatmul.mubr.f32.gmra.mrb[0].mxu0 %v516
        %v1049 = vpop.f32.mrb[0].mxu0
        %v1050 = vadd.f32 %v690, %v1049
        %v1051 = vpop.f32.mrb[0].mxu0
        %v1052 = vadd.f32 %v690, %v1051
        %1053 = vmatprep.mubr.f32.mxu0 %v816
        %1054 = vmatmul.mubr.f32.gmra.mrb[0].mxu0 %v518
        %v1055 = vpop.f32.mrb[0].mxu0
        %v1056 = vadd.f32 %v695, %v1055
        %v1057 = vpop.f32.mrb[0].mxu0
        %v1058 = vadd.f32 %v695, %v1057
        %1059 = vmatprep.mubr.f32.mxu0 %v819
        %1060 = vmatmul.mubr.f32.gmra.mrb[0].mxu0 %v520
        %v1061 = vpop.f32.mrb[0].mxu0
        %v1062 = vadd.f32 %v700, %v1061
        %v1063 = vpop.f32.mrb[0].mxu0
        %v1064 = vadd.f32 %v700, %v1063
        %1065 = vmatprep.mubr.f32.mxu0 %v822
        %1066 = vmatmul.mubr.f32.gmra.mrb[0].mxu0 %v522
        %v1067 = vpop.f32.mrb[0].mxu0
        %v1068 = vadd.f32 %v705, %v1067
        %v1069 = vpop.f32.mrb[0].mxu0
        %v1070 = vadd.f32 %v705, %v1069
        %1071 = vmatprep.mubr.f32.mxu0 %v825
        %1072 = vmatmul.mubr.f32.gmra.mrb[0].mxu0 %v524
        %v1073 = vpop.f32.mrb[0].mxu0
        %v1074 = vadd.f32 %v710, %v1073
        %v1075 = vpop.f32.mrb[0].mxu0
        %v1076 = vadd.f32 %v710, %v1075
        %1077 = vmatprep.mubr.f32.mxu0 %v828
        %1078 = vmatmul.mubr.f32.gmra.mrb[0].mxu0 %v526
        %v1079 = vpop.f32.mrb[0].mxu0
        %v1080 = vadd.f32 %v715, %v1079
        %v1081 = vpop.f32.mrb[0].mxu0
        %v1082 = vadd.f32 %v715, %v1081
        %1083 = vmatprep.mubr.f32.mxu0 %v831
        %1084 = vmatmul.mubr.f32.gmra.mrb[0].mxu0 %v528
        %v1085 = vpop.f32.mrb[0].mxu0
        %v1086 = vadd.f32 %v720, %v1085
        %v1087 = vpop.f32.mrb[0].mxu0
        %v1088 = vadd.f32 %v720, %v1087
        %1089 = vmatprep.mubr.f32.mxu0 %v834
        %1090 = vmatmul.mubr.f32.gmra.mrb[0].mxu0 %v530
        %v1091 = vpop.f32.mrb[0].mxu0
        %v1092 = vadd.f32 %v725, %v1091
        %v1093 = vpop.f32.mrb[0].mxu0
        %v1094 = vadd.f32 %v725, %v1093
        %1095 = vmatprep.mubr.f32.mxu0 %v837
        %1096 = vmatmul.mubr.f32.gmra.mrb[0].mxu0 %v532
        %v1097 = vpop.f32.mrb[0].mxu0
        %v1098 = vadd.f32 %v730, %v1097
        %v1099 = vpop.f32.mrb[0].mxu0
        %v1100 = vadd.f32 %v730, %v1099
        %1101 = vmatprep.mubr.f32.mxu0 %v840
        %1102 = vmatmul.mubr.f32.gmra.mrb[0].mxu0 %v534
        %v1103 = vpop.f32.mrb[0].mxu0
        %v1104 = vadd.f32 %v735, %v1103
        %v1105 = vpop.f32.mrb[0].mxu0
        %v1106 = vadd.f32 %v735, %v1105
        %1107 = vmatprep.mubr.f32.mxu0 %v843
        %1108 = vmatmul.mubr.f32.gmra.mrb[0].mxu0 %v536
        %v1109 = vpop.f32.mrb[0].mxu0
        %v1110 = vadd.f32 %v740, %v1109
        %v1111 = vpop.f32.mrb[0].mxu0
        %v1112 = vadd.f32 %v740, %v1111
        %1113 = vdwg.mxu0
        %v1114 = vmax.f32 %v912, 0.0
        %v1115 = vmax.f32 %v914, 0.0
        %v1116 = vmax.f32 %v918, 0.0
        %v1117 = vmax.f32 %v920, 0.0
        %v1118 = vmax.f32 %v924, 0.0
        %v1119 = vmax.f32 %v926, 0.0
        %v1120 = vmax.f32 %v930, 0.0
        %v1121 = vmax.f32 %v932, 0.0
        %v1122 = vmax.f32 %v936, 0.0
        %v1123 = vmax.f32 %v938, 0.0
        %v1124 = vmax.f32 %v942, 0.0
        %v1125 = vmax.f32 %v944, 0.0
        %v1126 = vmax.f32 %v948, 0.0
        %v1127 = vmax.f32 %v950, 0.0
        %v1128 = vmax.f32 %v954, 0.0
        %v1129 = vmax.f32 %v956, 0.0
        %v1130 = vmax.f32 %v960, 0.0
        %v1131 = vmax.f32 %v962, 0.0
        %v1132 = vmax.f32 %v966, 0.0
        %v1133 = vmax.f32 %v968, 0.0
        %v1134 = vmax.f32 %v972, 0.0
        %v1135 = vmax.f32 %v974, 0.0
        %v1136 = vmax.f32 %v978, 0.0
        %v1137 = vmax.f32 %v980, 0.0
        %v1138 = vmax.f32 %v984, 0.0
        %v1139 = vmax.f32 %v986, 0.0
        %v1140 = vmax.f32 %v990, 0.0
        %v1141 = vmax.f32 %v992, 0.0
        %v1142 = vmax.f32 %v996, 0.0
        %v1143 = vmax.f32 %v998, 0.0
        %v1144 = vmax.f32 %v1002, 0.0
        %v1145 = vmax.f32 %v1004, 0.0
        %v1146 = vmax.f32 %v1008, 0.0
        %v1147 = vmax.f32 %v1010, 0.0
        %v1148 = vmax.f32 %v1014, 0.0
        %v1149 = vmax.f32 %v1016, 0.0
        %v1150 = vmax.f32 %v1020, 0.0
        %v1151 = vmax.f32 %v1022, 0.0
        %v1152 = vmax.f32 %v1026, 0.0
        %v1153 = vmax.f32 %v1028, 0.0
        %v1154 = vmax.f32 %v1032, 0.0
        %v1155 = vmax.f32 %v1034, 0.0
        %v1156 = vmax.f32 %v1038, 0.0
        %v1157 = vmax.f32 %v1040, 0.0
        %v1158 = vmax.f32 %v1044, 0.0
        %v1159 = vmax.f32 %v1046, 0.0
        %v1160 = vmax.f32 %v1050, 0.0
        %v1161 = vmax.f32 %v1052, 0.0
        %v1162 = vmax.f32 %v1056, 0.0
        %v1163 = vmax.f32 %v1058, 0.0
        %v1164 = vmax.f32 %v1062, 0.0
        %v1165 = vmax.f32 %v1064, 0.0
        %v1166 = vmax.f32 %v1068, 0.0
        %v1167 = vmax.f32 %v1070, 0.0
        %v1168 = vmax.f32 %v1074, 0.0
        %v1169 = vmax.f32 %v1076, 0.0
        %v1170 = vmax.f32 %v1080, 0.0
        %v1171 = vmax.f32 %v1082, 0.0
        %v1172 = vmax.f32 %v1086, 0.0
        %v1173 = vmax.f32 %v1088, 0.0
        %v1174 = vmax.f32 %v1092, 0.0
        %v1175 = vmax.f32 %v1094, 0.0
        %v1176 = vmax.f32 %v1098, 0.0
        %v1177 = vmax.f32 %v1100, 0.0
        %v1178 = vmax.f32 %v1104, 0.0
        %v1179 = vmax.f32 %v1106, 0.0
        %v1180 = vmax.f32 %v1110, 0.0
        %v1181 = vmax.f32 %v1112, 0.0
        %1182 = vrot.lane.b32.xlu0 %v1114, 112
        %v1183 = vpop.permute.xlu0 %1182
        %1184 = vrot.lane.b32.xlu0 %v1116, 112
        %v1185 = vpop.permute.xlu0 %1184
        %1186 = vrot.lane.b32.xlu0 %v1118, 112
        %v1187 = vpop.permute.xlu0 %1186
        %1188 = vrot.lane.b32.xlu0 %v1120, 112
        %v1189 = vpop.permute.xlu0 %1188
        %1190 = vrot.lane.b32.xlu0 %v1122, 112
        %v1191 = vpop.permute.xlu0 %1190
        %1192 = vrot.lane.b32.xlu0 %v1124, 112
        %v1193 = vpop.permute.xlu0 %1192
        %1194 = vrot.lane.b32.xlu0 %v1126, 112
        %v1195 = vpop.permute.xlu0 %1194
        %1196 = vrot.lane.b32.xlu0 %v1128, 112
        %v1197 = vpop.permute.xlu0 %1196
        %1198 = vrot.lane.b32.xlu0 %v1130, 112
        %v1199 = vpop.permute.xlu0 %1198
        %1200 = vrot.lane.b32.xlu0 %v1132, 112
        %v1201 = vpop.permute.xlu0 %1200
        %1202 = vrot.lane.b32.xlu0 %v1134, 112
        %v1203 = vpop.permute.xlu0 %1202
        %1204 = vrot.lane.b32.xlu0 %v1136, 112
        %v1205 = vpop.permute.xlu0 %1204
        %1206 = vrot.lane.b32.xlu0 %v1138, 112
        %v1207 = vpop.permute.xlu0 %1206
        %1208 = vrot.lane.b32.xlu0 %v1140, 112
        %v1209 = vpop.permute.xlu0 %1208
        %1210 = vrot.lane.b32.xlu0 %v1142, 112
        %v1211 = vpop.permute.xlu0 %1210
        %1212 = vrot.lane.b32.xlu0 %v1144, 112
        %v1213 = vpop.permute.xlu0 %1212
        %1214 = vrot.lane.b32.xlu0 %v1115, 112
        %v1215 = vpop.permute.xlu0 %1214
        %1216 = vrot.lane.b32.xlu0 %v1117, 112
        %v1217 = vpop.permute.xlu0 %1216
        %1218 = vrot.lane.b32.xlu0 %v1119, 112
        %v1219 = vpop.permute.xlu0 %1218
        %1220 = vrot.lane.b32.xlu0 %v1121, 112
        %v1221 = vpop.permute.xlu0 %1220
        %1222 = vrot.lane.b32.xlu0 %v1123, 112
        %v1223 = vpop.permute.xlu0 %1222
        %1224 = vrot.lane.b32.xlu0 %v1125, 112
        %v1225 = vpop.permute.xlu0 %1224
        %1226 = vrot.lane.b32.xlu0 %v1127, 112
        %v1227 = vpop.permute.xlu0 %1226
        %1228 = vrot.lane.b32.xlu0 %v1129, 112
        %v1229 = vpop.permute.xlu0 %1228
        %1230 = vrot.lane.b32.xlu0 %v1131, 112
        %v1231 = vpop.permute.xlu0 %1230
        %1232 = vrot.lane.b32.xlu0 %v1133, 112
        %v1233 = vpop.permute.xlu0 %1232
        %1234 = vrot.lane.b32.xlu0 %v1135, 112
        %v1235 = vpop.permute.xlu0 %1234
        %1236 = vrot.lane.b32.xlu0 %v1137, 112
        %v1237 = vpop.permute.xlu0 %1236
        %1238 = vrot.lane.b32.xlu0 %v1139, 112
        %v1239 = vpop.permute.xlu0 %1238
        %1240 = vrot.lane.b32.xlu0 %v1141, 112
        %v1241 = vpop.permute.xlu0 %1240
        %1242 = vrot.lane.b32.xlu0 %v1143, 112
        %v1243 = vpop.permute.xlu0 %1242
        %1244 = vrot.lane.b32.xlu0 %v1145, 112
        %v1245 = vpop.permute.xlu0 %1244
        %v1246 = vsel %vm434, %v1183, %v1215
        %v1247 = vsel %vm434, %v1185, %v1217
        %v1248 = vsel %vm434, %v1187, %v1219
        %v1249 = vsel %vm434, %v1189, %v1221
        %v1250 = vsel %vm434, %v1191, %v1223
        %v1251 = vsel %vm434, %v1193, %v1225
        %v1252 = vsel %vm434, %v1195, %v1227
        %v1253 = vsel %vm434, %v1197, %v1229
        %v1254 = vsel %vm434, %v1199, %v1231
        %v1255 = vsel %vm434, %v1201, %v1233
        %v1256 = vsel %vm434, %v1203, %v1235
        %v1257 = vsel %vm434, %v1205, %v1237
        %v1258 = vsel %vm434, %v1207, %v1239
        %v1259 = vsel %vm434, %v1209, %v1241
        %v1260 = vsel %vm434, %v1211, %v1243
        %v1261 = vsel %vm434, %v1213, %v1245
        %v1262 = vsel %vm434, %v1215, %v1183
        %v1263 = vsel %vm434, %v1217, %v1185
        %v1264 = vsel %vm434, %v1219, %v1187
        %v1265 = vsel %vm434, %v1221, %v1189
        %v1266 = vsel %vm434, %v1223, %v1191
        %v1267 = vsel %vm434, %v1225, %v1193
        %v1268 = vsel %vm434, %v1227, %v1195
        %v1269 = vsel %vm434, %v1229, %v1197
        %v1270 = vsel %vm434, %v1231, %v1199
        %v1271 = vsel %vm434, %v1233, %v1201
        %v1272 = vsel %vm434, %v1235, %v1203
        %v1273 = vsel %vm434, %v1237, %v1205
        %v1274 = vsel %vm434, %v1239, %v1207
        %v1275 = vsel %vm434, %v1241, %v1209
        %v1276 = vsel %vm434, %v1243, %v1211
        %v1277 = vsel %vm434, %v1245, %v1213
        %v1278 = vmax.f32 %v1114, %v1246
        %v1279 = vmax.f32 %v1115, %v1262
        %v1280 = vmax.f32 %v1116, %v1247
        %v1281 = vmax.f32 %v1117, %v1263
        %v1282 = vmax.f32 %v1118, %v1248
        %v1283 = vmax.f32 %v1119, %v1264
        %v1284 = vmax.f32 %v1120, %v1249
        %v1285 = vmax.f32 %v1121, %v1265
        %v1286 = vmax.f32 %v1122, %v1250
        %v1287 = vmax.f32 %v1123, %v1266
        %v1288 = vmax.f32 %v1124, %v1251
        %v1289 = vmax.f32 %v1125, %v1267
        %v1290 = vmax.f32 %v1126, %v1252
        %v1291 = vmax.f32 %v1127, %v1268
        %v1292 = vmax.f32 %v1128, %v1253
        %v1293 = vmax.f32 %v1129, %v1269
        %v1294 = vmax.f32 %v1130, %v1254
        %v1295 = vmax.f32 %v1131, %v1270
        %v1296 = vmax.f32 %v1132, %v1255
        %v1297 = vmax.f32 %v1133, %v1271
        %v1298 = vmax.f32 %v1134, %v1256
        %v1299 = vmax.f32 %v1135, %v1272
        %v1300 = vmax.f32 %v1136, %v1257
        %v1301 = vmax.f32 %v1137, %v1273
        %v1302 = vmax.f32 %v1138, %v1258
        %v1303 = vmax.f32 %v1139, %v1274
        %v1304 = vmax.f32 %v1140, %v1259
        %v1305 = vmax.f32 %v1141, %v1275
        %v1306 = vmax.f32 %v1142, %v1260
        %v1307 = vmax.f32 %v1143, %v1276
        %v1308 = vmax.f32 %v1144, %v1261
        %v1309 = vmax.f32 %v1145, %v1277
        %v1310 = vsel %vm441, %v1278, %v1114
        %v1311 = vsel %vm442, %v1279, %v1115
        %v1312 = vsel %vm441, %v1280, %v1116
        %v1313 = vsel %vm442, %v1281, %v1117
        %v1314 = vsel %vm441, %v1282, %v1118
        %v1315 = vsel %vm442, %v1283, %v1119
        %v1316 = vsel %vm441, %v1284, %v1120
        %v1317 = vsel %vm442, %v1285, %v1121
        %v1318 = vsel %vm441, %v1286, %v1122
        %v1319 = vsel %vm442, %v1287, %v1123
        %v1320 = vsel %vm441, %v1288, %v1124
        %v1321 = vsel %vm442, %v1289, %v1125
        %v1322 = vsel %vm441, %v1290, %v1126
        %v1323 = vsel %vm442, %v1291, %v1127
        %v1324 = vsel %vm441, %v1292, %v1128
        %v1325 = vsel %vm442, %v1293, %v1129
        %v1326 = vsel %vm441, %v1294, %v1130
        %v1327 = vsel %vm442, %v1295, %v1131
        %v1328 = vsel %vm441, %v1296, %v1132
        %v1329 = vsel %vm442, %v1297, %v1133
        %v1330 = vsel %vm441, %v1298, %v1134
        %v1331 = vsel %vm442, %v1299, %v1135
        %v1332 = vsel %vm441, %v1300, %v1136
        %v1333 = vsel %vm442, %v1301, %v1137
        %v1334 = vsel %vm441, %v1302, %v1138
        %v1335 = vsel %vm442, %v1303, %v1139
        %v1336 = vsel %vm441, %v1304, %v1140
        %v1337 = vsel %vm442, %v1305, %v1141
        %v1338 = vsel %vm441, %v1306, %v1142
        %v1339 = vsel %vm442, %v1307, %v1143
        %v1340 = vsel %vm441, %v1308, %v1144
        %v1341 = vsel %vm442, %v1309, %v1145
        %1342 = vrot.lane.b32.xlu0 %v1310, 96
        %v1343 = vpop.permute.xlu0 %1342
        %1344 = vrot.lane.b32.xlu0 %v1312, 96
        %v1345 = vpop.permute.xlu0 %1344
        %1346 = vrot.lane.b32.xlu0 %v1314, 96
        %v1347 = vpop.permute.xlu0 %1346
        %1348 = vrot.lane.b32.xlu0 %v1316, 96
        %v1349 = vpop.permute.xlu0 %1348
        %1350 = vrot.lane.b32.xlu0 %v1318, 96
        %v1351 = vpop.permute.xlu0 %1350
        %1352 = vrot.lane.b32.xlu0 %v1320, 96
        %v1353 = vpop.permute.xlu0 %1352
        %1354 = vrot.lane.b32.xlu0 %v1322, 96
        %v1355 = vpop.permute.xlu0 %1354
        %1356 = vrot.lane.b32.xlu0 %v1324, 96
        %v1357 = vpop.permute.xlu0 %1356
        %1358 = vrot.lane.b32.xlu0 %v1326, 96
        %v1359 = vpop.permute.xlu0 %1358
        %1360 = vrot.lane.b32.xlu0 %v1328, 96
        %v1361 = vpop.permute.xlu0 %1360
        %1362 = vrot.lane.b32.xlu0 %v1330, 96
        %v1363 = vpop.permute.xlu0 %1362
        %1364 = vrot.lane.b32.xlu0 %v1332, 96
        %v1365 = vpop.permute.xlu0 %1364
        %1366 = vrot.lane.b32.xlu0 %v1334, 96
        %v1367 = vpop.permute.xlu0 %1366
        %1368 = vrot.lane.b32.xlu0 %v1336, 96
        %v1369 = vpop.permute.xlu0 %1368
        %1370 = vrot.lane.b32.xlu0 %v1338, 96
        %v1371 = vpop.permute.xlu0 %1370
        %1372 = vrot.lane.b32.xlu0 %v1340, 96
        %v1373 = vpop.permute.xlu0 %1372
        %1374 = vrot.lane.b32.xlu0 %v1311, 96
        %v1375 = vpop.permute.xlu0 %1374
        %1376 = vrot.lane.b32.xlu0 %v1313, 96
        %v1377 = vpop.permute.xlu0 %1376
        %1378 = vrot.lane.b32.xlu0 %v1315, 96
        %v1379 = vpop.permute.xlu0 %1378
        %1380 = vrot.lane.b32.xlu0 %v1317, 96
        %v1381 = vpop.permute.xlu0 %1380
        %1382 = vrot.lane.b32.xlu0 %v1319, 96
        %v1383 = vpop.permute.xlu0 %1382
        %1384 = vrot.lane.b32.xlu0 %v1321, 96
        %v1385 = vpop.permute.xlu0 %1384
        %1386 = vrot.lane.b32.xlu0 %v1323, 96
        %v1387 = vpop.permute.xlu0 %1386
        %1388 = vrot.lane.b32.xlu0 %v1325, 96
        %v1389 = vpop.permute.xlu0 %1388
        %1390 = vrot.lane.b32.xlu0 %v1327, 96
        %v1391 = vpop.permute.xlu0 %1390
        %1392 = vrot.lane.b32.xlu0 %v1329, 96
        %v1393 = vpop.permute.xlu0 %1392
        %1394 = vrot.lane.b32.xlu0 %v1331, 96
        %v1395 = vpop.permute.xlu0 %1394
        %1396 = vrot.lane.b32.xlu0 %v1333, 96
        %v1397 = vpop.permute.xlu0 %1396
        %1398 = vrot.lane.b32.xlu0 %v1335, 96
        %v1399 = vpop.permute.xlu0 %1398
        %1400 = vrot.lane.b32.xlu0 %v1337, 96
        %v1401 = vpop.permute.xlu0 %1400
        %1402 = vrot.lane.b32.xlu0 %v1339, 96
        %v1403 = vpop.permute.xlu0 %1402
        %1404 = vrot.lane.b32.xlu0 %v1341, 96
        %v1405 = vpop.permute.xlu0 %1404
        %vm1406 = vcmp.lt.s32.totalorder %v278, 96
        %v1407 = vsel %vm1406, %v1343, %v1375
        %v1408 = vsel %vm1406, %v1345, %v1377
        %v1409 = vsel %vm1406, %v1347, %v1379
        %v1410 = vsel %vm1406, %v1349, %v1381
        %v1411 = vsel %vm1406, %v1351, %v1383
        %v1412 = vsel %vm1406, %v1353, %v1385
        %v1413 = vsel %vm1406, %v1355, %v1387
        %v1414 = vsel %vm1406, %v1357, %v1389
        %v1415 = vsel %vm1406, %v1359, %v1391
        %v1416 = vsel %vm1406, %v1361, %v1393
        %v1417 = vsel %vm1406, %v1363, %v1395
        %v1418 = vsel %vm1406, %v1365, %v1397
        %v1419 = vsel %vm1406, %v1367, %v1399
        %v1420 = vsel %vm1406, %v1369, %v1401
        %v1421 = vsel %vm1406, %v1371, %v1403
        %v1422 = vsel %vm1406, %v1373, %v1405
        %v1423 = vsel %vm1406, %v1375, %v1343
        %v1424 = vsel %vm1406, %v1377, %v1345
        %v1425 = vsel %vm1406, %v1379, %v1347
        %v1426 = vsel %vm1406, %v1381, %v1349
        %v1427 = vsel %vm1406, %v1383, %v1351
        %v1428 = vsel %vm1406, %v1385, %v1353
        %v1429 = vsel %vm1406, %v1387, %v1355
        %v1430 = vsel %vm1406, %v1389, %v1357
        %v1431 = vsel %vm1406, %v1391, %v1359
        %v1432 = vsel %vm1406, %v1393, %v1361
        %v1433 = vsel %vm1406, %v1395, %v1363
        %v1434 = vsel %vm1406, %v1397, %v1365
        %v1435 = vsel %vm1406, %v1399, %v1367
        %v1436 = vsel %vm1406, %v1401, %v1369
        %v1437 = vsel %vm1406, %v1403, %v1371
        %v1438 = vsel %vm1406, %v1405, %v1373
        %vm1439 = vcmp.lt.s32.totalorder %v278, 224
        %vm1440 = vcmp.lt.s32.totalorder %v279, 224
        %v1441 = vmax.f32 %v1310, %v1407
        %v1442 = vmax.f32 %v1311, %v1423
        %v1443 = vmax.f32 %v1312, %v1408
        %v1444 = vmax.f32 %v1313, %v1424
        %v1445 = vmax.f32 %v1314, %v1409
        %v1446 = vmax.f32 %v1315, %v1425
        %v1447 = vmax.f32 %v1316, %v1410
        %v1448 = vmax.f32 %v1317, %v1426
        %v1449 = vmax.f32 %v1318, %v1411
        %v1450 = vmax.f32 %v1319, %v1427
        %v1451 = vmax.f32 %v1320, %v1412
        %v1452 = vmax.f32 %v1321, %v1428
        %v1453 = vmax.f32 %v1322, %v1413
        %v1454 = vmax.f32 %v1323, %v1429
        %v1455 = vmax.f32 %v1324, %v1414
        %v1456 = vmax.f32 %v1325, %v1430
        %v1457 = vmax.f32 %v1326, %v1415
        %v1458 = vmax.f32 %v1327, %v1431
        %v1459 = vmax.f32 %v1328, %v1416
        %v1460 = vmax.f32 %v1329, %v1432
        %v1461 = vmax.f32 %v1330, %v1417
        %v1462 = vmax.f32 %v1331, %v1433
        %v1463 = vmax.f32 %v1332, %v1418
        %v1464 = vmax.f32 %v1333, %v1434
        %v1465 = vmax.f32 %v1334, %v1419
        %v1466 = vmax.f32 %v1335, %v1435
        %v1467 = vmax.f32 %v1336, %v1420
        %v1468 = vmax.f32 %v1337, %v1436
        %v1469 = vmax.f32 %v1338, %v1421
        %v1470 = vmax.f32 %v1339, %v1437
        %v1471 = vmax.f32 %v1340, %v1422
        %v1472 = vmax.f32 %v1341, %v1438
        %v1473 = vsel %vm1439, 1, 0
        %v1474 = vsel %vm1440, 1, 0
        %vm1475 = vcmp.eq.s32.totalorder %v1473, 1
        %vm1476 = vcmp.eq.s32.totalorder %v1474, 1
        %v1477 = vsel %vm1475, %v1441, %v1310
        %v1478 = vsel %vm1476, %v1442, %v1311
        %v1479 = vsel %vm1475, %v1443, %v1312
        %v1480 = vsel %vm1476, %v1444, %v1313
        %v1481 = vsel %vm1475, %v1445, %v1314
        %v1482 = vsel %vm1476, %v1446, %v1315
        %v1483 = vsel %vm1475, %v1447, %v1316
        %v1484 = vsel %vm1476, %v1448, %v1317
        %v1485 = vsel %vm1475, %v1449, %v1318
        %v1486 = vsel %vm1476, %v1450, %v1319
        %v1487 = vsel %vm1475, %v1451, %v1320
        %v1488 = vsel %vm1476, %v1452, %v1321
        %v1489 = vsel %vm1475, %v1453, %v1322
        %v1490 = vsel %vm1476, %v1454, %v1323
        %v1491 = vsel %vm1475, %v1455, %v1324
        %v1492 = vsel %vm1476, %v1456, %v1325
        %v1493 = vsel %vm1475, %v1457, %v1326
        %v1494 = vsel %vm1476, %v1458, %v1327
        %v1495 = vsel %vm1475, %v1459, %v1328
        %v1496 = vsel %vm1476, %v1460, %v1329
        %v1497 = vsel %vm1475, %v1461, %v1330
        %v1498 = vsel %vm1476, %v1462, %v1331
        %v1499 = vsel %vm1475, %v1463, %v1332
        %v1500 = vsel %vm1476, %v1464, %v1333
        %v1501 = vsel %vm1475, %v1465, %v1334
        %v1502 = vsel %vm1476, %v1466, %v1335
        %v1503 = vsel %vm1475, %v1467, %v1336
        %v1504 = vsel %vm1476, %v1468, %v1337
        %v1505 = vsel %vm1475, %v1469, %v1338
        %v1506 = vsel %vm1476, %v1470, %v1339
        %v1507 = vsel %vm1475, %v1471, %v1340
        %v1508 = vsel %vm1476, %v1472, %v1341
        %1509 = vrot.lane.b32.xlu0 %v1477, 64
        %v1510 = vpop.permute.xlu0 %1509
        %1511 = vrot.lane.b32.xlu0 %v1479, 64
        %v1512 = vpop.permute.xlu0 %1511
        %1513 = vrot.lane.b32.xlu0 %v1481, 64
        %v1514 = vpop.permute.xlu0 %1513
        %1515 = vrot.lane.b32.xlu0 %v1483, 64
        %v1516 = vpop.permute.xlu0 %1515
        %1517 = vrot.lane.b32.xlu0 %v1485, 64
        %v1518 = vpop.permute.xlu0 %1517
        %1519 = vrot.lane.b32.xlu0 %v1487, 64
        %v1520 = vpop.permute.xlu0 %1519
        %1521 = vrot.lane.b32.xlu0 %v1489, 64
        %v1522 = vpop.permute.xlu0 %1521
        %1523 = vrot.lane.b32.xlu0 %v1491, 64
        %v1524 = vpop.permute.xlu0 %1523
        %1525 = vrot.lane.b32.xlu0 %v1493, 64
        %v1526 = vpop.permute.xlu0 %1525
        %1527 = vrot.lane.b32.xlu0 %v1495, 64
        %v1528 = vpop.permute.xlu0 %1527
        %1529 = vrot.lane.b32.xlu0 %v1497, 64
        %v1530 = vpop.permute.xlu0 %1529
        %1531 = vrot.lane.b32.xlu0 %v1499, 64
        %v1532 = vpop.permute.xlu0 %1531
        %1533 = vrot.lane.b32.xlu0 %v1501, 64
        %v1534 = vpop.permute.xlu0 %1533
        %1535 = vrot.lane.b32.xlu0 %v1503, 64
        %v1536 = vpop.permute.xlu0 %1535
        %1537 = vrot.lane.b32.xlu0 %v1505, 64
        %v1538 = vpop.permute.xlu0 %1537
        %1539 = vrot.lane.b32.xlu0 %v1507, 64
        %v1540 = vpop.permute.xlu0 %1539
        %1541 = vrot.lane.b32.xlu0 %v1478, 64
        %v1542 = vpop.permute.xlu0 %1541
        %1543 = vrot.lane.b32.xlu0 %v1480, 64
        %v1544 = vpop.permute.xlu0 %1543
        %1545 = vrot.lane.b32.xlu0 %v1482, 64
        %v1546 = vpop.permute.xlu0 %1545
        %1547 = vrot.lane.b32.xlu0 %v1484, 64
        %v1548 = vpop.permute.xlu0 %1547
        %1549 = vrot.lane.b32.xlu0 %v1486, 64
        %v1550 = vpop.permute.xlu0 %1549
        %1551 = vrot.lane.b32.xlu0 %v1488, 64
        %v1552 = vpop.permute.xlu0 %1551
        %1553 = vrot.lane.b32.xlu0 %v1490, 64
        %v1554 = vpop.permute.xlu0 %1553
        %1555 = vrot.lane.b32.xlu0 %v1492, 64
        %v1556 = vpop.permute.xlu0 %1555
        %1557 = vrot.lane.b32.xlu0 %v1494, 64
        %v1558 = vpop.permute.xlu0 %1557
        %1559 = vrot.lane.b32.xlu0 %v1496, 64
        %v1560 = vpop.permute.xlu0 %1559
        %1561 = vrot.lane.b32.xlu0 %v1498, 64
        %v1562 = vpop.permute.xlu0 %1561
        %1563 = vrot.lane.b32.xlu0 %v1500, 64
        %v1564 = vpop.permute.xlu0 %1563
        %1565 = vrot.lane.b32.xlu0 %v1502, 64
        %v1566 = vpop.permute.xlu0 %1565
        %1567 = vrot.lane.b32.xlu0 %v1504, 64
        %v1568 = vpop.permute.xlu0 %1567
        %1569 = vrot.lane.b32.xlu0 %v1506, 64
        %v1570 = vpop.permute.xlu0 %1569
        %1571 = vrot.lane.b32.xlu0 %v1508, 64
        %v1572 = vpop.permute.xlu0 %1571
        %vm1573 = vcmp.lt.s32.totalorder %v278, 64
        %v1574 = vsel %vm1573, %v1510, %v1542
        %v1575 = vsel %vm1573, %v1512, %v1544
        %v1576 = vsel %vm1573, %v1514, %v1546
        %v1577 = vsel %vm1573, %v1516, %v1548
        %v1578 = vsel %vm1573, %v1518, %v1550
        %v1579 = vsel %vm1573, %v1520, %v1552
        %v1580 = vsel %vm1573, %v1522, %v1554
        %v1581 = vsel %vm1573, %v1524, %v1556
        %v1582 = vsel %vm1573, %v1526, %v1558
        %v1583 = vsel %vm1573, %v1528, %v1560
        %v1584 = vsel %vm1573, %v1530, %v1562
        %v1585 = vsel %vm1573, %v1532, %v1564
        %v1586 = vsel %vm1573, %v1534, %v1566
        %v1587 = vsel %vm1573, %v1536, %v1568
        %v1588 = vsel %vm1573, %v1538, %v1570
        %v1589 = vsel %vm1573, %v1540, %v1572
        %v1590 = vsel %vm1573, %v1542, %v1510
        %v1591 = vsel %vm1573, %v1544, %v1512
        %v1592 = vsel %vm1573, %v1546, %v1514
        %v1593 = vsel %vm1573, %v1548, %v1516
        %v1594 = vsel %vm1573, %v1550, %v1518
        %v1595 = vsel %vm1573, %v1552, %v1520
        %v1596 = vsel %vm1573, %v1554, %v1522
        %v1597 = vsel %vm1573, %v1556, %v1524
        %v1598 = vsel %vm1573, %v1558, %v1526
        %v1599 = vsel %vm1573, %v1560, %v1528
        %v1600 = vsel %vm1573, %v1562, %v1530
        %v1601 = vsel %vm1573, %v1564, %v1532
        %v1602 = vsel %vm1573, %v1566, %v1534
        %v1603 = vsel %vm1573, %v1568, %v1536
        %v1604 = vsel %vm1573, %v1570, %v1538
        %v1605 = vsel %vm1573, %v1572, %v1540
        %vm1606 = vcmp.lt.s32.totalorder %v278, 192
        %vm1607 = vcmp.lt.s32.totalorder %v279, 192
        %v1608 = vmax.f32 %v1477, %v1574
        %v1609 = vmax.f32 %v1478, %v1590
        %v1610 = vmax.f32 %v1479, %v1575
        %v1611 = vmax.f32 %v1480, %v1591
        %v1612 = vmax.f32 %v1481, %v1576
        %v1613 = vmax.f32 %v1482, %v1592
        %v1614 = vmax.f32 %v1483, %v1577
        %v1615 = vmax.f32 %v1484, %v1593
        %v1616 = vmax.f32 %v1485, %v1578
        %v1617 = vmax.f32 %v1486, %v1594
        %v1618 = vmax.f32 %v1487, %v1579
        %v1619 = vmax.f32 %v1488, %v1595
        %v1620 = vmax.f32 %v1489, %v1580
        %v1621 = vmax.f32 %v1490, %v1596
        %v1622 = vmax.f32 %v1491, %v1581
        %v1623 = vmax.f32 %v1492, %v1597
        %v1624 = vmax.f32 %v1493, %v1582
        %v1625 = vmax.f32 %v1494, %v1598
        %v1626 = vmax.f32 %v1495, %v1583
        %v1627 = vmax.f32 %v1496, %v1599
        %v1628 = vmax.f32 %v1497, %v1584
        %v1629 = vmax.f32 %v1498, %v1600
        %v1630 = vmax.f32 %v1499, %v1585
        %v1631 = vmax.f32 %v1500, %v1601
        %v1632 = vmax.f32 %v1501, %v1586
        %v1633 = vmax.f32 %v1502, %v1602
        %v1634 = vmax.f32 %v1503, %v1587
        %v1635 = vmax.f32 %v1504, %v1603
        %v1636 = vmax.f32 %v1505, %v1588
        %v1637 = vmax.f32 %v1506, %v1604
        %v1638 = vmax.f32 %v1507, %v1589
        %v1639 = vmax.f32 %v1508, %v1605
        %v1640 = vsel %vm1606, 1, 0
        %v1641 = vsel %vm1607, 1, 0
        %vm1642 = vcmp.eq.s32.totalorder %v1640, 1
        %vm1643 = vcmp.eq.s32.totalorder %v1641, 1
        %v1644 = vsel %vm1642, %v1608, %v1477
        %v1645 = vsel %vm1643, %v1609, %v1478
        %v1646 = vsel %vm1642, %v1610, %v1479
        %v1647 = vsel %vm1643, %v1611, %v1480
        %v1648 = vsel %vm1642, %v1612, %v1481
        %v1649 = vsel %vm1643, %v1613, %v1482
        %v1650 = vsel %vm1642, %v1614, %v1483
        %v1651 = vsel %vm1643, %v1615, %v1484
        %v1652 = vsel %vm1642, %v1616, %v1485
        %v1653 = vsel %vm1643, %v1617, %v1486
        %v1654 = vsel %vm1642, %v1618, %v1487
        %v1655 = vsel %vm1643, %v1619, %v1488
        %v1656 = vsel %vm1642, %v1620, %v1489
        %v1657 = vsel %vm1643, %v1621, %v1490
        %v1658 = vsel %vm1642, %v1622, %v1491
        %v1659 = vsel %vm1643, %v1623, %v1492
        %v1660 = vsel %vm1642, %v1624, %v1493
        %v1661 = vsel %vm1643, %v1625, %v1494
        %v1662 = vsel %vm1642, %v1626, %v1495
        %v1663 = vsel %vm1643, %v1627, %v1496
        %v1664 = vsel %vm1642, %v1628, %v1497
        %v1665 = vsel %vm1643, %v1629, %v1498
        %v1666 = vsel %vm1642, %v1630, %v1499
        %v1667 = vsel %vm1643, %v1631, %v1500
        %v1668 = vsel %vm1642, %v1632, %v1501
        %v1669 = vsel %vm1643, %v1633, %v1502
        %v1670 = vsel %vm1642, %v1634, %v1503
        %v1671 = vsel %vm1643, %v1635, %v1504
        %v1672 = vsel %vm1642, %v1636, %v1505
        %v1673 = vsel %vm1643, %v1637, %v1506
        %v1674 = vsel %vm1642, %v1638, %v1507
        %v1675 = vsel %vm1643, %v1639, %v1508
        %vm1676 = vcmp.lt.s32.totalorder %v278, 128
        %vm1677 = vcmp.lt.s32.totalorder %v279, 128
        %v1678 = vmax.f32 %v1644, %v1645
        %v1679 = vmax.f32 %v1646, %v1647
        %v1680 = vmax.f32 %v1648, %v1649
        %v1681 = vmax.f32 %v1650, %v1651
        %v1682 = vmax.f32 %v1652, %v1653
        %v1683 = vmax.f32 %v1654, %v1655
        %v1684 = vmax.f32 %v1656, %v1657
        %v1685 = vmax.f32 %v1658, %v1659
        %v1686 = vmax.f32 %v1660, %v1661
        %v1687 = vmax.f32 %v1662, %v1663
        %v1688 = vmax.f32 %v1664, %v1665
        %v1689 = vmax.f32 %v1666, %v1667
        %v1690 = vmax.f32 %v1668, %v1669
        %v1691 = vmax.f32 %v1670, %v1671
        %v1692 = vmax.f32 %v1672, %v1673
        %v1693 = vmax.f32 %v1674, %v1675
        %v1694 = vsel %vm1676, 1, 0
        %v1695 = vsel %vm1677, 1, 0
        %vm1696 = vcmp.eq.s32.totalorder %v1694, 1
        %vm1697 = vcmp.eq.s32.totalorder %v1695, 1
        %v1698 = vsel %vm1696, %v1678, %v1644
        %v1699 = vsel %vm1697, %v1678, %v1645
        %v1700 = vsel %vm1696, %v1679, %v1646
        %v1701 = vsel %vm1697, %v1679, %v1647
        %v1702 = vsel %vm1696, %v1680, %v1648
        %v1703 = vsel %vm1697, %v1680, %v1649
        %v1704 = vsel %vm1696, %v1681, %v1650
        %v1705 = vsel %vm1697, %v1681, %v1651
        %v1706 = vsel %vm1696, %v1682, %v1652
        %v1707 = vsel %vm1697, %v1682, %v1653
        %v1708 = vsel %vm1696, %v1683, %v1654
        %v1709 = vsel %vm1697, %v1683, %v1655
        %v1710 = vsel %vm1696, %v1684, %v1656
        %v1711 = vsel %vm1697, %v1684, %v1657
        %v1712 = vsel %vm1696, %v1685, %v1658
        %v1713 = vsel %vm1697, %v1685, %v1659
        %v1714 = vsel %vm1696, %v1686, %v1660
        %v1715 = vsel %vm1697, %v1686, %v1661
        %v1716 = vsel %vm1696, %v1687, %v1662
        %v1717 = vsel %vm1697, %v1687, %v1663
        %v1718 = vsel %vm1696, %v1688, %v1664
        %v1719 = vsel %vm1697, %v1688, %v1665
        %v1720 = vsel %vm1696, %v1689, %v1666
        %v1721 = vsel %vm1697, %v1689, %v1667
        %v1722 = vsel %vm1696, %v1690, %v1668
        %v1723 = vsel %vm1697, %v1690, %v1669
        %v1724 = vsel %vm1696, %v1691, %v1670
        %v1725 = vsel %vm1697, %v1691, %v1671
        %v1726 = vsel %vm1696, %v1692, %v1672
        %v1727 = vsel %vm1697, %v1692, %v1673
        %v1728 = vsel %vm1696, %v1693, %v1674
        %v1729 = vsel %vm1697, %v1693, %v1675
        %1730 = vrot.lane.b32.xlu0 %v1698, 127
        %v1731 = vpop.permute.xlu0 %1730
        %1732 = vrot.lane.b32.xlu0 %v1700, 127
        %v1733 = vpop.permute.xlu0 %1732
        %1734 = vrot.lane.b32.xlu0 %v1702, 127
        %v1735 = vpop.permute.xlu0 %1734
        %1736 = vrot.lane.b32.xlu0 %v1704, 127
        %v1737 = vpop.permute.xlu0 %1736
        %1738 = vrot.lane.b32.xlu0 %v1706, 127
        %v1739 = vpop.permute.xlu0 %1738
        %1740 = vrot.lane.b32.xlu0 %v1708, 127
        %v1741 = vpop.permute.xlu0 %1740
        %1742 = vrot.lane.b32.xlu0 %v1710, 127
        %v1743 = vpop.permute.xlu0 %1742
        %1744 = vrot.lane.b32.xlu0 %v1712, 127
        %v1745 = vpop.permute.xlu0 %1744
        %1746 = vrot.lane.b32.xlu0 %v1714, 127
        %v1747 = vpop.permute.xlu0 %1746
        %1748 = vrot.lane.b32.xlu0 %v1716, 127
        %v1749 = vpop.permute.xlu0 %1748
        %1750 = vrot.lane.b32.xlu0 %v1718, 127
        %v1751 = vpop.permute.xlu0 %1750
        %1752 = vrot.lane.b32.xlu0 %v1720, 127
        %v1753 = vpop.permute.xlu0 %1752
        %1754 = vrot.lane.b32.xlu0 %v1722, 127
        %v1755 = vpop.permute.xlu0 %1754
        %1756 = vrot.lane.b32.xlu0 %v1724, 127
        %v1757 = vpop.permute.xlu0 %1756
        %1758 = vrot.lane.b32.xlu0 %v1726, 127
        %v1759 = vpop.permute.xlu0 %1758
        %1760 = vrot.lane.b32.xlu0 %v1728, 127
        %v1761 = vpop.permute.xlu0 %1760
        %1762 = vrot.lane.b32.xlu0 %v1699, 127
        %v1763 = vpop.permute.xlu0 %1762
        %1764 = vrot.lane.b32.xlu0 %v1701, 127
        %v1765 = vpop.permute.xlu0 %1764
        %1766 = vrot.lane.b32.xlu0 %v1703, 127
        %v1767 = vpop.permute.xlu0 %1766
        %1768 = vrot.lane.b32.xlu0 %v1705, 127
        %v1769 = vpop.permute.xlu0 %1768
        %1770 = vrot.lane.b32.xlu0 %v1707, 127
        %v1771 = vpop.permute.xlu0 %1770
        %1772 = vrot.lane.b32.xlu0 %v1709, 127
        %v1773 = vpop.permute.xlu0 %1772
        %1774 = vrot.lane.b32.xlu0 %v1711, 127
        %v1775 = vpop.permute.xlu0 %1774
        %1776 = vrot.lane.b32.xlu0 %v1713, 127
        %v1777 = vpop.permute.xlu0 %1776
        %1778 = vrot.lane.b32.xlu0 %v1715, 127
        %v1779 = vpop.permute.xlu0 %1778
        %1780 = vrot.lane.b32.xlu0 %v1717, 127
        %v1781 = vpop.permute.xlu0 %1780
        %1782 = vrot.lane.b32.xlu0 %v1719, 127
        %v1783 = vpop.permute.xlu0 %1782
        %1784 = vrot.lane.b32.xlu0 %v1721, 127
        %v1785 = vpop.permute.xlu0 %1784
        %1786 = vrot.lane.b32.xlu0 %v1723, 127
        %v1787 = vpop.permute.xlu0 %1786
        %1788 = vrot.lane.b32.xlu0 %v1725, 127
        %v1789 = vpop.permute.xlu0 %1788
        %1790 = vrot.lane.b32.xlu0 %v1727, 127
        %v1791 = vpop.permute.xlu0 %1790
        %1792 = vrot.lane.b32.xlu0 %v1729, 127
        %v1793 = vpop.permute.xlu0 %1792
        %v1794 = vsel %vm388, %v1731, %v1763
        %v1795 = vsel %vm388, %v1733, %v1765
        %v1796 = vsel %vm388, %v1735, %v1767
        %v1797 = vsel %vm388, %v1737, %v1769
        %v1798 = vsel %vm388, %v1739, %v1771
        %v1799 = vsel %vm388, %v1741, %v1773
        %v1800 = vsel %vm388, %v1743, %v1775
        %v1801 = vsel %vm388, %v1745, %v1777
        %v1802 = vsel %vm388, %v1747, %v1779
        %v1803 = vsel %vm388, %v1749, %v1781
        %v1804 = vsel %vm388, %v1751, %v1783
        %v1805 = vsel %vm388, %v1753, %v1785
        %v1806 = vsel %vm388, %v1755, %v1787
        %v1807 = vsel %vm388, %v1757, %v1789
        %v1808 = vsel %vm388, %v1759, %v1791
        %v1809 = vsel %vm388, %v1761, %v1793
        %v1810 = vsel %vm388, %v1763, %v1731
        %v1811 = vsel %vm388, %v1765, %v1733
        %v1812 = vsel %vm388, %v1767, %v1735
        %v1813 = vsel %vm388, %v1769, %v1737
        %v1814 = vsel %vm388, %v1771, %v1739
        %v1815 = vsel %vm388, %v1773, %v1741
        %v1816 = vsel %vm388, %v1775, %v1743
        %v1817 = vsel %vm388, %v1777, %v1745
        %v1818 = vsel %vm388, %v1779, %v1747
        %v1819 = vsel %vm388, %v1781, %v1749
        %v1820 = vsel %vm388, %v1783, %v1751
        %v1821 = vsel %vm388, %v1785, %v1753
        %v1822 = vsel %vm388, %v1787, %v1755
        %v1823 = vsel %vm388, %v1789, %v1757
        %v1824 = vsel %vm388, %v1791, %v1759
        %v1825 = vsel %vm388, %v1793, %v1761
        %v1826 = vmax.f32 %v1698, %v1794
        %v1827 = vmax.f32 %v1699, %v1810
        %v1828 = vmax.f32 %v1700, %v1795
        %v1829 = vmax.f32 %v1701, %v1811
        %v1830 = vmax.f32 %v1702, %v1796
        %v1831 = vmax.f32 %v1703, %v1812
        %v1832 = vmax.f32 %v1704, %v1797
        %v1833 = vmax.f32 %v1705, %v1813
        %v1834 = vmax.f32 %v1706, %v1798
        %v1835 = vmax.f32 %v1707, %v1814
        %v1836 = vmax.f32 %v1708, %v1799
        %v1837 = vmax.f32 %v1709, %v1815
        %v1838 = vmax.f32 %v1710, %v1800
        %v1839 = vmax.f32 %v1711, %v1816
        %v1840 = vmax.f32 %v1712, %v1801
        %v1841 = vmax.f32 %v1713, %v1817
        %v1842 = vmax.f32 %v1714, %v1802
        %v1843 = vmax.f32 %v1715, %v1818
        %v1844 = vmax.f32 %v1716, %v1803
        %v1845 = vmax.f32 %v1717, %v1819
        %v1846 = vmax.f32 %v1718, %v1804
        %v1847 = vmax.f32 %v1719, %v1820
        %v1848 = vmax.f32 %v1720, %v1805
        %v1849 = vmax.f32 %v1721, %v1821
        %v1850 = vmax.f32 %v1722, %v1806
        %v1851 = vmax.f32 %v1723, %v1822
        %v1852 = vmax.f32 %v1724, %v1807
        %v1853 = vmax.f32 %v1725, %v1823
        %v1854 = vmax.f32 %v1726, %v1808
        %v1855 = vmax.f32 %v1727, %v1824
        %v1856 = vmax.f32 %v1728, %v1809
        %v1857 = vmax.f32 %v1729, %v1825
        %v1858 = vsel %vm395, %v1826, %v1698
        %v1859 = vsel %vm396, %v1827, %v1699
        %v1860 = vsel %vm395, %v1828, %v1700
        %v1861 = vsel %vm396, %v1829, %v1701
        %v1862 = vsel %vm395, %v1830, %v1702
        %v1863 = vsel %vm396, %v1831, %v1703
        %v1864 = vsel %vm395, %v1832, %v1704
        %v1865 = vsel %vm396, %v1833, %v1705
        %v1866 = vsel %vm395, %v1834, %v1706
        %v1867 = vsel %vm396, %v1835, %v1707
        %v1868 = vsel %vm395, %v1836, %v1708
        %v1869 = vsel %vm396, %v1837, %v1709
        %v1870 = vsel %vm395, %v1838, %v1710
        %v1871 = vsel %vm396, %v1839, %v1711
        %v1872 = vsel %vm395, %v1840, %v1712
        %v1873 = vsel %vm396, %v1841, %v1713
        %v1874 = vsel %vm395, %v1842, %v1714
        %v1875 = vsel %vm396, %v1843, %v1715
        %v1876 = vsel %vm395, %v1844, %v1716
        %v1877 = vsel %vm396, %v1845, %v1717
        %v1878 = vsel %vm395, %v1846, %v1718
        %v1879 = vsel %vm396, %v1847, %v1719
        %v1880 = vsel %vm395, %v1848, %v1720
        %v1881 = vsel %vm396, %v1849, %v1721
        %v1882 = vsel %vm395, %v1850, %v1722
        %v1883 = vsel %vm396, %v1851, %v1723
        %v1884 = vsel %vm395, %v1852, %v1724
        %v1885 = vsel %vm396, %v1853, %v1725
        %v1886 = vsel %vm395, %v1854, %v1726
        %v1887 = vsel %vm396, %v1855, %v1727
        %v1888 = vsel %vm395, %v1856, %v1728
        %v1889 = vsel %vm396, %v1857, %v1729
        %1890 = vrot.lane.b32.xlu0 %v1858, 126
        %v1891 = vpop.permute.xlu0 %1890
        %1892 = vrot.lane.b32.xlu0 %v1860, 126
        %v1893 = vpop.permute.xlu0 %1892
        %1894 = vrot.lane.b32.xlu0 %v1862, 126
        %v1895 = vpop.permute.xlu0 %1894
        %1896 = vrot.lane.b32.xlu0 %v1864, 126
        %v1897 = vpop.permute.xlu0 %1896
        %1898 = vrot.lane.b32.xlu0 %v1866, 126
        %v1899 = vpop.permute.xlu0 %1898
        %1900 = vrot.lane.b32.xlu0 %v1868, 126
        %v1901 = vpop.permute.xlu0 %1900
        %1902 = vrot.lane.b32.xlu0 %v1870, 126
        %v1903 = vpop.permute.xlu0 %1902
        %1904 = vrot.lane.b32.xlu0 %v1872, 126
        %v1905 = vpop.permute.xlu0 %1904
        %1906 = vrot.lane.b32.xlu0 %v1874, 126
        %v1907 = vpop.permute.xlu0 %1906
        %1908 = vrot.lane.b32.xlu0 %v1876, 126
        %v1909 = vpop.permute.xlu0 %1908
        %1910 = vrot.lane.b32.xlu0 %v1878, 126
        %v1911 = vpop.permute.xlu0 %1910
        %1912 = vrot.lane.b32.xlu0 %v1880, 126
        %v1913 = vpop.permute.xlu0 %1912
        %1914 = vrot.lane.b32.xlu0 %v1882, 126
        %v1915 = vpop.permute.xlu0 %1914
        %1916 = vrot.lane.b32.xlu0 %v1884, 126
        %v1917 = vpop.permute.xlu0 %1916
        %1918 = vrot.lane.b32.xlu0 %v1886, 126
        %v1919 = vpop.permute.xlu0 %1918
        %1920 = vrot.lane.b32.xlu0 %v1888, 126
        %v1921 = vpop.permute.xlu0 %1920
        %1922 = vrot.lane.b32.xlu0 %v1859, 126
        %v1923 = vpop.permute.xlu0 %1922
        %1924 = vrot.lane.b32.xlu0 %v1861, 126
        %v1925 = vpop.permute.xlu0 %1924
        %1926 = vrot.lane.b32.xlu0 %v1863, 126
        %v1927 = vpop.permute.xlu0 %1926
        %1928 = vrot.lane.b32.xlu0 %v1865, 126
        %v1929 = vpop.permute.xlu0 %1928
        %1930 = vrot.lane.b32.xlu0 %v1867, 126
        %v1931 = vpop.permute.xlu0 %1930
        %1932 = vrot.lane.b32.xlu0 %v1869, 126
        %v1933 = vpop.permute.xlu0 %1932
        %1934 = vrot.lane.b32.xlu0 %v1871, 126
        %v1935 = vpop.permute.xlu0 %1934
        %1936 = vrot.lane.b32.xlu0 %v1873, 126
        %v1937 = vpop.permute.xlu0 %1936
        %1938 = vrot.lane.b32.xlu0 %v1875, 126
        %v1939 = vpop.permute.xlu0 %1938
        %1940 = vrot.lane.b32.xlu0 %v1877, 126
        %v1941 = vpop.permute.xlu0 %1940
        %1942 = vrot.lane.b32.xlu0 %v1879, 126
        %v1943 = vpop.permute.xlu0 %1942
        %1944 = vrot.lane.b32.xlu0 %v1881, 126
        %v1945 = vpop.permute.xlu0 %1944
        %1946 = vrot.lane.b32.xlu0 %v1883, 126
        %v1947 = vpop.permute.xlu0 %1946
        %1948 = vrot.lane.b32.xlu0 %v1885, 126
        %v1949 = vpop.permute.xlu0 %1948
        %1950 = vrot.lane.b32.xlu0 %v1887, 126
        %v1951 = vpop.permute.xlu0 %1950
        %1952 = vrot.lane.b32.xlu0 %v1889, 126
        %v1953 = vpop.permute.xlu0 %1952
        %vm1954 = vcmp.lt.s32.totalorder %v278, 126
        %v1955 = vsel %vm1954, %v1891, %v1923
        %v1956 = vsel %vm1954, %v1893, %v1925
        %v1957 = vsel %vm1954, %v1895, %v1927
        %v1958 = vsel %vm1954, %v1897, %v1929
        %v1959 = vsel %vm1954, %v1899, %v1931
        %v1960 = vsel %vm1954, %v1901, %v1933
        %v1961 = vsel %vm1954, %v1903, %v1935
        %v1962 = vsel %vm1954, %v1905, %v1937
        %v1963 = vsel %vm1954, %v1907, %v1939
        %v1964 = vsel %vm1954, %v1909, %v1941
        %v1965 = vsel %vm1954, %v1911, %v1943
        %v1966 = vsel %vm1954, %v1913, %v1945
        %v1967 = vsel %vm1954, %v1915, %v1947
        %v1968 = vsel %vm1954, %v1917, %v1949
        %v1969 = vsel %vm1954, %v1919, %v1951
        %v1970 = vsel %vm1954, %v1921, %v1953
        %v1971 = vsel %vm1954, %v1923, %v1891
        %v1972 = vsel %vm1954, %v1925, %v1893
        %v1973 = vsel %vm1954, %v1927, %v1895
        %v1974 = vsel %vm1954, %v1929, %v1897
        %v1975 = vsel %vm1954, %v1931, %v1899
        %v1976 = vsel %vm1954, %v1933, %v1901
        %v1977 = vsel %vm1954, %v1935, %v1903
        %v1978 = vsel %vm1954, %v1937, %v1905
        %v1979 = vsel %vm1954, %v1939, %v1907
        %v1980 = vsel %vm1954, %v1941, %v1909
        %v1981 = vsel %vm1954, %v1943, %v1911
        %v1982 = vsel %vm1954, %v1945, %v1913
        %v1983 = vsel %vm1954, %v1947, %v1915
        %v1984 = vsel %vm1954, %v1949, %v1917
        %v1985 = vsel %vm1954, %v1951, %v1919
        %v1986 = vsel %vm1954, %v1953, %v1921
        %vm1987 = vcmp.lt.s32.totalorder %v280, 14
        %vm1988 = vcmp.lt.s32.totalorder %v281, 14
        %v1989 = vmax.f32 %v1858, %v1955
        %v1990 = vmax.f32 %v1859, %v1971
        %v1991 = vmax.f32 %v1860, %v1956
        %v1992 = vmax.f32 %v1861, %v1972
        %v1993 = vmax.f32 %v1862, %v1957
        %v1994 = vmax.f32 %v1863, %v1973
        %v1995 = vmax.f32 %v1864, %v1958
        %v1996 = vmax.f32 %v1865, %v1974
        %v1997 = vmax.f32 %v1866, %v1959
        %v1998 = vmax.f32 %v1867, %v1975
        %v1999 = vmax.f32 %v1868, %v1960
        %v2000 = vmax.f32 %v1869, %v1976
        %v2001 = vmax.f32 %v1870, %v1961
        %v2002 = vmax.f32 %v1871, %v1977
        %v2003 = vmax.f32 %v1872, %v1962
        %v2004 = vmax.f32 %v1873, %v1978
        %v2005 = vmax.f32 %v1874, %v1963
        %v2006 = vmax.f32 %v1875, %v1979
        %v2007 = vmax.f32 %v1876, %v1964
        %v2008 = vmax.f32 %v1877, %v1980
        %v2009 = vmax.f32 %v1878, %v1965
        %v2010 = vmax.f32 %v1879, %v1981
        %v2011 = vmax.f32 %v1880, %v1966
        %v2012 = vmax.f32 %v1881, %v1982
        %v2013 = vmax.f32 %v1882, %v1967
        %v2014 = vmax.f32 %v1883, %v1983
        %v2015 = vmax.f32 %v1884, %v1968
        %v2016 = vmax.f32 %v1885, %v1984
        %v2017 = vmax.f32 %v1886, %v1969
        %v2018 = vmax.f32 %v1887, %v1985
        %v2019 = vmax.f32 %v1888, %v1970
        %v2020 = vmax.f32 %v1889, %v1986
        %v2021 = vsel %vm1987, 1, 0
        %v2022 = vsel %vm1988, 1, 0
        %vm2023 = vcmp.eq.s32.totalorder %v2021, 1
        %vm2024 = vcmp.eq.s32.totalorder %v2022, 1
        %v2025 = vsel %vm2023, %v1989, %v1858
        %v2026 = vsel %vm2024, %v1990, %v1859
        %v2027 = vsel %vm2023, %v1991, %v1860
        %v2028 = vsel %vm2024, %v1992, %v1861
        %v2029 = vsel %vm2023, %v1993, %v1862
        %v2030 = vsel %vm2024, %v1994, %v1863
        %v2031 = vsel %vm2023, %v1995, %v1864
        %v2032 = vsel %vm2024, %v1996, %v1865
        %v2033 = vsel %vm2023, %v1997, %v1866
        %v2034 = vsel %vm2024, %v1998, %v1867
        %v2035 = vsel %vm2023, %v1999, %v1868
        %v2036 = vsel %vm2024, %v2000, %v1869
        %v2037 = vsel %vm2023, %v2001, %v1870
        %v2038 = vsel %vm2024, %v2002, %v1871
        %v2039 = vsel %vm2023, %v2003, %v1872
        %v2040 = vsel %vm2024, %v2004, %v1873
        %v2041 = vsel %vm2023, %v2005, %v1874
        %v2042 = vsel %vm2024, %v2006, %v1875
        %v2043 = vsel %vm2023, %v2007, %v1876
        %v2044 = vsel %vm2024, %v2008, %v1877
        %v2045 = vsel %vm2023, %v2009, %v1878
        %v2046 = vsel %vm2024, %v2010, %v1879
        %v2047 = vsel %vm2023, %v2011, %v1880
        %v2048 = vsel %vm2024, %v2012, %v1881
        %v2049 = vsel %vm2023, %v2013, %v1882
        %v2050 = vsel %vm2024, %v2014, %v1883
        %v2051 = vsel %vm2023, %v2015, %v1884
        %v2052 = vsel %vm2024, %v2016, %v1885
        %v2053 = vsel %vm2023, %v2017, %v1886
        %v2054 = vsel %vm2024, %v2018, %v1887
        %v2055 = vsel %vm2023, %v2019, %v1888
        %v2056 = vsel %vm2024, %v2020, %v1889
        %2057 = vrot.lane.b32.xlu0 %v2025, 124
        %v2058 = vpop.permute.xlu0 %2057
        %2059 = vrot.lane.b32.xlu0 %v2027, 124
        %v2060 = vpop.permute.xlu0 %2059
        %2061 = vrot.lane.b32.xlu0 %v2029, 124
        %v2062 = vpop.permute.xlu0 %2061
        %2063 = vrot.lane.b32.xlu0 %v2031, 124
        %v2064 = vpop.permute.xlu0 %2063
        %2065 = vrot.lane.b32.xlu0 %v2033, 124
        %v2066 = vpop.permute.xlu0 %2065
        %2067 = vrot.lane.b32.xlu0 %v2035, 124
        %v2068 = vpop.permute.xlu0 %2067
        %2069 = vrot.lane.b32.xlu0 %v2037, 124
        %v2070 = vpop.permute.xlu0 %2069
        %2071 = vrot.lane.b32.xlu0 %v2039, 124
        %v2072 = vpop.permute.xlu0 %2071
        %2073 = vrot.lane.b32.xlu0 %v2041, 124
        %v2074 = vpop.permute.xlu0 %2073
        %2075 = vrot.lane.b32.xlu0 %v2043, 124
        %v2076 = vpop.permute.xlu0 %2075
        %2077 = vrot.lane.b32.xlu0 %v2045, 124
        %v2078 = vpop.permute.xlu0 %2077
        %2079 = vrot.lane.b32.xlu0 %v2047, 124
        %v2080 = vpop.permute.xlu0 %2079
        %2081 = vrot.lane.b32.xlu0 %v2049, 124
        %v2082 = vpop.permute.xlu0 %2081
        %2083 = vrot.lane.b32.xlu0 %v2051, 124
        %v2084 = vpop.permute.xlu0 %2083
        %2085 = vrot.lane.b32.xlu0 %v2053, 124
        %v2086 = vpop.permute.xlu0 %2085
        %2087 = vrot.lane.b32.xlu0 %v2055, 124
        %v2088 = vpop.permute.xlu0 %2087
        %2089 = vrot.lane.b32.xlu0 %v2026, 124
        %v2090 = vpop.permute.xlu0 %2089
        %2091 = vrot.lane.b32.xlu0 %v2028, 124
        %v2092 = vpop.permute.xlu0 %2091
        %2093 = vrot.lane.b32.xlu0 %v2030, 124
        %v2094 = vpop.permute.xlu0 %2093
        %2095 = vrot.lane.b32.xlu0 %v2032, 124
        %v2096 = vpop.permute.xlu0 %2095
        %2097 = vrot.lane.b32.xlu0 %v2034, 124
        %v2098 = vpop.permute.xlu0 %2097
        %2099 = vrot.lane.b32.xlu0 %v2036, 124
        %v2100 = vpop.permute.xlu0 %2099
        %2101 = vrot.lane.b32.xlu0 %v2038, 124
        %v2102 = vpop.permute.xlu0 %2101
        %2103 = vrot.lane.b32.xlu0 %v2040, 124
        %v2104 = vpop.permute.xlu0 %2103
        %2105 = vrot.lane.b32.xlu0 %v2042, 124
        %v2106 = vpop.permute.xlu0 %2105
        %2107 = vrot.lane.b32.xlu0 %v2044, 124
        %v2108 = vpop.permute.xlu0 %2107
        %2109 = vrot.lane.b32.xlu0 %v2046, 124
        %v2110 = vpop.permute.xlu0 %2109
        %2111 = vrot.lane.b32.xlu0 %v2048, 124
        %v2112 = vpop.permute.xlu0 %2111
        %2113 = vrot.lane.b32.xlu0 %v2050, 124
        %v2114 = vpop.permute.xlu0 %2113
        %2115 = vrot.lane.b32.xlu0 %v2052, 124
        %v2116 = vpop.permute.xlu0 %2115
        %2117 = vrot.lane.b32.xlu0 %v2054, 124
        %v2118 = vpop.permute.xlu0 %2117
        %2119 = vrot.lane.b32.xlu0 %v2056, 124
        %v2120 = vpop.permute.xlu0 %2119
        %vm2121 = vcmp.lt.s32.totalorder %v278, 124
        %v2122 = vsel %vm2121, %v2058, %v2090
        %v2123 = vsel %vm2121, %v2060, %v2092
        %v2124 = vsel %vm2121, %v2062, %v2094
        %v2125 = vsel %vm2121, %v2064, %v2096
        %v2126 = vsel %vm2121, %v2066, %v2098
        %v2127 = vsel %vm2121, %v2068, %v2100
        %v2128 = vsel %vm2121, %v2070, %v2102
        %v2129 = vsel %vm2121, %v2072, %v2104
        %v2130 = vsel %vm2121, %v2074, %v2106
        %v2131 = vsel %vm2121, %v2076, %v2108
        %v2132 = vsel %vm2121, %v2078, %v2110
        %v2133 = vsel %vm2121, %v2080, %v2112
        %v2134 = vsel %vm2121, %v2082, %v2114
        %v2135 = vsel %vm2121, %v2084, %v2116
        %v2136 = vsel %vm2121, %v2086, %v2118
        %v2137 = vsel %vm2121, %v2088, %v2120
        %v2138 = vsel %vm2121, %v2090, %v2058
        %v2139 = vsel %vm2121, %v2092, %v2060
        %v2140 = vsel %vm2121, %v2094, %v2062
        %v2141 = vsel %vm2121, %v2096, %v2064
        %v2142 = vsel %vm2121, %v2098, %v2066
        %v2143 = vsel %vm2121, %v2100, %v2068
        %v2144 = vsel %vm2121, %v2102, %v2070
        %v2145 = vsel %vm2121, %v2104, %v2072
        %v2146 = vsel %vm2121, %v2106, %v2074
        %v2147 = vsel %vm2121, %v2108, %v2076
        %v2148 = vsel %vm2121, %v2110, %v2078
        %v2149 = vsel %vm2121, %v2112, %v2080
        %v2150 = vsel %vm2121, %v2114, %v2082
        %v2151 = vsel %vm2121, %v2116, %v2084
        %v2152 = vsel %vm2121, %v2118, %v2086
        %v2153 = vsel %vm2121, %v2120, %v2088
        %vm2154 = vcmp.lt.s32.totalorder %v280, 12
        %vm2155 = vcmp.lt.s32.totalorder %v281, 12
        %v2156 = vmax.f32 %v2025, %v2122
        %v2157 = vmax.f32 %v2026, %v2138
        %v2158 = vmax.f32 %v2027, %v2123
        %v2159 = vmax.f32 %v2028, %v2139
        %v2160 = vmax.f32 %v2029, %v2124
        %v2161 = vmax.f32 %v2030, %v2140
        %v2162 = vmax.f32 %v2031, %v2125
        %v2163 = vmax.f32 %v2032, %v2141
        %v2164 = vmax.f32 %v2033, %v2126
        %v2165 = vmax.f32 %v2034, %v2142
        %v2166 = vmax.f32 %v2035, %v2127
        %v2167 = vmax.f32 %v2036, %v2143
        %v2168 = vmax.f32 %v2037, %v2128
        %v2169 = vmax.f32 %v2038, %v2144
        %v2170 = vmax.f32 %v2039, %v2129
        %v2171 = vmax.f32 %v2040, %v2145
        %v2172 = vmax.f32 %v2041, %v2130
        %v2173 = vmax.f32 %v2042, %v2146
        %v2174 = vmax.f32 %v2043, %v2131
        %v2175 = vmax.f32 %v2044, %v2147
        %v2176 = vmax.f32 %v2045, %v2132
        %v2177 = vmax.f32 %v2046, %v2148
        %v2178 = vmax.f32 %v2047, %v2133
        %v2179 = vmax.f32 %v2048, %v2149
        %v2180 = vmax.f32 %v2049, %v2134
        %v2181 = vmax.f32 %v2050, %v2150
        %v2182 = vmax.f32 %v2051, %v2135
        %v2183 = vmax.f32 %v2052, %v2151
        %v2184 = vmax.f32 %v2053, %v2136
        %v2185 = vmax.f32 %v2054, %v2152
        %v2186 = vmax.f32 %v2055, %v2137
        %v2187 = vmax.f32 %v2056, %v2153
        %v2188 = vsel %vm2154, 1, 0
        %v2189 = vsel %vm2155, 1, 0
        %vm2190 = vcmp.eq.s32.totalorder %v2188, 1
        %vm2191 = vcmp.eq.s32.totalorder %v2189, 1
        %v2192 = vsel %vm2190, %v2156, %v2025
        %v2193 = vsel %vm2191, %v2157, %v2026
        %v2194 = vsel %vm2190, %v2158, %v2027
        %v2195 = vsel %vm2191, %v2159, %v2028
        %v2196 = vsel %vm2190, %v2160, %v2029
        %v2197 = vsel %vm2191, %v2161, %v2030
        %v2198 = vsel %vm2190, %v2162, %v2031
        %v2199 = vsel %vm2191, %v2163, %v2032
        %v2200 = vsel %vm2190, %v2164, %v2033
        %v2201 = vsel %vm2191, %v2165, %v2034
        %v2202 = vsel %vm2190, %v2166, %v2035
        %v2203 = vsel %vm2191, %v2167, %v2036
        %v2204 = vsel %vm2190, %v2168, %v2037
        %v2205 = vsel %vm2191, %v2169, %v2038
        %v2206 = vsel %vm2190, %v2170, %v2039
        %v2207 = vsel %vm2191, %v2171, %v2040
        %v2208 = vsel %vm2190, %v2172, %v2041
        %v2209 = vsel %vm2191, %v2173, %v2042
        %v2210 = vsel %vm2190, %v2174, %v2043
        %v2211 = vsel %vm2191, %v2175, %v2044
        %v2212 = vsel %vm2190, %v2176, %v2045
        %v2213 = vsel %vm2191, %v2177, %v2046
        %v2214 = vsel %vm2190, %v2178, %v2047
        %v2215 = vsel %vm2191, %v2179, %v2048
        %v2216 = vsel %vm2190, %v2180, %v2049
        %v2217 = vsel %vm2191, %v2181, %v2050
        %v2218 = vsel %vm2190, %v2182, %v2051
        %v2219 = vsel %vm2191, %v2183, %v2052
        %v2220 = vsel %vm2190, %v2184, %v2053
        %v2221 = vsel %vm2191, %v2185, %v2054
        %v2222 = vsel %vm2190, %v2186, %v2055
        %v2223 = vsel %vm2191, %v2187, %v2056
        %2224 = vrot.lane.b32.xlu0 %v2192, 120
        %v2225 = vpop.permute.xlu0 %2224
        %2226 = vrot.lane.b32.xlu0 %v2194, 120
        %v2227 = vpop.permute.xlu0 %2226
        %2228 = vrot.lane.b32.xlu0 %v2196, 120
        %v2229 = vpop.permute.xlu0 %2228
        %2230 = vrot.lane.b32.xlu0 %v2198, 120
        %v2231 = vpop.permute.xlu0 %2230
        %2232 = vrot.lane.b32.xlu0 %v2200, 120
        %v2233 = vpop.permute.xlu0 %2232
        %2234 = vrot.lane.b32.xlu0 %v2202, 120
        %v2235 = vpop.permute.xlu0 %2234
        %2236 = vrot.lane.b32.xlu0 %v2204, 120
        %v2237 = vpop.permute.xlu0 %2236
        %2238 = vrot.lane.b32.xlu0 %v2206, 120
        %v2239 = vpop.permute.xlu0 %2238
        %2240 = vrot.lane.b32.xlu0 %v2208, 120
        %v2241 = vpop.permute.xlu0 %2240
        %2242 = vrot.lane.b32.xlu0 %v2210, 120
        %v2243 = vpop.permute.xlu0 %2242
        %2244 = vrot.lane.b32.xlu0 %v2212, 120
        %v2245 = vpop.permute.xlu0 %2244
        %2246 = vrot.lane.b32.xlu0 %v2214, 120
        %v2247 = vpop.permute.xlu0 %2246
        %2248 = vrot.lane.b32.xlu0 %v2216, 120
        %v2249 = vpop.permute.xlu0 %2248
        %2250 = vrot.lane.b32.xlu0 %v2218, 120
        %v2251 = vpop.permute.xlu0 %2250
        %2252 = vrot.lane.b32.xlu0 %v2220, 120
        %v2253 = vpop.permute.xlu0 %2252
        %2254 = vrot.lane.b32.xlu0 %v2222, 120
        %v2255 = vpop.permute.xlu0 %2254
        %2256 = vrot.lane.b32.xlu0 %v2193, 120
        %v2257 = vpop.permute.xlu0 %2256
        %2258 = vrot.lane.b32.xlu0 %v2195, 120
        %v2259 = vpop.permute.xlu0 %2258
        %2260 = vrot.lane.b32.xlu0 %v2197, 120
        %v2261 = vpop.permute.xlu0 %2260
        %2262 = vrot.lane.b32.xlu0 %v2199, 120
        %v2263 = vpop.permute.xlu0 %2262
        %2264 = vrot.lane.b32.xlu0 %v2201, 120
        %v2265 = vpop.permute.xlu0 %2264
        %2266 = vrot.lane.b32.xlu0 %v2203, 120
        %v2267 = vpop.permute.xlu0 %2266
        %2268 = vrot.lane.b32.xlu0 %v2205, 120
        %v2269 = vpop.permute.xlu0 %2268
        %2270 = vrot.lane.b32.xlu0 %v2207, 120
        %v2271 = vpop.permute.xlu0 %2270
        %2272 = vrot.lane.b32.xlu0 %v2209, 120
        %v2273 = vpop.permute.xlu0 %2272
        %2274 = vrot.lane.b32.xlu0 %v2211, 120
        %v2275 = vpop.permute.xlu0 %2274
        %2276 = vrot.lane.b32.xlu0 %v2213, 120
        %v2277 = vpop.permute.xlu0 %2276
        %2278 = vrot.lane.b32.xlu0 %v2215, 120
        %v2279 = vpop.permute.xlu0 %2278
        %2280 = vrot.lane.b32.xlu0 %v2217, 120
        %v2281 = vpop.permute.xlu0 %2280
        %2282 = vrot.lane.b32.xlu0 %v2219, 120
        %v2283 = vpop.permute.xlu0 %2282
        %2284 = vrot.lane.b32.xlu0 %v2221, 120
        %v2285 = vpop.permute.xlu0 %2284
        %2286 = vrot.lane.b32.xlu0 %v2223, 120
        %v2287 = vpop.permute.xlu0 %2286
        %vm2288 = vcmp.lt.s32.totalorder %v278, 120
        %v2289 = vsel %vm2288, %v2225, %v2257
        %v2290 = vsel %vm2288, %v2227, %v2259
        %v2291 = vsel %vm2288, %v2229, %v2261
        %v2292 = vsel %vm2288, %v2231, %v2263
        %v2293 = vsel %vm2288, %v2233, %v2265
        %v2294 = vsel %vm2288, %v2235, %v2267
        %v2295 = vsel %vm2288, %v2237, %v2269
        %v2296 = vsel %vm2288, %v2239, %v2271
        %v2297 = vsel %vm2288, %v2241, %v2273
        %v2298 = vsel %vm2288, %v2243, %v2275
        %v2299 = vsel %vm2288, %v2245, %v2277
        %v2300 = vsel %vm2288, %v2247, %v2279
        %v2301 = vsel %vm2288, %v2249, %v2281
        %v2302 = vsel %vm2288, %v2251, %v2283
        %v2303 = vsel %vm2288, %v2253, %v2285
        %v2304 = vsel %vm2288, %v2255, %v2287
        %v2305 = vsel %vm2288, %v2257, %v2225
        %v2306 = vsel %vm2288, %v2259, %v2227
        %v2307 = vsel %vm2288, %v2261, %v2229
        %v2308 = vsel %vm2288, %v2263, %v2231
        %v2309 = vsel %vm2288, %v2265, %v2233
        %v2310 = vsel %vm2288, %v2267, %v2235
        %v2311 = vsel %vm2288, %v2269, %v2237
        %v2312 = vsel %vm2288, %v2271, %v2239
        %v2313 = vsel %vm2288, %v2273, %v2241
        %v2314 = vsel %vm2288, %v2275, %v2243
        %v2315 = vsel %vm2288, %v2277, %v2245
        %v2316 = vsel %vm2288, %v2279, %v2247
        %v2317 = vsel %vm2288, %v2281, %v2249
        %v2318 = vsel %vm2288, %v2283, %v2251
        %v2319 = vsel %vm2288, %v2285, %v2253
        %v2320 = vsel %vm2288, %v2287, %v2255
        %vm2321 = vcmp.lt.s32.totalorder %v280, 8
        %vm2322 = vcmp.lt.s32.totalorder %v281, 8
        %v2323 = vmax.f32 %v2192, %v2289
        %v2324 = vmax.f32 %v2193, %v2305
        %v2325 = vmax.f32 %v2194, %v2290
        %v2326 = vmax.f32 %v2195, %v2306
        %v2327 = vmax.f32 %v2196, %v2291
        %v2328 = vmax.f32 %v2197, %v2307
        %v2329 = vmax.f32 %v2198, %v2292
        %v2330 = vmax.f32 %v2199, %v2308
        %v2331 = vmax.f32 %v2200, %v2293
        %v2332 = vmax.f32 %v2201, %v2309
        %v2333 = vmax.f32 %v2202, %v2294
        %v2334 = vmax.f32 %v2203, %v2310
        %v2335 = vmax.f32 %v2204, %v2295
        %v2336 = vmax.f32 %v2205, %v2311
        %v2337 = vmax.f32 %v2206, %v2296
        %v2338 = vmax.f32 %v2207, %v2312
        %v2339 = vmax.f32 %v2208, %v2297
        %v2340 = vmax.f32 %v2209, %v2313
        %v2341 = vmax.f32 %v2210, %v2298
        %v2342 = vmax.f32 %v2211, %v2314
        %v2343 = vmax.f32 %v2212, %v2299
        %v2344 = vmax.f32 %v2213, %v2315
        %v2345 = vmax.f32 %v2214, %v2300
        %v2346 = vmax.f32 %v2215, %v2316
        %v2347 = vmax.f32 %v2216, %v2301
        %v2348 = vmax.f32 %v2217, %v2317
        %v2349 = vmax.f32 %v2218, %v2302
        %v2350 = vmax.f32 %v2219, %v2318
        %v2351 = vmax.f32 %v2220, %v2303
        %v2352 = vmax.f32 %v2221, %v2319
        %v2353 = vmax.f32 %v2222, %v2304
        %v2354 = vmax.f32 %v2223, %v2320
        %v2355 = vsel %vm2321, 1, 0
        %v2356 = vsel %vm2322, 1, 0
        %vm2357 = vcmp.eq.s32.totalorder %v2355, 1
        %vm2358 = vcmp.eq.s32.totalorder %v2356, 1
        %v2359 = vsel %vm2357, %v2323, %v2192
        %v2360 = vsel %vm2358, %v2324, %v2193
        %v2361 = vsel %vm2357, %v2325, %v2194
        %v2362 = vsel %vm2358, %v2326, %v2195
        %v2363 = vsel %vm2357, %v2327, %v2196
        %v2364 = vsel %vm2358, %v2328, %v2197
        %v2365 = vsel %vm2357, %v2329, %v2198
        %v2366 = vsel %vm2358, %v2330, %v2199
        %v2367 = vsel %vm2357, %v2331, %v2200
        %v2368 = vsel %vm2358, %v2332, %v2201
        %v2369 = vsel %vm2357, %v2333, %v2202
        %v2370 = vsel %vm2358, %v2334, %v2203
        %v2371 = vsel %vm2357, %v2335, %v2204
        %v2372 = vsel %vm2358, %v2336, %v2205
        %v2373 = vsel %vm2357, %v2337, %v2206
        %v2374 = vsel %vm2358, %v2338, %v2207
        %v2375 = vsel %vm2357, %v2339, %v2208
        %v2376 = vsel %vm2358, %v2340, %v2209
        %v2377 = vsel %vm2357, %v2341, %v2210
        %v2378 = vsel %vm2358, %v2342, %v2211
        %v2379 = vsel %vm2357, %v2343, %v2212
        %v2380 = vsel %vm2358, %v2344, %v2213
        %v2381 = vsel %vm2357, %v2345, %v2214
        %v2382 = vsel %vm2358, %v2346, %v2215
        %v2383 = vsel %vm2357, %v2347, %v2216
        %v2384 = vsel %vm2358, %v2348, %v2217
        %v2385 = vsel %vm2357, %v2349, %v2218
        %v2386 = vsel %vm2358, %v2350, %v2219
        %v2387 = vsel %vm2357, %v2351, %v2220
        %v2388 = vsel %vm2358, %v2352, %v2221
        %v2389 = vsel %vm2357, %v2353, %v2222
        %v2390 = vsel %vm2358, %v2354, %v2223
        %2391 = vrot.lane.b32.xlu0 %v1146, 16
        %v2392 = vpop.permute.xlu0 %2391
        %2393 = vrot.lane.b32.xlu0 %v1148, 16
        %v2394 = vpop.permute.xlu0 %2393
        %2395 = vrot.lane.b32.xlu0 %v1150, 16
        %v2396 = vpop.permute.xlu0 %2395
        %2397 = vrot.lane.b32.xlu0 %v1152, 16
        %v2398 = vpop.permute.xlu0 %2397
        %2399 = vrot.lane.b32.xlu0 %v1154, 16
        %v2400 = vpop.permute.xlu0 %2399
        %2401 = vrot.lane.b32.xlu0 %v1156, 16
        %v2402 = vpop.permute.xlu0 %2401
        %2403 = vrot.lane.b32.xlu0 %v1158, 16
        %v2404 = vpop.permute.xlu0 %2403
        %2405 = vrot.lane.b32.xlu0 %v1160, 16
        %v2406 = vpop.permute.xlu0 %2405
        %2407 = vrot.lane.b32.xlu0 %v1162, 16
        %v2408 = vpop.permute.xlu0 %2407
        %2409 = vrot.lane.b32.xlu0 %v1164, 16
        %v2410 = vpop.permute.xlu0 %2409
        %2411 = vrot.lane.b32.xlu0 %v1166, 16
        %v2412 = vpop.permute.xlu0 %2411
        %2413 = vrot.lane.b32.xlu0 %v1168, 16
        %v2414 = vpop.permute.xlu0 %2413
        %2415 = vrot.lane.b32.xlu0 %v1170, 16
        %v2416 = vpop.permute.xlu0 %2415
        %2417 = vrot.lane.b32.xlu0 %v1172, 16
        %v2418 = vpop.permute.xlu0 %2417
        %2419 = vrot.lane.b32.xlu0 %v1174, 16
        %v2420 = vpop.permute.xlu0 %2419
        %2421 = vrot.lane.b32.xlu0 %v1176, 16
        %v2422 = vpop.permute.xlu0 %2421
        %2423 = vrot.lane.b32.xlu0 %v1147, 16
        %v2424 = vpop.permute.xlu0 %2423
        %2425 = vrot.lane.b32.xlu0 %v1149, 16
        %v2426 = vpop.permute.xlu0 %2425
        %2427 = vrot.lane.b32.xlu0 %v1151, 16
        %v2428 = vpop.permute.xlu0 %2427
        %2429 = vrot.lane.b32.xlu0 %v1153, 16
        %v2430 = vpop.permute.xlu0 %2429
        %2431 = vrot.lane.b32.xlu0 %v1155, 16
        %v2432 = vpop.permute.xlu0 %2431
        %2433 = vrot.lane.b32.xlu0 %v1157, 16
        %v2434 = vpop.permute.xlu0 %2433
        %2435 = vrot.lane.b32.xlu0 %v1159, 16
        %v2436 = vpop.permute.xlu0 %2435
        %2437 = vrot.lane.b32.xlu0 %v1161, 16
        %v2438 = vpop.permute.xlu0 %2437
        %2439 = vrot.lane.b32.xlu0 %v1163, 16
        %v2440 = vpop.permute.xlu0 %2439
        %2441 = vrot.lane.b32.xlu0 %v1165, 16
        %v2442 = vpop.permute.xlu0 %2441
        %2443 = vrot.lane.b32.xlu0 %v1167, 16
        %v2444 = vpop.permute.xlu0 %2443
        %2445 = vrot.lane.b32.xlu0 %v1169, 16
        %v2446 = vpop.permute.xlu0 %2445
        %2447 = vrot.lane.b32.xlu0 %v1171, 16
        %v2448 = vpop.permute.xlu0 %2447
        %2449 = vrot.lane.b32.xlu0 %v1173, 16
        %v2450 = vpop.permute.xlu0 %2449
        %2451 = vrot.lane.b32.xlu0 %v1175, 16
        %v2452 = vpop.permute.xlu0 %2451
        %2453 = vrot.lane.b32.xlu0 %v1177, 16
        %v2454 = vpop.permute.xlu0 %2453
        %v2455 = vsel %vm321, %v2392, %v2424
        %v2456 = vsel %vm321, %v2394, %v2426
        %v2457 = vsel %vm321, %v2396, %v2428
        %v2458 = vsel %vm321, %v2398, %v2430
        %v2459 = vsel %vm321, %v2400, %v2432
        %v2460 = vsel %vm321, %v2402, %v2434
        %v2461 = vsel %vm321, %v2404, %v2436
        %v2462 = vsel %vm321, %v2406, %v2438
        %v2463 = vsel %vm321, %v2408, %v2440
        %v2464 = vsel %vm321, %v2410, %v2442
        %v2465 = vsel %vm321, %v2412, %v2444
        %v2466 = vsel %vm321, %v2414, %v2446
        %v2467 = vsel %vm321, %v2416, %v2448
        %v2468 = vsel %vm321, %v2418, %v2450
        %v2469 = vsel %vm321, %v2420, %v2452
        %v2470 = vsel %vm321, %v2422, %v2454
        %v2471 = vsel %vm321, %v2424, %v2392
        %v2472 = vsel %vm321, %v2426, %v2394
        %v2473 = vsel %vm321, %v2428, %v2396
        %v2474 = vsel %vm321, %v2430, %v2398
        %v2475 = vsel %vm321, %v2432, %v2400
        %v2476 = vsel %vm321, %v2434, %v2402
        %v2477 = vsel %vm321, %v2436, %v2404
        %v2478 = vsel %vm321, %v2438, %v2406
        %v2479 = vsel %vm321, %v2440, %v2408
        %v2480 = vsel %vm321, %v2442, %v2410
        %v2481 = vsel %vm321, %v2444, %v2412
        %v2482 = vsel %vm321, %v2446, %v2414
        %v2483 = vsel %vm321, %v2448, %v2416
        %v2484 = vsel %vm321, %v2450, %v2418
        %v2485 = vsel %vm321, %v2452, %v2420
        %v2486 = vsel %vm321, %v2454, %v2422
        %v2487 = vmax.f32 %v1146, %v2471
        %v2488 = vmax.f32 %v1147, %v2455
        %v2489 = vmax.f32 %v1148, %v2472
        %v2490 = vmax.f32 %v1149, %v2456
        %v2491 = vmax.f32 %v1150, %v2473
        %v2492 = vmax.f32 %v1151, %v2457
        %v2493 = vmax.f32 %v1152, %v2474
        %v2494 = vmax.f32 %v1153, %v2458
        %v2495 = vmax.f32 %v1154, %v2475
        %v2496 = vmax.f32 %v1155, %v2459
        %v2497 = vmax.f32 %v1156, %v2476
        %v2498 = vmax.f32 %v1157, %v2460
        %v2499 = vmax.f32 %v1158, %v2477
        %v2500 = vmax.f32 %v1159, %v2461
        %v2501 = vmax.f32 %v1160, %v2478
        %v2502 = vmax.f32 %v1161, %v2462
        %v2503 = vmax.f32 %v1162, %v2479
        %v2504 = vmax.f32 %v1163, %v2463
        %v2505 = vmax.f32 %v1164, %v2480
        %v2506 = vmax.f32 %v1165, %v2464
        %v2507 = vmax.f32 %v1166, %v2481
        %v2508 = vmax.f32 %v1167, %v2465
        %v2509 = vmax.f32 %v1168, %v2482
        %v2510 = vmax.f32 %v1169, %v2466
        %v2511 = vmax.f32 %v1170, %v2483
        %v2512 = vmax.f32 %v1171, %v2467
        %v2513 = vmax.f32 %v1172, %v2484
        %v2514 = vmax.f32 %v1173, %v2468
        %v2515 = vmax.f32 %v1174, %v2485
        %v2516 = vmax.f32 %v1175, %v2469
        %v2517 = vmax.f32 %v1176, %v2486
        %v2518 = vmax.f32 %v1177, %v2470
        %v2519 = vsel %vm328, %v2487, %v1146
        %v2520 = vsel %vm329, %v2488, %v1147
        %v2521 = vsel %vm328, %v2489, %v1148
        %v2522 = vsel %vm329, %v2490, %v1149
        %v2523 = vsel %vm328, %v2491, %v1150
        %v2524 = vsel %vm329, %v2492, %v1151
        %v2525 = vsel %vm328, %v2493, %v1152
        %v2526 = vsel %vm329, %v2494, %v1153
        %v2527 = vsel %vm328, %v2495, %v1154
        %v2528 = vsel %vm329, %v2496, %v1155
        %v2529 = vsel %vm328, %v2497, %v1156
        %v2530 = vsel %vm329, %v2498, %v1157
        %v2531 = vsel %vm328, %v2499, %v1158
        %v2532 = vsel %vm329, %v2500, %v1159
        %v2533 = vsel %vm328, %v2501, %v1160
        %v2534 = vsel %vm329, %v2502, %v1161
        %v2535 = vsel %vm328, %v2503, %v1162
        %v2536 = vsel %vm329, %v2504, %v1163
        %v2537 = vsel %vm328, %v2505, %v1164
        %v2538 = vsel %vm329, %v2506, %v1165
        %v2539 = vsel %vm328, %v2507, %v1166
        %v2540 = vsel %vm329, %v2508, %v1167
        %v2541 = vsel %vm328, %v2509, %v1168
        %v2542 = vsel %vm329, %v2510, %v1169
        %v2543 = vsel %vm328, %v2511, %v1170
        %v2544 = vsel %vm329, %v2512, %v1171
        %v2545 = vsel %vm328, %v2513, %v1172
        %v2546 = vsel %vm329, %v2514, %v1173
        %v2547 = vsel %vm328, %v2515, %v1174
        %v2548 = vsel %vm329, %v2516, %v1175
        %v2549 = vsel %vm328, %v2517, %v1176
        %v2550 = vsel %vm329, %v2518, %v1177
        %2551 = vrot.lane.b32.xlu0 %v2519, 32
        %v2552 = vpop.permute.xlu0 %2551
        %2553 = vrot.lane.b32.xlu0 %v2521, 32
        %v2554 = vpop.permute.xlu0 %2553
        %2555 = vrot.lane.b32.xlu0 %v2523, 32
        %v2556 = vpop.permute.xlu0 %2555
        %2557 = vrot.lane.b32.xlu0 %v2525, 32
        %v2558 = vpop.permute.xlu0 %2557
        %2559 = vrot.lane.b32.xlu0 %v2527, 32
        %v2560 = vpop.permute.xlu0 %2559
        %2561 = vrot.lane.b32.xlu0 %v2529, 32
        %v2562 = vpop.permute.xlu0 %2561
        %2563 = vrot.lane.b32.xlu0 %v2531, 32
        %v2564 = vpop.permute.xlu0 %2563
        %2565 = vrot.lane.b32.xlu0 %v2533, 32
        %v2566 = vpop.permute.xlu0 %2565
        %2567 = vrot.lane.b32.xlu0 %v2535, 32
        %v2568 = vpop.permute.xlu0 %2567
        %2569 = vrot.lane.b32.xlu0 %v2537, 32
        %v2570 = vpop.permute.xlu0 %2569
        %2571 = vrot.lane.b32.xlu0 %v2539, 32
        %v2572 = vpop.permute.xlu0 %2571
        %2573 = vrot.lane.b32.xlu0 %v2541, 32
        %v2574 = vpop.permute.xlu0 %2573
        %2575 = vrot.lane.b32.xlu0 %v2543, 32
        %v2576 = vpop.permute.xlu0 %2575
        %2577 = vrot.lane.b32.xlu0 %v2545, 32
        %v2578 = vpop.permute.xlu0 %2577
        %2579 = vrot.lane.b32.xlu0 %v2547, 32
        %v2580 = vpop.permute.xlu0 %2579
        %2581 = vrot.lane.b32.xlu0 %v2549, 32
        %v2582 = vpop.permute.xlu0 %2581
        %2583 = vrot.lane.b32.xlu0 %v2520, 32
        %v2584 = vpop.permute.xlu0 %2583
        %2585 = vrot.lane.b32.xlu0 %v2522, 32
        %v2586 = vpop.permute.xlu0 %2585
        %2587 = vrot.lane.b32.xlu0 %v2524, 32
        %v2588 = vpop.permute.xlu0 %2587
        %2589 = vrot.lane.b32.xlu0 %v2526, 32
        %v2590 = vpop.permute.xlu0 %2589
        %2591 = vrot.lane.b32.xlu0 %v2528, 32
        %v2592 = vpop.permute.xlu0 %2591
        %2593 = vrot.lane.b32.xlu0 %v2530, 32
        %v2594 = vpop.permute.xlu0 %2593
        %2595 = vrot.lane.b32.xlu0 %v2532, 32
        %v2596 = vpop.permute.xlu0 %2595
        %2597 = vrot.lane.b32.xlu0 %v2534, 32
        %v2598 = vpop.permute.xlu0 %2597
        %2599 = vrot.lane.b32.xlu0 %v2536, 32
        %v2600 = vpop.permute.xlu0 %2599
        %2601 = vrot.lane.b32.xlu0 %v2538, 32
        %v2602 = vpop.permute.xlu0 %2601
        %2603 = vrot.lane.b32.xlu0 %v2540, 32
        %v2604 = vpop.permute.xlu0 %2603
        %2605 = vrot.lane.b32.xlu0 %v2542, 32
        %v2606 = vpop.permute.xlu0 %2605
        %2607 = vrot.lane.b32.xlu0 %v2544, 32
        %v2608 = vpop.permute.xlu0 %2607
        %2609 = vrot.lane.b32.xlu0 %v2546, 32
        %v2610 = vpop.permute.xlu0 %2609
        %2611 = vrot.lane.b32.xlu0 %v2548, 32
        %v2612 = vpop.permute.xlu0 %2611
        %2613 = vrot.lane.b32.xlu0 %v2550, 32
        %v2614 = vpop.permute.xlu0 %2613
        %vm2615 = vcmp.lt.s32.totalorder %v278, 32
        %v2616 = vsel %vm2615, %v2552, %v2584
        %v2617 = vsel %vm2615, %v2554, %v2586
        %v2618 = vsel %vm2615, %v2556, %v2588
        %v2619 = vsel %vm2615, %v2558, %v2590
        %v2620 = vsel %vm2615, %v2560, %v2592
        %v2621 = vsel %vm2615, %v2562, %v2594
        %v2622 = vsel %vm2615, %v2564, %v2596
        %v2623 = vsel %vm2615, %v2566, %v2598
        %v2624 = vsel %vm2615, %v2568, %v2600
        %v2625 = vsel %vm2615, %v2570, %v2602
        %v2626 = vsel %vm2615, %v2572, %v2604
        %v2627 = vsel %vm2615, %v2574, %v2606
        %v2628 = vsel %vm2615, %v2576, %v2608
        %v2629 = vsel %vm2615, %v2578, %v2610
        %v2630 = vsel %vm2615, %v2580, %v2612
        %v2631 = vsel %vm2615, %v2582, %v2614
        %v2632 = vsel %vm2615, %v2584, %v2552
        %v2633 = vsel %vm2615, %v2586, %v2554
        %v2634 = vsel %vm2615, %v2588, %v2556
        %v2635 = vsel %vm2615, %v2590, %v2558
        %v2636 = vsel %vm2615, %v2592, %v2560
        %v2637 = vsel %vm2615, %v2594, %v2562
        %v2638 = vsel %vm2615, %v2596, %v2564
        %v2639 = vsel %vm2615, %v2598, %v2566
        %v2640 = vsel %vm2615, %v2600, %v2568
        %v2641 = vsel %vm2615, %v2602, %v2570
        %v2642 = vsel %vm2615, %v2604, %v2572
        %v2643 = vsel %vm2615, %v2606, %v2574
        %v2644 = vsel %vm2615, %v2608, %v2576
        %v2645 = vsel %vm2615, %v2610, %v2578
        %v2646 = vsel %vm2615, %v2612, %v2580
        %v2647 = vsel %vm2615, %v2614, %v2582
        %vm2648 = vcmp.ge.s32.totalorder %v278, 32
        %vm2649 = vcmp.ge.s32.totalorder %v279, 32
        %v2650 = vmax.f32 %v2519, %v2632
        %v2651 = vmax.f32 %v2520, %v2616
        %v2652 = vmax.f32 %v2521, %v2633
        %v2653 = vmax.f32 %v2522, %v2617
        %v2654 = vmax.f32 %v2523, %v2634
        %v2655 = vmax.f32 %v2524, %v2618
        %v2656 = vmax.f32 %v2525, %v2635
        %v2657 = vmax.f32 %v2526, %v2619
        %v2658 = vmax.f32 %v2527, %v2636
        %v2659 = vmax.f32 %v2528, %v2620
        %v2660 = vmax.f32 %v2529, %v2637
        %v2661 = vmax.f32 %v2530, %v2621
        %v2662 = vmax.f32 %v2531, %v2638
        %v2663 = vmax.f32 %v2532, %v2622
        %v2664 = vmax.f32 %v2533, %v2639
        %v2665 = vmax.f32 %v2534, %v2623
        %v2666 = vmax.f32 %v2535, %v2640
        %v2667 = vmax.f32 %v2536, %v2624
        %v2668 = vmax.f32 %v2537, %v2641
        %v2669 = vmax.f32 %v2538, %v2625
        %v2670 = vmax.f32 %v2539, %v2642
        %v2671 = vmax.f32 %v2540, %v2626
        %v2672 = vmax.f32 %v2541, %v2643
        %v2673 = vmax.f32 %v2542, %v2627
        %v2674 = vmax.f32 %v2543, %v2644
        %v2675 = vmax.f32 %v2544, %v2628
        %v2676 = vmax.f32 %v2545, %v2645
        %v2677 = vmax.f32 %v2546, %v2629
        %v2678 = vmax.f32 %v2547, %v2646
        %v2679 = vmax.f32 %v2548, %v2630
        %v2680 = vmax.f32 %v2549, %v2647
        %v2681 = vmax.f32 %v2550, %v2631
        %v2682 = vsel %vm2648, 1, 0
        %v2683 = vsel %vm2649, 1, 0
        %vm2684 = vcmp.eq.s32.totalorder %v2682, 1
        %vm2685 = vcmp.eq.s32.totalorder %v2683, 1
        %v2686 = vsel %vm2684, %v2650, %v2519
        %v2687 = vsel %vm2685, %v2651, %v2520
        %v2688 = vsel %vm2684, %v2652, %v2521
        %v2689 = vsel %vm2685, %v2653, %v2522
        %v2690 = vsel %vm2684, %v2654, %v2523
        %v2691 = vsel %vm2685, %v2655, %v2524
        %v2692 = vsel %vm2684, %v2656, %v2525
        %v2693 = vsel %vm2685, %v2657, %v2526
        %v2694 = vsel %vm2684, %v2658, %v2527
        %v2695 = vsel %vm2685, %v2659, %v2528
        %v2696 = vsel %vm2684, %v2660, %v2529
        %v2697 = vsel %vm2685, %v2661, %v2530
        %v2698 = vsel %vm2684, %v2662, %v2531
        %v2699 = vsel %vm2685, %v2663, %v2532
        %v2700 = vsel %vm2684, %v2664, %v2533
        %v2701 = vsel %vm2685, %v2665, %v2534
        %v2702 = vsel %vm2684, %v2666, %v2535
        %v2703 = vsel %vm2685, %v2667, %v2536
        %v2704 = vsel %vm2684, %v2668, %v2537
        %v2705 = vsel %vm2685, %v2669, %v2538
        %v2706 = vsel %vm2684, %v2670, %v2539
        %v2707 = vsel %vm2685, %v2671, %v2540
        %v2708 = vsel %vm2684, %v2672, %v2541
        %v2709 = vsel %vm2685, %v2673, %v2542
        %v2710 = vsel %vm2684, %v2674, %v2543
        %v2711 = vsel %vm2685, %v2675, %v2544
        %v2712 = vsel %vm2684, %v2676, %v2545
        %v2713 = vsel %vm2685, %v2677, %v2546
        %v2714 = vsel %vm2684, %v2678, %v2547
        %v2715 = vsel %vm2685, %v2679, %v2548
        %v2716 = vsel %vm2684, %v2680, %v2549
        %v2717 = vsel %vm2685, %v2681, %v2550
        %2718 = vrot.lane.b32.xlu0 %v2686, 64
        %v2719 = vpop.permute.xlu0 %2718
        %2720 = vrot.lane.b32.xlu0 %v2688, 64
        %v2721 = vpop.permute.xlu0 %2720
        %2722 = vrot.lane.b32.xlu0 %v2690, 64
        %v2723 = vpop.permute.xlu0 %2722
        %2724 = vrot.lane.b32.xlu0 %v2692, 64
        %v2725 = vpop.permute.xlu0 %2724
        %2726 = vrot.lane.b32.xlu0 %v2694, 64
        %v2727 = vpop.permute.xlu0 %2726
        %2728 = vrot.lane.b32.xlu0 %v2696, 64
        %v2729 = vpop.permute.xlu0 %2728
        %2730 = vrot.lane.b32.xlu0 %v2698, 64
        %v2731 = vpop.permute.xlu0 %2730
        %2732 = vrot.lane.b32.xlu0 %v2700, 64
        %v2733 = vpop.permute.xlu0 %2732
        %2734 = vrot.lane.b32.xlu0 %v2702, 64
        %v2735 = vpop.permute.xlu0 %2734
        %2736 = vrot.lane.b32.xlu0 %v2704, 64
        %v2737 = vpop.permute.xlu0 %2736
        %2738 = vrot.lane.b32.xlu0 %v2706, 64
        %v2739 = vpop.permute.xlu0 %2738
        %2740 = vrot.lane.b32.xlu0 %v2708, 64
        %v2741 = vpop.permute.xlu0 %2740
        %2742 = vrot.lane.b32.xlu0 %v2710, 64
        %v2743 = vpop.permute.xlu0 %2742
        %2744 = vrot.lane.b32.xlu0 %v2712, 64
        %v2745 = vpop.permute.xlu0 %2744
        %2746 = vrot.lane.b32.xlu0 %v2714, 64
        %v2747 = vpop.permute.xlu0 %2746
        %2748 = vrot.lane.b32.xlu0 %v2716, 64
        %v2749 = vpop.permute.xlu0 %2748
        %2750 = vrot.lane.b32.xlu0 %v2687, 64
        %v2751 = vpop.permute.xlu0 %2750
        %2752 = vrot.lane.b32.xlu0 %v2689, 64
        %v2753 = vpop.permute.xlu0 %2752
        %2754 = vrot.lane.b32.xlu0 %v2691, 64
        %v2755 = vpop.permute.xlu0 %2754
        %2756 = vrot.lane.b32.xlu0 %v2693, 64
        %v2757 = vpop.permute.xlu0 %2756
        %2758 = vrot.lane.b32.xlu0 %v2695, 64
        %v2759 = vpop.permute.xlu0 %2758
        %2760 = vrot.lane.b32.xlu0 %v2697, 64
        %v2761 = vpop.permute.xlu0 %2760
        %2762 = vrot.lane.b32.xlu0 %v2699, 64
        %v2763 = vpop.permute.xlu0 %2762
        %2764 = vrot.lane.b32.xlu0 %v2701, 64
        %v2765 = vpop.permute.xlu0 %2764
        %2766 = vrot.lane.b32.xlu0 %v2703, 64
        %v2767 = vpop.permute.xlu0 %2766
        %2768 = vrot.lane.b32.xlu0 %v2705, 64
        %v2769 = vpop.permute.xlu0 %2768
        %2770 = vrot.lane.b32.xlu0 %v2707, 64
        %v2771 = vpop.permute.xlu0 %2770
        %2772 = vrot.lane.b32.xlu0 %v2709, 64
        %v2773 = vpop.permute.xlu0 %2772
        %2774 = vrot.lane.b32.xlu0 %v2711, 64
        %v2775 = vpop.permute.xlu0 %2774
        %2776 = vrot.lane.b32.xlu0 %v2713, 64
        %v2777 = vpop.permute.xlu0 %2776
        %2778 = vrot.lane.b32.xlu0 %v2715, 64
        %v2779 = vpop.permute.xlu0 %2778
        %2780 = vrot.lane.b32.xlu0 %v2717, 64
        %v2781 = vpop.permute.xlu0 %2780
        %v2782 = vsel %vm1573, %v2719, %v2751
        %v2783 = vsel %vm1573, %v2721, %v2753
        %v2784 = vsel %vm1573, %v2723, %v2755
        %v2785 = vsel %vm1573, %v2725, %v2757
        %v2786 = vsel %vm1573, %v2727, %v2759
        %v2787 = vsel %vm1573, %v2729, %v2761
        %v2788 = vsel %vm1573, %v2731, %v2763
        %v2789 = vsel %vm1573, %v2733, %v2765
        %v2790 = vsel %vm1573, %v2735, %v2767
        %v2791 = vsel %vm1573, %v2737, %v2769
        %v2792 = vsel %vm1573, %v2739, %v2771
        %v2793 = vsel %vm1573, %v2741, %v2773
        %v2794 = vsel %vm1573, %v2743, %v2775
        %v2795 = vsel %vm1573, %v2745, %v2777
        %v2796 = vsel %vm1573, %v2747, %v2779
        %v2797 = vsel %vm1573, %v2749, %v2781
        %v2798 = vsel %vm1573, %v2751, %v2719
        %v2799 = vsel %vm1573, %v2753, %v2721
        %v2800 = vsel %vm1573, %v2755, %v2723
        %v2801 = vsel %vm1573, %v2757, %v2725
        %v2802 = vsel %vm1573, %v2759, %v2727
        %v2803 = vsel %vm1573, %v2761, %v2729
        %v2804 = vsel %vm1573, %v2763, %v2731
        %v2805 = vsel %vm1573, %v2765, %v2733
        %v2806 = vsel %vm1573, %v2767, %v2735
        %v2807 = vsel %vm1573, %v2769, %v2737
        %v2808 = vsel %vm1573, %v2771, %v2739
        %v2809 = vsel %vm1573, %v2773, %v2741
        %v2810 = vsel %vm1573, %v2775, %v2743
        %v2811 = vsel %vm1573, %v2777, %v2745
        %v2812 = vsel %vm1573, %v2779, %v2747
        %v2813 = vsel %vm1573, %v2781, %v2749
        %vm2814 = vcmp.ge.s32.totalorder %v278, 64
        %vm2815 = vcmp.ge.s32.totalorder %v279, 64
        %v2816 = vmax.f32 %v2686, %v2798
        %v2817 = vmax.f32 %v2687, %v2782
        %v2818 = vmax.f32 %v2688, %v2799
        %v2819 = vmax.f32 %v2689, %v2783
        %v2820 = vmax.f32 %v2690, %v2800
        %v2821 = vmax.f32 %v2691, %v2784
        %v2822 = vmax.f32 %v2692, %v2801
        %v2823 = vmax.f32 %v2693, %v2785
        %v2824 = vmax.f32 %v2694, %v2802
        %v2825 = vmax.f32 %v2695, %v2786
        %v2826 = vmax.f32 %v2696, %v2803
        %v2827 = vmax.f32 %v2697, %v2787
        %v2828 = vmax.f32 %v2698, %v2804
        %v2829 = vmax.f32 %v2699, %v2788
        %v2830 = vmax.f32 %v2700, %v2805
        %v2831 = vmax.f32 %v2701, %v2789
        %v2832 = vmax.f32 %v2702, %v2806
        %v2833 = vmax.f32 %v2703, %v2790
        %v2834 = vmax.f32 %v2704, %v2807
        %v2835 = vmax.f32 %v2705, %v2791
        %v2836 = vmax.f32 %v2706, %v2808
        %v2837 = vmax.f32 %v2707, %v2792
        %v2838 = vmax.f32 %v2708, %v2809
        %v2839 = vmax.f32 %v2709, %v2793
        %v2840 = vmax.f32 %v2710, %v2810
        %v2841 = vmax.f32 %v2711, %v2794
        %v2842 = vmax.f32 %v2712, %v2811
        %v2843 = vmax.f32 %v2713, %v2795
        %v2844 = vmax.f32 %v2714, %v2812
        %v2845 = vmax.f32 %v2715, %v2796
        %v2846 = vmax.f32 %v2716, %v2813
        %v2847 = vmax.f32 %v2717, %v2797
        %v2848 = vsel %vm2814, 1, 0
        %v2849 = vsel %vm2815, 1, 0
        %vm2850 = vcmp.eq.s32.totalorder %v2848, 1
        %vm2851 = vcmp.eq.s32.totalorder %v2849, 1
        %v2852 = vsel %vm2850, %v2816, %v2686
        %v2853 = vsel %vm2851, %v2817, %v2687
        %v2854 = vsel %vm2850, %v2818, %v2688
        %v2855 = vsel %vm2851, %v2819, %v2689
        %v2856 = vsel %vm2850, %v2820, %v2690
        %v2857 = vsel %vm2851, %v2821, %v2691
        %v2858 = vsel %vm2850, %v2822, %v2692
        %v2859 = vsel %vm2851, %v2823, %v2693
        %v2860 = vsel %vm2850, %v2824, %v2694
        %v2861 = vsel %vm2851, %v2825, %v2695
        %v2862 = vsel %vm2850, %v2826, %v2696
        %v2863 = vsel %vm2851, %v2827, %v2697
        %v2864 = vsel %vm2850, %v2828, %v2698
        %v2865 = vsel %vm2851, %v2829, %v2699
        %v2866 = vsel %vm2850, %v2830, %v2700
        %v2867 = vsel %vm2851, %v2831, %v2701
        %v2868 = vsel %vm2850, %v2832, %v2702
        %v2869 = vsel %vm2851, %v2833, %v2703
        %v2870 = vsel %vm2850, %v2834, %v2704
        %v2871 = vsel %vm2851, %v2835, %v2705
        %v2872 = vsel %vm2850, %v2836, %v2706
        %v2873 = vsel %vm2851, %v2837, %v2707
        %v2874 = vsel %vm2850, %v2838, %v2708
        %v2875 = vsel %vm2851, %v2839, %v2709
        %v2876 = vsel %vm2850, %v2840, %v2710
        %v2877 = vsel %vm2851, %v2841, %v2711
        %v2878 = vsel %vm2850, %v2842, %v2712
        %v2879 = vsel %vm2851, %v2843, %v2713
        %v2880 = vsel %vm2850, %v2844, %v2714
        %v2881 = vsel %vm2851, %v2845, %v2715
        %v2882 = vsel %vm2850, %v2846, %v2716
        %v2883 = vsel %vm2851, %v2847, %v2717
        %vm2884 = vcmp.ge.s32.totalorder %v278, 128
        %vm2885 = vcmp.ge.s32.totalorder %v279, 128
        %v2886 = vmax.f32 %v2852, %v2853
        %v2887 = vmax.f32 %v2854, %v2855
        %v2888 = vmax.f32 %v2856, %v2857
        %v2889 = vmax.f32 %v2858, %v2859
        %v2890 = vmax.f32 %v2860, %v2861
        %v2891 = vmax.f32 %v2862, %v2863
        %v2892 = vmax.f32 %v2864, %v2865
        %v2893 = vmax.f32 %v2866, %v2867
        %v2894 = vmax.f32 %v2868, %v2869
        %v2895 = vmax.f32 %v2870, %v2871
        %v2896 = vmax.f32 %v2872, %v2873
        %v2897 = vmax.f32 %v2874, %v2875
        %v2898 = vmax.f32 %v2876, %v2877
        %v2899 = vmax.f32 %v2878, %v2879
        %v2900 = vmax.f32 %v2880, %v2881
        %v2901 = vmax.f32 %v2882, %v2883
        %v2902 = vsel %vm2884, 1, 0
        %v2903 = vsel %vm2885, 1, 0
        %vm2904 = vcmp.eq.s32.totalorder %v2902, 1
        %vm2905 = vcmp.eq.s32.totalorder %v2903, 1
        %v2906 = vsel %vm2904, %v2886, %v2852
        %v2907 = vsel %vm2905, %v2886, %v2853
        %v2908 = vsel %vm2904, %v2887, %v2854
        %v2909 = vsel %vm2905, %v2887, %v2855
        %v2910 = vsel %vm2904, %v2888, %v2856
        %v2911 = vsel %vm2905, %v2888, %v2857
        %v2912 = vsel %vm2904, %v2889, %v2858
        %v2913 = vsel %vm2905, %v2889, %v2859
        %v2914 = vsel %vm2904, %v2890, %v2860
        %v2915 = vsel %vm2905, %v2890, %v2861
        %v2916 = vsel %vm2904, %v2891, %v2862
        %v2917 = vsel %vm2905, %v2891, %v2863
        %v2918 = vsel %vm2904, %v2892, %v2864
        %v2919 = vsel %vm2905, %v2892, %v2865
        %v2920 = vsel %vm2904, %v2893, %v2866
        %v2921 = vsel %vm2905, %v2893, %v2867
        %v2922 = vsel %vm2904, %v2894, %v2868
        %v2923 = vsel %vm2905, %v2894, %v2869
        %v2924 = vsel %vm2904, %v2895, %v2870
        %v2925 = vsel %vm2905, %v2895, %v2871
        %v2926 = vsel %vm2904, %v2896, %v2872
        %v2927 = vsel %vm2905, %v2896, %v2873
        %v2928 = vsel %vm2904, %v2897, %v2874
        %v2929 = vsel %vm2905, %v2897, %v2875
        %v2930 = vsel %vm2904, %v2898, %v2876
        %v2931 = vsel %vm2905, %v2898, %v2877
        %v2932 = vsel %vm2904, %v2899, %v2878
        %v2933 = vsel %vm2905, %v2899, %v2879
        %v2934 = vsel %vm2904, %v2900, %v2880
        %v2935 = vsel %vm2905, %v2900, %v2881
        %v2936 = vsel %vm2904, %v2901, %v2882
        %v2937 = vsel %vm2905, %v2901, %v2883
        %2938 = vrot.lane.b32.xlu0 %v2906, 1
        %v2939 = vpop.permute.xlu0 %2938
        %2940 = vrot.lane.b32.xlu0 %v2908, 1
        %v2941 = vpop.permute.xlu0 %2940
        %2942 = vrot.lane.b32.xlu0 %v2910, 1
        %v2943 = vpop.permute.xlu0 %2942
        %2944 = vrot.lane.b32.xlu0 %v2912, 1
        %v2945 = vpop.permute.xlu0 %2944
        %2946 = vrot.lane.b32.xlu0 %v2914, 1
        %v2947 = vpop.permute.xlu0 %2946
        %2948 = vrot.lane.b32.xlu0 %v2916, 1
        %v2949 = vpop.permute.xlu0 %2948
        %2950 = vrot.lane.b32.xlu0 %v2918, 1
        %v2951 = vpop.permute.xlu0 %2950
        %2952 = vrot.lane.b32.xlu0 %v2920, 1
        %v2953 = vpop.permute.xlu0 %2952
        %2954 = vrot.lane.b32.xlu0 %v2922, 1
        %v2955 = vpop.permute.xlu0 %2954
        %2956 = vrot.lane.b32.xlu0 %v2924, 1
        %v2957 = vpop.permute.xlu0 %2956
        %2958 = vrot.lane.b32.xlu0 %v2926, 1
        %v2959 = vpop.permute.xlu0 %2958
        %2960 = vrot.lane.b32.xlu0 %v2928, 1
        %v2961 = vpop.permute.xlu0 %2960
        %2962 = vrot.lane.b32.xlu0 %v2930, 1
        %v2963 = vpop.permute.xlu0 %2962
        %2964 = vrot.lane.b32.xlu0 %v2932, 1
        %v2965 = vpop.permute.xlu0 %2964
        %2966 = vrot.lane.b32.xlu0 %v2934, 1
        %v2967 = vpop.permute.xlu0 %2966
        %2968 = vrot.lane.b32.xlu0 %v2936, 1
        %v2969 = vpop.permute.xlu0 %2968
        %2970 = vrot.lane.b32.xlu0 %v2907, 1
        %v2971 = vpop.permute.xlu0 %2970
        %2972 = vrot.lane.b32.xlu0 %v2909, 1
        %v2973 = vpop.permute.xlu0 %2972
        %2974 = vrot.lane.b32.xlu0 %v2911, 1
        %v2975 = vpop.permute.xlu0 %2974
        %2976 = vrot.lane.b32.xlu0 %v2913, 1
        %v2977 = vpop.permute.xlu0 %2976
        %2978 = vrot.lane.b32.xlu0 %v2915, 1
        %v2979 = vpop.permute.xlu0 %2978
        %2980 = vrot.lane.b32.xlu0 %v2917, 1
        %v2981 = vpop.permute.xlu0 %2980
        %2982 = vrot.lane.b32.xlu0 %v2919, 1
        %v2983 = vpop.permute.xlu0 %2982
        %2984 = vrot.lane.b32.xlu0 %v2921, 1
        %v2985 = vpop.permute.xlu0 %2984
        %2986 = vrot.lane.b32.xlu0 %v2923, 1
        %v2987 = vpop.permute.xlu0 %2986
        %2988 = vrot.lane.b32.xlu0 %v2925, 1
        %v2989 = vpop.permute.xlu0 %2988
        %2990 = vrot.lane.b32.xlu0 %v2927, 1
        %v2991 = vpop.permute.xlu0 %2990
        %2992 = vrot.lane.b32.xlu0 %v2929, 1
        %v2993 = vpop.permute.xlu0 %2992
        %2994 = vrot.lane.b32.xlu0 %v2931, 1
        %v2995 = vpop.permute.xlu0 %2994
        %2996 = vrot.lane.b32.xlu0 %v2933, 1
        %v2997 = vpop.permute.xlu0 %2996
        %2998 = vrot.lane.b32.xlu0 %v2935, 1
        %v2999 = vpop.permute.xlu0 %2998
        %3000 = vrot.lane.b32.xlu0 %v2937, 1
        %v3001 = vpop.permute.xlu0 %3000
        %v3002 = vsel %vm367, %v2939, %v2971
        %v3003 = vsel %vm367, %v2941, %v2973
        %v3004 = vsel %vm367, %v2943, %v2975
        %v3005 = vsel %vm367, %v2945, %v2977
        %v3006 = vsel %vm367, %v2947, %v2979
        %v3007 = vsel %vm367, %v2949, %v2981
        %v3008 = vsel %vm367, %v2951, %v2983
        %v3009 = vsel %vm367, %v2953, %v2985
        %v3010 = vsel %vm367, %v2955, %v2987
        %v3011 = vsel %vm367, %v2957, %v2989
        %v3012 = vsel %vm367, %v2959, %v2991
        %v3013 = vsel %vm367, %v2961, %v2993
        %v3014 = vsel %vm367, %v2963, %v2995
        %v3015 = vsel %vm367, %v2965, %v2997
        %v3016 = vsel %vm367, %v2967, %v2999
        %v3017 = vsel %vm367, %v2969, %v3001
        %v3018 = vsel %vm367, %v2971, %v2939
        %v3019 = vsel %vm367, %v2973, %v2941
        %v3020 = vsel %vm367, %v2975, %v2943
        %v3021 = vsel %vm367, %v2977, %v2945
        %v3022 = vsel %vm367, %v2979, %v2947
        %v3023 = vsel %vm367, %v2981, %v2949
        %v3024 = vsel %vm367, %v2983, %v2951
        %v3025 = vsel %vm367, %v2985, %v2953
        %v3026 = vsel %vm367, %v2987, %v2955
        %v3027 = vsel %vm367, %v2989, %v2957
        %v3028 = vsel %vm367, %v2991, %v2959
        %v3029 = vsel %vm367, %v2993, %v2961
        %v3030 = vsel %vm367, %v2995, %v2963
        %v3031 = vsel %vm367, %v2997, %v2965
        %v3032 = vsel %vm367, %v2999, %v2967
        %v3033 = vsel %vm367, %v3001, %v2969
        %v3034 = vmax.f32 %v2906, %v3018
        %v3035 = vmax.f32 %v2907, %v3002
        %v3036 = vmax.f32 %v2908, %v3019
        %v3037 = vmax.f32 %v2909, %v3003
        %v3038 = vmax.f32 %v2910, %v3020
        %v3039 = vmax.f32 %v2911, %v3004
        %v3040 = vmax.f32 %v2912, %v3021
        %v3041 = vmax.f32 %v2913, %v3005
        %v3042 = vmax.f32 %v2914, %v3022
        %v3043 = vmax.f32 %v2915, %v3006
        %v3044 = vmax.f32 %v2916, %v3023
        %v3045 = vmax.f32 %v2917, %v3007
        %v3046 = vmax.f32 %v2918, %v3024
        %v3047 = vmax.f32 %v2919, %v3008
        %v3048 = vmax.f32 %v2920, %v3025
        %v3049 = vmax.f32 %v2921, %v3009
        %v3050 = vmax.f32 %v2922, %v3026
        %v3051 = vmax.f32 %v2923, %v3010
        %v3052 = vmax.f32 %v2924, %v3027
        %v3053 = vmax.f32 %v2925, %v3011
        %v3054 = vmax.f32 %v2926, %v3028
        %v3055 = vmax.f32 %v2927, %v3012
        %v3056 = vmax.f32 %v2928, %v3029
        %v3057 = vmax.f32 %v2929, %v3013
        %v3058 = vmax.f32 %v2930, %v3030
        %v3059 = vmax.f32 %v2931, %v3014
        %v3060 = vmax.f32 %v2932, %v3031
        %v3061 = vmax.f32 %v2933, %v3015
        %v3062 = vmax.f32 %v2934, %v3032
        %v3063 = vmax.f32 %v2935, %v3016
        %v3064 = vmax.f32 %v2936, %v3033
        %v3065 = vmax.f32 %v2937, %v3017
        %v3066 = vsel %vm374, %v3034, %v2906
        %v3067 = vsel %vm375, %v3035, %v2907
        %v3068 = vsel %vm374, %v3036, %v2908
        %v3069 = vsel %vm375, %v3037, %v2909
        %v3070 = vsel %vm374, %v3038, %v2910
        %v3071 = vsel %vm375, %v3039, %v2911
        %v3072 = vsel %vm374, %v3040, %v2912
        %v3073 = vsel %vm375, %v3041, %v2913
        %v3074 = vsel %vm374, %v3042, %v2914
        %v3075 = vsel %vm375, %v3043, %v2915
        %v3076 = vsel %vm374, %v3044, %v2916
        %v3077 = vsel %vm375, %v3045, %v2917
        %v3078 = vsel %vm374, %v3046, %v2918
        %v3079 = vsel %vm375, %v3047, %v2919
        %v3080 = vsel %vm374, %v3048, %v2920
        %v3081 = vsel %vm375, %v3049, %v2921
        %v3082 = vsel %vm374, %v3050, %v2922
        %v3083 = vsel %vm375, %v3051, %v2923
        %v3084 = vsel %vm374, %v3052, %v2924
        %v3085 = vsel %vm375, %v3053, %v2925
        %v3086 = vsel %vm374, %v3054, %v2926
        %v3087 = vsel %vm375, %v3055, %v2927
        %v3088 = vsel %vm374, %v3056, %v2928
        %v3089 = vsel %vm375, %v3057, %v2929
        %v3090 = vsel %vm374, %v3058, %v2930
        %v3091 = vsel %vm375, %v3059, %v2931
        %v3092 = vsel %vm374, %v3060, %v2932
        %v3093 = vsel %vm375, %v3061, %v2933
        %v3094 = vsel %vm374, %v3062, %v2934
        %v3095 = vsel %vm375, %v3063, %v2935
        %v3096 = vsel %vm374, %v3064, %v2936
        %v3097 = vsel %vm375, %v3065, %v2937
        %3098 = vrot.lane.b32.xlu0 %v3066, 2
        %v3099 = vpop.permute.xlu0 %3098
        %3100 = vrot.lane.b32.xlu0 %v3068, 2
        %v3101 = vpop.permute.xlu0 %3100
        %3102 = vrot.lane.b32.xlu0 %v3070, 2
        %v3103 = vpop.permute.xlu0 %3102
        %3104 = vrot.lane.b32.xlu0 %v3072, 2
        %v3105 = vpop.permute.xlu0 %3104
        %3106 = vrot.lane.b32.xlu0 %v3074, 2
        %v3107 = vpop.permute.xlu0 %3106
        %3108 = vrot.lane.b32.xlu0 %v3076, 2
        %v3109 = vpop.permute.xlu0 %3108
        %3110 = vrot.lane.b32.xlu0 %v3078, 2
        %v3111 = vpop.permute.xlu0 %3110
        %3112 = vrot.lane.b32.xlu0 %v3080, 2
        %v3113 = vpop.permute.xlu0 %3112
        %3114 = vrot.lane.b32.xlu0 %v3082, 2
        %v3115 = vpop.permute.xlu0 %3114
        %3116 = vrot.lane.b32.xlu0 %v3084, 2
        %v3117 = vpop.permute.xlu0 %3116
        %3118 = vrot.lane.b32.xlu0 %v3086, 2
        %v3119 = vpop.permute.xlu0 %3118
        %3120 = vrot.lane.b32.xlu0 %v3088, 2
        %v3121 = vpop.permute.xlu0 %3120
        %3122 = vrot.lane.b32.xlu0 %v3090, 2
        %v3123 = vpop.permute.xlu0 %3122
        %3124 = vrot.lane.b32.xlu0 %v3092, 2
        %v3125 = vpop.permute.xlu0 %3124
        %3126 = vrot.lane.b32.xlu0 %v3094, 2
        %v3127 = vpop.permute.xlu0 %3126
        %3128 = vrot.lane.b32.xlu0 %v3096, 2
        %v3129 = vpop.permute.xlu0 %3128
        %3130 = vrot.lane.b32.xlu0 %v3067, 2
        %v3131 = vpop.permute.xlu0 %3130
        %3132 = vrot.lane.b32.xlu0 %v3069, 2
        %v3133 = vpop.permute.xlu0 %3132
        %3134 = vrot.lane.b32.xlu0 %v3071, 2
        %v3135 = vpop.permute.xlu0 %3134
        %3136 = vrot.lane.b32.xlu0 %v3073, 2
        %v3137 = vpop.permute.xlu0 %3136
        %3138 = vrot.lane.b32.xlu0 %v3075, 2
        %v3139 = vpop.permute.xlu0 %3138
        %3140 = vrot.lane.b32.xlu0 %v3077, 2
        %v3141 = vpop.permute.xlu0 %3140
        %3142 = vrot.lane.b32.xlu0 %v3079, 2
        %v3143 = vpop.permute.xlu0 %3142
        %3144 = vrot.lane.b32.xlu0 %v3081, 2
        %v3145 = vpop.permute.xlu0 %3144
        %3146 = vrot.lane.b32.xlu0 %v3083, 2
        %v3147 = vpop.permute.xlu0 %3146
        %3148 = vrot.lane.b32.xlu0 %v3085, 2
        %v3149 = vpop.permute.xlu0 %3148
        %3150 = vrot.lane.b32.xlu0 %v3087, 2
        %v3151 = vpop.permute.xlu0 %3150
        %3152 = vrot.lane.b32.xlu0 %v3089, 2
        %v3153 = vpop.permute.xlu0 %3152
        %3154 = vrot.lane.b32.xlu0 %v3091, 2
        %v3155 = vpop.permute.xlu0 %3154
        %3156 = vrot.lane.b32.xlu0 %v3093, 2
        %v3157 = vpop.permute.xlu0 %3156
        %3158 = vrot.lane.b32.xlu0 %v3095, 2
        %v3159 = vpop.permute.xlu0 %3158
        %3160 = vrot.lane.b32.xlu0 %v3097, 2
        %v3161 = vpop.permute.xlu0 %3160
        %vm3162 = vcmp.lt.s32.totalorder %v278, 2
        %v3163 = vsel %vm3162, %v3099, %v3131
        %v3164 = vsel %vm3162, %v3101, %v3133
        %v3165 = vsel %vm3162, %v3103, %v3135
        %v3166 = vsel %vm3162, %v3105, %v3137
        %v3167 = vsel %vm3162, %v3107, %v3139
        %v3168 = vsel %vm3162, %v3109, %v3141
        %v3169 = vsel %vm3162, %v3111, %v3143
        %v3170 = vsel %vm3162, %v3113, %v3145
        %v3171 = vsel %vm3162, %v3115, %v3147
        %v3172 = vsel %vm3162, %v3117, %v3149
        %v3173 = vsel %vm3162, %v3119, %v3151
        %v3174 = vsel %vm3162, %v3121, %v3153
        %v3175 = vsel %vm3162, %v3123, %v3155
        %v3176 = vsel %vm3162, %v3125, %v3157
        %v3177 = vsel %vm3162, %v3127, %v3159
        %v3178 = vsel %vm3162, %v3129, %v3161
        %v3179 = vsel %vm3162, %v3131, %v3099
        %v3180 = vsel %vm3162, %v3133, %v3101
        %v3181 = vsel %vm3162, %v3135, %v3103
        %v3182 = vsel %vm3162, %v3137, %v3105
        %v3183 = vsel %vm3162, %v3139, %v3107
        %v3184 = vsel %vm3162, %v3141, %v3109
        %v3185 = vsel %vm3162, %v3143, %v3111
        %v3186 = vsel %vm3162, %v3145, %v3113
        %v3187 = vsel %vm3162, %v3147, %v3115
        %v3188 = vsel %vm3162, %v3149, %v3117
        %v3189 = vsel %vm3162, %v3151, %v3119
        %v3190 = vsel %vm3162, %v3153, %v3121
        %v3191 = vsel %vm3162, %v3155, %v3123
        %v3192 = vsel %vm3162, %v3157, %v3125
        %v3193 = vsel %vm3162, %v3159, %v3127
        %v3194 = vsel %vm3162, %v3161, %v3129
        %vm3195 = vcmp.ge.s32.totalorder %v280, 2
        %vm3196 = vcmp.ge.s32.totalorder %v281, 2
        %v3197 = vmax.f32 %v3066, %v3179
        %v3198 = vmax.f32 %v3067, %v3163
        %v3199 = vmax.f32 %v3068, %v3180
        %v3200 = vmax.f32 %v3069, %v3164
        %v3201 = vmax.f32 %v3070, %v3181
        %v3202 = vmax.f32 %v3071, %v3165
        %v3203 = vmax.f32 %v3072, %v3182
        %v3204 = vmax.f32 %v3073, %v3166
        %v3205 = vmax.f32 %v3074, %v3183
        %v3206 = vmax.f32 %v3075, %v3167
        %v3207 = vmax.f32 %v3076, %v3184
        %v3208 = vmax.f32 %v3077, %v3168
        %v3209 = vmax.f32 %v3078, %v3185
        %v3210 = vmax.f32 %v3079, %v3169
        %v3211 = vmax.f32 %v3080, %v3186
        %v3212 = vmax.f32 %v3081, %v3170
        %v3213 = vmax.f32 %v3082, %v3187
        %v3214 = vmax.f32 %v3083, %v3171
        %v3215 = vmax.f32 %v3084, %v3188
        %v3216 = vmax.f32 %v3085, %v3172
        %v3217 = vmax.f32 %v3086, %v3189
        %v3218 = vmax.f32 %v3087, %v3173
        %v3219 = vmax.f32 %v3088, %v3190
        %v3220 = vmax.f32 %v3089, %v3174
        %v3221 = vmax.f32 %v3090, %v3191
        %v3222 = vmax.f32 %v3091, %v3175
        %v3223 = vmax.f32 %v3092, %v3192
        %v3224 = vmax.f32 %v3093, %v3176
        %v3225 = vmax.f32 %v3094, %v3193
        %v3226 = vmax.f32 %v3095, %v3177
        %v3227 = vmax.f32 %v3096, %v3194
        %v3228 = vmax.f32 %v3097, %v3178
        %v3229 = vsel %vm3195, 1, 0
        %v3230 = vsel %vm3196, 1, 0
        %vm3231 = vcmp.eq.s32.totalorder %v3229, 1
        %vm3232 = vcmp.eq.s32.totalorder %v3230, 1
        %v3233 = vsel %vm3231, %v3197, %v3066
        %v3234 = vsel %vm3232, %v3198, %v3067
        %v3235 = vsel %vm3231, %v3199, %v3068
        %v3236 = vsel %vm3232, %v3200, %v3069
        %v3237 = vsel %vm3231, %v3201, %v3070
        %v3238 = vsel %vm3232, %v3202, %v3071
        %v3239 = vsel %vm3231, %v3203, %v3072
        %v3240 = vsel %vm3232, %v3204, %v3073
        %v3241 = vsel %vm3231, %v3205, %v3074
        %v3242 = vsel %vm3232, %v3206, %v3075
        %v3243 = vsel %vm3231, %v3207, %v3076
        %v3244 = vsel %vm3232, %v3208, %v3077
        %v3245 = vsel %vm3231, %v3209, %v3078
        %v3246 = vsel %vm3232, %v3210, %v3079
        %v3247 = vsel %vm3231, %v3211, %v3080
        %v3248 = vsel %vm3232, %v3212, %v3081
        %v3249 = vsel %vm3231, %v3213, %v3082
        %v3250 = vsel %vm3232, %v3214, %v3083
        %v3251 = vsel %vm3231, %v3215, %v3084
        %v3252 = vsel %vm3232, %v3216, %v3085
        %v3253 = vsel %vm3231, %v3217, %v3086
        %v3254 = vsel %vm3232, %v3218, %v3087
        %v3255 = vsel %vm3231, %v3219, %v3088
        %v3256 = vsel %vm3232, %v3220, %v3089
        %v3257 = vsel %vm3231, %v3221, %v3090
        %v3258 = vsel %vm3232, %v3222, %v3091
        %v3259 = vsel %vm3231, %v3223, %v3092
        %v3260 = vsel %vm3232, %v3224, %v3093
        %v3261 = vsel %vm3231, %v3225, %v3094
        %v3262 = vsel %vm3232, %v3226, %v3095
        %v3263 = vsel %vm3231, %v3227, %v3096
        %v3264 = vsel %vm3232, %v3228, %v3097
        %3265 = vrot.lane.b32.xlu0 %v3233, 4
        %v3266 = vpop.permute.xlu0 %3265
        %3267 = vrot.lane.b32.xlu0 %v3235, 4
        %v3268 = vpop.permute.xlu0 %3267
        %3269 = vrot.lane.b32.xlu0 %v3237, 4
        %v3270 = vpop.permute.xlu0 %3269
        %3271 = vrot.lane.b32.xlu0 %v3239, 4
        %v3272 = vpop.permute.xlu0 %3271
        %3273 = vrot.lane.b32.xlu0 %v3241, 4
        %v3274 = vpop.permute.xlu0 %3273
        %3275 = vrot.lane.b32.xlu0 %v3243, 4
        %v3276 = vpop.permute.xlu0 %3275
        %3277 = vrot.lane.b32.xlu0 %v3245, 4
        %v3278 = vpop.permute.xlu0 %3277
        %3279 = vrot.lane.b32.xlu0 %v3247, 4
        %v3280 = vpop.permute.xlu0 %3279
        %3281 = vrot.lane.b32.xlu0 %v3249, 4
        %v3282 = vpop.permute.xlu0 %3281
        %3283 = vrot.lane.b32.xlu0 %v3251, 4
        %v3284 = vpop.permute.xlu0 %3283
        %3285 = vrot.lane.b32.xlu0 %v3253, 4
        %v3286 = vpop.permute.xlu0 %3285
        %3287 = vrot.lane.b32.xlu0 %v3255, 4
        %v3288 = vpop.permute.xlu0 %3287
        %3289 = vrot.lane.b32.xlu0 %v3257, 4
        %v3290 = vpop.permute.xlu0 %3289
        %3291 = vrot.lane.b32.xlu0 %v3259, 4
        %v3292 = vpop.permute.xlu0 %3291
        %3293 = vrot.lane.b32.xlu0 %v3261, 4
        %v3294 = vpop.permute.xlu0 %3293
        %3295 = vrot.lane.b32.xlu0 %v3263, 4
        %v3296 = vpop.permute.xlu0 %3295
        %3297 = vrot.lane.b32.xlu0 %v3234, 4
        %v3298 = vpop.permute.xlu0 %3297
        %3299 = vrot.lane.b32.xlu0 %v3236, 4
        %v3300 = vpop.permute.xlu0 %3299
        %3301 = vrot.lane.b32.xlu0 %v3238, 4
        %v3302 = vpop.permute.xlu0 %3301
        %3303 = vrot.lane.b32.xlu0 %v3240, 4
        %v3304 = vpop.permute.xlu0 %3303
        %3305 = vrot.lane.b32.xlu0 %v3242, 4
        %v3306 = vpop.permute.xlu0 %3305
        %3307 = vrot.lane.b32.xlu0 %v3244, 4
        %v3308 = vpop.permute.xlu0 %3307
        %3309 = vrot.lane.b32.xlu0 %v3246, 4
        %v3310 = vpop.permute.xlu0 %3309
        %3311 = vrot.lane.b32.xlu0 %v3248, 4
        %v3312 = vpop.permute.xlu0 %3311
        %3313 = vrot.lane.b32.xlu0 %v3250, 4
        %v3314 = vpop.permute.xlu0 %3313
        %3315 = vrot.lane.b32.xlu0 %v3252, 4
        %v3316 = vpop.permute.xlu0 %3315
        %3317 = vrot.lane.b32.xlu0 %v3254, 4
        %v3318 = vpop.permute.xlu0 %3317
        %3319 = vrot.lane.b32.xlu0 %v3256, 4
        %v3320 = vpop.permute.xlu0 %3319
        %3321 = vrot.lane.b32.xlu0 %v3258, 4
        %v3322 = vpop.permute.xlu0 %3321
        %3323 = vrot.lane.b32.xlu0 %v3260, 4
        %v3324 = vpop.permute.xlu0 %3323
        %3325 = vrot.lane.b32.xlu0 %v3262, 4
        %v3326 = vpop.permute.xlu0 %3325
        %3327 = vrot.lane.b32.xlu0 %v3264, 4
        %v3328 = vpop.permute.xlu0 %3327
        %vm3329 = vcmp.lt.s32.totalorder %v278, 4
        %v3330 = vsel %vm3329, %v3266, %v3298
        %v3331 = vsel %vm3329, %v3268, %v3300
        %v3332 = vsel %vm3329, %v3270, %v3302
        %v3333 = vsel %vm3329, %v3272, %v3304
        %v3334 = vsel %vm3329, %v3274, %v3306
        %v3335 = vsel %vm3329, %v3276, %v3308
        %v3336 = vsel %vm3329, %v3278, %v3310
        %v3337 = vsel %vm3329, %v3280, %v3312
        %v3338 = vsel %vm3329, %v3282, %v3314
        %v3339 = vsel %vm3329, %v3284, %v3316
        %v3340 = vsel %vm3329, %v3286, %v3318
        %v3341 = vsel %vm3329, %v3288, %v3320
        %v3342 = vsel %vm3329, %v3290, %v3322
        %v3343 = vsel %vm3329, %v3292, %v3324
        %v3344 = vsel %vm3329, %v3294, %v3326
        %v3345 = vsel %vm3329, %v3296, %v3328
        %v3346 = vsel %vm3329, %v3298, %v3266
        %v3347 = vsel %vm3329, %v3300, %v3268
        %v3348 = vsel %vm3329, %v3302, %v3270
        %v3349 = vsel %vm3329, %v3304, %v3272
        %v3350 = vsel %vm3329, %v3306, %v3274
        %v3351 = vsel %vm3329, %v3308, %v3276
        %v3352 = vsel %vm3329, %v3310, %v3278
        %v3353 = vsel %vm3329, %v3312, %v3280
        %v3354 = vsel %vm3329, %v3314, %v3282
        %v3355 = vsel %vm3329, %v3316, %v3284
        %v3356 = vsel %vm3329, %v3318, %v3286
        %v3357 = vsel %vm3329, %v3320, %v3288
        %v3358 = vsel %vm3329, %v3322, %v3290
        %v3359 = vsel %vm3329, %v3324, %v3292
        %v3360 = vsel %vm3329, %v3326, %v3294
        %v3361 = vsel %vm3329, %v3328, %v3296
        %vm3362 = vcmp.ge.s32.totalorder %v280, 4
        %vm3363 = vcmp.ge.s32.totalorder %v281, 4
        %v3364 = vmax.f32 %v3233, %v3346
        %v3365 = vmax.f32 %v3234, %v3330
        %v3366 = vmax.f32 %v3235, %v3347
        %v3367 = vmax.f32 %v3236, %v3331
        %v3368 = vmax.f32 %v3237, %v3348
        %v3369 = vmax.f32 %v3238, %v3332
        %v3370 = vmax.f32 %v3239, %v3349
        %v3371 = vmax.f32 %v3240, %v3333
        %v3372 = vmax.f32 %v3241, %v3350
        %v3373 = vmax.f32 %v3242, %v3334
        %v3374 = vmax.f32 %v3243, %v3351
        %v3375 = vmax.f32 %v3244, %v3335
        %v3376 = vmax.f32 %v3245, %v3352
        %v3377 = vmax.f32 %v3246, %v3336
        %v3378 = vmax.f32 %v3247, %v3353
        %v3379 = vmax.f32 %v3248, %v3337
        %v3380 = vmax.f32 %v3249, %v3354
        %v3381 = vmax.f32 %v3250, %v3338
        %v3382 = vmax.f32 %v3251, %v3355
        %v3383 = vmax.f32 %v3252, %v3339
        %v3384 = vmax.f32 %v3253, %v3356
        %v3385 = vmax.f32 %v3254, %v3340
        %v3386 = vmax.f32 %v3255, %v3357
        %v3387 = vmax.f32 %v3256, %v3341
        %v3388 = vmax.f32 %v3257, %v3358
        %v3389 = vmax.f32 %v3258, %v3342
        %v3390 = vmax.f32 %v3259, %v3359
        %v3391 = vmax.f32 %v3260, %v3343
        %v3392 = vmax.f32 %v3261, %v3360
        %v3393 = vmax.f32 %v3262, %v3344
        %v3394 = vmax.f32 %v3263, %v3361
        %v3395 = vmax.f32 %v3264, %v3345
        %v3396 = vsel %vm3362, 1, 0
        %v3397 = vsel %vm3363, 1, 0
        %vm3398 = vcmp.eq.s32.totalorder %v3396, 1
        %vm3399 = vcmp.eq.s32.totalorder %v3397, 1
        %v3400 = vsel %vm3398, %v3364, %v3233
        %v3401 = vsel %vm3399, %v3365, %v3234
        %v3402 = vsel %vm3398, %v3366, %v3235
        %v3403 = vsel %vm3399, %v3367, %v3236
        %v3404 = vsel %vm3398, %v3368, %v3237
        %v3405 = vsel %vm3399, %v3369, %v3238
        %v3406 = vsel %vm3398, %v3370, %v3239
        %v3407 = vsel %vm3399, %v3371, %v3240
        %v3408 = vsel %vm3398, %v3372, %v3241
        %v3409 = vsel %vm3399, %v3373, %v3242
        %v3410 = vsel %vm3398, %v3374, %v3243
        %v3411 = vsel %vm3399, %v3375, %v3244
        %v3412 = vsel %vm3398, %v3376, %v3245
        %v3413 = vsel %vm3399, %v3377, %v3246
        %v3414 = vsel %vm3398, %v3378, %v3247
        %v3415 = vsel %vm3399, %v3379, %v3248
        %v3416 = vsel %vm3398, %v3380, %v3249
        %v3417 = vsel %vm3399, %v3381, %v3250
        %v3418 = vsel %vm3398, %v3382, %v3251
        %v3419 = vsel %vm3399, %v3383, %v3252
        %v3420 = vsel %vm3398, %v3384, %v3253
        %v3421 = vsel %vm3399, %v3385, %v3254
        %v3422 = vsel %vm3398, %v3386, %v3255
        %v3423 = vsel %vm3399, %v3387, %v3256
        %v3424 = vsel %vm3398, %v3388, %v3257
        %v3425 = vsel %vm3399, %v3389, %v3258
        %v3426 = vsel %vm3398, %v3390, %v3259
        %v3427 = vsel %vm3399, %v3391, %v3260
        %v3428 = vsel %vm3398, %v3392, %v3261
        %v3429 = vsel %vm3399, %v3393, %v3262
        %v3430 = vsel %vm3398, %v3394, %v3263
        %v3431 = vsel %vm3399, %v3395, %v3264
        %3432 = vrot.lane.b32.xlu0 %v3400, 8
        %v3433 = vpop.permute.xlu0 %3432
        %3434 = vrot.lane.b32.xlu0 %v3402, 8
        %v3435 = vpop.permute.xlu0 %3434
        %3436 = vrot.lane.b32.xlu0 %v3404, 8
        %v3437 = vpop.permute.xlu0 %3436
        %3438 = vrot.lane.b32.xlu0 %v3406, 8
        %v3439 = vpop.permute.xlu0 %3438
        %3440 = vrot.lane.b32.xlu0 %v3408, 8
        %v3441 = vpop.permute.xlu0 %3440
        %3442 = vrot.lane.b32.xlu0 %v3410, 8
        %v3443 = vpop.permute.xlu0 %3442
        %3444 = vrot.lane.b32.xlu0 %v3412, 8
        %v3445 = vpop.permute.xlu0 %3444
        %3446 = vrot.lane.b32.xlu0 %v3414, 8
        %v3447 = vpop.permute.xlu0 %3446
        %3448 = vrot.lane.b32.xlu0 %v3416, 8
        %v3449 = vpop.permute.xlu0 %3448
        %3450 = vrot.lane.b32.xlu0 %v3418, 8
        %v3451 = vpop.permute.xlu0 %3450
        %3452 = vrot.lane.b32.xlu0 %v3420, 8
        %v3453 = vpop.permute.xlu0 %3452
        %3454 = vrot.lane.b32.xlu0 %v3422, 8
        %v3455 = vpop.permute.xlu0 %3454
        %3456 = vrot.lane.b32.xlu0 %v3424, 8
        %v3457 = vpop.permute.xlu0 %3456
        %3458 = vrot.lane.b32.xlu0 %v3426, 8
        %v3459 = vpop.permute.xlu0 %3458
        %3460 = vrot.lane.b32.xlu0 %v3428, 8
        %v3461 = vpop.permute.xlu0 %3460
        %3462 = vrot.lane.b32.xlu0 %v3430, 8
        %v3463 = vpop.permute.xlu0 %3462
        %3464 = vrot.lane.b32.xlu0 %v3401, 8
        %v3465 = vpop.permute.xlu0 %3464
        %3466 = vrot.lane.b32.xlu0 %v3403, 8
        %v3467 = vpop.permute.xlu0 %3466
        %3468 = vrot.lane.b32.xlu0 %v3405, 8
        %v3469 = vpop.permute.xlu0 %3468
        %3470 = vrot.lane.b32.xlu0 %v3407, 8
        %v3471 = vpop.permute.xlu0 %3470
        %3472 = vrot.lane.b32.xlu0 %v3409, 8
        %v3473 = vpop.permute.xlu0 %3472
        %3474 = vrot.lane.b32.xlu0 %v3411, 8
        %v3475 = vpop.permute.xlu0 %3474
        %3476 = vrot.lane.b32.xlu0 %v3413, 8
        %v3477 = vpop.permute.xlu0 %3476
        %3478 = vrot.lane.b32.xlu0 %v3415, 8
        %v3479 = vpop.permute.xlu0 %3478
        %3480 = vrot.lane.b32.xlu0 %v3417, 8
        %v3481 = vpop.permute.xlu0 %3480
        %3482 = vrot.lane.b32.xlu0 %v3419, 8
        %v3483 = vpop.permute.xlu0 %3482
        %3484 = vrot.lane.b32.xlu0 %v3421, 8
        %v3485 = vpop.permute.xlu0 %3484
        %3486 = vrot.lane.b32.xlu0 %v3423, 8
        %v3487 = vpop.permute.xlu0 %3486
        %3488 = vrot.lane.b32.xlu0 %v3425, 8
        %v3489 = vpop.permute.xlu0 %3488
        %3490 = vrot.lane.b32.xlu0 %v3427, 8
        %v3491 = vpop.permute.xlu0 %3490
        %3492 = vrot.lane.b32.xlu0 %v3429, 8
        %v3493 = vpop.permute.xlu0 %3492
        %3494 = vrot.lane.b32.xlu0 %v3431, 8
        %v3495 = vpop.permute.xlu0 %3494
        %vm3496 = vcmp.lt.s32.totalorder %v278, 8
        %v3497 = vsel %vm3496, %v3433, %v3465
        %v3498 = vsel %vm3496, %v3435, %v3467
        %v3499 = vsel %vm3496, %v3437, %v3469
        %v3500 = vsel %vm3496, %v3439, %v3471
        %v3501 = vsel %vm3496, %v3441, %v3473
        %v3502 = vsel %vm3496, %v3443, %v3475
        %v3503 = vsel %vm3496, %v3445, %v3477
        %v3504 = vsel %vm3496, %v3447, %v3479
        %v3505 = vsel %vm3496, %v3449, %v3481
        %v3506 = vsel %vm3496, %v3451, %v3483
        %v3507 = vsel %vm3496, %v3453, %v3485
        %v3508 = vsel %vm3496, %v3455, %v3487
        %v3509 = vsel %vm3496, %v3457, %v3489
        %v3510 = vsel %vm3496, %v3459, %v3491
        %v3511 = vsel %vm3496, %v3461, %v3493
        %v3512 = vsel %vm3496, %v3463, %v3495
        %v3513 = vsel %vm3496, %v3465, %v3433
        %v3514 = vsel %vm3496, %v3467, %v3435
        %v3515 = vsel %vm3496, %v3469, %v3437
        %v3516 = vsel %vm3496, %v3471, %v3439
        %v3517 = vsel %vm3496, %v3473, %v3441
        %v3518 = vsel %vm3496, %v3475, %v3443
        %v3519 = vsel %vm3496, %v3477, %v3445
        %v3520 = vsel %vm3496, %v3479, %v3447
        %v3521 = vsel %vm3496, %v3481, %v3449
        %v3522 = vsel %vm3496, %v3483, %v3451
        %v3523 = vsel %vm3496, %v3485, %v3453
        %v3524 = vsel %vm3496, %v3487, %v3455
        %v3525 = vsel %vm3496, %v3489, %v3457
        %v3526 = vsel %vm3496, %v3491, %v3459
        %v3527 = vsel %vm3496, %v3493, %v3461
        %v3528 = vsel %vm3496, %v3495, %v3463
        %vm3529 = vcmp.ge.s32.totalorder %v280, 8
        %vm3530 = vcmp.ge.s32.totalorder %v281, 8
        %v3531 = vmax.f32 %v3400, %v3513
        %v3532 = vmax.f32 %v3401, %v3497
        %v3533 = vmax.f32 %v3402, %v3514
        %v3534 = vmax.f32 %v3403, %v3498
        %v3535 = vmax.f32 %v3404, %v3515
        %v3536 = vmax.f32 %v3405, %v3499
        %v3537 = vmax.f32 %v3406, %v3516
        %v3538 = vmax.f32 %v3407, %v3500
        %v3539 = vmax.f32 %v3408, %v3517
        %v3540 = vmax.f32 %v3409, %v3501
        %v3541 = vmax.f32 %v3410, %v3518
        %v3542 = vmax.f32 %v3411, %v3502
        %v3543 = vmax.f32 %v3412, %v3519
        %v3544 = vmax.f32 %v3413, %v3503
        %v3545 = vmax.f32 %v3414, %v3520
        %v3546 = vmax.f32 %v3415, %v3504
        %v3547 = vmax.f32 %v3416, %v3521
        %v3548 = vmax.f32 %v3417, %v3505
        %v3549 = vmax.f32 %v3418, %v3522
        %v3550 = vmax.f32 %v3419, %v3506
        %v3551 = vmax.f32 %v3420, %v3523
        %v3552 = vmax.f32 %v3421, %v3507
        %v3553 = vmax.f32 %v3422, %v3524
        %v3554 = vmax.f32 %v3423, %v3508
        %v3555 = vmax.f32 %v3424, %v3525
        %v3556 = vmax.f32 %v3425, %v3509
        %v3557 = vmax.f32 %v3426, %v3526
        %v3558 = vmax.f32 %v3427, %v3510
        %v3559 = vmax.f32 %v3428, %v3527
        %v3560 = vmax.f32 %v3429, %v3511
        %v3561 = vmax.f32 %v3430, %v3528
        %v3562 = vmax.f32 %v3431, %v3512
        %v3563 = vsel %vm3529, 1, 0
        %v3564 = vsel %vm3530, 1, 0
        %vm3565 = vcmp.eq.s32.totalorder %v3563, 1
        %vm3566 = vcmp.eq.s32.totalorder %v3564, 1
        %v3567 = vsel %vm3565, %v3531, %v3400
        %v3568 = vsel %vm3566, %v3532, %v3401
        %v3569 = vsel %vm3565, %v3533, %v3402
        %v3570 = vsel %vm3566, %v3534, %v3403
        %v3571 = vsel %vm3565, %v3535, %v3404
        %v3572 = vsel %vm3566, %v3536, %v3405
        %v3573 = vsel %vm3565, %v3537, %v3406
        %v3574 = vsel %vm3566, %v3538, %v3407
        %v3575 = vsel %vm3565, %v3539, %v3408
        %v3576 = vsel %vm3566, %v3540, %v3409
        %v3577 = vsel %vm3565, %v3541, %v3410
        %v3578 = vsel %vm3566, %v3542, %v3411
        %v3579 = vsel %vm3565, %v3543, %v3412
        %v3580 = vsel %vm3566, %v3544, %v3413
        %v3581 = vsel %vm3565, %v3545, %v3414
        %v3582 = vsel %vm3566, %v3546, %v3415
        %v3583 = vsel %vm3565, %v3547, %v3416
        %v3584 = vsel %vm3566, %v3548, %v3417
        %v3585 = vsel %vm3565, %v3549, %v3418
        %v3586 = vsel %vm3566, %v3550, %v3419
        %v3587 = vsel %vm3565, %v3551, %v3420
        %v3588 = vsel %vm3566, %v3552, %v3421
        %v3589 = vsel %vm3565, %v3553, %v3422
        %v3590 = vsel %vm3566, %v3554, %v3423
        %v3591 = vsel %vm3565, %v3555, %v3424
        %v3592 = vsel %vm3566, %v3556, %v3425
        %v3593 = vsel %vm3565, %v3557, %v3426
        %v3594 = vsel %vm3566, %v3558, %v3427
        %v3595 = vsel %vm3565, %v3559, %v3428
        %v3596 = vsel %vm3566, %v3560, %v3429
        %v3597 = vsel %vm3565, %v3561, %v3430
        %v3598 = vsel %vm3566, %v3562, %v3431
        %v3599 = vld [vmem:[%s3] sm:$0xff]
        %v3600 = vld [vmem:[%s3 + $0x8] sm:$0xff]
        %v3601 = vld [vmem:[%s3 + $0x10] sm:$0xff]
        %v3602 = vld [vmem:[%s3 + $0x18] sm:$0xff]
        %3603 = vrot.lane.b32.xlu0 %v2359, 17
        %v3604 = vpop.permute.xlu0 %3603
        %3605 = vrot.lane.b32.xlu0 %v2361, 17
        %v3606 = vpop.permute.xlu0 %3605
        %3607 = vrot.lane.b32.xlu0 %v2363, 17
        %v3608 = vpop.permute.xlu0 %3607
        %3609 = vrot.lane.b32.xlu0 %v2365, 17
        %v3610 = vpop.permute.xlu0 %3609
        %3611 = vrot.lane.b32.xlu0 %v2367, 17
        %v3612 = vpop.permute.xlu0 %3611
        %3613 = vrot.lane.b32.xlu0 %v2369, 17
        %v3614 = vpop.permute.xlu0 %3613
        %3615 = vrot.lane.b32.xlu0 %v2371, 17
        %v3616 = vpop.permute.xlu0 %3615
        %3617 = vrot.lane.b32.xlu0 %v2373, 17
        %v3618 = vpop.permute.xlu0 %3617
        %3619 = vrot.lane.b32.xlu0 %v2375, 17
        %v3620 = vpop.permute.xlu0 %3619
        %3621 = vrot.lane.b32.xlu0 %v2377, 17
        %v3622 = vpop.permute.xlu0 %3621
        %3623 = vrot.lane.b32.xlu0 %v2379, 17
        %v3624 = vpop.permute.xlu0 %3623
        %3625 = vrot.lane.b32.xlu0 %v2381, 17
        %v3626 = vpop.permute.xlu0 %3625
        %3627 = vrot.lane.b32.xlu0 %v2383, 17
        %v3628 = vpop.permute.xlu0 %3627
        %3629 = vrot.lane.b32.xlu0 %v2385, 17
        %v3630 = vpop.permute.xlu0 %3629
        %3631 = vrot.lane.b32.xlu0 %v2387, 17
        %v3632 = vpop.permute.xlu0 %3631
        %3633 = vrot.lane.b32.xlu0 %v2389, 17
        %v3634 = vpop.permute.xlu0 %3633
        %3635 = vrot.lane.b32.xlu0 %v3567, 17
        %v3636 = vpop.permute.xlu0 %3635
        %3637 = vrot.lane.b32.xlu0 %v3569, 17
        %v3638 = vpop.permute.xlu0 %3637
        %3639 = vrot.lane.b32.xlu0 %v3571, 17
        %v3640 = vpop.permute.xlu0 %3639
        %3641 = vrot.lane.b32.xlu0 %v3573, 17
        %v3642 = vpop.permute.xlu0 %3641
        %3643 = vrot.lane.b32.xlu0 %v3575, 17
        %v3644 = vpop.permute.xlu0 %3643
        %3645 = vrot.lane.b32.xlu0 %v3577, 17
        %v3646 = vpop.permute.xlu0 %3645
        %3647 = vrot.lane.b32.xlu0 %v3579, 17
        %v3648 = vpop.permute.xlu0 %3647
        %3649 = vrot.lane.b32.xlu0 %v3581, 17
        %v3650 = vpop.permute.xlu0 %3649
        %3651 = vrot.lane.b32.xlu0 %v3583, 17
        %v3652 = vpop.permute.xlu0 %3651
        %3653 = vrot.lane.b32.xlu0 %v3585, 17
        %v3654 = vpop.permute.xlu0 %3653
        %3655 = vrot.lane.b32.xlu0 %v3587, 17
        %v3656 = vpop.permute.xlu0 %3655
        %3657 = vrot.lane.b32.xlu0 %v3589, 17
        %v3658 = vpop.permute.xlu0 %3657
        %3659 = vrot.lane.b32.xlu0 %v3591, 17
        %v3660 = vpop.permute.xlu0 %3659
        %3661 = vrot.lane.b32.xlu0 %v3593, 17
        %v3662 = vpop.permute.xlu0 %3661
        %3663 = vrot.lane.b32.xlu0 %v3595, 17
        %v3664 = vpop.permute.xlu0 %3663
        %3665 = vrot.lane.b32.xlu0 %v3597, 17
        %v3666 = vpop.permute.xlu0 %3665
        %3667 = vrot.lane.b32.xlu0 %v2360, 17
        %v3668 = vpop.permute.xlu0 %3667
        %3669 = vrot.lane.b32.xlu0 %v2362, 17
        %v3670 = vpop.permute.xlu0 %3669
        %3671 = vrot.lane.b32.xlu0 %v2364, 17
        %v3672 = vpop.permute.xlu0 %3671
        %3673 = vrot.lane.b32.xlu0 %v2366, 17
        %v3674 = vpop.permute.xlu0 %3673
        %3675 = vrot.lane.b32.xlu0 %v2368, 17
        %v3676 = vpop.permute.xlu0 %3675
        %3677 = vrot.lane.b32.xlu0 %v2370, 17
        %v3678 = vpop.permute.xlu0 %3677
        %3679 = vrot.lane.b32.xlu0 %v2372, 17
        %v3680 = vpop.permute.xlu0 %3679
        %3681 = vrot.lane.b32.xlu0 %v2374, 17
        %v3682 = vpop.permute.xlu0 %3681
        %3683 = vrot.lane.b32.xlu0 %v2376, 17
        %v3684 = vpop.permute.xlu0 %3683
        %3685 = vrot.lane.b32.xlu0 %v2378, 17
        %v3686 = vpop.permute.xlu0 %3685
        %3687 = vrot.lane.b32.xlu0 %v2380, 17
        %v3688 = vpop.permute.xlu0 %3687
        %3689 = vrot.lane.b32.xlu0 %v2382, 17
        %v3690 = vpop.permute.xlu0 %3689
        %3691 = vrot.lane.b32.xlu0 %v2384, 17
        %v3692 = vpop.permute.xlu0 %3691
        %3693 = vrot.lane.b32.xlu0 %v2386, 17
        %v3694 = vpop.permute.xlu0 %3693
        %3695 = vrot.lane.b32.xlu0 %v2388, 17
        %v3696 = vpop.permute.xlu0 %3695
        %3697 = vrot.lane.b32.xlu0 %v2390, 17
        %v3698 = vpop.permute.xlu0 %3697
        %3699 = vrot.lane.b32.xlu0 %v3568, 17
        %v3700 = vpop.permute.xlu0 %3699
        %3701 = vrot.lane.b32.xlu0 %v3570, 17
        %v3702 = vpop.permute.xlu0 %3701
        %3703 = vrot.lane.b32.xlu0 %v3572, 17
        %v3704 = vpop.permute.xlu0 %3703
        %3705 = vrot.lane.b32.xlu0 %v3574, 17
        %v3706 = vpop.permute.xlu0 %3705
        %3707 = vrot.lane.b32.xlu0 %v3576, 17
        %v3708 = vpop.permute.xlu0 %3707
        %3709 = vrot.lane.b32.xlu0 %v3578, 17
        %v3710 = vpop.permute.xlu0 %3709
        %3711 = vrot.lane.b32.xlu0 %v3580, 17
        %v3712 = vpop.permute.xlu0 %3711
        %3713 = vrot.lane.b32.xlu0 %v3582, 17
        %v3714 = vpop.permute.xlu0 %3713
        %3715 = vrot.lane.b32.xlu0 %v3584, 17
        %v3716 = vpop.permute.xlu0 %3715
        %3717 = vrot.lane.b32.xlu0 %v3586, 17
        %v3718 = vpop.permute.xlu0 %3717
        %3719 = vrot.lane.b32.xlu0 %v3588, 17
        %v3720 = vpop.permute.xlu0 %3719
        %3721 = vrot.lane.b32.xlu0 %v3590, 17
        %v3722 = vpop.permute.xlu0 %3721
        %3723 = vrot.lane.b32.xlu0 %v3592, 17
        %v3724 = vpop.permute.xlu0 %3723
        %3725 = vrot.lane.b32.xlu0 %v3594, 17
        %v3726 = vpop.permute.xlu0 %3725
        %3727 = vrot.lane.b32.xlu0 %v3596, 17
        %v3728 = vpop.permute.xlu0 %3727
        %3729 = vrot.lane.b32.xlu0 %v3598, 17
        %v3730 = vpop.permute.xlu0 %3729
        %v3731 = vsel %vm294, %v3604, %v3668
        %v3732 = vsel %vm294, %v3606, %v3670
        %v3733 = vsel %vm294, %v3608, %v3672
        %v3734 = vsel %vm294, %v3610, %v3674
        %v3735 = vsel %vm294, %v3612, %v3676
        %v3736 = vsel %vm294, %v3614, %v3678
        %v3737 = vsel %vm294, %v3616, %v3680
        %v3738 = vsel %vm294, %v3618, %v3682
        %v3739 = vsel %vm294, %v3620, %v3684
        %v3740 = vsel %vm294, %v3622, %v3686
        %v3741 = vsel %vm294, %v3624, %v3688
        %v3742 = vsel %vm294, %v3626, %v3690
        %v3743 = vsel %vm294, %v3628, %v3692
        %v3744 = vsel %vm294, %v3630, %v3694
        %v3745 = vsel %vm294, %v3632, %v3696
        %v3746 = vsel %vm294, %v3634, %v3698
        %v3747 = vsel %vm294, %v3636, %v3700
        %v3748 = vsel %vm294, %v3638, %v3702
        %v3749 = vsel %vm294, %v3640, %v3704
        %v3750 = vsel %vm294, %v3642, %v3706
        %v3751 = vsel %vm294, %v3644, %v3708
        %v3752 = vsel %vm294, %v3646, %v3710
        %v3753 = vsel %vm294, %v3648, %v3712
        %v3754 = vsel %vm294, %v3650, %v3714
        %v3755 = vsel %vm294, %v3652, %v3716
        %v3756 = vsel %vm294, %v3654, %v3718
        %v3757 = vsel %vm294, %v3656, %v3720
        %v3758 = vsel %vm294, %v3658, %v3722
        %v3759 = vsel %vm294, %v3660, %v3724
        %v3760 = vsel %vm294, %v3662, %v3726
        %v3761 = vsel %vm294, %v3664, %v3728
        %v3762 = vsel %vm294, %v3666, %v3730
        %v3763 = vsel %vm294, %v3668, %v3604
        %v3764 = vsel %vm294, %v3670, %v3606
        %v3765 = vsel %vm294, %v3672, %v3608
        %v3766 = vsel %vm294, %v3674, %v3610
        %v3767 = vsel %vm294, %v3676, %v3612
        %v3768 = vsel %vm294, %v3678, %v3614
        %v3769 = vsel %vm294, %v3680, %v3616
        %v3770 = vsel %vm294, %v3682, %v3618
        %v3771 = vsel %vm294, %v3684, %v3620
        %v3772 = vsel %vm294, %v3686, %v3622
        %v3773 = vsel %vm294, %v3688, %v3624
        %v3774 = vsel %vm294, %v3690, %v3626
        %v3775 = vsel %vm294, %v3692, %v3628
        %v3776 = vsel %vm294, %v3694, %v3630
        %v3777 = vsel %vm294, %v3696, %v3632
        %v3778 = vsel %vm294, %v3698, %v3634
        %v3779 = vsel %vm294, %v3700, %v3636
        %v3780 = vsel %vm294, %v3702, %v3638
        %v3781 = vsel %vm294, %v3704, %v3640
        %v3782 = vsel %vm294, %v3706, %v3642
        %v3783 = vsel %vm294, %v3708, %v3644
        %v3784 = vsel %vm294, %v3710, %v3646
        %v3785 = vsel %vm294, %v3712, %v3648
        %v3786 = vsel %vm294, %v3714, %v3650
        %v3787 = vsel %vm294, %v3716, %v3652
        %v3788 = vsel %vm294, %v3718, %v3654
        %v3789 = vsel %vm294, %v3720, %v3656
        %v3790 = vsel %vm294, %v3722, %v3658
        %v3791 = vsel %vm294, %v3724, %v3660
        %v3792 = vsel %vm294, %v3726, %v3662
        %v3793 = vsel %vm294, %v3728, %v3664
        %v3794 = vsel %vm294, %v3730, %v3666
        %v3795 = vsel %vm307, %v3763, 0.0
        %v3796 = vsel %vm308, %v3731, 0.0
        %v3797 = vsel %vm307, %v3764, 0.0
        %v3798 = vsel %vm308, %v3732, 0.0
        %v3799 = vsel %vm307, %v3765, 0.0
        %v3800 = vsel %vm308, %v3733, 0.0
        %v3801 = vsel %vm307, %v3766, 0.0
        %v3802 = vsel %vm308, %v3734, 0.0
        %v3803 = vsel %vm307, %v3767, 0.0
        %v3804 = vsel %vm308, %v3735, 0.0
        %v3805 = vsel %vm307, %v3768, 0.0
        %v3806 = vsel %vm308, %v3736, 0.0
        %v3807 = vsel %vm307, %v3769, 0.0
        %v3808 = vsel %vm308, %v3737, 0.0
        %v3809 = vsel %vm307, %v3770, 0.0
        %v3810 = vsel %vm308, %v3738, 0.0
        %v3811 = vsel %vm307, %v3771, 0.0
        %v3812 = vsel %vm308, %v3739, 0.0
        %v3813 = vsel %vm307, %v3772, 0.0
        %v3814 = vsel %vm308, %v3740, 0.0
        %v3815 = vsel %vm307, %v3773, 0.0
        %v3816 = vsel %vm308, %v3741, 0.0
        %v3817 = vsel %vm307, %v3774, 0.0
        %v3818 = vsel %vm308, %v3742, 0.0
        %v3819 = vsel %vm307, %v3775, 0.0
        %v3820 = vsel %vm308, %v3743, 0.0
        %v3821 = vsel %vm307, %v3776, 0.0
        %v3822 = vsel %vm308, %v3744, 0.0
        %v3823 = vsel %vm307, %v3777, 0.0
        %v3824 = vsel %vm308, %v3745, 0.0
        %v3825 = vsel %vm307, %v3778, 0.0
        %v3826 = vsel %vm308, %v3746, 0.0
        %v3827 = vsel %vm307, %v3779, 0.0
        %v3828 = vsel %vm308, %v3747, 0.0
        %v3829 = vsel %vm307, %v3780, 0.0
        %v3830 = vsel %vm308, %v3748, 0.0
        %v3831 = vsel %vm307, %v3781, 0.0
        %v3832 = vsel %vm308, %v3749, 0.0
        %v3833 = vsel %vm307, %v3782, 0.0
        %v3834 = vsel %vm308, %v3750, 0.0
        %v3835 = vsel %vm307, %v3783, 0.0
        %v3836 = vsel %vm308, %v3751, 0.0
        %v3837 = vsel %vm307, %v3784, 0.0
        %v3838 = vsel %vm308, %v3752, 0.0
        %v3839 = vsel %vm307, %v3785, 0.0
        %v3840 = vsel %vm308, %v3753, 0.0
        %v3841 = vsel %vm307, %v3786, 0.0
        %v3842 = vsel %vm308, %v3754, 0.0
        %v3843 = vsel %vm307, %v3787, 0.0
        %v3844 = vsel %vm308, %v3755, 0.0
        %v3845 = vsel %vm307, %v3788, 0.0
        %v3846 = vsel %vm308, %v3756, 0.0
        %v3847 = vsel %vm307, %v3789, 0.0
        %v3848 = vsel %vm308, %v3757, 0.0
        %v3849 = vsel %vm307, %v3790, 0.0
        %v3850 = vsel %vm308, %v3758, 0.0
        %v3851 = vsel %vm307, %v3791, 0.0
        %v3852 = vsel %vm308, %v3759, 0.0
        %v3853 = vsel %vm307, %v3792, 0.0
        %v3854 = vsel %vm308, %v3760, 0.0
        %v3855 = vsel %vm307, %v3793, 0.0
        %v3856 = vsel %vm308, %v3761, 0.0
        %v3857 = vsel %vm307, %v3794, 0.0
        %v3858 = vsel %vm308, %v3762, 0.0
        %s3859 = scalar_lea.vmem %s3, 32
        %v3860 = vld [vmem:[%s3859] sm:$0xff]
        %v3861 = vld [vmem:[%s3859 + $0x8] sm:$0xff]
        %v3862 = vld [vmem:[%s3859 + $0x10] sm:$0xff]
        %v3863 = vld [vmem:[%s3859 + $0x18] sm:$0xff]
        %3864 = vrot.lane.b32.xlu0 %v2359, 16
        %v3865 = vpop.permute.xlu0 %3864
        %3866 = vrot.lane.b32.xlu0 %v2361, 16
        %v3867 = vpop.permute.xlu0 %3866
        %3868 = vrot.lane.b32.xlu0 %v2363, 16
        %v3869 = vpop.permute.xlu0 %3868
        %3870 = vrot.lane.b32.xlu0 %v2365, 16
        %v3871 = vpop.permute.xlu0 %3870
        %3872 = vrot.lane.b32.xlu0 %v2367, 16
        %v3873 = vpop.permute.xlu0 %3872
        %3874 = vrot.lane.b32.xlu0 %v2369, 16
        %v3875 = vpop.permute.xlu0 %3874
        %3876 = vrot.lane.b32.xlu0 %v2371, 16
        %v3877 = vpop.permute.xlu0 %3876
        %3878 = vrot.lane.b32.xlu0 %v2373, 16
        %v3879 = vpop.permute.xlu0 %3878
        %3880 = vrot.lane.b32.xlu0 %v2375, 16
        %v3881 = vpop.permute.xlu0 %3880
        %3882 = vrot.lane.b32.xlu0 %v2377, 16
        %v3883 = vpop.permute.xlu0 %3882
        %3884 = vrot.lane.b32.xlu0 %v2379, 16
        %v3885 = vpop.permute.xlu0 %3884
        %3886 = vrot.lane.b32.xlu0 %v2381, 16
        %v3887 = vpop.permute.xlu0 %3886
        %3888 = vrot.lane.b32.xlu0 %v2383, 16
        %v3889 = vpop.permute.xlu0 %3888
        %3890 = vrot.lane.b32.xlu0 %v2385, 16
        %v3891 = vpop.permute.xlu0 %3890
        %3892 = vrot.lane.b32.xlu0 %v2387, 16
        %v3893 = vpop.permute.xlu0 %3892
        %3894 = vrot.lane.b32.xlu0 %v2389, 16
        %v3895 = vpop.permute.xlu0 %3894
        %3896 = vrot.lane.b32.xlu0 %v3567, 16
        %v3897 = vpop.permute.xlu0 %3896
        %3898 = vrot.lane.b32.xlu0 %v3569, 16
        %v3899 = vpop.permute.xlu0 %3898
        %3900 = vrot.lane.b32.xlu0 %v3571, 16
        %v3901 = vpop.permute.xlu0 %3900
        %3902 = vrot.lane.b32.xlu0 %v3573, 16
        %v3903 = vpop.permute.xlu0 %3902
        %3904 = vrot.lane.b32.xlu0 %v3575, 16
        %v3905 = vpop.permute.xlu0 %3904
        %3906 = vrot.lane.b32.xlu0 %v3577, 16
        %v3907 = vpop.permute.xlu0 %3906
        %3908 = vrot.lane.b32.xlu0 %v3579, 16
        %v3909 = vpop.permute.xlu0 %3908
        %3910 = vrot.lane.b32.xlu0 %v3581, 16
        %v3911 = vpop.permute.xlu0 %3910
        %3912 = vrot.lane.b32.xlu0 %v3583, 16
        %v3913 = vpop.permute.xlu0 %3912
        %3914 = vrot.lane.b32.xlu0 %v3585, 16
        %v3915 = vpop.permute.xlu0 %3914
        %3916 = vrot.lane.b32.xlu0 %v3587, 16
        %v3917 = vpop.permute.xlu0 %3916
        %3918 = vrot.lane.b32.xlu0 %v3589, 16
        %v3919 = vpop.permute.xlu0 %3918
        %3920 = vrot.lane.b32.xlu0 %v3591, 16
        %v3921 = vpop.permute.xlu0 %3920
        %3922 = vrot.lane.b32.xlu0 %v3593, 16
        %v3923 = vpop.permute.xlu0 %3922
        %3924 = vrot.lane.b32.xlu0 %v3595, 16
        %v3925 = vpop.permute.xlu0 %3924
        %3926 = vrot.lane.b32.xlu0 %v3597, 16
        %v3927 = vpop.permute.xlu0 %3926
        %3928 = vrot.lane.b32.xlu0 %v2360, 16
        %v3929 = vpop.permute.xlu0 %3928
        %3930 = vrot.lane.b32.xlu0 %v2362, 16
        %v3931 = vpop.permute.xlu0 %3930
        %3932 = vrot.lane.b32.xlu0 %v2364, 16
        %v3933 = vpop.permute.xlu0 %3932
        %3934 = vrot.lane.b32.xlu0 %v2366, 16
        %v3935 = vpop.permute.xlu0 %3934
        %3936 = vrot.lane.b32.xlu0 %v2368, 16
        %v3937 = vpop.permute.xlu0 %3936
        %3938 = vrot.lane.b32.xlu0 %v2370, 16
        %v3939 = vpop.permute.xlu0 %3938
        %3940 = vrot.lane.b32.xlu0 %v2372, 16
        %v3941 = vpop.permute.xlu0 %3940
        %3942 = vrot.lane.b32.xlu0 %v2374, 16
        %v3943 = vpop.permute.xlu0 %3942
        %3944 = vrot.lane.b32.xlu0 %v2376, 16
        %v3945 = vpop.permute.xlu0 %3944
        %3946 = vrot.lane.b32.xlu0 %v2378, 16
        %v3947 = vpop.permute.xlu0 %3946
        %3948 = vrot.lane.b32.xlu0 %v2380, 16
        %v3949 = vpop.permute.xlu0 %3948
        %3950 = vrot.lane.b32.xlu0 %v2382, 16
        %v3951 = vpop.permute.xlu0 %3950
        %3952 = vrot.lane.b32.xlu0 %v2384, 16
        %v3953 = vpop.permute.xlu0 %3952
        %3954 = vrot.lane.b32.xlu0 %v2386, 16
        %v3955 = vpop.permute.xlu0 %3954
        %3956 = vrot.lane.b32.xlu0 %v2388, 16
        %v3957 = vpop.permute.xlu0 %3956
        %3958 = vrot.lane.b32.xlu0 %v2390, 16
        %v3959 = vpop.permute.xlu0 %3958
        %3960 = vrot.lane.b32.xlu0 %v3568, 16
        %v3961 = vpop.permute.xlu0 %3960
        %3962 = vrot.lane.b32.xlu0 %v3570, 16
        %v3963 = vpop.permute.xlu0 %3962
        %3964 = vrot.lane.b32.xlu0 %v3572, 16
        %v3965 = vpop.permute.xlu0 %3964
        %3966 = vrot.lane.b32.xlu0 %v3574, 16
        %v3967 = vpop.permute.xlu0 %3966
        %3968 = vrot.lane.b32.xlu0 %v3576, 16
        %v3969 = vpop.permute.xlu0 %3968
        %3970 = vrot.lane.b32.xlu0 %v3578, 16
        %v3971 = vpop.permute.xlu0 %3970
        %3972 = vrot.lane.b32.xlu0 %v3580, 16
        %v3973 = vpop.permute.xlu0 %3972
        %3974 = vrot.lane.b32.xlu0 %v3582, 16
        %v3975 = vpop.permute.xlu0 %3974
        %3976 = vrot.lane.b32.xlu0 %v3584, 16
        %v3977 = vpop.permute.xlu0 %3976
        %3978 = vrot.lane.b32.xlu0 %v3586, 16
        %v3979 = vpop.permute.xlu0 %3978
        %3980 = vrot.lane.b32.xlu0 %v3588, 16
        %v3981 = vpop.permute.xlu0 %3980
        %3982 = vrot.lane.b32.xlu0 %v3590, 16
        %v3983 = vpop.permute.xlu0 %3982
        %3984 = vrot.lane.b32.xlu0 %v3592, 16
        %v3985 = vpop.permute.xlu0 %3984
        %3986 = vrot.lane.b32.xlu0 %v3594, 16
        %v3987 = vpop.permute.xlu0 %3986
        %3988 = vrot.lane.b32.xlu0 %v3596, 16
        %v3989 = vpop.permute.xlu0 %3988
        %3990 = vrot.lane.b32.xlu0 %v3598, 16
        %v3991 = vpop.permute.xlu0 %3990
        %v3992 = vsel %vm321, %v3865, %v3929
        %v3993 = vsel %vm321, %v3867, %v3931
        %v3994 = vsel %vm321, %v3869, %v3933
        %v3995 = vsel %vm321, %v3871, %v3935
        %v3996 = vsel %vm321, %v3873, %v3937
        %v3997 = vsel %vm321, %v3875, %v3939
        %v3998 = vsel %vm321, %v3877, %v3941
        %v3999 = vsel %vm321, %v3879, %v3943
        %v4000 = vsel %vm321, %v3881, %v3945
        %v4001 = vsel %vm321, %v3883, %v3947
        %v4002 = vsel %vm321, %v3885, %v3949
        %v4003 = vsel %vm321, %v3887, %v3951
        %v4004 = vsel %vm321, %v3889, %v3953
        %v4005 = vsel %vm321, %v3891, %v3955
        %v4006 = vsel %vm321, %v3893, %v3957
        %v4007 = vsel %vm321, %v3895, %v3959
        %v4008 = vsel %vm321, %v3897, %v3961
        %v4009 = vsel %vm321, %v3899, %v3963
        %v4010 = vsel %vm321, %v3901, %v3965
        %v4011 = vsel %vm321, %v3903, %v3967
        %v4012 = vsel %vm321, %v3905, %v3969
        %v4013 = vsel %vm321, %v3907, %v3971
        %v4014 = vsel %vm321, %v3909, %v3973
        %v4015 = vsel %vm321, %v3911, %v3975
        %v4016 = vsel %vm321, %v3913, %v3977
        %v4017 = vsel %vm321, %v3915, %v3979
        %v4018 = vsel %vm321, %v3917, %v3981
        %v4019 = vsel %vm321, %v3919, %v3983
        %v4020 = vsel %vm321, %v3921, %v3985
        %v4021 = vsel %vm321, %v3923, %v3987
        %v4022 = vsel %vm321, %v3925, %v3989
        %v4023 = vsel %vm321, %v3927, %v3991
        %v4024 = vsel %vm321, %v3929, %v3865
        %v4025 = vsel %vm321, %v3931, %v3867
        %v4026 = vsel %vm321, %v3933, %v3869
        %v4027 = vsel %vm321, %v3935, %v3871
        %v4028 = vsel %vm321, %v3937, %v3873
        %v4029 = vsel %vm321, %v3939, %v3875
        %v4030 = vsel %vm321, %v3941, %v3877
        %v4031 = vsel %vm321, %v3943, %v3879
        %v4032 = vsel %vm321, %v3945, %v3881
        %v4033 = vsel %vm321, %v3947, %v3883
        %v4034 = vsel %vm321, %v3949, %v3885
        %v4035 = vsel %vm321, %v3951, %v3887
        %v4036 = vsel %vm321, %v3953, %v3889
        %v4037 = vsel %vm321, %v3955, %v3891
        %v4038 = vsel %vm321, %v3957, %v3893
        %v4039 = vsel %vm321, %v3959, %v3895
        %v4040 = vsel %vm321, %v3961, %v3897
        %v4041 = vsel %vm321, %v3963, %v3899
        %v4042 = vsel %vm321, %v3965, %v3901
        %v4043 = vsel %vm321, %v3967, %v3903
        %v4044 = vsel %vm321, %v3969, %v3905
        %v4045 = vsel %vm321, %v3971, %v3907
        %v4046 = vsel %vm321, %v3973, %v3909
        %v4047 = vsel %vm321, %v3975, %v3911
        %v4048 = vsel %vm321, %v3977, %v3913
        %v4049 = vsel %vm321, %v3979, %v3915
        %v4050 = vsel %vm321, %v3981, %v3917
        %v4051 = vsel %vm321, %v3983, %v3919
        %v4052 = vsel %vm321, %v3985, %v3921
        %v4053 = vsel %vm321, %v3987, %v3923
        %v4054 = vsel %vm321, %v3989, %v3925
        %v4055 = vsel %vm321, %v3991, %v3927
        %v4056 = vsel %vm328, %v4024, 0.0
        %v4057 = vsel %vm329, %v3992, 0.0
        %v4058 = vsel %vm328, %v4025, 0.0
        %v4059 = vsel %vm329, %v3993, 0.0
        %v4060 = vsel %vm328, %v4026, 0.0
        %v4061 = vsel %vm329, %v3994, 0.0
        %v4062 = vsel %vm328, %v4027, 0.0
        %v4063 = vsel %vm329, %v3995, 0.0
        %v4064 = vsel %vm328, %v4028, 0.0
        %v4065 = vsel %vm329, %v3996, 0.0
        %v4066 = vsel %vm328, %v4029, 0.0
        %v4067 = vsel %vm329, %v3997, 0.0
        %v4068 = vsel %vm328, %v4030, 0.0
        %v4069 = vsel %vm329, %v3998, 0.0
        %v4070 = vsel %vm328, %v4031, 0.0
        %v4071 = vsel %vm329, %v3999, 0.0
        %v4072 = vsel %vm328, %v4032, 0.0
        %v4073 = vsel %vm329, %v4000, 0.0
        %v4074 = vsel %vm328, %v4033, 0.0
        %v4075 = vsel %vm329, %v4001, 0.0
        %v4076 = vsel %vm328, %v4034, 0.0
        %v4077 = vsel %vm329, %v4002, 0.0
        %v4078 = vsel %vm328, %v4035, 0.0
        %v4079 = vsel %vm329, %v4003, 0.0
        %v4080 = vsel %vm328, %v4036, 0.0
        %v4081 = vsel %vm329, %v4004, 0.0
        %v4082 = vsel %vm328, %v4037, 0.0
        %v4083 = vsel %vm329, %v4005, 0.0
        %v4084 = vsel %vm328, %v4038, 0.0
        %v4085 = vsel %vm329, %v4006, 0.0
        %v4086 = vsel %vm328, %v4039, 0.0
        %v4087 = vsel %vm329, %v4007, 0.0
        %v4088 = vsel %vm328, %v4040, 0.0
        %v4089 = vsel %vm329, %v4008, 0.0
        %v4090 = vsel %vm328, %v4041, 0.0
        %v4091 = vsel %vm329, %v4009, 0.0
        %v4092 = vsel %vm328, %v4042, 0.0
        %v4093 = vsel %vm329, %v4010, 0.0
        %v4094 = vsel %vm328, %v4043, 0.0
        %v4095 = vsel %vm329, %v4011, 0.0
        %v4096 = vsel %vm328, %v4044, 0.0
        %v4097 = vsel %vm329, %v4012, 0.0
        %v4098 = vsel %vm328, %v4045, 0.0
        %v4099 = vsel %vm329, %v4013, 0.0
        %v4100 = vsel %vm328, %v4046, 0.0
        %v4101 = vsel %vm329, %v4014, 0.0
        %v4102 = vsel %vm328, %v4047, 0.0
        %v4103 = vsel %vm329, %v4015, 0.0
        %v4104 = vsel %vm328, %v4048, 0.0
        %v4105 = vsel %vm329, %v4016, 0.0
        %v4106 = vsel %vm328, %v4049, 0.0
        %v4107 = vsel %vm329, %v4017, 0.0
        %v4108 = vsel %vm328, %v4050, 0.0
        %v4109 = vsel %vm329, %v4018, 0.0
        %v4110 = vsel %vm328, %v4051, 0.0
        %v4111 = vsel %vm329, %v4019, 0.0
        %v4112 = vsel %vm328, %v4052, 0.0
        %v4113 = vsel %vm329, %v4020, 0.0
        %v4114 = vsel %vm328, %v4053, 0.0
        %v4115 = vsel %vm329, %v4021, 0.0
        %v4116 = vsel %vm328, %v4054, 0.0
        %v4117 = vsel %vm329, %v4022, 0.0
        %v4118 = vsel %vm328, %v4055, 0.0
        %v4119 = vsel %vm329, %v4023, 0.0
        %4120 = vmatprep.subr.mxu0 %v4057
        %4121 = vmatpush1.msra.mxu0 %v4056
        %4122 = vmatprep.subr.mxu0 %v4059
        %4123 = vmatpush1.msra.mxu0 %v4058
        %4124 = vmatprep.subr.mxu0 %v4061
        %4125 = vmatpush1.msra.mxu0 %v4060
        %4126 = vmatprep.subr.mxu0 %v4063
        %4127 = vmatpush1.msra.mxu0 %v4062
        %4128 = vmatprep.subr.mxu0 %v4065
        %4129 = vmatpush1.msra.mxu0 %v4064
        %4130 = vmatprep.subr.mxu0 %v4067
        %4131 = vmatpush1.msra.mxu0 %v4066
        %4132 = vmatprep.subr.mxu0 %v4069
        %4133 = vmatpush1.msra.mxu0 %v4068
        %4134 = vmatprep.subr.mxu0 %v4071
        %4135 = vmatpush1.msra.mxu0 %v4070
        %4136 = vmatprep.subr.mxu0 %v4073
        %4137 = vmatpush1.msra.mxu0 %v4072
        %4138 = vmatprep.subr.mxu0 %v4075
        %4139 = vmatpush1.msra.mxu0 %v4074
        %4140 = vmatprep.subr.mxu0 %v4077
        %4141 = vmatpush1.msra.mxu0 %v4076
        %4142 = vmatprep.subr.mxu0 %v4079
        %4143 = vmatpush1.msra.mxu0 %v4078
        %4144 = vmatprep.subr.mxu0 %v4081
        %4145 = vmatpush1.msra.mxu0 %v4080
        %4146 = vmatprep.subr.mxu0 %v4083
        %4147 = vmatpush1.msra.mxu0 %v4082
        %4148 = vmatprep.subr.mxu0 %v4085
        %4149 = vmatpush1.msra.mxu0 %v4084
        %4150 = vmatprep.subr.mxu0 %v4087
        %4151 = vmatpush1.msra.mxu0 %v4086
        %4152 = vmatprep.subr.mxu0 %v4089
        %4153 = vmatpush1.msra.mxu0 %v4088
        %4154 = vmatprep.subr.mxu0 %v4091
        %4155 = vmatpush1.msra.mxu0 %v4090
        %4156 = vmatprep.subr.mxu0 %v4093
        %4157 = vmatpush1.msra.mxu0 %v4092
        %4158 = vmatprep.subr.mxu0 %v4095
        %4159 = vmatpush1.msra.mxu0 %v4094
        %4160 = vmatprep.subr.mxu0 %v4097
        %4161 = vmatpush1.msra.mxu0 %v4096
        %4162 = vmatprep.subr.mxu0 %v4099
        %4163 = vmatpush1.msra.mxu0 %v4098
        %4164 = vmatprep.subr.mxu0 %v4101
        %4165 = vmatpush1.msra.mxu0 %v4100
        %4166 = vmatprep.subr.mxu0 %v4103
        %4167 = vmatpush1.msra.mxu0 %v4102
        %4168 = vmatprep.subr.mxu0 %v4105
        %4169 = vmatpush1.msra.mxu0 %v4104
        %4170 = vmatprep.subr.mxu0 %v4107
        %4171 = vmatpush1.msra.mxu0 %v4106
        %4172 = vmatprep.subr.mxu0 %v4109
        %4173 = vmatpush1.msra.mxu0 %v4108
        %4174 = vmatprep.subr.mxu0 %v4111
        %4175 = vmatpush1.msra.mxu0 %v4110
        %4176 = vmatprep.subr.mxu0 %v4113
        %4177 = vmatpush1.msra.mxu0 %v4112
        %4178 = vmatprep.subr.mxu0 %v4115
        %4179 = vmatpush1.msra.mxu0 %v4114
        %4180 = vmatprep.subr.mxu0 %v4117
        %4181 = vmatpush1.msra.mxu0 %v4116
        %4182 = vmatprep.subr.mxu0 %v4119
        %4183 = vmatpush1.msra.mxu0 %v4118
        %4184 = vmatprep.mubr.f32.mxu0 %v3861
        %4185 = vmatmul.mubr.f32.gmra.mrb[0].mxu0 %v3860
        %v4186 = vpop.f32.mrb[0].mxu0
        %v4187 = vadd.f32 0.0, %v4186
        %v4188 = vpop.f32.mrb[0].mxu0
        %v4189 = vadd.f32 0.0, %v4188
        %4190 = vmatprep.mubr.f32.mxu0 %v3863
        %4191 = vmatmul.mubr.f32.gmra.mrb[0].mxu0 %v3862
        %v4192 = vpop.f32.mrb[0].mxu0
        %v4193 = vadd.f32 0.0, %v4192
        %v4194 = vpop.f32.mrb[0].mxu0
        %v4195 = vadd.f32 0.0, %v4194
        %4196 = vdwg.mxu0
        %4197 = vmatprep.subr.mxu0 %v3796
        %4198 = vmatpush1.msra.mxu0 %v3795
        %4199 = vmatprep.subr.mxu0 %v3798
        %4200 = vmatpush1.msra.mxu0 %v3797
        %4201 = vmatprep.subr.mxu0 %v3800
        %4202 = vmatpush1.msra.mxu0 %v3799
        %4203 = vmatprep.subr.mxu0 %v3802
        %4204 = vmatpush1.msra.mxu0 %v3801
        %4205 = vmatprep.subr.mxu0 %v3804
        %4206 = vmatpush1.msra.mxu0 %v3803
        %4207 = vmatprep.subr.mxu0 %v3806
        %4208 = vmatpush1.msra.mxu0 %v3805
        %4209 = vmatprep.subr.mxu0 %v3808
        %4210 = vmatpush1.msra.mxu0 %v3807
        %4211 = vmatprep.subr.mxu0 %v3810
        %4212 = vmatpush1.msra.mxu0 %v3809
        %4213 = vmatprep.subr.mxu0 %v3812
        %4214 = vmatpush1.msra.mxu0 %v3811
        %4215 = vmatprep.subr.mxu0 %v3814
        %4216 = vmatpush1.msra.mxu0 %v3813
        %4217 = vmatprep.subr.mxu0 %v3816
        %4218 = vmatpush1.msra.mxu0 %v3815
        %4219 = vmatprep.subr.mxu0 %v3818
        %4220 = vmatpush1.msra.mxu0 %v3817
        %4221 = vmatprep.subr.mxu0 %v3820
        %4222 = vmatpush1.msra.mxu0 %v3819
        %4223 = vmatprep.subr.mxu0 %v3822
        %4224 = vmatpush1.msra.mxu0 %v3821
        %4225 = vmatprep.subr.mxu0 %v3824
        %4226 = vmatpush1.msra.mxu0 %v3823
        %4227 = vmatprep.subr.mxu0 %v3826
        %4228 = vmatpush1.msra.mxu0 %v3825
        %4229 = vmatprep.subr.mxu0 %v3828
        %4230 = vmatpush1.msra.mxu0 %v3827
        %4231 = vmatprep.subr.mxu0 %v3830
        %4232 = vmatpush1.msra.mxu0 %v3829
        %4233 = vmatprep.subr.mxu0 %v3832
        %4234 = vmatpush1.msra.mxu0 %v3831
        %4235 = vmatprep.subr.mxu0 %v3834
        %4236 = vmatpush1.msra.mxu0 %v3833
        %4237 = vmatprep.subr.mxu0 %v3836
        %4238 = vmatpush1.msra.mxu0 %v3835
        %4239 = vmatprep.subr.mxu0 %v3838
        %4240 = vmatpush1.msra.mxu0 %v3837
        %4241 = vmatprep.subr.mxu0 %v3840
        %4242 = vmatpush1.msra.mxu0 %v3839
        %4243 = vmatprep.subr.mxu0 %v3842
        %4244 = vmatpush1.msra.mxu0 %v3841
        %4245 = vmatprep.subr.mxu0 %v3844
        %4246 = vmatpush1.msra.mxu0 %v3843
        %4247 = vmatprep.subr.mxu0 %v3846
        %4248 = vmatpush1.msra.mxu0 %v3845
        %4249 = vmatprep.subr.mxu0 %v3848
        %4250 = vmatpush1.msra.mxu0 %v3847
        %4251 = vmatprep.subr.mxu0 %v3850
        %4252 = vmatpush1.msra.mxu0 %v3849
        %4253 = vmatprep.subr.mxu0 %v3852
        %4254 = vmatpush1.msra.mxu0 %v3851
        %4255 = vmatprep.subr.mxu0 %v3854
        %4256 = vmatpush1.msra.mxu0 %v3853
        %4257 = vmatprep.subr.mxu0 %v3856
        %4258 = vmatpush1.msra.mxu0 %v3855
        %4259 = vmatprep.subr.mxu0 %v3858
        %4260 = vmatpush1.msra.mxu0 %v3857
        %4261 = vmatprep.mubr.f32.mxu0 %v3600
        %4262 = vmatmul.mubr.f32.gmra.mrb[0].mxu0 %v3599
        %v4263 = vpop.f32.mrb[0].mxu0
        %v4264 = vadd.f32 %v4187, %v4263
        %v4265 = vpop.f32.mrb[0].mxu0
        %v4266 = vadd.f32 %v4189, %v4265
        %4267 = vmatprep.mubr.f32.mxu0 %v3602
        %4268 = vmatmul.mubr.f32.gmra.mrb[0].mxu0 %v3601
        %v4269 = vpop.f32.mrb[0].mxu0
        %v4270 = vadd.f32 %v4193, %v4269
        %v4271 = vpop.f32.mrb[0].mxu0
        %v4272 = vadd.f32 %v4195, %v4271
        %4273 = vdwg.mxu0
        %s4274 = scalar_lea.vmem %s3, 64
        %v4275 = vld [vmem:[%s4274] sm:$0xff]
        %v4276 = vld [vmem:[%s4274 + $0x8] sm:$0xff]
        %v4277 = vld [vmem:[%s4274 + $0x10] sm:$0xff]
        %v4278 = vld [vmem:[%s4274 + $0x18] sm:$0xff]
        %4279 = vrot.lane.b32.xlu0 %v2359, 15
        %v4280 = vpop.permute.xlu0 %4279
        %4281 = vrot.lane.b32.xlu0 %v2361, 15
        %v4282 = vpop.permute.xlu0 %4281
        %4283 = vrot.lane.b32.xlu0 %v2363, 15
        %v4284 = vpop.permute.xlu0 %4283
        %4285 = vrot.lane.b32.xlu0 %v2365, 15
        %v4286 = vpop.permute.xlu0 %4285
        %4287 = vrot.lane.b32.xlu0 %v2367, 15
        %v4288 = vpop.permute.xlu0 %4287
        %4289 = vrot.lane.b32.xlu0 %v2369, 15
        %v4290 = vpop.permute.xlu0 %4289
        %4291 = vrot.lane.b32.xlu0 %v2371, 15
        %v4292 = vpop.permute.xlu0 %4291
        %4293 = vrot.lane.b32.xlu0 %v2373, 15
        %v4294 = vpop.permute.xlu0 %4293
        %4295 = vrot.lane.b32.xlu0 %v2375, 15
        %v4296 = vpop.permute.xlu0 %4295
        %4297 = vrot.lane.b32.xlu0 %v2377, 15
        %v4298 = vpop.permute.xlu0 %4297
        %4299 = vrot.lane.b32.xlu0 %v2379, 15
        %v4300 = vpop.permute.xlu0 %4299
        %4301 = vrot.lane.b32.xlu0 %v2381, 15
        %v4302 = vpop.permute.xlu0 %4301
        %4303 = vrot.lane.b32.xlu0 %v2383, 15
        %v4304 = vpop.permute.xlu0 %4303
        %4305 = vrot.lane.b32.xlu0 %v2385, 15
        %v4306 = vpop.permute.xlu0 %4305
        %4307 = vrot.lane.b32.xlu0 %v2387, 15
        %v4308 = vpop.permute.xlu0 %4307
        %4309 = vrot.lane.b32.xlu0 %v2389, 15
        %v4310 = vpop.permute.xlu0 %4309
        %4311 = vrot.lane.b32.xlu0 %v3567, 15
        %v4312 = vpop.permute.xlu0 %4311
        %4313 = vrot.lane.b32.xlu0 %v3569, 15
        %v4314 = vpop.permute.xlu0 %4313
        %4315 = vrot.lane.b32.xlu0 %v3571, 15
        %v4316 = vpop.permute.xlu0 %4315
        %4317 = vrot.lane.b32.xlu0 %v3573, 15
        %v4318 = vpop.permute.xlu0 %4317
        %4319 = vrot.lane.b32.xlu0 %v3575, 15
        %v4320 = vpop.permute.xlu0 %4319
        %4321 = vrot.lane.b32.xlu0 %v3577, 15
        %v4322 = vpop.permute.xlu0 %4321
        %4323 = vrot.lane.b32.xlu0 %v3579, 15
        %v4324 = vpop.permute.xlu0 %4323
        %4325 = vrot.lane.b32.xlu0 %v3581, 15
        %v4326 = vpop.permute.xlu0 %4325
        %4327 = vrot.lane.b32.xlu0 %v3583, 15
        %v4328 = vpop.permute.xlu0 %4327
        %4329 = vrot.lane.b32.xlu0 %v3585, 15
        %v4330 = vpop.permute.xlu0 %4329
        %4331 = vrot.lane.b32.xlu0 %v3587, 15
        %v4332 = vpop.permute.xlu0 %4331
        %4333 = vrot.lane.b32.xlu0 %v3589, 15
        %v4334 = vpop.permute.xlu0 %4333
        %4335 = vrot.lane.b32.xlu0 %v3591, 15
        %v4336 = vpop.permute.xlu0 %4335
        %4337 = vrot.lane.b32.xlu0 %v3593, 15
        %v4338 = vpop.permute.xlu0 %4337
        %4339 = vrot.lane.b32.xlu0 %v3595, 15
        %v4340 = vpop.permute.xlu0 %4339
        %4341 = vrot.lane.b32.xlu0 %v3597, 15
        %v4342 = vpop.permute.xlu0 %4341
        %4343 = vrot.lane.b32.xlu0 %v2360, 15
        %v4344 = vpop.permute.xlu0 %4343
        %4345 = vrot.lane.b32.xlu0 %v2362, 15
        %v4346 = vpop.permute.xlu0 %4345
        %4347 = vrot.lane.b32.xlu0 %v2364, 15
        %v4348 = vpop.permute.xlu0 %4347
        %4349 = vrot.lane.b32.xlu0 %v2366, 15
        %v4350 = vpop.permute.xlu0 %4349
        %4351 = vrot.lane.b32.xlu0 %v2368, 15
        %v4352 = vpop.permute.xlu0 %4351
        %4353 = vrot.lane.b32.xlu0 %v2370, 15
        %v4354 = vpop.permute.xlu0 %4353
        %4355 = vrot.lane.b32.xlu0 %v2372, 15
        %v4356 = vpop.permute.xlu0 %4355
        %4357 = vrot.lane.b32.xlu0 %v2374, 15
        %v4358 = vpop.permute.xlu0 %4357
        %4359 = vrot.lane.b32.xlu0 %v2376, 15
        %v4360 = vpop.permute.xlu0 %4359
        %4361 = vrot.lane.b32.xlu0 %v2378, 15
        %v4362 = vpop.permute.xlu0 %4361
        %4363 = vrot.lane.b32.xlu0 %v2380, 15
        %v4364 = vpop.permute.xlu0 %4363
        %4365 = vrot.lane.b32.xlu0 %v2382, 15
        %v4366 = vpop.permute.xlu0 %4365
        %4367 = vrot.lane.b32.xlu0 %v2384, 15
        %v4368 = vpop.permute.xlu0 %4367
        %4369 = vrot.lane.b32.xlu0 %v2386, 15
        %v4370 = vpop.permute.xlu0 %4369
        %4371 = vrot.lane.b32.xlu0 %v2388, 15
        %v4372 = vpop.permute.xlu0 %4371
        %4373 = vrot.lane.b32.xlu0 %v2390, 15
        %v4374 = vpop.permute.xlu0 %4373
        %4375 = vrot.lane.b32.xlu0 %v3568, 15
        %v4376 = vpop.permute.xlu0 %4375
        %4377 = vrot.lane.b32.xlu0 %v3570, 15
        %v4378 = vpop.permute.xlu0 %4377
        %4379 = vrot.lane.b32.xlu0 %v3572, 15
        %v4380 = vpop.permute.xlu0 %4379
        %4381 = vrot.lane.b32.xlu0 %v3574, 15
        %v4382 = vpop.permute.xlu0 %4381
        %4383 = vrot.lane.b32.xlu0 %v3576, 15
        %v4384 = vpop.permute.xlu0 %4383
        %4385 = vrot.lane.b32.xlu0 %v3578, 15
        %v4386 = vpop.permute.xlu0 %4385
        %4387 = vrot.lane.b32.xlu0 %v3580, 15
        %v4388 = vpop.permute.xlu0 %4387
        %4389 = vrot.lane.b32.xlu0 %v3582, 15
        %v4390 = vpop.permute.xlu0 %4389
        %4391 = vrot.lane.b32.xlu0 %v3584, 15
        %v4392 = vpop.permute.xlu0 %4391
        %4393 = vrot.lane.b32.xlu0 %v3586, 15
        %v4394 = vpop.permute.xlu0 %4393
        %4395 = vrot.lane.b32.xlu0 %v3588, 15
        %v4396 = vpop.permute.xlu0 %4395
        %4397 = vrot.lane.b32.xlu0 %v3590, 15
        %v4398 = vpop.permute.xlu0 %4397
        %4399 = vrot.lane.b32.xlu0 %v3592, 15
        %v4400 = vpop.permute.xlu0 %4399
        %4401 = vrot.lane.b32.xlu0 %v3594, 15
        %v4402 = vpop.permute.xlu0 %4401
        %4403 = vrot.lane.b32.xlu0 %v3596, 15
        %v4404 = vpop.permute.xlu0 %4403
        %4405 = vrot.lane.b32.xlu0 %v3598, 15
        %v4406 = vpop.permute.xlu0 %4405
        %v4407 = vsel %vm342, %v4280, %v4344
        %v4408 = vsel %vm342, %v4282, %v4346
        %v4409 = vsel %vm342, %v4284, %v4348
        %v4410 = vsel %vm342, %v4286, %v4350
        %v4411 = vsel %vm342, %v4288, %v4352
        %v4412 = vsel %vm342, %v4290, %v4354
        %v4413 = vsel %vm342, %v4292, %v4356
        %v4414 = vsel %vm342, %v4294, %v4358
        %v4415 = vsel %vm342, %v4296, %v4360
        %v4416 = vsel %vm342, %v4298, %v4362
        %v4417 = vsel %vm342, %v4300, %v4364
        %v4418 = vsel %vm342, %v4302, %v4366
        %v4419 = vsel %vm342, %v4304, %v4368
        %v4420 = vsel %vm342, %v4306, %v4370
        %v4421 = vsel %vm342, %v4308, %v4372
        %v4422 = vsel %vm342, %v4310, %v4374
        %v4423 = vsel %vm342, %v4312, %v4376
        %v4424 = vsel %vm342, %v4314, %v4378
        %v4425 = vsel %vm342, %v4316, %v4380
        %v4426 = vsel %vm342, %v4318, %v4382
        %v4427 = vsel %vm342, %v4320, %v4384
        %v4428 = vsel %vm342, %v4322, %v4386
        %v4429 = vsel %vm342, %v4324, %v4388
        %v4430 = vsel %vm342, %v4326, %v4390
        %v4431 = vsel %vm342, %v4328, %v4392
        %v4432 = vsel %vm342, %v4330, %v4394
        %v4433 = vsel %vm342, %v4332, %v4396
        %v4434 = vsel %vm342, %v4334, %v4398
        %v4435 = vsel %vm342, %v4336, %v4400
        %v4436 = vsel %vm342, %v4338, %v4402
        %v4437 = vsel %vm342, %v4340, %v4404
        %v4438 = vsel %vm342, %v4342, %v4406
        %v4439 = vsel %vm342, %v4344, %v4280
        %v4440 = vsel %vm342, %v4346, %v4282
        %v4441 = vsel %vm342, %v4348, %v4284
        %v4442 = vsel %vm342, %v4350, %v4286
        %v4443 = vsel %vm342, %v4352, %v4288
        %v4444 = vsel %vm342, %v4354, %v4290
        %v4445 = vsel %vm342, %v4356, %v4292
        %v4446 = vsel %vm342, %v4358, %v4294
        %v4447 = vsel %vm342, %v4360, %v4296
        %v4448 = vsel %vm342, %v4362, %v4298
        %v4449 = vsel %vm342, %v4364, %v4300
        %v4450 = vsel %vm342, %v4366, %v4302
        %v4451 = vsel %vm342, %v4368, %v4304
        %v4452 = vsel %vm342, %v4370, %v4306
        %v4453 = vsel %vm342, %v4372, %v4308
        %v4454 = vsel %vm342, %v4374, %v4310
        %v4455 = vsel %vm342, %v4376, %v4312
        %v4456 = vsel %vm342, %v4378, %v4314
        %v4457 = vsel %vm342, %v4380, %v4316
        %v4458 = vsel %vm342, %v4382, %v4318
        %v4459 = vsel %vm342, %v4384, %v4320
        %v4460 = vsel %vm342, %v4386, %v4322
        %v4461 = vsel %vm342, %v4388, %v4324
        %v4462 = vsel %vm342, %v4390, %v4326
        %v4463 = vsel %vm342, %v4392, %v4328
        %v4464 = vsel %vm342, %v4394, %v4330
        %v4465 = vsel %vm342, %v4396, %v4332
        %v4466 = vsel %vm342, %v4398, %v4334
        %v4467 = vsel %vm342, %v4400, %v4336
        %v4468 = vsel %vm342, %v4402, %v4338
        %v4469 = vsel %vm342, %v4404, %v4340
        %v4470 = vsel %vm342, %v4406, %v4342
        %v4471 = vsel %vm353, %v4439, 0.0
        %v4472 = vsel %vm354, %v4407, 0.0
        %v4473 = vsel %vm353, %v4440, 0.0
        %v4474 = vsel %vm354, %v4408, 0.0
        %v4475 = vsel %vm353, %v4441, 0.0
        %v4476 = vsel %vm354, %v4409, 0.0
        %v4477 = vsel %vm353, %v4442, 0.0
        %v4478 = vsel %vm354, %v4410, 0.0
        %v4479 = vsel %vm353, %v4443, 0.0
        %v4480 = vsel %vm354, %v4411, 0.0
        %v4481 = vsel %vm353, %v4444, 0.0
        %v4482 = vsel %vm354, %v4412, 0.0
        %v4483 = vsel %vm353, %v4445, 0.0
        %v4484 = vsel %vm354, %v4413, 0.0
        %v4485 = vsel %vm353, %v4446, 0.0
        %v4486 = vsel %vm354, %v4414, 0.0
        %v4487 = vsel %vm353, %v4447, 0.0
        %v4488 = vsel %vm354, %v4415, 0.0
        %v4489 = vsel %vm353, %v4448, 0.0
        %v4490 = vsel %vm354, %v4416, 0.0
        %v4491 = vsel %vm353, %v4449, 0.0
        %v4492 = vsel %vm354, %v4417, 0.0
        %v4493 = vsel %vm353, %v4450, 0.0
        %v4494 = vsel %vm354, %v4418, 0.0
        %v4495 = vsel %vm353, %v4451, 0.0
        %v4496 = vsel %vm354, %v4419, 0.0
        %v4497 = vsel %vm353, %v4452, 0.0
        %v4498 = vsel %vm354, %v4420, 0.0
        %v4499 = vsel %vm353, %v4453, 0.0
        %v4500 = vsel %vm354, %v4421, 0.0
        %v4501 = vsel %vm353, %v4454, 0.0
        %v4502 = vsel %vm354, %v4422, 0.0
        %v4503 = vsel %vm353, %v4455, 0.0
        %v4504 = vsel %vm354, %v4423, 0.0
        %v4505 = vsel %vm353, %v4456, 0.0
        %v4506 = vsel %vm354, %v4424, 0.0
        %v4507 = vsel %vm353, %v4457, 0.0
        %v4508 = vsel %vm354, %v4425, 0.0
        %v4509 = vsel %vm353, %v4458, 0.0
        %v4510 = vsel %vm354, %v4426, 0.0
        %v4511 = vsel %vm353, %v4459, 0.0
        %v4512 = vsel %vm354, %v4427, 0.0
        %v4513 = vsel %vm353, %v4460, 0.0
        %v4514 = vsel %vm354, %v4428, 0.0
        %v4515 = vsel %vm353, %v4461, 0.0
        %v4516 = vsel %vm354, %v4429, 0.0
        %v4517 = vsel %vm353, %v4462, 0.0
        %v4518 = vsel %vm354, %v4430, 0.0
        %v4519 = vsel %vm353, %v4463, 0.0
        %v4520 = vsel %vm354, %v4431, 0.0
        %v4521 = vsel %vm353, %v4464, 0.0
        %v4522 = vsel %vm354, %v4432, 0.0
        %v4523 = vsel %vm353, %v4465, 0.0
        %v4524 = vsel %vm354, %v4433, 0.0
        %v4525 = vsel %vm353, %v4466, 0.0
        %v4526 = vsel %vm354, %v4434, 0.0
        %v4527 = vsel %vm353, %v4467, 0.0
        %v4528 = vsel %vm354, %v4435, 0.0
        %v4529 = vsel %vm353, %v4468, 0.0
        %v4530 = vsel %vm354, %v4436, 0.0
        %v4531 = vsel %vm353, %v4469, 0.0
        %v4532 = vsel %vm354, %v4437, 0.0
        %v4533 = vsel %vm353, %v4470, 0.0
        %v4534 = vsel %vm354, %v4438, 0.0
        %4535 = vmatprep.subr.mxu0 %v4472
        %4536 = vmatpush1.msra.mxu0 %v4471
        %4537 = vmatprep.subr.mxu0 %v4474
        %4538 = vmatpush1.msra.mxu0 %v4473
        %4539 = vmatprep.subr.mxu0 %v4476
        %4540 = vmatpush1.msra.mxu0 %v4475
        %4541 = vmatprep.subr.mxu0 %v4478
        %4542 = vmatpush1.msra.mxu0 %v4477
        %4543 = vmatprep.subr.mxu0 %v4480
        %4544 = vmatpush1.msra.mxu0 %v4479
        %4545 = vmatprep.subr.mxu0 %v4482
        %4546 = vmatpush1.msra.mxu0 %v4481
        %4547 = vmatprep.subr.mxu0 %v4484
        %4548 = vmatpush1.msra.mxu0 %v4483
        %4549 = vmatprep.subr.mxu0 %v4486
        %4550 = vmatpush1.msra.mxu0 %v4485
        %4551 = vmatprep.subr.mxu0 %v4488
        %4552 = vmatpush1.msra.mxu0 %v4487
        %4553 = vmatprep.subr.mxu0 %v4490
        %4554 = vmatpush1.msra.mxu0 %v4489
        %4555 = vmatprep.subr.mxu0 %v4492
        %4556 = vmatpush1.msra.mxu0 %v4491
        %4557 = vmatprep.subr.mxu0 %v4494
        %4558 = vmatpush1.msra.mxu0 %v4493
        %4559 = vmatprep.subr.mxu0 %v4496
        %4560 = vmatpush1.msra.mxu0 %v4495
        %4561 = vmatprep.subr.mxu0 %v4498
        %4562 = vmatpush1.msra.mxu0 %v4497
        %4563 = vmatprep.subr.mxu0 %v4500
        %4564 = vmatpush1.msra.mxu0 %v4499
        %4565 = vmatprep.subr.mxu0 %v4502
        %4566 = vmatpush1.msra.mxu0 %v4501
        %4567 = vmatprep.subr.mxu0 %v4504
        %4568 = vmatpush1.msra.mxu0 %v4503
        %4569 = vmatprep.subr.mxu0 %v4506
        %4570 = vmatpush1.msra.mxu0 %v4505
        %4571 = vmatprep.subr.mxu0 %v4508
        %4572 = vmatpush1.msra.mxu0 %v4507
        %4573 = vmatprep.subr.mxu0 %v4510
        %4574 = vmatpush1.msra.mxu0 %v4509
        %4575 = vmatprep.subr.mxu0 %v4512
        %4576 = vmatpush1.msra.mxu0 %v4511
        %4577 = vmatprep.subr.mxu0 %v4514
        %4578 = vmatpush1.msra.mxu0 %v4513
        %4579 = vmatprep.subr.mxu0 %v4516
        %4580 = vmatpush1.msra.mxu0 %v4515
        %4581 = vmatprep.subr.mxu0 %v4518
        %4582 = vmatpush1.msra.mxu0 %v4517
        %4583 = vmatprep.subr.mxu0 %v4520
        %4584 = vmatpush1.msra.mxu0 %v4519
        %4585 = vmatprep.subr.mxu0 %v4522
        %4586 = vmatpush1.msra.mxu0 %v4521
        %4587 = vmatprep.subr.mxu0 %v4524
        %4588 = vmatpush1.msra.mxu0 %v4523
        %4589 = vmatprep.subr.mxu0 %v4526
        %4590 = vmatpush1.msra.mxu0 %v4525
        %4591 = vmatprep.subr.mxu0 %v4528
        %4592 = vmatpush1.msra.mxu0 %v4527
        %4593 = vmatprep.subr.mxu0 %v4530
        %4594 = vmatpush1.msra.mxu0 %v4529
        %4595 = vmatprep.subr.mxu0 %v4532
        %4596 = vmatpush1.msra.mxu0 %v4531
        %4597 = vmatprep.subr.mxu0 %v4534
        %4598 = vmatpush1.msra.mxu0 %v4533
        %4599 = vmatprep.mubr.f32.mxu0 %v4276
        %4600 = vmatmul.mubr.f32.gmra.mrb[0].mxu0 %v4275
        %v4601 = vpop.f32.mrb[0].mxu0
        %v4602 = vadd.f32 0.0, %v4601
        %v4603 = vpop.f32.mrb[0].mxu0
        %v4604 = vadd.f32 0.0, %v4603
        %4605 = vmatprep.mubr.f32.mxu0 %v4278
        %4606 = vmatmul.mubr.f32.gmra.mrb[0].mxu0 %v4277
        %v4607 = vpop.f32.mrb[0].mxu0
        %v4608 = vadd.f32 0.0, %v4607
        %v4609 = vpop.f32.mrb[0].mxu0
        %v4610 = vadd.f32 0.0, %v4609
        %4611 = vdwg.mxu0
        %v4612 = vadd.f32 %v4264, %v4602
        %v4613 = vadd.f32 %v4266, %v4604
        %v4614 = vadd.f32 %v4270, %v4608
        %v4615 = vadd.f32 %v4272, %v4610
        %s4616 = scalar_lea.vmem %s3, 96
        %v4617 = vld [vmem:[%s4616] sm:$0xff]
        %v4618 = vld [vmem:[%s4616 + $0x8] sm:$0xff]
        %v4619 = vld [vmem:[%s4616 + $0x10] sm:$0xff]
        %v4620 = vld [vmem:[%s4616 + $0x18] sm:$0xff]
        %4621 = vrot.lane.b32.xlu0 %v2359, 1
        %v4622 = vpop.permute.xlu0 %4621
        %4623 = vrot.lane.b32.xlu0 %v2361, 1
        %v4624 = vpop.permute.xlu0 %4623
        %4625 = vrot.lane.b32.xlu0 %v2363, 1
        %v4626 = vpop.permute.xlu0 %4625
        %4627 = vrot.lane.b32.xlu0 %v2365, 1
        %v4628 = vpop.permute.xlu0 %4627
        %4629 = vrot.lane.b32.xlu0 %v2367, 1
        %v4630 = vpop.permute.xlu0 %4629
        %4631 = vrot.lane.b32.xlu0 %v2369, 1
        %v4632 = vpop.permute.xlu0 %4631
        %4633 = vrot.lane.b32.xlu0 %v2371, 1
        %v4634 = vpop.permute.xlu0 %4633
        %4635 = vrot.lane.b32.xlu0 %v2373, 1
        %v4636 = vpop.permute.xlu0 %4635
        %4637 = vrot.lane.b32.xlu0 %v2375, 1
        %v4638 = vpop.permute.xlu0 %4637
        %4639 = vrot.lane.b32.xlu0 %v2377, 1
        %v4640 = vpop.permute.xlu0 %4639
        %4641 = vrot.lane.b32.xlu0 %v2379, 1
        %v4642 = vpop.permute.xlu0 %4641
        %4643 = vrot.lane.b32.xlu0 %v2381, 1
        %v4644 = vpop.permute.xlu0 %4643
        %4645 = vrot.lane.b32.xlu0 %v2383, 1
        %v4646 = vpop.permute.xlu0 %4645
        %4647 = vrot.lane.b32.xlu0 %v2385, 1
        %v4648 = vpop.permute.xlu0 %4647
        %4649 = vrot.lane.b32.xlu0 %v2387, 1
        %v4650 = vpop.permute.xlu0 %4649
        %4651 = vrot.lane.b32.xlu0 %v2389, 1
        %v4652 = vpop.permute.xlu0 %4651
        %4653 = vrot.lane.b32.xlu0 %v3567, 1
        %v4654 = vpop.permute.xlu0 %4653
        %4655 = vrot.lane.b32.xlu0 %v3569, 1
        %v4656 = vpop.permute.xlu0 %4655
        %4657 = vrot.lane.b32.xlu0 %v3571, 1
        %v4658 = vpop.permute.xlu0 %4657
        %4659 = vrot.lane.b32.xlu0 %v3573, 1
        %v4660 = vpop.permute.xlu0 %4659
        %4661 = vrot.lane.b32.xlu0 %v3575, 1
        %v4662 = vpop.permute.xlu0 %4661
        %4663 = vrot.lane.b32.xlu0 %v3577, 1
        %v4664 = vpop.permute.xlu0 %4663
        %4665 = vrot.lane.b32.xlu0 %v3579, 1
        %v4666 = vpop.permute.xlu0 %4665
        %4667 = vrot.lane.b32.xlu0 %v3581, 1
        %v4668 = vpop.permute.xlu0 %4667
        %4669 = vrot.lane.b32.xlu0 %v3583, 1
        %v4670 = vpop.permute.xlu0 %4669
        %4671 = vrot.lane.b32.xlu0 %v3585, 1
        %v4672 = vpop.permute.xlu0 %4671
        %4673 = vrot.lane.b32.xlu0 %v3587, 1
        %v4674 = vpop.permute.xlu0 %4673
        %4675 = vrot.lane.b32.xlu0 %v3589, 1
        %v4676 = vpop.permute.xlu0 %4675
        %4677 = vrot.lane.b32.xlu0 %v3591, 1
        %v4678 = vpop.permute.xlu0 %4677
        %4679 = vrot.lane.b32.xlu0 %v3593, 1
        %v4680 = vpop.permute.xlu0 %4679
        %4681 = vrot.lane.b32.xlu0 %v3595, 1
        %v4682 = vpop.permute.xlu0 %4681
        %4683 = vrot.lane.b32.xlu0 %v3597, 1
        %v4684 = vpop.permute.xlu0 %4683
        %4685 = vrot.lane.b32.xlu0 %v2360, 1
        %v4686 = vpop.permute.xlu0 %4685
        %4687 = vrot.lane.b32.xlu0 %v2362, 1
        %v4688 = vpop.permute.xlu0 %4687
        %4689 = vrot.lane.b32.xlu0 %v2364, 1
        %v4690 = vpop.permute.xlu0 %4689
        %4691 = vrot.lane.b32.xlu0 %v2366, 1
        %v4692 = vpop.permute.xlu0 %4691
        %4693 = vrot.lane.b32.xlu0 %v2368, 1
        %v4694 = vpop.permute.xlu0 %4693
        %4695 = vrot.lane.b32.xlu0 %v2370, 1
        %v4696 = vpop.permute.xlu0 %4695
        %4697 = vrot.lane.b32.xlu0 %v2372, 1
        %v4698 = vpop.permute.xlu0 %4697
        %4699 = vrot.lane.b32.xlu0 %v2374, 1
        %v4700 = vpop.permute.xlu0 %4699
        %4701 = vrot.lane.b32.xlu0 %v2376, 1
        %v4702 = vpop.permute.xlu0 %4701
        %4703 = vrot.lane.b32.xlu0 %v2378, 1
        %v4704 = vpop.permute.xlu0 %4703
        %4705 = vrot.lane.b32.xlu0 %v2380, 1
        %v4706 = vpop.permute.xlu0 %4705
        %4707 = vrot.lane.b32.xlu0 %v2382, 1
        %v4708 = vpop.permute.xlu0 %4707
        %4709 = vrot.lane.b32.xlu0 %v2384, 1
        %v4710 = vpop.permute.xlu0 %4709
        %4711 = vrot.lane.b32.xlu0 %v2386, 1
        %v4712 = vpop.permute.xlu0 %4711
        %4713 = vrot.lane.b32.xlu0 %v2388, 1
        %v4714 = vpop.permute.xlu0 %4713
        %4715 = vrot.lane.b32.xlu0 %v2390, 1
        %v4716 = vpop.permute.xlu0 %4715
        %4717 = vrot.lane.b32.xlu0 %v3568, 1
        %v4718 = vpop.permute.xlu0 %4717
        %4719 = vrot.lane.b32.xlu0 %v3570, 1
        %v4720 = vpop.permute.xlu0 %4719
        %4721 = vrot.lane.b32.xlu0 %v3572, 1
        %v4722 = vpop.permute.xlu0 %4721
        %4723 = vrot.lane.b32.xlu0 %v3574, 1
        %v4724 = vpop.permute.xlu0 %4723
        %4725 = vrot.lane.b32.xlu0 %v3576, 1
        %v4726 = vpop.permute.xlu0 %4725
        %4727 = vrot.lane.b32.xlu0 %v3578, 1
        %v4728 = vpop.permute.xlu0 %4727
        %4729 = vrot.lane.b32.xlu0 %v3580, 1
        %v4730 = vpop.permute.xlu0 %4729
        %4731 = vrot.lane.b32.xlu0 %v3582, 1
        %v4732 = vpop.permute.xlu0 %4731
        %4733 = vrot.lane.b32.xlu0 %v3584, 1
        %v4734 = vpop.permute.xlu0 %4733
        %4735 = vrot.lane.b32.xlu0 %v3586, 1
        %v4736 = vpop.permute.xlu0 %4735
        %4737 = vrot.lane.b32.xlu0 %v3588, 1
        %v4738 = vpop.permute.xlu0 %4737
        %4739 = vrot.lane.b32.xlu0 %v3590, 1
        %v4740 = vpop.permute.xlu0 %4739
        %4741 = vrot.lane.b32.xlu0 %v3592, 1
        %v4742 = vpop.permute.xlu0 %4741
        %4743 = vrot.lane.b32.xlu0 %v3594, 1
        %v4744 = vpop.permute.xlu0 %4743
        %4745 = vrot.lane.b32.xlu0 %v3596, 1
        %v4746 = vpop.permute.xlu0 %4745
        %4747 = vrot.lane.b32.xlu0 %v3598, 1
        %v4748 = vpop.permute.xlu0 %4747
        %v4749 = vsel %vm367, %v4622, %v4686
        %v4750 = vsel %vm367, %v4624, %v4688
        %v4751 = vsel %vm367, %v4626, %v4690
        %v4752 = vsel %vm367, %v4628, %v4692
        %v4753 = vsel %vm367, %v4630, %v4694
        %v4754 = vsel %vm367, %v4632, %v4696
        %v4755 = vsel %vm367, %v4634, %v4698
        %v4756 = vsel %vm367, %v4636, %v4700
        %v4757 = vsel %vm367, %v4638, %v4702
        %v4758 = vsel %vm367, %v4640, %v4704
        %v4759 = vsel %vm367, %v4642, %v4706
        %v4760 = vsel %vm367, %v4644, %v4708
        %v4761 = vsel %vm367, %v4646, %v4710
        %v4762 = vsel %vm367, %v4648, %v4712
        %v4763 = vsel %vm367, %v4650, %v4714
        %v4764 = vsel %vm367, %v4652, %v4716
        %v4765 = vsel %vm367, %v4654, %v4718
        %v4766 = vsel %vm367, %v4656, %v4720
        %v4767 = vsel %vm367, %v4658, %v4722
        %v4768 = vsel %vm367, %v4660, %v4724
        %v4769 = vsel %vm367, %v4662, %v4726
        %v4770 = vsel %vm367, %v4664, %v4728
        %v4771 = vsel %vm367, %v4666, %v4730
        %v4772 = vsel %vm367, %v4668, %v4732
        %v4773 = vsel %vm367, %v4670, %v4734
        %v4774 = vsel %vm367, %v4672, %v4736
        %v4775 = vsel %vm367, %v4674, %v4738
        %v4776 = vsel %vm367, %v4676, %v4740
        %v4777 = vsel %vm367, %v4678, %v4742
        %v4778 = vsel %vm367, %v4680, %v4744
        %v4779 = vsel %vm367, %v4682, %v4746
        %v4780 = vsel %vm367, %v4684, %v4748
        %v4781 = vsel %vm367, %v4686, %v4622
        %v4782 = vsel %vm367, %v4688, %v4624
        %v4783 = vsel %vm367, %v4690, %v4626
        %v4784 = vsel %vm367, %v4692, %v4628
        %v4785 = vsel %vm367, %v4694, %v4630
        %v4786 = vsel %vm367, %v4696, %v4632
        %v4787 = vsel %vm367, %v4698, %v4634
        %v4788 = vsel %vm367, %v4700, %v4636
        %v4789 = vsel %vm367, %v4702, %v4638
        %v4790 = vsel %vm367, %v4704, %v4640
        %v4791 = vsel %vm367, %v4706, %v4642
        %v4792 = vsel %vm367, %v4708, %v4644
        %v4793 = vsel %vm367, %v4710, %v4646
        %v4794 = vsel %vm367, %v4712, %v4648
        %v4795 = vsel %vm367, %v4714, %v4650
        %v4796 = vsel %vm367, %v4716, %v4652
        %v4797 = vsel %vm367, %v4718, %v4654
        %v4798 = vsel %vm367, %v4720, %v4656
        %v4799 = vsel %vm367, %v4722, %v4658
        %v4800 = vsel %vm367, %v4724, %v4660
        %v4801 = vsel %vm367, %v4726, %v4662
        %v4802 = vsel %vm367, %v4728, %v4664
        %v4803 = vsel %vm367, %v4730, %v4666
        %v4804 = vsel %vm367, %v4732, %v4668
        %v4805 = vsel %vm367, %v4734, %v4670
        %v4806 = vsel %vm367, %v4736, %v4672
        %v4807 = vsel %vm367, %v4738, %v4674
        %v4808 = vsel %vm367, %v4740, %v4676
        %v4809 = vsel %vm367, %v4742, %v4678
        %v4810 = vsel %vm367, %v4744, %v4680
        %v4811 = vsel %vm367, %v4746, %v4682
        %v4812 = vsel %vm367, %v4748, %v4684
        %v4813 = vsel %vm374, %v4781, 0.0
        %v4814 = vsel %vm375, %v4749, 0.0
        %v4815 = vsel %vm374, %v4782, 0.0
        %v4816 = vsel %vm375, %v4750, 0.0
        %v4817 = vsel %vm374, %v4783, 0.0
        %v4818 = vsel %vm375, %v4751, 0.0
        %v4819 = vsel %vm374, %v4784, 0.0
        %v4820 = vsel %vm375, %v4752, 0.0
        %v4821 = vsel %vm374, %v4785, 0.0
        %v4822 = vsel %vm375, %v4753, 0.0
        %v4823 = vsel %vm374, %v4786, 0.0
        %v4824 = vsel %vm375, %v4754, 0.0
        %v4825 = vsel %vm374, %v4787, 0.0
        %v4826 = vsel %vm375, %v4755, 0.0
        %v4827 = vsel %vm374, %v4788, 0.0
        %v4828 = vsel %vm375, %v4756, 0.0
        %v4829 = vsel %vm374, %v4789, 0.0
        %v4830 = vsel %vm375, %v4757, 0.0
        %v4831 = vsel %vm374, %v4790, 0.0
        %v4832 = vsel %vm375, %v4758, 0.0
        %v4833 = vsel %vm374, %v4791, 0.0
        %v4834 = vsel %vm375, %v4759, 0.0
        %v4835 = vsel %vm374, %v4792, 0.0
        %v4836 = vsel %vm375, %v4760, 0.0
        %v4837 = vsel %vm374, %v4793, 0.0
        %v4838 = vsel %vm375, %v4761, 0.0
        %v4839 = vsel %vm374, %v4794, 0.0
        %v4840 = vsel %vm375, %v4762, 0.0
        %v4841 = vsel %vm374, %v4795, 0.0
        %v4842 = vsel %vm375, %v4763, 0.0
        %v4843 = vsel %vm374, %v4796, 0.0
        %v4844 = vsel %vm375, %v4764, 0.0
        %v4845 = vsel %vm374, %v4797, 0.0
        %v4846 = vsel %vm375, %v4765, 0.0
        %v4847 = vsel %vm374, %v4798, 0.0
        %v4848 = vsel %vm375, %v4766, 0.0
        %v4849 = vsel %vm374, %v4799, 0.0
        %v4850 = vsel %vm375, %v4767, 0.0
        %v4851 = vsel %vm374, %v4800, 0.0
        %v4852 = vsel %vm375, %v4768, 0.0
        %v4853 = vsel %vm374, %v4801, 0.0
        %v4854 = vsel %vm375, %v4769, 0.0
        %v4855 = vsel %vm374, %v4802, 0.0
        %v4856 = vsel %vm375, %v4770, 0.0
        %v4857 = vsel %vm374, %v4803, 0.0
        %v4858 = vsel %vm375, %v4771, 0.0
        %v4859 = vsel %vm374, %v4804, 0.0
        %v4860 = vsel %vm375, %v4772, 0.0
        %v4861 = vsel %vm374, %v4805, 0.0
        %v4862 = vsel %vm375, %v4773, 0.0
        %v4863 = vsel %vm374, %v4806, 0.0
        %v4864 = vsel %vm375, %v4774, 0.0
        %v4865 = vsel %vm374, %v4807, 0.0
        %v4866 = vsel %vm375, %v4775, 0.0
        %v4867 = vsel %vm374, %v4808, 0.0
        %v4868 = vsel %vm375, %v4776, 0.0
        %v4869 = vsel %vm374, %v4809, 0.0
        %v4870 = vsel %vm375, %v4777, 0.0
        %v4871 = vsel %vm374, %v4810, 0.0
        %v4872 = vsel %vm375, %v4778, 0.0
        %v4873 = vsel %vm374, %v4811, 0.0
        %v4874 = vsel %vm375, %v4779, 0.0
        %v4875 = vsel %vm374, %v4812, 0.0
        %v4876 = vsel %vm375, %v4780, 0.0
        %4877 = vmatprep.subr.mxu0 %v4814
        %4878 = vmatpush1.msra.mxu0 %v4813
        %4879 = vmatprep.subr.mxu0 %v4816
        %4880 = vmatpush1.msra.mxu0 %v4815
        %4881 = vmatprep.subr.mxu0 %v4818
        %4882 = vmatpush1.msra.mxu0 %v4817
        %4883 = vmatprep.subr.mxu0 %v4820
        %4884 = vmatpush1.msra.mxu0 %v4819
        %4885 = vmatprep.subr.mxu0 %v4822
        %4886 = vmatpush1.msra.mxu0 %v4821
        %4887 = vmatprep.subr.mxu0 %v4824
        %4888 = vmatpush1.msra.mxu0 %v4823
        %4889 = vmatprep.subr.mxu0 %v4826
        %4890 = vmatpush1.msra.mxu0 %v4825
        %4891 = vmatprep.subr.mxu0 %v4828
        %4892 = vmatpush1.msra.mxu0 %v4827
        %4893 = vmatprep.subr.mxu0 %v4830
        %4894 = vmatpush1.msra.mxu0 %v4829
        %4895 = vmatprep.subr.mxu0 %v4832
        %4896 = vmatpush1.msra.mxu0 %v4831
        %4897 = vmatprep.subr.mxu0 %v4834
        %4898 = vmatpush1.msra.mxu0 %v4833
        %4899 = vmatprep.subr.mxu0 %v4836
        %4900 = vmatpush1.msra.mxu0 %v4835
        %4901 = vmatprep.subr.mxu0 %v4838
        %4902 = vmatpush1.msra.mxu0 %v4837
        %4903 = vmatprep.subr.mxu0 %v4840
        %4904 = vmatpush1.msra.mxu0 %v4839
        %4905 = vmatprep.subr.mxu0 %v4842
        %4906 = vmatpush1.msra.mxu0 %v4841
        %4907 = vmatprep.subr.mxu0 %v4844
        %4908 = vmatpush1.msra.mxu0 %v4843
        %4909 = vmatprep.subr.mxu0 %v4846
        %4910 = vmatpush1.msra.mxu0 %v4845
        %4911 = vmatprep.subr.mxu0 %v4848
        %4912 = vmatpush1.msra.mxu0 %v4847
        %4913 = vmatprep.subr.mxu0 %v4850
        %4914 = vmatpush1.msra.mxu0 %v4849
        %4915 = vmatprep.subr.mxu0 %v4852
        %4916 = vmatpush1.msra.mxu0 %v4851
        %4917 = vmatprep.subr.mxu0 %v4854
        %4918 = vmatpush1.msra.mxu0 %v4853
        %4919 = vmatprep.subr.mxu0 %v4856
        %4920 = vmatpush1.msra.mxu0 %v4855
        %4921 = vmatprep.subr.mxu0 %v4858
        %4922 = vmatpush1.msra.mxu0 %v4857
        %4923 = vmatprep.subr.mxu0 %v4860
        %4924 = vmatpush1.msra.mxu0 %v4859
        %4925 = vmatprep.subr.mxu0 %v4862
        %4926 = vmatpush1.msra.mxu0 %v4861
        %4927 = vmatprep.subr.mxu0 %v4864
        %4928 = vmatpush1.msra.mxu0 %v4863
        %4929 = vmatprep.subr.mxu0 %v4866
        %4930 = vmatpush1.msra.mxu0 %v4865
        %4931 = vmatprep.subr.mxu0 %v4868
        %4932 = vmatpush1.msra.mxu0 %v4867
        %4933 = vmatprep.subr.mxu0 %v4870
        %4934 = vmatpush1.msra.mxu0 %v4869
        %4935 = vmatprep.subr.mxu0 %v4872
        %4936 = vmatpush1.msra.mxu0 %v4871
        %4937 = vmatprep.subr.mxu0 %v4874
        %4938 = vmatpush1.msra.mxu0 %v4873
        %4939 = vmatprep.subr.mxu0 %v4876
        %4940 = vmatpush1.msra.mxu0 %v4875
        %4941 = vmatprep.mubr.f32.mxu0 %v4618
        %4942 = vmatmul.mubr.f32.gmra.mrb[0].mxu0 %v4617
        %v4943 = vpop.f32.mrb[0].mxu0
        %v4944 = vadd.f32 0.0, %v4943
        %v4945 = vpop.f32.mrb[0].mxu0
        %v4946 = vadd.f32 0.0, %v4945
        %4947 = vmatprep.mubr.f32.mxu0 %v4620
        %4948 = vmatmul.mubr.f32.gmra.mrb[0].mxu0 %v4619
        %v4949 = vpop.f32.mrb[0].mxu0
        %v4950 = vadd.f32 0.0, %v4949
        %v4951 = vpop.f32.mrb[0].mxu0
        %v4952 = vadd.f32 0.0, %v4951
        %4953 = vdwg.mxu0
        %v4954 = vadd.f32 %v4612, %v4944
        %v4955 = vadd.f32 %v4613, %v4946
        %v4956 = vadd.f32 %v4614, %v4950
        %v4957 = vadd.f32 %v4615, %v4952
        %s4958 = scalar_lea.vmem %s3, 128
        %v4959 = vld [vmem:[%s4958] sm:$0xff]
        %v4960 = vld [vmem:[%s4958 + $0x8] sm:$0xff]
        %v4961 = vld [vmem:[%s4958 + $0x10] sm:$0xff]
        %v4962 = vld [vmem:[%s4958 + $0x18] sm:$0xff]
        %4963 = vmatprep.subr.mxu0 %v2360
        %4964 = vmatpush1.msra.mxu0 %v2359
        %4965 = vmatprep.subr.mxu0 %v2362
        %4966 = vmatpush1.msra.mxu0 %v2361
        %4967 = vmatprep.subr.mxu0 %v2364
        %4968 = vmatpush1.msra.mxu0 %v2363
        %4969 = vmatprep.subr.mxu0 %v2366
        %4970 = vmatpush1.msra.mxu0 %v2365
        %4971 = vmatprep.subr.mxu0 %v2368
        %4972 = vmatpush1.msra.mxu0 %v2367
        %4973 = vmatprep.subr.mxu0 %v2370
        %4974 = vmatpush1.msra.mxu0 %v2369
        %4975 = vmatprep.subr.mxu0 %v2372
        %4976 = vmatpush1.msra.mxu0 %v2371
        %4977 = vmatprep.subr.mxu0 %v2374
        %4978 = vmatpush1.msra.mxu0 %v2373
        %4979 = vmatprep.subr.mxu0 %v2376
        %4980 = vmatpush1.msra.mxu0 %v2375
        %4981 = vmatprep.subr.mxu0 %v2378
        %4982 = vmatpush1.msra.mxu0 %v2377
        %4983 = vmatprep.subr.mxu0 %v2380
        %4984 = vmatpush1.msra.mxu0 %v2379
        %4985 = vmatprep.subr.mxu0 %v2382
        %4986 = vmatpush1.msra.mxu0 %v2381
        %4987 = vmatprep.subr.mxu0 %v2384
        %4988 = vmatpush1.msra.mxu0 %v2383
        %4989 = vmatprep.subr.mxu0 %v2386
        %4990 = vmatpush1.msra.mxu0 %v2385
        %4991 = vmatprep.subr.mxu0 %v2388
        %4992 = vmatpush1.msra.mxu0 %v2387
        %4993 = vmatprep.subr.mxu0 %v2390
        %4994 = vmatpush1.msra.mxu0 %v2389
        %4995 = vmatprep.subr.mxu0 %v3568
        %4996 = vmatpush1.msra.mxu0 %v3567
        %4997 = vmatprep.subr.mxu0 %v3570
        %4998 = vmatpush1.msra.mxu0 %v3569
        %4999 = vmatprep.subr.mxu0 %v3572
        %5000 = vmatpush1.msra.mxu0 %v3571
        %5001 = vmatprep.subr.mxu0 %v3574
        %5002 = vmatpush1.msra.mxu0 %v3573
        %5003 = vmatprep.subr.mxu0 %v3576
        %5004 = vmatpush1.msra.mxu0 %v3575
        %5005 = vmatprep.subr.mxu0 %v3578
        %5006 = vmatpush1.msra.mxu0 %v3577
        %5007 = vmatprep.subr.mxu0 %v3580
        %5008 = vmatpush1.msra.mxu0 %v3579
        %5009 = vmatprep.subr.mxu0 %v3582
        %5010 = vmatpush1.msra.mxu0 %v3581
        %5011 = vmatprep.subr.mxu0 %v3584
        %5012 = vmatpush1.msra.mxu0 %v3583
        %5013 = vmatprep.subr.mxu0 %v3586
        %5014 = vmatpush1.msra.mxu0 %v3585
        %5015 = vmatprep.subr.mxu0 %v3588
        %5016 = vmatpush1.msra.mxu0 %v3587
        %5017 = vmatprep.subr.mxu0 %v3590
        %5018 = vmatpush1.msra.mxu0 %v3589
        %5019 = vmatprep.subr.mxu0 %v3592
        %5020 = vmatpush1.msra.mxu0 %v3591
        %5021 = vmatprep.subr.mxu0 %v3594
        %5022 = vmatpush1.msra.mxu0 %v3593
        %5023 = vmatprep.subr.mxu0 %v3596
        %5024 = vmatpush1.msra.mxu0 %v3595
        %5025 = vmatprep.subr.mxu0 %v3598
        %5026 = vmatpush1.msra.mxu0 %v3597
        %5027 = vmatprep.mubr.f32.mxu0 %v4960
        %5028 = vmatmul.mubr.f32.gmra.mrb[0].mxu0 %v4959
        %v5029 = vpop.f32.mrb[0].mxu0
        %v5030 = vadd.f32 0.0, %v5029
        %v5031 = vpop.f32.mrb[0].mxu0
        %v5032 = vadd.f32 0.0, %v5031
        %5033 = vmatprep.mubr.f32.mxu0 %v4962
        %5034 = vmatmul.mubr.f32.gmra.mrb[0].mxu0 %v4961
        %v5035 = vpop.f32.mrb[0].mxu0
        %v5036 = vadd.f32 0.0, %v5035
        %v5037 = vpop.f32.mrb[0].mxu0
        %v5038 = vadd.f32 0.0, %v5037
        %5039 = vdwg.mxu0
        %v5040 = vadd.f32 %v4954, %v5030
        %v5041 = vadd.f32 %v4955, %v5032
        %v5042 = vadd.f32 %v4956, %v5036
        %v5043 = vadd.f32 %v4957, %v5038
        %s5044 = scalar_lea.vmem %s3, 160
        %v5045 = vld [vmem:[%s5044] sm:$0xff]
        %v5046 = vld [vmem:[%s5044 + $0x8] sm:$0xff]
        %v5047 = vld [vmem:[%s5044 + $0x10] sm:$0xff]
        %v5048 = vld [vmem:[%s5044 + $0x18] sm:$0xff]
        %5049 = vrot.lane.b32.xlu0 %v2359, 127
        %v5050 = vpop.permute.xlu0 %5049
        %5051 = vrot.lane.b32.xlu0 %v2361, 127
        %v5052 = vpop.permute.xlu0 %5051
        %5053 = vrot.lane.b32.xlu0 %v2363, 127
        %v5054 = vpop.permute.xlu0 %5053
        %5055 = vrot.lane.b32.xlu0 %v2365, 127
        %v5056 = vpop.permute.xlu0 %5055
        %5057 = vrot.lane.b32.xlu0 %v2367, 127
        %v5058 = vpop.permute.xlu0 %5057
        %5059 = vrot.lane.b32.xlu0 %v2369, 127
        %v5060 = vpop.permute.xlu0 %5059
        %5061 = vrot.lane.b32.xlu0 %v2371, 127
        %v5062 = vpop.permute.xlu0 %5061
        %5063 = vrot.lane.b32.xlu0 %v2373, 127
        %v5064 = vpop.permute.xlu0 %5063
        %5065 = vrot.lane.b32.xlu0 %v2375, 127
        %v5066 = vpop.permute.xlu0 %5065
        %5067 = vrot.lane.b32.xlu0 %v2377, 127
        %v5068 = vpop.permute.xlu0 %5067
        %5069 = vrot.lane.b32.xlu0 %v2379, 127
        %v5070 = vpop.permute.xlu0 %5069
        %5071 = vrot.lane.b32.xlu0 %v2381, 127
        %v5072 = vpop.permute.xlu0 %5071
        %5073 = vrot.lane.b32.xlu0 %v2383, 127
        %v5074 = vpop.permute.xlu0 %5073
        %5075 = vrot.lane.b32.xlu0 %v2385, 127
        %v5076 = vpop.permute.xlu0 %5075
        %5077 = vrot.lane.b32.xlu0 %v2387, 127
        %v5078 = vpop.permute.xlu0 %5077
        %5079 = vrot.lane.b32.xlu0 %v2389, 127
        %v5080 = vpop.permute.xlu0 %5079
        %5081 = vrot.lane.b32.xlu0 %v3567, 127
        %v5082 = vpop.permute.xlu0 %5081
        %5083 = vrot.lane.b32.xlu0 %v3569, 127
        %v5084 = vpop.permute.xlu0 %5083
        %5085 = vrot.lane.b32.xlu0 %v3571, 127
        %v5086 = vpop.permute.xlu0 %5085
        %5087 = vrot.lane.b32.xlu0 %v3573, 127
        %v5088 = vpop.permute.xlu0 %5087
        %5089 = vrot.lane.b32.xlu0 %v3575, 127
        %v5090 = vpop.permute.xlu0 %5089
        %5091 = vrot.lane.b32.xlu0 %v3577, 127
        %v5092 = vpop.permute.xlu0 %5091
        %5093 = vrot.lane.b32.xlu0 %v3579, 127
        %v5094 = vpop.permute.xlu0 %5093
        %5095 = vrot.lane.b32.xlu0 %v3581, 127
        %v5096 = vpop.permute.xlu0 %5095
        %5097 = vrot.lane.b32.xlu0 %v3583, 127
        %v5098 = vpop.permute.xlu0 %5097
        %5099 = vrot.lane.b32.xlu0 %v3585, 127
        %v5100 = vpop.permute.xlu0 %5099
        %5101 = vrot.lane.b32.xlu0 %v3587, 127
        %v5102 = vpop.permute.xlu0 %5101
        %5103 = vrot.lane.b32.xlu0 %v3589, 127
        %v5104 = vpop.permute.xlu0 %5103
        %5105 = vrot.lane.b32.xlu0 %v3591, 127
        %v5106 = vpop.permute.xlu0 %5105
        %5107 = vrot.lane.b32.xlu0 %v3593, 127
        %v5108 = vpop.permute.xlu0 %5107
        %5109 = vrot.lane.b32.xlu0 %v3595, 127
        %v5110 = vpop.permute.xlu0 %5109
        %5111 = vrot.lane.b32.xlu0 %v3597, 127
        %v5112 = vpop.permute.xlu0 %5111
        %5113 = vrot.lane.b32.xlu0 %v2360, 127
        %v5114 = vpop.permute.xlu0 %5113
        %5115 = vrot.lane.b32.xlu0 %v2362, 127
        %v5116 = vpop.permute.xlu0 %5115
        %5117 = vrot.lane.b32.xlu0 %v2364, 127
        %v5118 = vpop.permute.xlu0 %5117
        %5119 = vrot.lane.b32.xlu0 %v2366, 127
        %v5120 = vpop.permute.xlu0 %5119
        %5121 = vrot.lane.b32.xlu0 %v2368, 127
        %v5122 = vpop.permute.xlu0 %5121
        %5123 = vrot.lane.b32.xlu0 %v2370, 127
        %v5124 = vpop.permute.xlu0 %5123
        %5125 = vrot.lane.b32.xlu0 %v2372, 127
        %v5126 = vpop.permute.xlu0 %5125
        %5127 = vrot.lane.b32.xlu0 %v2374, 127
        %v5128 = vpop.permute.xlu0 %5127
        %5129 = vrot.lane.b32.xlu0 %v2376, 127
        %v5130 = vpop.permute.xlu0 %5129
        %5131 = vrot.lane.b32.xlu0 %v2378, 127
        %v5132 = vpop.permute.xlu0 %5131
        %5133 = vrot.lane.b32.xlu0 %v2380, 127
        %v5134 = vpop.permute.xlu0 %5133
        %5135 = vrot.lane.b32.xlu0 %v2382, 127
        %v5136 = vpop.permute.xlu0 %5135
        %5137 = vrot.lane.b32.xlu0 %v2384, 127
        %v5138 = vpop.permute.xlu0 %5137
        %5139 = vrot.lane.b32.xlu0 %v2386, 127
        %v5140 = vpop.permute.xlu0 %5139
        %5141 = vrot.lane.b32.xlu0 %v2388, 127
        %v5142 = vpop.permute.xlu0 %5141
        %5143 = vrot.lane.b32.xlu0 %v2390, 127
        %v5144 = vpop.permute.xlu0 %5143
        %5145 = vrot.lane.b32.xlu0 %v3568, 127
        %v5146 = vpop.permute.xlu0 %5145
        %5147 = vrot.lane.b32.xlu0 %v3570, 127
        %v5148 = vpop.permute.xlu0 %5147
        %5149 = vrot.lane.b32.xlu0 %v3572, 127
        %v5150 = vpop.permute.xlu0 %5149
        %5151 = vrot.lane.b32.xlu0 %v3574, 127
        %v5152 = vpop.permute.xlu0 %5151
        %5153 = vrot.lane.b32.xlu0 %v3576, 127
        %v5154 = vpop.permute.xlu0 %5153
        %5155 = vrot.lane.b32.xlu0 %v3578, 127
        %v5156 = vpop.permute.xlu0 %5155
        %5157 = vrot.lane.b32.xlu0 %v3580, 127
        %v5158 = vpop.permute.xlu0 %5157
        %5159 = vrot.lane.b32.xlu0 %v3582, 127
        %v5160 = vpop.permute.xlu0 %5159
        %5161 = vrot.lane.b32.xlu0 %v3584, 127
        %v5162 = vpop.permute.xlu0 %5161
        %5163 = vrot.lane.b32.xlu0 %v3586, 127
        %v5164 = vpop.permute.xlu0 %5163
        %5165 = vrot.lane.b32.xlu0 %v3588, 127
        %v5166 = vpop.permute.xlu0 %5165
        %5167 = vrot.lane.b32.xlu0 %v3590, 127
        %v5168 = vpop.permute.xlu0 %5167
        %5169 = vrot.lane.b32.xlu0 %v3592, 127
        %v5170 = vpop.permute.xlu0 %5169
        %5171 = vrot.lane.b32.xlu0 %v3594, 127
        %v5172 = vpop.permute.xlu0 %5171
        %5173 = vrot.lane.b32.xlu0 %v3596, 127
        %v5174 = vpop.permute.xlu0 %5173
        %5175 = vrot.lane.b32.xlu0 %v3598, 127
        %v5176 = vpop.permute.xlu0 %5175
        %v5177 = vsel %vm388, %v5050, %v5114
        %v5178 = vsel %vm388, %v5052, %v5116
        %v5179 = vsel %vm388, %v5054, %v5118
        %v5180 = vsel %vm388, %v5056, %v5120
        %v5181 = vsel %vm388, %v5058, %v5122
        %v5182 = vsel %vm388, %v5060, %v5124
        %v5183 = vsel %vm388, %v5062, %v5126
        %v5184 = vsel %vm388, %v5064, %v5128
        %v5185 = vsel %vm388, %v5066, %v5130
        %v5186 = vsel %vm388, %v5068, %v5132
        %v5187 = vsel %vm388, %v5070, %v5134
        %v5188 = vsel %vm388, %v5072, %v5136
        %v5189 = vsel %vm388, %v5074, %v5138
        %v5190 = vsel %vm388, %v5076, %v5140
        %v5191 = vsel %vm388, %v5078, %v5142
        %v5192 = vsel %vm388, %v5080, %v5144
        %v5193 = vsel %vm388, %v5082, %v5146
        %v5194 = vsel %vm388, %v5084, %v5148
        %v5195 = vsel %vm388, %v5086, %v5150
        %v5196 = vsel %vm388, %v5088, %v5152
        %v5197 = vsel %vm388, %v5090, %v5154
        %v5198 = vsel %vm388, %v5092, %v5156
        %v5199 = vsel %vm388, %v5094, %v5158
        %v5200 = vsel %vm388, %v5096, %v5160
        %v5201 = vsel %vm388, %v5098, %v5162
        %v5202 = vsel %vm388, %v5100, %v5164
        %v5203 = vsel %vm388, %v5102, %v5166
        %v5204 = vsel %vm388, %v5104, %v5168
        %v5205 = vsel %vm388, %v5106, %v5170
        %v5206 = vsel %vm388, %v5108, %v5172
        %v5207 = vsel %vm388, %v5110, %v5174
        %v5208 = vsel %vm388, %v5112, %v5176
        %v5209 = vsel %vm388, %v5114, %v5050
        %v5210 = vsel %vm388, %v5116, %v5052
        %v5211 = vsel %vm388, %v5118, %v5054
        %v5212 = vsel %vm388, %v5120, %v5056
        %v5213 = vsel %vm388, %v5122, %v5058
        %v5214 = vsel %vm388, %v5124, %v5060
        %v5215 = vsel %vm388, %v5126, %v5062
        %v5216 = vsel %vm388, %v5128, %v5064
        %v5217 = vsel %vm388, %v5130, %v5066
        %v5218 = vsel %vm388, %v5132, %v5068
        %v5219 = vsel %vm388, %v5134, %v5070
        %v5220 = vsel %vm388, %v5136, %v5072
        %v5221 = vsel %vm388, %v5138, %v5074
        %v5222 = vsel %vm388, %v5140, %v5076
        %v5223 = vsel %vm388, %v5142, %v5078
        %v5224 = vsel %vm388, %v5144, %v5080
        %v5225 = vsel %vm388, %v5146, %v5082
        %v5226 = vsel %vm388, %v5148, %v5084
        %v5227 = vsel %vm388, %v5150, %v5086
        %v5228 = vsel %vm388, %v5152, %v5088
        %v5229 = vsel %vm388, %v5154, %v5090
        %v5230 = vsel %vm388, %v5156, %v5092
        %v5231 = vsel %vm388, %v5158, %v5094
        %v5232 = vsel %vm388, %v5160, %v5096
        %v5233 = vsel %vm388, %v5162, %v5098
        %v5234 = vsel %vm388, %v5164, %v5100
        %v5235 = vsel %vm388, %v5166, %v5102
        %v5236 = vsel %vm388, %v5168, %v5104
        %v5237 = vsel %vm388, %v5170, %v5106
        %v5238 = vsel %vm388, %v5172, %v5108
        %v5239 = vsel %vm388, %v5174, %v5110
        %v5240 = vsel %vm388, %v5176, %v5112
        %v5241 = vsel %vm395, %v5177, 0.0
        %v5242 = vsel %vm396, %v5209, 0.0
        %v5243 = vsel %vm395, %v5178, 0.0
        %v5244 = vsel %vm396, %v5210, 0.0
        %v5245 = vsel %vm395, %v5179, 0.0
        %v5246 = vsel %vm396, %v5211, 0.0
        %v5247 = vsel %vm395, %v5180, 0.0
        %v5248 = vsel %vm396, %v5212, 0.0
        %v5249 = vsel %vm395, %v5181, 0.0
        %v5250 = vsel %vm396, %v5213, 0.0
        %v5251 = vsel %vm395, %v5182, 0.0
        %v5252 = vsel %vm396, %v5214, 0.0
        %v5253 = vsel %vm395, %v5183, 0.0
        %v5254 = vsel %vm396, %v5215, 0.0
        %v5255 = vsel %vm395, %v5184, 0.0
        %v5256 = vsel %vm396, %v5216, 0.0
        %v5257 = vsel %vm395, %v5185, 0.0
        %v5258 = vsel %vm396, %v5217, 0.0
        %v5259 = vsel %vm395, %v5186, 0.0
        %v5260 = vsel %vm396, %v5218, 0.0
        %v5261 = vsel %vm395, %v5187, 0.0
        %v5262 = vsel %vm396, %v5219, 0.0
        %v5263 = vsel %vm395, %v5188, 0.0
        %v5264 = vsel %vm396, %v5220, 0.0
        %v5265 = vsel %vm395, %v5189, 0.0
        %v5266 = vsel %vm396, %v5221, 0.0
        %v5267 = vsel %vm395, %v5190, 0.0
        %v5268 = vsel %vm396, %v5222, 0.0
        %v5269 = vsel %vm395, %v5191, 0.0
        %v5270 = vsel %vm396, %v5223, 0.0
        %v5271 = vsel %vm395, %v5192, 0.0
        %v5272 = vsel %vm396, %v5224, 0.0
        %v5273 = vsel %vm395, %v5193, 0.0
        %v5274 = vsel %vm396, %v5225, 0.0
        %v5275 = vsel %vm395, %v5194, 0.0
        %v5276 = vsel %vm396, %v5226, 0.0
        %v5277 = vsel %vm395, %v5195, 0.0
        %v5278 = vsel %vm396, %v5227, 0.0
        %v5279 = vsel %vm395, %v5196, 0.0
        %v5280 = vsel %vm396, %v5228, 0.0
        %v5281 = vsel %vm395, %v5197, 0.0
        %v5282 = vsel %vm396, %v5229, 0.0
        %v5283 = vsel %vm395, %v5198, 0.0
        %v5284 = vsel %vm396, %v5230, 0.0
        %v5285 = vsel %vm395, %v5199, 0.0
        %v5286 = vsel %vm396, %v5231, 0.0
        %v5287 = vsel %vm395, %v5200, 0.0
        %v5288 = vsel %vm396, %v5232, 0.0
        %v5289 = vsel %vm395, %v5201, 0.0
        %v5290 = vsel %vm396, %v5233, 0.0
        %v5291 = vsel %vm395, %v5202, 0.0
        %v5292 = vsel %vm396, %v5234, 0.0
        %v5293 = vsel %vm395, %v5203, 0.0
        %v5294 = vsel %vm396, %v5235, 0.0
        %v5295 = vsel %vm395, %v5204, 0.0
        %v5296 = vsel %vm396, %v5236, 0.0
        %v5297 = vsel %vm395, %v5205, 0.0
        %v5298 = vsel %vm396, %v5237, 0.0
        %v5299 = vsel %vm395, %v5206, 0.0
        %v5300 = vsel %vm396, %v5238, 0.0
        %v5301 = vsel %vm395, %v5207, 0.0
        %v5302 = vsel %vm396, %v5239, 0.0
        %v5303 = vsel %vm395, %v5208, 0.0
        %v5304 = vsel %vm396, %v5240, 0.0
        %5305 = vmatprep.subr.mxu0 %v5242
        %5306 = vmatpush1.msra.mxu0 %v5241
        %5307 = vmatprep.subr.mxu0 %v5244
        %5308 = vmatpush1.msra.mxu0 %v5243
        %5309 = vmatprep.subr.mxu0 %v5246
        %5310 = vmatpush1.msra.mxu0 %v5245
        %5311 = vmatprep.subr.mxu0 %v5248
        %5312 = vmatpush1.msra.mxu0 %v5247
        %5313 = vmatprep.subr.mxu0 %v5250
        %5314 = vmatpush1.msra.mxu0 %v5249
        %5315 = vmatprep.subr.mxu0 %v5252
        %5316 = vmatpush1.msra.mxu0 %v5251
        %5317 = vmatprep.subr.mxu0 %v5254
        %5318 = vmatpush1.msra.mxu0 %v5253
        %5319 = vmatprep.subr.mxu0 %v5256
        %5320 = vmatpush1.msra.mxu0 %v5255
        %5321 = vmatprep.subr.mxu0 %v5258
        %5322 = vmatpush1.msra.mxu0 %v5257
        %5323 = vmatprep.subr.mxu0 %v5260
        %5324 = vmatpush1.msra.mxu0 %v5259
        %5325 = vmatprep.subr.mxu0 %v5262
        %5326 = vmatpush1.msra.mxu0 %v5261
        %5327 = vmatprep.subr.mxu0 %v5264
        %5328 = vmatpush1.msra.mxu0 %v5263
        %5329 = vmatprep.subr.mxu0 %v5266
        %5330 = vmatpush1.msra.mxu0 %v5265
        %5331 = vmatprep.subr.mxu0 %v5268
        %5332 = vmatpush1.msra.mxu0 %v5267
        %5333 = vmatprep.subr.mxu0 %v5270
        %5334 = vmatpush1.msra.mxu0 %v5269
        %5335 = vmatprep.subr.mxu0 %v5272
        %5336 = vmatpush1.msra.mxu0 %v5271
        %5337 = vmatprep.subr.mxu0 %v5274
        %5338 = vmatpush1.msra.mxu0 %v5273
        %5339 = vmatprep.subr.mxu0 %v5276
        %5340 = vmatpush1.msra.mxu0 %v5275
        %5341 = vmatprep.subr.mxu0 %v5278
        %5342 = vmatpush1.msra.mxu0 %v5277
        %5343 = vmatprep.subr.mxu0 %v5280
        %5344 = vmatpush1.msra.mxu0 %v5279
        %5345 = vmatprep.subr.mxu0 %v5282
        %5346 = vmatpush1.msra.mxu0 %v5281
        %5347 = vmatprep.subr.mxu0 %v5284
        %5348 = vmatpush1.msra.mxu0 %v5283
        %5349 = vmatprep.subr.mxu0 %v5286
        %5350 = vmatpush1.msra.mxu0 %v5285
        %5351 = vmatprep.subr.mxu0 %v5288
        %5352 = vmatpush1.msra.mxu0 %v5287
        %5353 = vmatprep.subr.mxu0 %v5290
        %5354 = vmatpush1.msra.mxu0 %v5289
        %5355 = vmatprep.subr.mxu0 %v5292
        %5356 = vmatpush1.msra.mxu0 %v5291
        %5357 = vmatprep.subr.mxu0 %v5294
        %5358 = vmatpush1.msra.mxu0 %v5293
        %5359 = vmatprep.subr.mxu0 %v5296
        %5360 = vmatpush1.msra.mxu0 %v5295
        %5361 = vmatprep.subr.mxu0 %v5298
        %5362 = vmatpush1.msra.mxu0 %v5297
        %5363 = vmatprep.subr.mxu0 %v5300
        %5364 = vmatpush1.msra.mxu0 %v5299
        %5365 = vmatprep.subr.mxu0 %v5302
        %5366 = vmatpush1.msra.mxu0 %v5301
        %5367 = vmatprep.subr.mxu0 %v5304
        %5368 = vmatpush1.msra.mxu0 %v5303
        %5369 = vmatprep.mubr.f32.mxu0 %v5046
        %5370 = vmatmul.mubr.f32.gmra.mrb[0].mxu0 %v5045
        %v5371 = vpop.f32.mrb[0].mxu0
        %v5372 = vadd.f32 0.0, %v5371
        %v5373 = vpop.f32.mrb[0].mxu0
        %v5374 = vadd.f32 0.0, %v5373
        %5375 = vmatprep.mubr.f32.mxu0 %v5048
        %5376 = vmatmul.mubr.f32.gmra.mrb[0].mxu0 %v5047
        %v5377 = vpop.f32.mrb[0].mxu0
        %v5378 = vadd.f32 0.0, %v5377
        %v5379 = vpop.f32.mrb[0].mxu0
        %v5380 = vadd.f32 0.0, %v5379
        %5381 = vdwg.mxu0
        %v5382 = vadd.f32 %v5040, %v5372
        %v5383 = vadd.f32 %v5041, %v5374
        %v5384 = vadd.f32 %v5042, %v5378
        %v5385 = vadd.f32 %v5043, %v5380
        %s5386 = scalar_lea.vmem %s3, 192
        %v5387 = vld [vmem:[%s5386] sm:$0xff]
        %v5388 = vld [vmem:[%s5386 + $0x8] sm:$0xff]
        %v5389 = vld [vmem:[%s5386 + $0x10] sm:$0xff]
        %v5390 = vld [vmem:[%s5386 + $0x18] sm:$0xff]
        %5391 = vrot.lane.b32.xlu0 %v2359, 113
        %v5392 = vpop.permute.xlu0 %5391
        %5393 = vrot.lane.b32.xlu0 %v2361, 113
        %v5394 = vpop.permute.xlu0 %5393
        %5395 = vrot.lane.b32.xlu0 %v2363, 113
        %v5396 = vpop.permute.xlu0 %5395
        %5397 = vrot.lane.b32.xlu0 %v2365, 113
        %v5398 = vpop.permute.xlu0 %5397
        %5399 = vrot.lane.b32.xlu0 %v2367, 113
        %v5400 = vpop.permute.xlu0 %5399
        %5401 = vrot.lane.b32.xlu0 %v2369, 113
        %v5402 = vpop.permute.xlu0 %5401
        %5403 = vrot.lane.b32.xlu0 %v2371, 113
        %v5404 = vpop.permute.xlu0 %5403
        %5405 = vrot.lane.b32.xlu0 %v2373, 113
        %v5406 = vpop.permute.xlu0 %5405
        %5407 = vrot.lane.b32.xlu0 %v2375, 113
        %v5408 = vpop.permute.xlu0 %5407
        %5409 = vrot.lane.b32.xlu0 %v2377, 113
        %v5410 = vpop.permute.xlu0 %5409
        %5411 = vrot.lane.b32.xlu0 %v2379, 113
        %v5412 = vpop.permute.xlu0 %5411
        %5413 = vrot.lane.b32.xlu0 %v2381, 113
        %v5414 = vpop.permute.xlu0 %5413
        %5415 = vrot.lane.b32.xlu0 %v2383, 113
        %v5416 = vpop.permute.xlu0 %5415
        %5417 = vrot.lane.b32.xlu0 %v2385, 113
        %v5418 = vpop.permute.xlu0 %5417
        %5419 = vrot.lane.b32.xlu0 %v2387, 113
        %v5420 = vpop.permute.xlu0 %5419
        %5421 = vrot.lane.b32.xlu0 %v2389, 113
        %v5422 = vpop.permute.xlu0 %5421
        %5423 = vrot.lane.b32.xlu0 %v3567, 113
        %v5424 = vpop.permute.xlu0 %5423
        %5425 = vrot.lane.b32.xlu0 %v3569, 113
        %v5426 = vpop.permute.xlu0 %5425
        %5427 = vrot.lane.b32.xlu0 %v3571, 113
        %v5428 = vpop.permute.xlu0 %5427
        %5429 = vrot.lane.b32.xlu0 %v3573, 113
        %v5430 = vpop.permute.xlu0 %5429
        %5431 = vrot.lane.b32.xlu0 %v3575, 113
        %v5432 = vpop.permute.xlu0 %5431
        %5433 = vrot.lane.b32.xlu0 %v3577, 113
        %v5434 = vpop.permute.xlu0 %5433
        %5435 = vrot.lane.b32.xlu0 %v3579, 113
        %v5436 = vpop.permute.xlu0 %5435
        %5437 = vrot.lane.b32.xlu0 %v3581, 113
        %v5438 = vpop.permute.xlu0 %5437
        %5439 = vrot.lane.b32.xlu0 %v3583, 113
        %v5440 = vpop.permute.xlu0 %5439
        %5441 = vrot.lane.b32.xlu0 %v3585, 113
        %v5442 = vpop.permute.xlu0 %5441
        %5443 = vrot.lane.b32.xlu0 %v3587, 113
        %v5444 = vpop.permute.xlu0 %5443
        %5445 = vrot.lane.b32.xlu0 %v3589, 113
        %v5446 = vpop.permute.xlu0 %5445
        %5447 = vrot.lane.b32.xlu0 %v3591, 113
        %v5448 = vpop.permute.xlu0 %5447
        %5449 = vrot.lane.b32.xlu0 %v3593, 113
        %v5450 = vpop.permute.xlu0 %5449
        %5451 = vrot.lane.b32.xlu0 %v3595, 113
        %v5452 = vpop.permute.xlu0 %5451
        %5453 = vrot.lane.b32.xlu0 %v3597, 113
        %v5454 = vpop.permute.xlu0 %5453
        %5455 = vrot.lane.b32.xlu0 %v2360, 113
        %v5456 = vpop.permute.xlu0 %5455
        %5457 = vrot.lane.b32.xlu0 %v2362, 113
        %v5458 = vpop.permute.xlu0 %5457
        %5459 = vrot.lane.b32.xlu0 %v2364, 113
        %v5460 = vpop.permute.xlu0 %5459
        %5461 = vrot.lane.b32.xlu0 %v2366, 113
        %v5462 = vpop.permute.xlu0 %5461
        %5463 = vrot.lane.b32.xlu0 %v2368, 113
        %v5464 = vpop.permute.xlu0 %5463
        %5465 = vrot.lane.b32.xlu0 %v2370, 113
        %v5466 = vpop.permute.xlu0 %5465
        %5467 = vrot.lane.b32.xlu0 %v2372, 113
        %v5468 = vpop.permute.xlu0 %5467
        %5469 = vrot.lane.b32.xlu0 %v2374, 113
        %v5470 = vpop.permute.xlu0 %5469
        %5471 = vrot.lane.b32.xlu0 %v2376, 113
        %v5472 = vpop.permute.xlu0 %5471
        %5473 = vrot.lane.b32.xlu0 %v2378, 113
        %v5474 = vpop.permute.xlu0 %5473
        %5475 = vrot.lane.b32.xlu0 %v2380, 113
        %v5476 = vpop.permute.xlu0 %5475
        %5477 = vrot.lane.b32.xlu0 %v2382, 113
        %v5478 = vpop.permute.xlu0 %5477
        %5479 = vrot.lane.b32.xlu0 %v2384, 113
        %v5480 = vpop.permute.xlu0 %5479
        %5481 = vrot.lane.b32.xlu0 %v2386, 113
        %v5482 = vpop.permute.xlu0 %5481
        %5483 = vrot.lane.b32.xlu0 %v2388, 113
        %v5484 = vpop.permute.xlu0 %5483
        %5485 = vrot.lane.b32.xlu0 %v2390, 113
        %v5486 = vpop.permute.xlu0 %5485
        %5487 = vrot.lane.b32.xlu0 %v3568, 113
        %v5488 = vpop.permute.xlu0 %5487
        %5489 = vrot.lane.b32.xlu0 %v3570, 113
        %v5490 = vpop.permute.xlu0 %5489
        %5491 = vrot.lane.b32.xlu0 %v3572, 113
        %v5492 = vpop.permute.xlu0 %5491
        %5493 = vrot.lane.b32.xlu0 %v3574, 113
        %v5494 = vpop.permute.xlu0 %5493
        %5495 = vrot.lane.b32.xlu0 %v3576, 113
        %v5496 = vpop.permute.xlu0 %5495
        %5497 = vrot.lane.b32.xlu0 %v3578, 113
        %v5498 = vpop.permute.xlu0 %5497
        %5499 = vrot.lane.b32.xlu0 %v3580, 113
        %v5500 = vpop.permute.xlu0 %5499
        %5501 = vrot.lane.b32.xlu0 %v3582, 113
        %v5502 = vpop.permute.xlu0 %5501
        %5503 = vrot.lane.b32.xlu0 %v3584, 113
        %v5504 = vpop.permute.xlu0 %5503
        %5505 = vrot.lane.b32.xlu0 %v3586, 113
        %v5506 = vpop.permute.xlu0 %5505
        %5507 = vrot.lane.b32.xlu0 %v3588, 113
        %v5508 = vpop.permute.xlu0 %5507
        %5509 = vrot.lane.b32.xlu0 %v3590, 113
        %v5510 = vpop.permute.xlu0 %5509
        %5511 = vrot.lane.b32.xlu0 %v3592, 113
        %v5512 = vpop.permute.xlu0 %5511
        %5513 = vrot.lane.b32.xlu0 %v3594, 113
        %v5514 = vpop.permute.xlu0 %5513
        %5515 = vrot.lane.b32.xlu0 %v3596, 113
        %v5516 = vpop.permute.xlu0 %5515
        %5517 = vrot.lane.b32.xlu0 %v3598, 113
        %v5518 = vpop.permute.xlu0 %5517
        %v5519 = vsel %vm409, %v5392, %v5456
        %v5520 = vsel %vm409, %v5394, %v5458
        %v5521 = vsel %vm409, %v5396, %v5460
        %v5522 = vsel %vm409, %v5398, %v5462
        %v5523 = vsel %vm409, %v5400, %v5464
        %v5524 = vsel %vm409, %v5402, %v5466
        %v5525 = vsel %vm409, %v5404, %v5468
        %v5526 = vsel %vm409, %v5406, %v5470
        %v5527 = vsel %vm409, %v5408, %v5472
        %v5528 = vsel %vm409, %v5410, %v5474
        %v5529 = vsel %vm409, %v5412, %v5476
        %v5530 = vsel %vm409, %v5414, %v5478
        %v5531 = vsel %vm409, %v5416, %v5480
        %v5532 = vsel %vm409, %v5418, %v5482
        %v5533 = vsel %vm409, %v5420, %v5484
        %v5534 = vsel %vm409, %v5422, %v5486
        %v5535 = vsel %vm409, %v5424, %v5488
        %v5536 = vsel %vm409, %v5426, %v5490
        %v5537 = vsel %vm409, %v5428, %v5492
        %v5538 = vsel %vm409, %v5430, %v5494
        %v5539 = vsel %vm409, %v5432, %v5496
        %v5540 = vsel %vm409, %v5434, %v5498
        %v5541 = vsel %vm409, %v5436, %v5500
        %v5542 = vsel %vm409, %v5438, %v5502
        %v5543 = vsel %vm409, %v5440, %v5504
        %v5544 = vsel %vm409, %v5442, %v5506
        %v5545 = vsel %vm409, %v5444, %v5508
        %v5546 = vsel %vm409, %v5446, %v5510
        %v5547 = vsel %vm409, %v5448, %v5512
        %v5548 = vsel %vm409, %v5450, %v5514
        %v5549 = vsel %vm409, %v5452, %v5516
        %v5550 = vsel %vm409, %v5454, %v5518
        %v5551 = vsel %vm409, %v5456, %v5392
        %v5552 = vsel %vm409, %v5458, %v5394
        %v5553 = vsel %vm409, %v5460, %v5396
        %v5554 = vsel %vm409, %v5462, %v5398
        %v5555 = vsel %vm409, %v5464, %v5400
        %v5556 = vsel %vm409, %v5466, %v5402
        %v5557 = vsel %vm409, %v5468, %v5404
        %v5558 = vsel %vm409, %v5470, %v5406
        %v5559 = vsel %vm409, %v5472, %v5408
        %v5560 = vsel %vm409, %v5474, %v5410
        %v5561 = vsel %vm409, %v5476, %v5412
        %v5562 = vsel %vm409, %v5478, %v5414
        %v5563 = vsel %vm409, %v5480, %v5416
        %v5564 = vsel %vm409, %v5482, %v5418
        %v5565 = vsel %vm409, %v5484, %v5420
        %v5566 = vsel %vm409, %v5486, %v5422
        %v5567 = vsel %vm409, %v5488, %v5424
        %v5568 = vsel %vm409, %v5490, %v5426
        %v5569 = vsel %vm409, %v5492, %v5428
        %v5570 = vsel %vm409, %v5494, %v5430
        %v5571 = vsel %vm409, %v5496, %v5432
        %v5572 = vsel %vm409, %v5498, %v5434
        %v5573 = vsel %vm409, %v5500, %v5436
        %v5574 = vsel %vm409, %v5502, %v5438
        %v5575 = vsel %vm409, %v5504, %v5440
        %v5576 = vsel %vm409, %v5506, %v5442
        %v5577 = vsel %vm409, %v5508, %v5444
        %v5578 = vsel %vm409, %v5510, %v5446
        %v5579 = vsel %vm409, %v5512, %v5448
        %v5580 = vsel %vm409, %v5514, %v5450
        %v5581 = vsel %vm409, %v5516, %v5452
        %v5582 = vsel %vm409, %v5518, %v5454
        %v5583 = vsel %vm420, %v5519, 0.0
        %v5584 = vsel %vm421, %v5551, 0.0
        %v5585 = vsel %vm420, %v5520, 0.0
        %v5586 = vsel %vm421, %v5552, 0.0
        %v5587 = vsel %vm420, %v5521, 0.0
        %v5588 = vsel %vm421, %v5553, 0.0
        %v5589 = vsel %vm420, %v5522, 0.0
        %v5590 = vsel %vm421, %v5554, 0.0
        %v5591 = vsel %vm420, %v5523, 0.0
        %v5592 = vsel %vm421, %v5555, 0.0
        %v5593 = vsel %vm420, %v5524, 0.0
        %v5594 = vsel %vm421, %v5556, 0.0
        %v5595 = vsel %vm420, %v5525, 0.0
        %v5596 = vsel %vm421, %v5557, 0.0
        %v5597 = vsel %vm420, %v5526, 0.0
        %v5598 = vsel %vm421, %v5558, 0.0
        %v5599 = vsel %vm420, %v5527, 0.0
        %v5600 = vsel %vm421, %v5559, 0.0
        %v5601 = vsel %vm420, %v5528, 0.0
        %v5602 = vsel %vm421, %v5560, 0.0
        %v5603 = vsel %vm420, %v5529, 0.0
        %v5604 = vsel %vm421, %v5561, 0.0
        %v5605 = vsel %vm420, %v5530, 0.0
        %v5606 = vsel %vm421, %v5562, 0.0
        %v5607 = vsel %vm420, %v5531, 0.0
        %v5608 = vsel %vm421, %v5563, 0.0
        %v5609 = vsel %vm420, %v5532, 0.0
        %v5610 = vsel %vm421, %v5564, 0.0
        %v5611 = vsel %vm420, %v5533, 0.0
        %v5612 = vsel %vm421, %v5565, 0.0
        %v5613 = vsel %vm420, %v5534, 0.0
        %v5614 = vsel %vm421, %v5566, 0.0
        %v5615 = vsel %vm420, %v5535, 0.0
        %v5616 = vsel %vm421, %v5567, 0.0
        %v5617 = vsel %vm420, %v5536, 0.0
        %v5618 = vsel %vm421, %v5568, 0.0
        %v5619 = vsel %vm420, %v5537, 0.0
        %v5620 = vsel %vm421, %v5569, 0.0
        %v5621 = vsel %vm420, %v5538, 0.0
        %v5622 = vsel %vm421, %v5570, 0.0
        %v5623 = vsel %vm420, %v5539, 0.0
        %v5624 = vsel %vm421, %v5571, 0.0
        %v5625 = vsel %vm420, %v5540, 0.0
        %v5626 = vsel %vm421, %v5572, 0.0
        %v5627 = vsel %vm420, %v5541, 0.0
        %v5628 = vsel %vm421, %v5573, 0.0
        %v5629 = vsel %vm420, %v5542, 0.0
        %v5630 = vsel %vm421, %v5574, 0.0
        %v5631 = vsel %vm420, %v5543, 0.0
        %v5632 = vsel %vm421, %v5575, 0.0
        %v5633 = vsel %vm420, %v5544, 0.0
        %v5634 = vsel %vm421, %v5576, 0.0
        %v5635 = vsel %vm420, %v5545, 0.0
        %v5636 = vsel %vm421, %v5577, 0.0
        %v5637 = vsel %vm420, %v5546, 0.0
        %v5638 = vsel %vm421, %v5578, 0.0
        %v5639 = vsel %vm420, %v5547, 0.0
        %v5640 = vsel %vm421, %v5579, 0.0
        %v5641 = vsel %vm420, %v5548, 0.0
        %v5642 = vsel %vm421, %v5580, 0.0
        %v5643 = vsel %vm420, %v5549, 0.0
        %v5644 = vsel %vm421, %v5581, 0.0
        %v5645 = vsel %vm420, %v5550, 0.0
        %v5646 = vsel %vm421, %v5582, 0.0
        %5647 = vmatprep.subr.mxu0 %v5584
        %5648 = vmatpush1.msra.mxu0 %v5583
        %5649 = vmatprep.subr.mxu0 %v5586
        %5650 = vmatpush1.msra.mxu0 %v5585
        %5651 = vmatprep.subr.mxu0 %v5588
        %5652 = vmatpush1.msra.mxu0 %v5587
        %5653 = vmatprep.subr.mxu0 %v5590
        %5654 = vmatpush1.msra.mxu0 %v5589
        %5655 = vmatprep.subr.mxu0 %v5592
        %5656 = vmatpush1.msra.mxu0 %v5591
        %5657 = vmatprep.subr.mxu0 %v5594
        %5658 = vmatpush1.msra.mxu0 %v5593
        %5659 = vmatprep.subr.mxu0 %v5596
        %5660 = vmatpush1.msra.mxu0 %v5595
        %5661 = vmatprep.subr.mxu0 %v5598
        %5662 = vmatpush1.msra.mxu0 %v5597
        %5663 = vmatprep.subr.mxu0 %v5600
        %5664 = vmatpush1.msra.mxu0 %v5599
        %5665 = vmatprep.subr.mxu0 %v5602
        %5666 = vmatpush1.msra.mxu0 %v5601
        %5667 = vmatprep.subr.mxu0 %v5604
        %5668 = vmatpush1.msra.mxu0 %v5603
        %5669 = vmatprep.subr.mxu0 %v5606
        %5670 = vmatpush1.msra.mxu0 %v5605
        %5671 = vmatprep.subr.mxu0 %v5608
        %5672 = vmatpush1.msra.mxu0 %v5607
        %5673 = vmatprep.subr.mxu0 %v5610
        %5674 = vmatpush1.msra.mxu0 %v5609
        %5675 = vmatprep.subr.mxu0 %v5612
        %5676 = vmatpush1.msra.mxu0 %v5611
        %5677 = vmatprep.subr.mxu0 %v5614
        %5678 = vmatpush1.msra.mxu0 %v5613
        %5679 = vmatprep.subr.mxu0 %v5616
        %5680 = vmatpush1.msra.mxu0 %v5615
        %5681 = vmatprep.subr.mxu0 %v5618
        %5682 = vmatpush1.msra.mxu0 %v5617
        %5683 = vmatprep.subr.mxu0 %v5620
        %5684 = vmatpush1.msra.mxu0 %v5619
        %5685 = vmatprep.subr.mxu0 %v5622
        %5686 = vmatpush1.msra.mxu0 %v5621
        %5687 = vmatprep.subr.mxu0 %v5624
        %5688 = vmatpush1.msra.mxu0 %v5623
        %5689 = vmatprep.subr.mxu0 %v5626
        %5690 = vmatpush1.msra.mxu0 %v5625
        %5691 = vmatprep.subr.mxu0 %v5628
        %5692 = vmatpush1.msra.mxu0 %v5627
        %5693 = vmatprep.subr.mxu0 %v5630
        %5694 = vmatpush1.msra.mxu0 %v5629
        %5695 = vmatprep.subr.mxu0 %v5632
        %5696 = vmatpush1.msra.mxu0 %v5631
        %5697 = vmatprep.subr.mxu0 %v5634
        %5698 = vmatpush1.msra.mxu0 %v5633
        %5699 = vmatprep.subr.mxu0 %v5636
        %5700 = vmatpush1.msra.mxu0 %v5635
        %5701 = vmatprep.subr.mxu0 %v5638
        %5702 = vmatpush1.msra.mxu0 %v5637
        %5703 = vmatprep.subr.mxu0 %v5640
        %5704 = vmatpush1.msra.mxu0 %v5639
        %5705 = vmatprep.subr.mxu0 %v5642
        %5706 = vmatpush1.msra.mxu0 %v5641
        %5707 = vmatprep.subr.mxu0 %v5644
        %5708 = vmatpush1.msra.mxu0 %v5643
        %5709 = vmatprep.subr.mxu0 %v5646
        %5710 = vmatpush1.msra.mxu0 %v5645
        %5711 = vmatprep.mubr.f32.mxu0 %v5388
        %5712 = vmatmul.mubr.f32.gmra.mrb[0].mxu0 %v5387
        %v5713 = vpop.f32.mrb[0].mxu0
        %v5714 = vadd.f32 0.0, %v5713
        %v5715 = vpop.f32.mrb[0].mxu0
        %v5716 = vadd.f32 0.0, %v5715
        %5717 = vmatprep.mubr.f32.mxu0 %v5390
        %5718 = vmatmul.mubr.f32.gmra.mrb[0].mxu0 %v5389
        %v5719 = vpop.f32.mrb[0].mxu0
        %v5720 = vadd.f32 0.0, %v5719
        %v5721 = vpop.f32.mrb[0].mxu0
        %v5722 = vadd.f32 0.0, %v5721
        %5723 = vdwg.mxu0
        %v5724 = vadd.f32 %v5382, %v5714
        %v5725 = vadd.f32 %v5383, %v5716
        %v5726 = vadd.f32 %v5384, %v5720
        %v5727 = vadd.f32 %v5385, %v5722
        %s5728 = scalar_lea.vmem %s3, 224
        %v5729 = vld [vmem:[%s5728] sm:$0xff]
        %v5730 = vld [vmem:[%s5728 + $0x8] sm:$0xff]
        %v5731 = vld [vmem:[%s5728 + $0x10] sm:$0xff]
        %v5732 = vld [vmem:[%s5728 + $0x18] sm:$0xff]
        %5733 = vrot.lane.b32.xlu0 %v2359, 112
        %v5734 = vpop.permute.xlu0 %5733
        %5735 = vrot.lane.b32.xlu0 %v2361, 112
        %v5736 = vpop.permute.xlu0 %5735
        %5737 = vrot.lane.b32.xlu0 %v2363, 112
        %v5738 = vpop.permute.xlu0 %5737
        %5739 = vrot.lane.b32.xlu0 %v2365, 112
        %v5740 = vpop.permute.xlu0 %5739
        %5741 = vrot.lane.b32.xlu0 %v2367, 112
        %v5742 = vpop.permute.xlu0 %5741
        %5743 = vrot.lane.b32.xlu0 %v2369, 112
        %v5744 = vpop.permute.xlu0 %5743
        %5745 = vrot.lane.b32.xlu0 %v2371, 112
        %v5746 = vpop.permute.xlu0 %5745
        %5747 = vrot.lane.b32.xlu0 %v2373, 112
        %v5748 = vpop.permute.xlu0 %5747
        %5749 = vrot.lane.b32.xlu0 %v2375, 112
        %v5750 = vpop.permute.xlu0 %5749
        %5751 = vrot.lane.b32.xlu0 %v2377, 112
        %v5752 = vpop.permute.xlu0 %5751
        %5753 = vrot.lane.b32.xlu0 %v2379, 112
        %v5754 = vpop.permute.xlu0 %5753
        %5755 = vrot.lane.b32.xlu0 %v2381, 112
        %v5756 = vpop.permute.xlu0 %5755
        %5757 = vrot.lane.b32.xlu0 %v2383, 112
        %v5758 = vpop.permute.xlu0 %5757
        %5759 = vrot.lane.b32.xlu0 %v2385, 112
        %v5760 = vpop.permute.xlu0 %5759
        %5761 = vrot.lane.b32.xlu0 %v2387, 112
        %v5762 = vpop.permute.xlu0 %5761
        %5763 = vrot.lane.b32.xlu0 %v2389, 112
        %v5764 = vpop.permute.xlu0 %5763
        %5765 = vrot.lane.b32.xlu0 %v3567, 112
        %v5766 = vpop.permute.xlu0 %5765
        %5767 = vrot.lane.b32.xlu0 %v3569, 112
        %v5768 = vpop.permute.xlu0 %5767
        %5769 = vrot.lane.b32.xlu0 %v3571, 112
        %v5770 = vpop.permute.xlu0 %5769
        %5771 = vrot.lane.b32.xlu0 %v3573, 112
        %v5772 = vpop.permute.xlu0 %5771
        %5773 = vrot.lane.b32.xlu0 %v3575, 112
        %v5774 = vpop.permute.xlu0 %5773
        %5775 = vrot.lane.b32.xlu0 %v3577, 112
        %v5776 = vpop.permute.xlu0 %5775
        %5777 = vrot.lane.b32.xlu0 %v3579, 112
        %v5778 = vpop.permute.xlu0 %5777
        %5779 = vrot.lane.b32.xlu0 %v3581, 112
        %v5780 = vpop.permute.xlu0 %5779
        %5781 = vrot.lane.b32.xlu0 %v3583, 112
        %v5782 = vpop.permute.xlu0 %5781
        %5783 = vrot.lane.b32.xlu0 %v3585, 112
        %v5784 = vpop.permute.xlu0 %5783
        %5785 = vrot.lane.b32.xlu0 %v3587, 112
        %v5786 = vpop.permute.xlu0 %5785
        %5787 = vrot.lane.b32.xlu0 %v3589, 112
        %v5788 = vpop.permute.xlu0 %5787
        %5789 = vrot.lane.b32.xlu0 %v3591, 112
        %v5790 = vpop.permute.xlu0 %5789
        %5791 = vrot.lane.b32.xlu0 %v3593, 112
        %v5792 = vpop.permute.xlu0 %5791
        %5793 = vrot.lane.b32.xlu0 %v3595, 112
        %v5794 = vpop.permute.xlu0 %5793
        %5795 = vrot.lane.b32.xlu0 %v3597, 112
        %v5796 = vpop.permute.xlu0 %5795
        %5797 = vrot.lane.b32.xlu0 %v2360, 112
        %v5798 = vpop.permute.xlu0 %5797
        %5799 = vrot.lane.b32.xlu0 %v2362, 112
        %v5800 = vpop.permute.xlu0 %5799
        %5801 = vrot.lane.b32.xlu0 %v2364, 112
        %v5802 = vpop.permute.xlu0 %5801
        %5803 = vrot.lane.b32.xlu0 %v2366, 112
        %v5804 = vpop.permute.xlu0 %5803
        %5805 = vrot.lane.b32.xlu0 %v2368, 112
        %v5806 = vpop.permute.xlu0 %5805
        %5807 = vrot.lane.b32.xlu0 %v2370, 112
        %v5808 = vpop.permute.xlu0 %5807
        %5809 = vrot.lane.b32.xlu0 %v2372, 112
        %v5810 = vpop.permute.xlu0 %5809
        %5811 = vrot.lane.b32.xlu0 %v2374, 112
        %v5812 = vpop.permute.xlu0 %5811
        %5813 = vrot.lane.b32.xlu0 %v2376, 112
        %v5814 = vpop.permute.xlu0 %5813
        %5815 = vrot.lane.b32.xlu0 %v2378, 112
        %v5816 = vpop.permute.xlu0 %5815
        %5817 = vrot.lane.b32.xlu0 %v2380, 112
        %v5818 = vpop.permute.xlu0 %5817
        %5819 = vrot.lane.b32.xlu0 %v2382, 112
        %v5820 = vpop.permute.xlu0 %5819
        %5821 = vrot.lane.b32.xlu0 %v2384, 112
        %v5822 = vpop.permute.xlu0 %5821
        %5823 = vrot.lane.b32.xlu0 %v2386, 112
        %v5824 = vpop.permute.xlu0 %5823
        %5825 = vrot.lane.b32.xlu0 %v2388, 112
        %v5826 = vpop.permute.xlu0 %5825
        %5827 = vrot.lane.b32.xlu0 %v2390, 112
        %v5828 = vpop.permute.xlu0 %5827
        %5829 = vrot.lane.b32.xlu0 %v3568, 112
        %v5830 = vpop.permute.xlu0 %5829
        %5831 = vrot.lane.b32.xlu0 %v3570, 112
        %v5832 = vpop.permute.xlu0 %5831
        %5833 = vrot.lane.b32.xlu0 %v3572, 112
        %v5834 = vpop.permute.xlu0 %5833
        %5835 = vrot.lane.b32.xlu0 %v3574, 112
        %v5836 = vpop.permute.xlu0 %5835
        %5837 = vrot.lane.b32.xlu0 %v3576, 112
        %v5838 = vpop.permute.xlu0 %5837
        %5839 = vrot.lane.b32.xlu0 %v3578, 112
        %v5840 = vpop.permute.xlu0 %5839
        %5841 = vrot.lane.b32.xlu0 %v3580, 112
        %v5842 = vpop.permute.xlu0 %5841
        %5843 = vrot.lane.b32.xlu0 %v3582, 112
        %v5844 = vpop.permute.xlu0 %5843
        %5845 = vrot.lane.b32.xlu0 %v3584, 112
        %v5846 = vpop.permute.xlu0 %5845
        %5847 = vrot.lane.b32.xlu0 %v3586, 112
        %v5848 = vpop.permute.xlu0 %5847
        %5849 = vrot.lane.b32.xlu0 %v3588, 112
        %v5850 = vpop.permute.xlu0 %5849
        %5851 = vrot.lane.b32.xlu0 %v3590, 112
        %v5852 = vpop.permute.xlu0 %5851
        %5853 = vrot.lane.b32.xlu0 %v3592, 112
        %v5854 = vpop.permute.xlu0 %5853
        %5855 = vrot.lane.b32.xlu0 %v3594, 112
        %v5856 = vpop.permute.xlu0 %5855
        %5857 = vrot.lane.b32.xlu0 %v3596, 112
        %v5858 = vpop.permute.xlu0 %5857
        %5859 = vrot.lane.b32.xlu0 %v3598, 112
        %v5860 = vpop.permute.xlu0 %5859
        %v5861 = vsel %vm434, %v5734, %v5798
        %v5862 = vsel %vm434, %v5736, %v5800
        %v5863 = vsel %vm434, %v5738, %v5802
        %v5864 = vsel %vm434, %v5740, %v5804
        %v5865 = vsel %vm434, %v5742, %v5806
        %v5866 = vsel %vm434, %v5744, %v5808
        %v5867 = vsel %vm434, %v5746, %v5810
        %v5868 = vsel %vm434, %v5748, %v5812
        %v5869 = vsel %vm434, %v5750, %v5814
        %v5870 = vsel %vm434, %v5752, %v5816
        %v5871 = vsel %vm434, %v5754, %v5818
        %v5872 = vsel %vm434, %v5756, %v5820
        %v5873 = vsel %vm434, %v5758, %v5822
        %v5874 = vsel %vm434, %v5760, %v5824
        %v5875 = vsel %vm434, %v5762, %v5826
        %v5876 = vsel %vm434, %v5764, %v5828
        %v5877 = vsel %vm434, %v5766, %v5830
        %v5878 = vsel %vm434, %v5768, %v5832
        %v5879 = vsel %vm434, %v5770, %v5834
        %v5880 = vsel %vm434, %v5772, %v5836
        %v5881 = vsel %vm434, %v5774, %v5838
        %v5882 = vsel %vm434, %v5776, %v5840
        %v5883 = vsel %vm434, %v5778, %v5842
        %v5884 = vsel %vm434, %v5780, %v5844
        %v5885 = vsel %vm434, %v5782, %v5846
        %v5886 = vsel %vm434, %v5784, %v5848
        %v5887 = vsel %vm434, %v5786, %v5850
        %v5888 = vsel %vm434, %v5788, %v5852
        %v5889 = vsel %vm434, %v5790, %v5854
        %v5890 = vsel %vm434, %v5792, %v5856
        %v5891 = vsel %vm434, %v5794, %v5858
        %v5892 = vsel %vm434, %v5796, %v5860
        %v5893 = vsel %vm434, %v5798, %v5734
        %v5894 = vsel %vm434, %v5800, %v5736
        %v5895 = vsel %vm434, %v5802, %v5738
        %v5896 = vsel %vm434, %v5804, %v5740
        %v5897 = vsel %vm434, %v5806, %v5742
        %v5898 = vsel %vm434, %v5808, %v5744
        %v5899 = vsel %vm434, %v5810, %v5746
        %v5900 = vsel %vm434, %v5812, %v5748
        %v5901 = vsel %vm434, %v5814, %v5750
        %v5902 = vsel %vm434, %v5816, %v5752
        %v5903 = vsel %vm434, %v5818, %v5754
        %v5904 = vsel %vm434, %v5820, %v5756
        %v5905 = vsel %vm434, %v5822, %v5758
        %v5906 = vsel %vm434, %v5824, %v5760
        %v5907 = vsel %vm434, %v5826, %v5762
        %v5908 = vsel %vm434, %v5828, %v5764
        %v5909 = vsel %vm434, %v5830, %v5766
        %v5910 = vsel %vm434, %v5832, %v5768
        %v5911 = vsel %vm434, %v5834, %v5770
        %v5912 = vsel %vm434, %v5836, %v5772
        %v5913 = vsel %vm434, %v5838, %v5774
        %v5914 = vsel %vm434, %v5840, %v5776
        %v5915 = vsel %vm434, %v5842, %v5778
        %v5916 = vsel %vm434, %v5844, %v5780
        %v5917 = vsel %vm434, %v5846, %v5782
        %v5918 = vsel %vm434, %v5848, %v5784
        %v5919 = vsel %vm434, %v5850, %v5786
        %v5920 = vsel %vm434, %v5852, %v5788
        %v5921 = vsel %vm434, %v5854, %v5790
        %v5922 = vsel %vm434, %v5856, %v5792
        %v5923 = vsel %vm434, %v5858, %v5794
        %v5924 = vsel %vm434, %v5860, %v5796
        %v5925 = vsel %vm441, %v5861, 0.0
        %v5926 = vsel %vm442, %v5893, 0.0
        %v5927 = vsel %vm441, %v5862, 0.0
        %v5928 = vsel %vm442, %v5894, 0.0
        %v5929 = vsel %vm441, %v5863, 0.0
        %v5930 = vsel %vm442, %v5895, 0.0
        %v5931 = vsel %vm441, %v5864, 0.0
        %v5932 = vsel %vm442, %v5896, 0.0
        %v5933 = vsel %vm441, %v5865, 0.0
        %v5934 = vsel %vm442, %v5897, 0.0
        %v5935 = vsel %vm441, %v5866, 0.0
        %v5936 = vsel %vm442, %v5898, 0.0
        %v5937 = vsel %vm441, %v5867, 0.0
        %v5938 = vsel %vm442, %v5899, 0.0
        %v5939 = vsel %vm441, %v5868, 0.0
        %v5940 = vsel %vm442, %v5900, 0.0
        %v5941 = vsel %vm441, %v5869, 0.0
        %v5942 = vsel %vm442, %v5901, 0.0
        %v5943 = vsel %vm441, %v5870, 0.0
        %v5944 = vsel %vm442, %v5902, 0.0
        %v5945 = vsel %vm441, %v5871, 0.0
        %v5946 = vsel %vm442, %v5903, 0.0
        %v5947 = vsel %vm441, %v5872, 0.0
        %v5948 = vsel %vm442, %v5904, 0.0
        %v5949 = vsel %vm441, %v5873, 0.0
        %v5950 = vsel %vm442, %v5905, 0.0
        %v5951 = vsel %vm441, %v5874, 0.0
        %v5952 = vsel %vm442, %v5906, 0.0
        %v5953 = vsel %vm441, %v5875, 0.0
        %v5954 = vsel %vm442, %v5907, 0.0
        %v5955 = vsel %vm441, %v5876, 0.0
        %v5956 = vsel %vm442, %v5908, 0.0
        %v5957 = vsel %vm441, %v5877, 0.0
        %v5958 = vsel %vm442, %v5909, 0.0
        %v5959 = vsel %vm441, %v5878, 0.0
        %v5960 = vsel %vm442, %v5910, 0.0
        %v5961 = vsel %vm441, %v5879, 0.0
        %v5962 = vsel %vm442, %v5911, 0.0
        %v5963 = vsel %vm441, %v5880, 0.0
        %v5964 = vsel %vm442, %v5912, 0.0
        %v5965 = vsel %vm441, %v5881, 0.0
        %v5966 = vsel %vm442, %v5913, 0.0
        %v5967 = vsel %vm441, %v5882, 0.0
        %v5968 = vsel %vm442, %v5914, 0.0
        %v5969 = vsel %vm441, %v5883, 0.0
        %v5970 = vsel %vm442, %v5915, 0.0
        %v5971 = vsel %vm441, %v5884, 0.0
        %v5972 = vsel %vm442, %v5916, 0.0
        %v5973 = vsel %vm441, %v5885, 0.0
        %v5974 = vsel %vm442, %v5917, 0.0
        %v5975 = vsel %vm441, %v5886, 0.0
        %v5976 = vsel %vm442, %v5918, 0.0
        %v5977 = vsel %vm441, %v5887, 0.0
        %v5978 = vsel %vm442, %v5919, 0.0
        %v5979 = vsel %vm441, %v5888, 0.0
        %v5980 = vsel %vm442, %v5920, 0.0
        %v5981 = vsel %vm441, %v5889, 0.0
        %v5982 = vsel %vm442, %v5921, 0.0
        %v5983 = vsel %vm441, %v5890, 0.0
        %v5984 = vsel %vm442, %v5922, 0.0
        %v5985 = vsel %vm441, %v5891, 0.0
        %v5986 = vsel %vm442, %v5923, 0.0
        %v5987 = vsel %vm441, %v5892, 0.0
        %v5988 = vsel %vm442, %v5924, 0.0
        %5989 = vmatprep.subr.mxu0 %v5926
        %5990 = vmatpush1.msra.mxu0 %v5925
        %5991 = vmatprep.subr.mxu0 %v5928
        %5992 = vmatpush1.msra.mxu0 %v5927
        %5993 = vmatprep.subr.mxu0 %v5930
        %5994 = vmatpush1.msra.mxu0 %v5929
        %5995 = vmatprep.subr.mxu0 %v5932
        %5996 = vmatpush1.msra.mxu0 %v5931
        %5997 = vmatprep.subr.mxu0 %v5934
        %5998 = vmatpush1.msra.mxu0 %v5933
        %5999 = vmatprep.subr.mxu0 %v5936
        %6000 = vmatpush1.msra.mxu0 %v5935
        %6001 = vmatprep.subr.mxu0 %v5938
        %6002 = vmatpush1.msra.mxu0 %v5937
        %6003 = vmatprep.subr.mxu0 %v5940
        %6004 = vmatpush1.msra.mxu0 %v5939
        %6005 = vmatprep.subr.mxu0 %v5942
        %6006 = vmatpush1.msra.mxu0 %v5941
        %6007 = vmatprep.subr.mxu0 %v5944
        %6008 = vmatpush1.msra.mxu0 %v5943
        %6009 = vmatprep.subr.mxu0 %v5946
        %6010 = vmatpush1.msra.mxu0 %v5945
        %6011 = vmatprep.subr.mxu0 %v5948
        %6012 = vmatpush1.msra.mxu0 %v5947
        %6013 = vmatprep.subr.mxu0 %v5950
        %6014 = vmatpush1.msra.mxu0 %v5949
        %6015 = vmatprep.subr.mxu0 %v5952
        %6016 = vmatpush1.msra.mxu0 %v5951
        %6017 = vmatprep.subr.mxu0 %v5954
        %6018 = vmatpush1.msra.mxu0 %v5953
        %6019 = vmatprep.subr.mxu0 %v5956
        %6020 = vmatpush1.msra.mxu0 %v5955
        %6021 = vmatprep.subr.mxu0 %v5958
        %6022 = vmatpush1.msra.mxu0 %v5957
        %6023 = vmatprep.subr.mxu0 %v5960
        %6024 = vmatpush1.msra.mxu0 %v5959
        %6025 = vmatprep.subr.mxu0 %v5962
        %6026 = vmatpush1.msra.mxu0 %v5961
        %6027 = vmatprep.subr.mxu0 %v5964
        %6028 = vmatpush1.msra.mxu0 %v5963
        %6029 = vmatprep.subr.mxu0 %v5966
        %6030 = vmatpush1.msra.mxu0 %v5965
        %6031 = vmatprep.subr.mxu0 %v5968
        %6032 = vmatpush1.msra.mxu0 %v5967
        %6033 = vmatprep.subr.mxu0 %v5970
        %6034 = vmatpush1.msra.mxu0 %v5969
        %6035 = vmatprep.subr.mxu0 %v5972
        %6036 = vmatpush1.msra.mxu0 %v5971
        %6037 = vmatprep.subr.mxu0 %v5974
        %6038 = vmatpush1.msra.mxu0 %v5973
        %6039 = vmatprep.subr.mxu0 %v5976
        %6040 = vmatpush1.msra.mxu0 %v5975
        %6041 = vmatprep.subr.mxu0 %v5978
        %6042 = vmatpush1.msra.mxu0 %v5977
        %6043 = vmatprep.subr.mxu0 %v5980
        %6044 = vmatpush1.msra.mxu0 %v5979
        %6045 = vmatprep.subr.mxu0 %v5982
        %6046 = vmatpush1.msra.mxu0 %v5981
        %6047 = vmatprep.subr.mxu0 %v5984
        %6048 = vmatpush1.msra.mxu0 %v5983
        %6049 = vmatprep.subr.mxu0 %v5986
        %6050 = vmatpush1.msra.mxu0 %v5985
        %6051 = vmatprep.subr.mxu0 %v5988
        %6052 = vmatpush1.msra.mxu0 %v5987
        %6053 = vmatprep.mubr.f32.mxu0 %v5730
        %6054 = vmatmul.mubr.f32.gmra.mrb[0].mxu0 %v5729
        %v6055 = vpop.f32.mrb[0].mxu0
        %v6056 = vadd.f32 0.0, %v6055
        %v6057 = vpop.f32.mrb[0].mxu0
        %v6058 = vadd.f32 0.0, %v6057
        %6059 = vmatprep.mubr.f32.mxu0 %v5732
        %6060 = vmatmul.mubr.f32.gmra.mrb[0].mxu0 %v5731
        %v6061 = vpop.f32.mrb[0].mxu0
        %v6062 = vadd.f32 0.0, %v6061
        %v6063 = vpop.f32.mrb[0].mxu0
        %v6064 = vadd.f32 0.0, %v6063
        %6065 = vdwg.mxu0
        %v6066 = vadd.f32 %v5724, %v6056
        %v6067 = vadd.f32 %v5725, %v6058
        %v6068 = vadd.f32 %v5726, %v6062
        %v6069 = vadd.f32 %v5727, %v6064
        %s6070 = scalar_lea.vmem %s3, 256
        %v6071 = vld [vmem:[%s6070] sm:$0xff]
        %v6072 = vld [vmem:[%s6070 + $0x8] sm:$0xff]
        %v6073 = vld [vmem:[%s6070 + $0x10] sm:$0xff]
        %v6074 = vld [vmem:[%s6070 + $0x18] sm:$0xff]
        %6075 = vrot.lane.b32.xlu0 %v2359, 111
        %v6076 = vpop.permute.xlu0 %6075
        %6077 = vrot.lane.b32.xlu0 %v2361, 111
        %v6078 = vpop.permute.xlu0 %6077
        %6079 = vrot.lane.b32.xlu0 %v2363, 111
        %v6080 = vpop.permute.xlu0 %6079
        %6081 = vrot.lane.b32.xlu0 %v2365, 111
        %v6082 = vpop.permute.xlu0 %6081
        %6083 = vrot.lane.b32.xlu0 %v2367, 111
        %v6084 = vpop.permute.xlu0 %6083
        %6085 = vrot.lane.b32.xlu0 %v2369, 111
        %v6086 = vpop.permute.xlu0 %6085
        %6087 = vrot.lane.b32.xlu0 %v2371, 111
        %v6088 = vpop.permute.xlu0 %6087
        %6089 = vrot.lane.b32.xlu0 %v2373, 111
        %v6090 = vpop.permute.xlu0 %6089
        %6091 = vrot.lane.b32.xlu0 %v2375, 111
        %v6092 = vpop.permute.xlu0 %6091
        %6093 = vrot.lane.b32.xlu0 %v2377, 111
        %v6094 = vpop.permute.xlu0 %6093
        %6095 = vrot.lane.b32.xlu0 %v2379, 111
        %v6096 = vpop.permute.xlu0 %6095
        %6097 = vrot.lane.b32.xlu0 %v2381, 111
        %v6098 = vpop.permute.xlu0 %6097
        %6099 = vrot.lane.b32.xlu0 %v2383, 111
        %v6100 = vpop.permute.xlu0 %6099
        %6101 = vrot.lane.b32.xlu0 %v2385, 111
        %v6102 = vpop.permute.xlu0 %6101
        %6103 = vrot.lane.b32.xlu0 %v2387, 111
        %v6104 = vpop.permute.xlu0 %6103
        %6105 = vrot.lane.b32.xlu0 %v2389, 111
        %v6106 = vpop.permute.xlu0 %6105
        %6107 = vrot.lane.b32.xlu0 %v3567, 111
        %v6108 = vpop.permute.xlu0 %6107
        %6109 = vrot.lane.b32.xlu0 %v3569, 111
        %v6110 = vpop.permute.xlu0 %6109
        %6111 = vrot.lane.b32.xlu0 %v3571, 111
        %v6112 = vpop.permute.xlu0 %6111
        %6113 = vrot.lane.b32.xlu0 %v3573, 111
        %v6114 = vpop.permute.xlu0 %6113
        %6115 = vrot.lane.b32.xlu0 %v3575, 111
        %v6116 = vpop.permute.xlu0 %6115
        %6117 = vrot.lane.b32.xlu0 %v3577, 111
        %v6118 = vpop.permute.xlu0 %6117
        %6119 = vrot.lane.b32.xlu0 %v3579, 111
        %v6120 = vpop.permute.xlu0 %6119
        %6121 = vrot.lane.b32.xlu0 %v3581, 111
        %v6122 = vpop.permute.xlu0 %6121
        %6123 = vrot.lane.b32.xlu0 %v3583, 111
        %v6124 = vpop.permute.xlu0 %6123
        %6125 = vrot.lane.b32.xlu0 %v3585, 111
        %v6126 = vpop.permute.xlu0 %6125
        %6127 = vrot.lane.b32.xlu0 %v3587, 111
        %v6128 = vpop.permute.xlu0 %6127
        %6129 = vrot.lane.b32.xlu0 %v3589, 111
        %v6130 = vpop.permute.xlu0 %6129
        %6131 = vrot.lane.b32.xlu0 %v3591, 111
        %v6132 = vpop.permute.xlu0 %6131
        %6133 = vrot.lane.b32.xlu0 %v3593, 111
        %v6134 = vpop.permute.xlu0 %6133
        %6135 = vrot.lane.b32.xlu0 %v3595, 111
        %v6136 = vpop.permute.xlu0 %6135
        %6137 = vrot.lane.b32.xlu0 %v3597, 111
        %v6138 = vpop.permute.xlu0 %6137
        %6139 = vrot.lane.b32.xlu0 %v2360, 111
        %v6140 = vpop.permute.xlu0 %6139
        %6141 = vrot.lane.b32.xlu0 %v2362, 111
        %v6142 = vpop.permute.xlu0 %6141
        %6143 = vrot.lane.b32.xlu0 %v2364, 111
        %v6144 = vpop.permute.xlu0 %6143
        %6145 = vrot.lane.b32.xlu0 %v2366, 111
        %v6146 = vpop.permute.xlu0 %6145
        %6147 = vrot.lane.b32.xlu0 %v2368, 111
        %v6148 = vpop.permute.xlu0 %6147
        %6149 = vrot.lane.b32.xlu0 %v2370, 111
        %v6150 = vpop.permute.xlu0 %6149
        %6151 = vrot.lane.b32.xlu0 %v2372, 111
        %v6152 = vpop.permute.xlu0 %6151
        %6153 = vrot.lane.b32.xlu0 %v2374, 111
        %v6154 = vpop.permute.xlu0 %6153
        %6155 = vrot.lane.b32.xlu0 %v2376, 111
        %v6156 = vpop.permute.xlu0 %6155
        %6157 = vrot.lane.b32.xlu0 %v2378, 111
        %v6158 = vpop.permute.xlu0 %6157
        %6159 = vrot.lane.b32.xlu0 %v2380, 111
        %v6160 = vpop.permute.xlu0 %6159
        %6161 = vrot.lane.b32.xlu0 %v2382, 111
        %v6162 = vpop.permute.xlu0 %6161
        %6163 = vrot.lane.b32.xlu0 %v2384, 111
        %v6164 = vpop.permute.xlu0 %6163
        %6165 = vrot.lane.b32.xlu0 %v2386, 111
        %v6166 = vpop.permute.xlu0 %6165
        %6167 = vrot.lane.b32.xlu0 %v2388, 111
        %v6168 = vpop.permute.xlu0 %6167
        %6169 = vrot.lane.b32.xlu0 %v2390, 111
        %v6170 = vpop.permute.xlu0 %6169
        %6171 = vrot.lane.b32.xlu0 %v3568, 111
        %v6172 = vpop.permute.xlu0 %6171
        %6173 = vrot.lane.b32.xlu0 %v3570, 111
        %v6174 = vpop.permute.xlu0 %6173
        %6175 = vrot.lane.b32.xlu0 %v3572, 111
        %v6176 = vpop.permute.xlu0 %6175
        %6177 = vrot.lane.b32.xlu0 %v3574, 111
        %v6178 = vpop.permute.xlu0 %6177
        %6179 = vrot.lane.b32.xlu0 %v3576, 111
        %v6180 = vpop.permute.xlu0 %6179
        %6181 = vrot.lane.b32.xlu0 %v3578, 111
        %v6182 = vpop.permute.xlu0 %6181
        %6183 = vrot.lane.b32.xlu0 %v3580, 111
        %v6184 = vpop.permute.xlu0 %6183
        %6185 = vrot.lane.b32.xlu0 %v3582, 111
        %v6186 = vpop.permute.xlu0 %6185
        %6187 = vrot.lane.b32.xlu0 %v3584, 111
        %v6188 = vpop.permute.xlu0 %6187
        %6189 = vrot.lane.b32.xlu0 %v3586, 111
        %v6190 = vpop.permute.xlu0 %6189
        %6191 = vrot.lane.b32.xlu0 %v3588, 111
        %v6192 = vpop.permute.xlu0 %6191
        %6193 = vrot.lane.b32.xlu0 %v3590, 111
        %v6194 = vpop.permute.xlu0 %6193
        %6195 = vrot.lane.b32.xlu0 %v3592, 111
        %v6196 = vpop.permute.xlu0 %6195
        %6197 = vrot.lane.b32.xlu0 %v3594, 111
        %v6198 = vpop.permute.xlu0 %6197
        %6199 = vrot.lane.b32.xlu0 %v3596, 111
        %v6200 = vpop.permute.xlu0 %6199
        %6201 = vrot.lane.b32.xlu0 %v3598, 111
        %v6202 = vpop.permute.xlu0 %6201
        %v6203 = vsel %vm455, %v6076, %v6140
        %v6204 = vsel %vm455, %v6078, %v6142
        %v6205 = vsel %vm455, %v6080, %v6144
        %v6206 = vsel %vm455, %v6082, %v6146
        %v6207 = vsel %vm455, %v6084, %v6148
        %v6208 = vsel %vm455, %v6086, %v6150
        %v6209 = vsel %vm455, %v6088, %v6152
        %v6210 = vsel %vm455, %v6090, %v6154
        %v6211 = vsel %vm455, %v6092, %v6156
        %v6212 = vsel %vm455, %v6094, %v6158
        %v6213 = vsel %vm455, %v6096, %v6160
        %v6214 = vsel %vm455, %v6098, %v6162
        %v6215 = vsel %vm455, %v6100, %v6164
        %v6216 = vsel %vm455, %v6102, %v6166
        %v6217 = vsel %vm455, %v6104, %v6168
        %v6218 = vsel %vm455, %v6106, %v6170
        %v6219 = vsel %vm455, %v6108, %v6172
        %v6220 = vsel %vm455, %v6110, %v6174
        %v6221 = vsel %vm455, %v6112, %v6176
        %v6222 = vsel %vm455, %v6114, %v6178
        %v6223 = vsel %vm455, %v6116, %v6180
        %v6224 = vsel %vm455, %v6118, %v6182
        %v6225 = vsel %vm455, %v6120, %v6184
        %v6226 = vsel %vm455, %v6122, %v6186
        %v6227 = vsel %vm455, %v6124, %v6188
        %v6228 = vsel %vm455, %v6126, %v6190
        %v6229 = vsel %vm455, %v6128, %v6192
        %v6230 = vsel %vm455, %v6130, %v6194
        %v6231 = vsel %vm455, %v6132, %v6196
        %v6232 = vsel %vm455, %v6134, %v6198
        %v6233 = vsel %vm455, %v6136, %v6200
        %v6234 = vsel %vm455, %v6138, %v6202
        %v6235 = vsel %vm455, %v6140, %v6076
        %v6236 = vsel %vm455, %v6142, %v6078
        %v6237 = vsel %vm455, %v6144, %v6080
        %v6238 = vsel %vm455, %v6146, %v6082
        %v6239 = vsel %vm455, %v6148, %v6084
        %v6240 = vsel %vm455, %v6150, %v6086
        %v6241 = vsel %vm455, %v6152, %v6088
        %v6242 = vsel %vm455, %v6154, %v6090
        %v6243 = vsel %vm455, %v6156, %v6092
        %v6244 = vsel %vm455, %v6158, %v6094
        %v6245 = vsel %vm455, %v6160, %v6096
        %v6246 = vsel %vm455, %v6162, %v6098
        %v6247 = vsel %vm455, %v6164, %v6100
        %v6248 = vsel %vm455, %v6166, %v6102
        %v6249 = vsel %vm455, %v6168, %v6104
        %v6250 = vsel %vm455, %v6170, %v6106
        %v6251 = vsel %vm455, %v6172, %v6108
        %v6252 = vsel %vm455, %v6174, %v6110
        %v6253 = vsel %vm455, %v6176, %v6112
        %v6254 = vsel %vm455, %v6178, %v6114
        %v6255 = vsel %vm455, %v6180, %v6116
        %v6256 = vsel %vm455, %v6182, %v6118
        %v6257 = vsel %vm455, %v6184, %v6120
        %v6258 = vsel %vm455, %v6186, %v6122
        %v6259 = vsel %vm455, %v6188, %v6124
        %v6260 = vsel %vm455, %v6190, %v6126
        %v6261 = vsel %vm455, %v6192, %v6128
        %v6262 = vsel %vm455, %v6194, %v6130
        %v6263 = vsel %vm455, %v6196, %v6132
        %v6264 = vsel %vm455, %v6198, %v6134
        %v6265 = vsel %vm455, %v6200, %v6136
        %v6266 = vsel %vm455, %v6202, %v6138
        %v6267 = vsel %vm464, %v6203, 0.0
        %v6268 = vsel %vm465, %v6235, 0.0
        %v6269 = vsel %vm464, %v6204, 0.0
        %v6270 = vsel %vm465, %v6236, 0.0
        %v6271 = vsel %vm464, %v6205, 0.0
        %v6272 = vsel %vm465, %v6237, 0.0
        %v6273 = vsel %vm464, %v6206, 0.0
        %v6274 = vsel %vm465, %v6238, 0.0
        %v6275 = vsel %vm464, %v6207, 0.0
        %v6276 = vsel %vm465, %v6239, 0.0
        %v6277 = vsel %vm464, %v6208, 0.0
        %v6278 = vsel %vm465, %v6240, 0.0
        %v6279 = vsel %vm464, %v6209, 0.0
        %v6280 = vsel %vm465, %v6241, 0.0
        %v6281 = vsel %vm464, %v6210, 0.0
        %v6282 = vsel %vm465, %v6242, 0.0
        %v6283 = vsel %vm464, %v6211, 0.0
        %v6284 = vsel %vm465, %v6243, 0.0
        %v6285 = vsel %vm464, %v6212, 0.0
        %v6286 = vsel %vm465, %v6244, 0.0
        %v6287 = vsel %vm464, %v6213, 0.0
        %v6288 = vsel %vm465, %v6245, 0.0
        %v6289 = vsel %vm464, %v6214, 0.0
        %v6290 = vsel %vm465, %v6246, 0.0
        %v6291 = vsel %vm464, %v6215, 0.0
        %v6292 = vsel %vm465, %v6247, 0.0
        %v6293 = vsel %vm464, %v6216, 0.0
        %v6294 = vsel %vm465, %v6248, 0.0
        %v6295 = vsel %vm464, %v6217, 0.0
        %v6296 = vsel %vm465, %v6249, 0.0
        %v6297 = vsel %vm464, %v6218, 0.0
        %v6298 = vsel %vm465, %v6250, 0.0
        %v6299 = vsel %vm464, %v6219, 0.0
        %v6300 = vsel %vm465, %v6251, 0.0
        %v6301 = vsel %vm464, %v6220, 0.0
        %v6302 = vsel %vm465, %v6252, 0.0
        %v6303 = vsel %vm464, %v6221, 0.0
        %v6304 = vsel %vm465, %v6253, 0.0
        %v6305 = vsel %vm464, %v6222, 0.0
        %v6306 = vsel %vm465, %v6254, 0.0
        %v6307 = vsel %vm464, %v6223, 0.0
        %v6308 = vsel %vm465, %v6255, 0.0
        %v6309 = vsel %vm464, %v6224, 0.0
        %v6310 = vsel %vm465, %v6256, 0.0
        %v6311 = vsel %vm464, %v6225, 0.0
        %v6312 = vsel %vm465, %v6257, 0.0
        %v6313 = vsel %vm464, %v6226, 0.0
        %v6314 = vsel %vm465, %v6258, 0.0
        %v6315 = vsel %vm464, %v6227, 0.0
        %v6316 = vsel %vm465, %v6259, 0.0
        %v6317 = vsel %vm464, %v6228, 0.0
        %v6318 = vsel %vm465, %v6260, 0.0
        %v6319 = vsel %vm464, %v6229, 0.0
        %v6320 = vsel %vm465, %v6261, 0.0
        %v6321 = vsel %vm464, %v6230, 0.0
        %v6322 = vsel %vm465, %v6262, 0.0
        %v6323 = vsel %vm464, %v6231, 0.0
        %v6324 = vsel %vm465, %v6263, 0.0
        %v6325 = vsel %vm464, %v6232, 0.0
        %v6326 = vsel %vm465, %v6264, 0.0
        %v6327 = vsel %vm464, %v6233, 0.0
        %v6328 = vsel %vm465, %v6265, 0.0
        %v6329 = vsel %vm464, %v6234, 0.0
        %v6330 = vsel %vm465, %v6266, 0.0
        %6331 = vmatprep.subr.mxu0 %v6268
        %6332 = vmatpush1.msra.mxu0 %v6267
        %6333 = vmatprep.subr.mxu0 %v6270
        %6334 = vmatpush1.msra.mxu0 %v6269
        %6335 = vmatprep.subr.mxu0 %v6272
        %6336 = vmatpush1.msra.mxu0 %v6271
        %6337 = vmatprep.subr.mxu0 %v6274
        %6338 = vmatpush1.msra.mxu0 %v6273
        %6339 = vmatprep.subr.mxu0 %v6276
        %6340 = vmatpush1.msra.mxu0 %v6275
        %6341 = vmatprep.subr.mxu0 %v6278
        %6342 = vmatpush1.msra.mxu0 %v6277
        %6343 = vmatprep.subr.mxu0 %v6280
        %6344 = vmatpush1.msra.mxu0 %v6279
        %6345 = vmatprep.subr.mxu0 %v6282
        %6346 = vmatpush1.msra.mxu0 %v6281
        %6347 = vmatprep.subr.mxu0 %v6284
        %6348 = vmatpush1.msra.mxu0 %v6283
        %6349 = vmatprep.subr.mxu0 %v6286
        %6350 = vmatpush1.msra.mxu0 %v6285
        %6351 = vmatprep.subr.mxu0 %v6288
        %6352 = vmatpush1.msra.mxu0 %v6287
        %6353 = vmatprep.subr.mxu0 %v6290
        %6354 = vmatpush1.msra.mxu0 %v6289
        %6355 = vmatprep.subr.mxu0 %v6292
        %6356 = vmatpush1.msra.mxu0 %v6291
        %6357 = vmatprep.subr.mxu0 %v6294
        %6358 = vmatpush1.msra.mxu0 %v6293
        %6359 = vmatprep.subr.mxu0 %v6296
        %6360 = vmatpush1.msra.mxu0 %v6295
        %6361 = vmatprep.subr.mxu0 %v6298
        %6362 = vmatpush1.msra.mxu0 %v6297
        %6363 = vmatprep.subr.mxu0 %v6300
        %6364 = vmatpush1.msra.mxu0 %v6299
        %6365 = vmatprep.subr.mxu0 %v6302
        %6366 = vmatpush1.msra.mxu0 %v6301
        %6367 = vmatprep.subr.mxu0 %v6304
        %6368 = vmatpush1.msra.mxu0 %v6303
        %6369 = vmatprep.subr.mxu0 %v6306
        %6370 = vmatpush1.msra.mxu0 %v6305
        %6371 = vmatprep.subr.mxu0 %v6308
        %6372 = vmatpush1.msra.mxu0 %v6307
        %6373 = vmatprep.subr.mxu0 %v6310
        %6374 = vmatpush1.msra.mxu0 %v6309
        %6375 = vmatprep.subr.mxu0 %v6312
        %6376 = vmatpush1.msra.mxu0 %v6311
        %6377 = vmatprep.subr.mxu0 %v6314
        %6378 = vmatpush1.msra.mxu0 %v6313
        %6379 = vmatprep.subr.mxu0 %v6316
        %6380 = vmatpush1.msra.mxu0 %v6315
        %6381 = vmatprep.subr.mxu0 %v6318
        %6382 = vmatpush1.msra.mxu0 %v6317
        %6383 = vmatprep.subr.mxu0 %v6320
        %6384 = vmatpush1.msra.mxu0 %v6319
        %6385 = vmatprep.subr.mxu0 %v6322
        %6386 = vmatpush1.msra.mxu0 %v6321
        %6387 = vmatprep.subr.mxu0 %v6324
        %6388 = vmatpush1.msra.mxu0 %v6323
        %6389 = vmatprep.subr.mxu0 %v6326
        %6390 = vmatpush1.msra.mxu0 %v6325
        %6391 = vmatprep.subr.mxu0 %v6328
        %6392 = vmatpush1.msra.mxu0 %v6327
        %6393 = vmatprep.subr.mxu0 %v6330
        %6394 = vmatpush1.msra.mxu0 %v6329
        %6395 = vmatprep.mubr.f32.mxu0 %v6072
        %6396 = vmatmul.mubr.f32.gmra.mrb[0].mxu0 %v6071
        %v6397 = vpop.f32.mrb[0].mxu0
        %v6398 = vadd.f32 0.0, %v6397
        %v6399 = vpop.f32.mrb[0].mxu0
        %v6400 = vadd.f32 0.0, %v6399
        %6401 = vmatprep.mubr.f32.mxu0 %v6074
        %6402 = vmatmul.mubr.f32.gmra.mrb[0].mxu0 %v6073
        %v6403 = vpop.f32.mrb[0].mxu0
        %v6404 = vadd.f32 0.0, %v6403
        %v6405 = vpop.f32.mrb[0].mxu0
        %v6406 = vadd.f32 0.0, %v6405
        %6407 = vdwg.mxu0
        %v6408 = vadd.f32 %v6066, %v6398
        %v6409 = vadd.f32 %v6067, %v6400
        %v6410 = vadd.f32 %v6068, %v6404
        %v6411 = vadd.f32 %v6069, %v6406
        %v6412 = vld [vmem:[%s4] sm:$0xff]
        %v6413 = vld [vmem:[%s4 + $0x8] sm:$0xff]
        %6415 = vset.pattern.permute.xlu0 0
        %6416 = vperm.xlu0 %6415, %v6412
        %v6417 = vpop.permute.xlu0 %6416
        %6420 = vset.pattern.permute.xlu0 0
        %6421 = vperm.xlu0 %6420, %v6413
        %v6422 = vpop.permute.xlu0 %6421
        %v6424 = vadd.f32 %v6408, %v6417
        %v6425 = vadd.f32 %v6409, %v6417
        %v6426 = vadd.f32 %v6410, %v6422
        %v6427 = vadd.f32 %v6411, %v6422
        %v6428 = vmax.f32 %v6424, 0.0
        %v6429 = vmax.f32 %v6425, 0.0
        %v6430 = vmax.f32 %v6426, 0.0
        %v6431 = vmax.f32 %v6427, 0.0
        %6432 = vrot.lane.b32.xlu0 %v6428, 17
        %v6433 = vpop.permute.xlu0 %6432
        %6434 = vrot.lane.b32.xlu0 %v6430, 17
        %v6435 = vpop.permute.xlu0 %6434
        %6436 = vrot.lane.b32.xlu0 %v1178, 17
        %v6437 = vpop.permute.xlu0 %6436
        %6438 = vrot.lane.b32.xlu0 %v1180, 17
        %v6439 = vpop.permute.xlu0 %6438
        %6440 = vrot.lane.b32.xlu0 %v6429, 17
        %v6441 = vpop.permute.xlu0 %6440
        %6442 = vrot.lane.b32.xlu0 %v6431, 17
        %v6443 = vpop.permute.xlu0 %6442
        %6444 = vrot.lane.b32.xlu0 %v1179, 17
        %v6445 = vpop.permute.xlu0 %6444
        %6446 = vrot.lane.b32.xlu0 %v1181, 17
        %v6447 = vpop.permute.xlu0 %6446
        %v6448 = vsel %vm294, %v6433, %v6441
        %v6449 = vsel %vm294, %v6435, %v6443
        %v6450 = vsel %vm294, %v6437, %v6445
        %v6451 = vsel %vm294, %v6439, %v6447
        %v6452 = vsel %vm294, %v6441, %v6433
        %v6453 = vsel %vm294, %v6443, %v6435
        %v6454 = vsel %vm294, %v6445, %v6437
        %v6455 = vsel %vm294, %v6447, %v6439
        %v6456 = vsel %vm307, %v6452, 0.0
        %v6457 = vsel %vm308, %v6448, 0.0
        %v6458 = vsel %vm307, %v6453, 0.0
        %v6459 = vsel %vm308, %v6449, 0.0
        %v6460 = vsel %vm307, %v6454, 0.0
        %v6461 = vsel %vm308, %v6450, 0.0
        %v6462 = vsel %vm307, %v6455, 0.0
        %v6463 = vsel %vm308, %v6451, 0.0
        %6464 = vrot.lane.b32.xlu0 %v6428, 16
        %v6465 = vpop.permute.xlu0 %6464
        %6466 = vrot.lane.b32.xlu0 %v6430, 16
        %v6467 = vpop.permute.xlu0 %6466
        %6468 = vrot.lane.b32.xlu0 %v1178, 16
        %v6469 = vpop.permute.xlu0 %6468
        %6470 = vrot.lane.b32.xlu0 %v1180, 16
        %v6471 = vpop.permute.xlu0 %6470
        %6472 = vrot.lane.b32.xlu0 %v6429, 16
        %v6473 = vpop.permute.xlu0 %6472
        %6474 = vrot.lane.b32.xlu0 %v6431, 16
        %v6475 = vpop.permute.xlu0 %6474
        %6476 = vrot.lane.b32.xlu0 %v1179, 16
        %v6477 = vpop.permute.xlu0 %6476
        %6478 = vrot.lane.b32.xlu0 %v1181, 16
        %v6479 = vpop.permute.xlu0 %6478
        %v6480 = vsel %vm321, %v6465, %v6473
        %v6481 = vsel %vm321, %v6467, %v6475
        %v6482 = vsel %vm321, %v6469, %v6477
        %v6483 = vsel %vm321, %v6471, %v6479
        %v6484 = vsel %vm321, %v6473, %v6465
        %v6485 = vsel %vm321, %v6475, %v6467
        %v6486 = vsel %vm321, %v6477, %v6469
        %v6487 = vsel %vm321, %v6479, %v6471
        %v6488 = vsel %vm328, %v6484, 0.0
        %v6489 = vsel %vm329, %v6480, 0.0
        %v6490 = vsel %vm328, %v6485, 0.0
        %v6491 = vsel %vm329, %v6481, 0.0
        %v6492 = vsel %vm328, %v6486, 0.0
        %v6493 = vsel %vm329, %v6482, 0.0
        %v6494 = vsel %vm328, %v6487, 0.0
        %v6495 = vsel %vm329, %v6483, 0.0
        %6496 = vrot.lane.b32.xlu0 %v6428, 15
        %v6497 = vpop.permute.xlu0 %6496
        %6498 = vrot.lane.b32.xlu0 %v6430, 15
        %v6499 = vpop.permute.xlu0 %6498
        %6500 = vrot.lane.b32.xlu0 %v1178, 15
        %v6501 = vpop.permute.xlu0 %6500
        %6502 = vrot.lane.b32.xlu0 %v1180, 15
        %v6503 = vpop.permute.xlu0 %6502
        %6504 = vrot.lane.b32.xlu0 %v6429, 15
        %v6505 = vpop.permute.xlu0 %6504
        %6506 = vrot.lane.b32.xlu0 %v6431, 15
        %v6507 = vpop.permute.xlu0 %6506
        %6508 = vrot.lane.b32.xlu0 %v1179, 15
        %v6509 = vpop.permute.xlu0 %6508
        %6510 = vrot.lane.b32.xlu0 %v1181, 15
        %v6511 = vpop.permute.xlu0 %6510
        %v6512 = vsel %vm342, %v6497, %v6505
        %v6513 = vsel %vm342, %v6499, %v6507
        %v6514 = vsel %vm342, %v6501, %v6509
        %v6515 = vsel %vm342, %v6503, %v6511
        %v6516 = vsel %vm342, %v6505, %v6497
        %v6517 = vsel %vm342, %v6507, %v6499
        %v6518 = vsel %vm342, %v6509, %v6501
        %v6519 = vsel %vm342, %v6511, %v6503
        %v6520 = vsel %vm353, %v6516, 0.0
        %v6521 = vsel %vm354, %v6512, 0.0
        %v6522 = vsel %vm353, %v6517, 0.0
        %v6523 = vsel %vm354, %v6513, 0.0
        %v6524 = vsel %vm353, %v6518, 0.0
        %v6525 = vsel %vm354, %v6514, 0.0
        %v6526 = vsel %vm353, %v6519, 0.0
        %v6527 = vsel %vm354, %v6515, 0.0
        %6528 = vrot.lane.b32.xlu0 %v6428, 1
        %v6529 = vpop.permute.xlu0 %6528
        %6530 = vrot.lane.b32.xlu0 %v6430, 1
        %v6531 = vpop.permute.xlu0 %6530
        %6532 = vrot.lane.b32.xlu0 %v1178, 1
        %v6533 = vpop.permute.xlu0 %6532
        %6534 = vrot.lane.b32.xlu0 %v1180, 1
        %v6535 = vpop.permute.xlu0 %6534
        %6536 = vrot.lane.b32.xlu0 %v6429, 1
        %v6537 = vpop.permute.xlu0 %6536
        %6538 = vrot.lane.b32.xlu0 %v6431, 1
        %v6539 = vpop.permute.xlu0 %6538
        %6540 = vrot.lane.b32.xlu0 %v1179, 1
        %v6541 = vpop.permute.xlu0 %6540
        %6542 = vrot.lane.b32.xlu0 %v1181, 1
        %v6543 = vpop.permute.xlu0 %6542
        %v6544 = vsel %vm367, %v6529, %v6537
        %v6545 = vsel %vm367, %v6531, %v6539
        %v6546 = vsel %vm367, %v6533, %v6541
        %v6547 = vsel %vm367, %v6535, %v6543
        %v6548 = vsel %vm367, %v6537, %v6529
        %v6549 = vsel %vm367, %v6539, %v6531
        %v6550 = vsel %vm367, %v6541, %v6533
        %v6551 = vsel %vm367, %v6543, %v6535
        %v6552 = vsel %vm374, %v6548, 0.0
        %v6553 = vsel %vm375, %v6544, 0.0
        %v6554 = vsel %vm374, %v6549, 0.0
        %v6555 = vsel %vm375, %v6545, 0.0
        %v6556 = vsel %vm374, %v6550, 0.0
        %v6557 = vsel %vm375, %v6546, 0.0
        %v6558 = vsel %vm374, %v6551, 0.0
        %v6559 = vsel %vm375, %v6547, 0.0
        %6560 = vrot.lane.b32.xlu0 %v6428, 127
        %v6561 = vpop.permute.xlu0 %6560
        %6562 = vrot.lane.b32.xlu0 %v6430, 127
        %v6563 = vpop.permute.xlu0 %6562
        %6564 = vrot.lane.b32.xlu0 %v1178, 127
        %v6565 = vpop.permute.xlu0 %6564
        %6566 = vrot.lane.b32.xlu0 %v1180, 127
        %v6567 = vpop.permute.xlu0 %6566
        %6568 = vrot.lane.b32.xlu0 %v6429, 127
        %v6569 = vpop.permute.xlu0 %6568
        %6570 = vrot.lane.b32.xlu0 %v6431, 127
        %v6571 = vpop.permute.xlu0 %6570
        %6572 = vrot.lane.b32.xlu0 %v1179, 127
        %v6573 = vpop.permute.xlu0 %6572
        %6574 = vrot.lane.b32.xlu0 %v1181, 127
        %v6575 = vpop.permute.xlu0 %6574
        %v6576 = vsel %vm388, %v6561, %v6569
        %v6577 = vsel %vm388, %v6563, %v6571
        %v6578 = vsel %vm388, %v6565, %v6573
        %v6579 = vsel %vm388, %v6567, %v6575
        %v6580 = vsel %vm388, %v6569, %v6561
        %v6581 = vsel %vm388, %v6571, %v6563
        %v6582 = vsel %vm388, %v6573, %v6565
        %v6583 = vsel %vm388, %v6575, %v6567
        %v6584 = vsel %vm395, %v6576, 0.0
        %v6585 = vsel %vm396, %v6580, 0.0
        %v6586 = vsel %vm395, %v6577, 0.0
        %v6587 = vsel %vm396, %v6581, 0.0
        %v6588 = vsel %vm395, %v6578, 0.0
        %v6589 = vsel %vm396, %v6582, 0.0
        %v6590 = vsel %vm395, %v6579, 0.0
        %v6591 = vsel %vm396, %v6583, 0.0
        %6592 = vrot.lane.b32.xlu0 %v6428, 113
        %v6593 = vpop.permute.xlu0 %6592
        %6594 = vrot.lane.b32.xlu0 %v6430, 113
        %v6595 = vpop.permute.xlu0 %6594
        %6596 = vrot.lane.b32.xlu0 %v1178, 113
        %v6597 = vpop.permute.xlu0 %6596
        %6598 = vrot.lane.b32.xlu0 %v1180, 113
        %v6599 = vpop.permute.xlu0 %6598
        %6600 = vrot.lane.b32.xlu0 %v6429, 113
        %v6601 = vpop.permute.xlu0 %6600
        %6602 = vrot.lane.b32.xlu0 %v6431, 113
        %v6603 = vpop.permute.xlu0 %6602
        %6604 = vrot.lane.b32.xlu0 %v1179, 113
        %v6605 = vpop.permute.xlu0 %6604
        %6606 = vrot.lane.b32.xlu0 %v1181, 113
        %v6607 = vpop.permute.xlu0 %6606
        %v6608 = vsel %vm409, %v6593, %v6601
        %v6609 = vsel %vm409, %v6595, %v6603
        %v6610 = vsel %vm409, %v6597, %v6605
        %v6611 = vsel %vm409, %v6599, %v6607
        %v6612 = vsel %vm409, %v6601, %v6593
        %v6613 = vsel %vm409, %v6603, %v6595
        %v6614 = vsel %vm409, %v6605, %v6597
        %v6615 = vsel %vm409, %v6607, %v6599
        %v6616 = vsel %vm420, %v6608, 0.0
        %v6617 = vsel %vm421, %v6612, 0.0
        %v6618 = vsel %vm420, %v6609, 0.0
        %v6619 = vsel %vm421, %v6613, 0.0
        %v6620 = vsel %vm420, %v6610, 0.0
        %v6621 = vsel %vm421, %v6614, 0.0
        %v6622 = vsel %vm420, %v6611, 0.0
        %v6623 = vsel %vm421, %v6615, 0.0
        %6624 = vrot.lane.b32.xlu0 %v6428, 112
        %v6625 = vpop.permute.xlu0 %6624
        %6626 = vrot.lane.b32.xlu0 %v6430, 112
        %v6627 = vpop.permute.xlu0 %6626
        %6628 = vrot.lane.b32.xlu0 %v1178, 112
        %v6629 = vpop.permute.xlu0 %6628
        %6630 = vrot.lane.b32.xlu0 %v1180, 112
        %v6631 = vpop.permute.xlu0 %6630
        %6632 = vrot.lane.b32.xlu0 %v6429, 112
        %v6633 = vpop.permute.xlu0 %6632
        %6634 = vrot.lane.b32.xlu0 %v6431, 112
        %v6635 = vpop.permute.xlu0 %6634
        %6636 = vrot.lane.b32.xlu0 %v1179, 112
        %v6637 = vpop.permute.xlu0 %6636
        %6638 = vrot.lane.b32.xlu0 %v1181, 112
        %v6639 = vpop.permute.xlu0 %6638
        %v6640 = vsel %vm434, %v6625, %v6633
        %v6641 = vsel %vm434, %v6627, %v6635
        %v6642 = vsel %vm434, %v6629, %v6637
        %v6643 = vsel %vm434, %v6631, %v6639
        %v6644 = vsel %vm434, %v6633, %v6625
        %v6645 = vsel %vm434, %v6635, %v6627
        %v6646 = vsel %vm434, %v6637, %v6629
        %v6647 = vsel %vm434, %v6639, %v6631
        %v6648 = vsel %vm441, %v6640, 0.0
        %v6649 = vsel %vm442, %v6644, 0.0
        %v6650 = vsel %vm441, %v6641, 0.0
        %v6651 = vsel %vm442, %v6645, 0.0
        %v6652 = vsel %vm441, %v6642, 0.0
        %v6653 = vsel %vm442, %v6646, 0.0
        %v6654 = vsel %vm441, %v6643, 0.0
        %v6655 = vsel %vm442, %v6647, 0.0
        %6656 = vrot.lane.b32.xlu0 %v6428, 111
        %v6657 = vpop.permute.xlu0 %6656
        %6658 = vrot.lane.b32.xlu0 %v6430, 111
        %v6659 = vpop.permute.xlu0 %6658
        %6660 = vrot.lane.b32.xlu0 %v1178, 111
        %v6661 = vpop.permute.xlu0 %6660
        %6662 = vrot.lane.b32.xlu0 %v1180, 111
        %v6663 = vpop.permute.xlu0 %6662
        %6664 = vrot.lane.b32.xlu0 %v6429, 111
        %v6665 = vpop.permute.xlu0 %6664
        %6666 = vrot.lane.b32.xlu0 %v6431, 111
        %v6667 = vpop.permute.xlu0 %6666
        %6668 = vrot.lane.b32.xlu0 %v1179, 111
        %v6669 = vpop.permute.xlu0 %6668
        %6670 = vrot.lane.b32.xlu0 %v1181, 111
        %v6671 = vpop.permute.xlu0 %6670
        %v6672 = vsel %vm455, %v6657, %v6665
        %v6673 = vsel %vm455, %v6659, %v6667
        %v6674 = vsel %vm455, %v6661, %v6669
        %v6675 = vsel %vm455, %v6663, %v6671
        %v6676 = vsel %vm455, %v6665, %v6657
        %v6677 = vsel %vm455, %v6667, %v6659
        %v6678 = vsel %vm455, %v6669, %v6661
        %v6679 = vsel %vm455, %v6671, %v6663
        %v6680 = vsel %vm464, %v6672, 0.0
        %v6681 = vsel %vm465, %v6676, 0.0
        %v6682 = vsel %vm464, %v6673, 0.0
        %v6683 = vsel %vm465, %v6677, 0.0
        %v6684 = vsel %vm464, %v6674, 0.0
        %v6685 = vsel %vm465, %v6678, 0.0
        %v6686 = vsel %vm464, %v6675, 0.0
        %v6687 = vsel %vm465, %v6679, 0.0
        %v6688 = vld [vmem:[%s5] sm:$0xff]
        %v6689 = vld [vmem:[%s5 + $0x8] sm:$0xff]
        %v6690 = vld [vmem:[%s5 + $0x10] sm:$0xff]
        %v6691 = vld [vmem:[%s5 + $0x18] sm:$0xff]
        %v6692 = vld [vmem:[%s5 + $0x20] sm:$0xff]
        %v6693 = vld [vmem:[%s5 + $0x28] sm:$0xff]
        %v6694 = vld [vmem:[%s6] sm:$0xff]
        %v6695 = vld [vmem:[%s6 + $0x8] sm:$0xff]
        %6697 = vset.pattern.permute.xlu0 0
        %6698 = vperm.xlu0 %6697, %v6694
        %v6699 = vpop.permute.xlu0 %6698
        %6702 = vset.pattern.permute.xlu0 0
        %6703 = vperm.xlu0 %6702, %v6695
        %v6704 = vpop.permute.xlu0 %6703
        %vm6706 = vcmask 261120
        %v6708 = vsel %vm6706, %v6690, 0
        %v6711 = vsel %vm6706, %v6693, 0
        %6713 = vmatprep.subr.mxu0 %v6457
        %6714 = vmatpush1.msra.mxu0 %v6456
        %6715 = vmatprep.subr.mxu0 %v6459
        %6716 = vmatpush1.msra.mxu0 %v6458
        %6717 = vmatprep.subr.mxu0 %v6461
        %6718 = vmatpush1.msra.mxu0 %v6460
        %6719 = vmatprep.subr.mxu0 %v6463
        %6720 = vmatpush1.msra.mxu0 %v6462
        %6721 = vmatprep.subr.mxu0 %v6489
        %6722 = vmatpush1.msra.mxu0 %v6488
        %6723 = vmatprep.subr.mxu0 %v6491
        %6724 = vmatpush1.msra.mxu0 %v6490
        %6725 = vmatprep.subr.mxu0 %v6493
        %6726 = vmatpush1.msra.mxu0 %v6492
        %6727 = vmatprep.subr.mxu0 %v6495
        %6728 = vmatpush1.msra.mxu0 %v6494
        %6729 = vmatprep.subr.mxu0 %v6521
        %6730 = vmatpush1.msra.mxu0 %v6520
        %6731 = vmatprep.subr.mxu0 %v6523
        %6732 = vmatpush1.msra.mxu0 %v6522
        %6733 = vmatprep.subr.mxu0 %v6525
        %6734 = vmatpush1.msra.mxu0 %v6524
        %6735 = vmatprep.subr.mxu0 %v6527
        %6736 = vmatpush1.msra.mxu0 %v6526
        %6737 = vmatprep.subr.mxu0 %v6553
        %6738 = vmatpush1.msra.mxu0 %v6552
        %6739 = vmatprep.subr.mxu0 %v6555
        %6740 = vmatpush1.msra.mxu0 %v6554
        %6741 = vmatprep.subr.mxu0 %v6557
        %6742 = vmatpush1.msra.mxu0 %v6556
        %6743 = vmatprep.subr.mxu0 %v6559
        %6744 = vmatpush1.msra.mxu0 %v6558
        %6745 = vmatprep.subr.mxu0 %v6429
        %6746 = vmatpush1.msra.mxu0 %v6428
        %6747 = vmatprep.subr.mxu0 %v6431
        %6748 = vmatpush1.msra.mxu0 %v6430
        %6749 = vmatprep.subr.mxu0 %v1179
        %6750 = vmatpush1.msra.mxu0 %v1178
        %6751 = vmatprep.subr.mxu0 %v1181
        %6752 = vmatpush1.msra.mxu0 %v1180
        %6753 = vmatprep.subr.mxu0 %v6585
        %6754 = vmatpush1.msra.mxu0 %v6584
        %6755 = vmatprep.subr.mxu0 %v6587
        %6756 = vmatpush1.msra.mxu0 %v6586
        %6757 = vmatprep.subr.mxu0 %v6589
        %6758 = vmatpush1.msra.mxu0 %v6588
        %6759 = vmatprep.subr.mxu0 %v6591
        %6760 = vmatpush1.msra.mxu0 %v6590
        %6761 = vmatprep.subr.mxu0 %v6617
        %6762 = vmatpush1.msra.mxu0 %v6616
        %6763 = vmatprep.subr.mxu0 %v6619
        %6764 = vmatpush1.msra.mxu0 %v6618
        %6765 = vmatprep.subr.mxu0 %v6621
        %6766 = vmatpush1.msra.mxu0 %v6620
        %6767 = vmatprep.subr.mxu0 %v6623
        %6768 = vmatpush1.msra.mxu0 %v6622
        %6769 = vmatprep.subr.mxu0 %v6649
        %6770 = vmatpush1.msra.mxu0 %v6648
        %6771 = vmatprep.subr.mxu0 %v6651
        %6772 = vmatpush1.msra.mxu0 %v6650
        %6773 = vmatprep.subr.mxu0 %v6653
        %6774 = vmatpush1.msra.mxu0 %v6652
        %6775 = vmatprep.subr.mxu0 %v6655
        %6776 = vmatpush1.msra.mxu0 %v6654
        %6777 = vmatprep.mubr.f32.mxu0 %v6689
        %6778 = vmatmul.mubr.f32.gmra.mrb[0].mxu0 %v6688
        %v6779 = vpop.f32.mrb[0].mxu0
        %v6780 = vadd.f32 %v6699, %v6779
        %v6781 = vpop.f32.mrb[0].mxu0
        %v6782 = vadd.f32 %v6699, %v6781
        %6783 = vmatprep.mubr.f32.mxu0 %v6692
        %6784 = vmatmul.mubr.f32.gmra.mrb[0].mxu0 %v6691
        %v6785 = vpop.f32.mrb[0].mxu0
        %v6786 = vadd.f32 %v6704, %v6785
        %v6787 = vpop.f32.mrb[0].mxu0
        %v6788 = vadd.f32 %v6704, %v6787
        %6789 = vdwg.mxu0
        %6790 = vmatprep.subr.mxu0 %v6681
        %6791 = vmatpush1.msra.mxu0 %v6680
        %6792 = vmatprep.subr.mxu0 %v6683
        %6793 = vmatpush1.msra.mxu0 %v6682
        %6794 = vmatprep.subr.mxu0 %v6685
        %6795 = vmatpush1.msra.mxu0 %v6684
        %6796 = vmatprep.subr.mxu0 %v6687
        %6797 = vmatpush1.msra.mxu0 %v6686
        %6798 = vmatprep.subr.mxu0 0.0
        %6799 = vmatpush1.msra.mxu0 0.0
        %6800 = vmatprep.subr.mxu0 0.0
        %6801 = vmatpush1.msra.mxu0 0.0
        %6802 = vmatprep.subr.mxu0 0.0
        %6803 = vmatpush1.msra.mxu0 0.0
        %6804 = vmatprep.subr.mxu0 0.0
        %6805 = vmatpush1.msra.mxu0 0.0
        %6806 = vmatprep.subr.mxu0 0.0
        %6807 = vmatpush1.msra.mxu0 0.0
        %6808 = vmatprep.subr.mxu0 0.0
        %6809 = vmatpush1.msra.mxu0 0.0
        %6810 = vmatprep.subr.mxu0 0.0
        %6811 = vmatpush1.msra.mxu0 0.0
        %6812 = vmatprep.subr.mxu0 0.0
        %6813 = vmatpush1.msra.mxu0 0.0
        %6814 = vmatprep.subr.mxu0 0.0
        %6815 = vmatpush1.msra.mxu0 0.0
        %6816 = vmatprep.subr.mxu0 0.0
        %6817 = vmatpush1.msra.mxu0 0.0
        %6818 = vmatprep.subr.mxu0 0.0
        %6819 = vmatpush1.msra.mxu0 0.0
        %6820 = vmatprep.subr.mxu0 0.0
        %6821 = vmatpush1.msra.mxu0 0.0
        %6822 = vmatprep.subr.mxu0 0.0
        %6823 = vmatpush1.msra.mxu0 0.0
        %6824 = vmatprep.subr.mxu0 0.0
        %6825 = vmatpush1.msra.mxu0 0.0
        %6826 = vmatprep.subr.mxu0 0.0
        %6827 = vmatpush1.msra.mxu0 0.0
        %6828 = vmatprep.subr.mxu0 0.0
        %6829 = vmatpush1.msra.mxu0 0.0
        %6830 = vmatprep.subr.mxu0 0.0
        %6831 = vmatpush1.msra.mxu0 0.0
        %6832 = vmatprep.subr.mxu0 0.0
        %6833 = vmatpush1.msra.mxu0 0.0
        %6834 = vmatprep.subr.mxu0 0.0
        %6835 = vmatpush1.msra.mxu0 0.0
        %6836 = vmatprep.subr.mxu0 0.0
        %6837 = vmatpush1.msra.mxu0 0.0
        %6838 = vmatprep.subr.mxu0 0.0
        %6839 = vmatpush1.msra.mxu0 0.0
        %6840 = vmatprep.subr.mxu0 0.0
        %6841 = vmatpush1.msra.mxu0 0.0
        %6842 = vmatprep.subr.mxu0 0.0
        %6843 = vmatpush1.msra.mxu0 0.0
        %6844 = vmatprep.subr.mxu0 0.0
        %6845 = vmatpush1.msra.mxu0 0.0
        %6846 = vmatprep.subr.mxu0 0.0
        %6847 = vmatpush1.msra.mxu0 0.0
        %6848 = vmatprep.subr.mxu0 0.0
        %6849 = vmatpush1.msra.mxu0 0.0
        %6850 = vmatprep.subr.mxu0 0.0
        %6851 = vmatpush1.msra.mxu0 0.0
        %6852 = vmatprep.subr.mxu0 0.0
        %6853 = vmatpush1.msra.mxu0 0.0
        %6854 = vmatprep.mubr.f32.mxu0 0.0
        %6855 = vmatmul.mubr.f32.gmra.mrb[0].mxu0 %v6708
        %v6856 = vpop.f32.mrb[0].mxu0
        %v6857 = vadd.f32 %v6780, %v6856
        %v6858 = vpop.f32.mrb[0].mxu0
        %v6859 = vadd.f32 %v6782, %v6858
        %6860 = vmatprep.mubr.f32.mxu0 0.0
        %6861 = vmatmul.mubr.f32.gmra.mrb[0].mxu0 %v6711
        %v6862 = vpop.f32.mrb[0].mxu0
        %v6863 = vadd.f32 %v6786, %v6862
        %v6864 = vpop.f32.mrb[0].mxu0
        %v6865 = vadd.f32 %v6788, %v6864
        %6866 = vdwg.mxu0
        %v6867 = vmax.f32 %v6857, 0.0
        %v6868 = vmax.f32 %v6859, 0.0
        %v6869 = vmax.f32 %v6863, 0.0
        %v6870 = vmax.f32 %v6865, 0.0
        %6871 = vst [vmem:[%s271] sm:$0xff] %v6867
        %6872 = vst [vmem:[%s271 + $0x8] sm:$0xff] %v6868
        %6873 = vst [vmem:[%s271 + $0x10] sm:$0xff] %v6869
        %6874 = vst [vmem:[%s271 + $0x18] sm:$0xff] %v6870
        %s6875 = sand.u32 %s181, 1
        %s6876 = scalar_lea.sflag [#allocation3], %s6875
        %s6877 = sand.u32 %s181, 1
        %s6878 = smul.addr %s6877, 32
        %s6879 = scalar_lea.vmem [#allocation2], %s6878
        // Predicated region
        $region49: #{tpu_custom_call.1} parent=47 // pred_check
          %p6880 = pneg %p191
        $region50: #{tpu_custom_call.1} parent=47 // pred_check_branch
          %6882 = sbr.rel (%p6880) target = $region52
        $region51: #{tpu_custom_call.1} parent=47 // pred_region
          %s6884 = ssub.s32 512, 512
          %6885 = vsyncadd %s6876, %s6884
          %s6886 = smul.addr %s21, 4
          %s6887 = smul.addr %s6886, 128
          %s6888 = scalar_lea.hbm %s7, %s6887
          %s6889 = sshll.u32 %s6879, 4
          %s6890 = int_to_ptr.vmem [resolvable:$true] %s6889
          %6895 = dma.vmem_to_hbm [thread:$0]  %s6890, 512, %s6888, %s6876, 256, 256, 16
        $region52: #{tpu_custom_call.1} parent=47 // pred_fallthru
          _
      $region48: #{tpu_custom_call.1} parent=5 // pred_fallthru
        _
      %p6896 = scmp.le.s32.totalorder 2, %s16
      // Predicated region
      $region53: #{tpu_custom_call.1} parent=5 // pred_check
        %p6897 = pneg %p6896
      $region54: #{tpu_custom_call.1} parent=5 // pred_check_branch
        %6899 = sbr.rel (%p6897) target = $region56
      $region55: #{tpu_custom_call.1} parent=5 // pred_region
        %s6900 = ssub.s32 %s16, 2
        // Predicated region
        $region57: #{tpu_custom_call.1} parent=55 // pred_check
          %p6901 = pneg %p197
        $region58: #{tpu_custom_call.1} parent=55 // pred_check_branch
          %6903 = sbr.rel (%p6901) target = $region60
        $region59: #{tpu_custom_call.1} parent=55 // pred_region
          %s6904 = sand.u32 %s182, 1
          %s6905 = scalar_lea.sflag [#allocation3], %s6904
          %s6906 = sand.u32 %s182, 1
          %s6907 = smul.addr %s6906, 32
          %s6908 = scalar_lea.vmem [#allocation2], %s6907
          %6909 = dma.done %s6905, 512
        $region60: #{tpu_custom_call.1} parent=55 // pred_fallthru
          _
      $region56: #{tpu_custom_call.1} parent=5 // pred_fallthru
        _
    $region6: #{tpu_custom_call.1} parent=1 // loop_footer
      %s20 = sadd.s32 1, %s16
    $region7: #{tpu_custom_call.1} parent=1 // loop_footer_branch
      %15 = sbr.rel target = $region3
    $region8: #{tpu_custom_call.1} parent=1 // loop_exit
      _
    %6910 = vsyncpa [#allocation3], 1
    %s6911 = scalar_lea.sflag [#allocation3], 1
    %6912 = vsyncpa %s6911, 1

</llo_original>
